<compile_context>
chip_gen: v6e
topology: v6e:2x2x1
jax: 0.10.0
libtpu: 0.0.40
codegen_flags: <defaults>
</compile_context>

<pallas_src>
import jax
import jax.numpy as jnp
import numpy as np
from jax.experimental import pallas as pl
from jax.experimental.pallas import tpu as pltpu

N_STEPS = 8     # model.n_steps
HIDDEN = 32     # synthetic denoiser hidden width
C = 3           # x = randn(n, 3, H, W) -> 3-channel images


def ddpm_kernel(inv_sa_ref, coef_sa_ref, sqrt_beta_ref,        # SMEM f32[n_steps]
                x0_ref,                                        # [C, TN]      x_T seed
                base_ref,                                      # [HIDDEN, TN] hoisted Wp^T@P + Ws^T@S + b1
                noise_ref,                                     # [n_steps, C, TN]
                temb_ref,                                      # [n_steps, HIDDEN, 1]
                wx_ref,                                        # [C, HIDDEN, 1]
                w2_ref,                                        # [HIDDEN, C, 1]
                b2_ref,                                        # [C, 1]
                x_out_ref):                                    # [C, TN]
    n_steps = noise_ref.shape[0]
    c_dim = x0_ref.shape[0]
    hidden = base_ref.shape[0]

    x = x0_ref[...]                                  # [C, TN]
    base = base_ref[...]                             # [HIDDEN, TN]
    b2c = b2_ref[...]                                # [C, 1]

    # Hoist the (tiny) weight loads out of the unrolled time loop.
    wx_cols = [wx_ref[c] for c in range(c_dim)]      # each [HIDDEN, 1]
    w2_cols = [w2_ref[k] for k in range(hidden)]     # each [C, 1]

    # reversed(range(n_steps)) -- fully unrolled (n_steps is small & static).
    for step in range(n_steps):
        t = n_steps - 1 - step

        # hidden layer: h = relu(base + Wx^T @ x + temb[t]); K=3 done as
        # broadcast FMAs on the VPU ([HIDDEN,1] * [1,TN] outer products).
        h = base + temb_ref[t]
        for c in range(c_dim):
            h = h + wx_cols[c] * x[c:c + 1, :]
        h = jnp.maximum(h, 0.0)

        # output layer: noise_hat = W2^T @ h + b2 as HIDDEN broadcast FMAs.
        nh = b2c + w2_cols[0] * h[0:1, :]
        for k in range(1, hidden):
            nh = nh + w2_cols[k] * h[k:k + 1, :]

        # DDPM update, multiply-only schedule constants:
        #   x = x/sqrt(alpha) - (coef/sqrt(alpha))*noise_hat + sqrt(beta)*noise
        x = (x * inv_sa_ref[t]
             - coef_sa_ref[t] * nh
             + sqrt_beta_ref[t] * noise_ref[t])

    x_out_ref[...] = x


def ddpm_sample(prevs_nchw, subseq_nchw, x0_nchw, noise_seq, temb,
                wp, wx, ws, b1, w2, b2,
                coef, sqrt_alpha, sqrt_beta, *, tile_n=None):
    B, Cc, H, W = prevs_nchw.shape
    n_steps = int(coef.shape[0])
    hidden = int(wp.shape[1])
    N = B * H * W

    # ---- lane-dense (pixel-last) layout: NCHW -> [C, B*H*W] ----
    def to_cn(a):
        return jnp.transpose(a, (1, 0, 2, 3)).reshape(Cc, N)

    prevs_cn = to_cn(prevs_nchw)
    subseq_cn = to_cn(subseq_nchw)
    x0_cn = to_cn(x0_nchw)
    noise_cn = jnp.transpose(noise_seq, (0, 2, 1, 3, 4)).reshape(n_steps, Cc, N)

    # Hoisted time-invariant half of the denoiser (computed once, plain XLA).
    base = wp.T @ prevs_cn + ws.T @ subseq_cn + b1.reshape(hidden, 1)   # [HIDDEN, N]

    # Weights reshaped so the contraction index is a leading dim (clean
    # leading-axis indexing inside the kernel, lane dim stays dense/broadcast).
    wx_r = wx[:, :, None]              # [C, HIDDEN, 1]
    w2_r = w2[:, :, None]              # [HIDDEN, C, 1]
    b2_r = b2.reshape(Cc, 1)           # [C, 1]
    temb_r = temb.reshape(n_steps, hidden, 1)

    # Multiply-only schedule constants (SMEM).
    inv_sqrt_alpha = (1.0 / sqrt_alpha).astype(jnp.float32)
    coef_over_sa = (coef / sqrt_alpha).astype(jnp.float32)
    sqrt_beta = sqrt_beta.astype(jnp.float32)

    # ---- pixel tiling on the lane axis (multiple of 128, pad N up) ----
    if tile_n is None:
        tile_n = min(16384, 128 * pl.cdiv(N, 128))
    assert tile_n % 128 == 0
    n_tiles = pl.cdiv(N, tile_n)
    n_pad = n_tiles * tile_n
    pad = n_pad - N
    if pad:
        x0_cn = jnp.pad(x0_cn, ((0, 0), (0, pad)))
        base = jnp.pad(base, ((0, 0), (0, pad)))
        noise_cn = jnp.pad(noise_cn, ((0, 0), (0, 0), (0, pad)))

    smem = pl.BlockSpec(memory_space=pltpu.MemorySpace.SMEM)
    tile2 = lambda j: (0, j)
    const2 = lambda j: (0, 0)

    out = pl.pallas_call(
        ddpm_kernel,
        out_shape=jax.ShapeDtypeStruct((Cc, n_pad), jnp.float32),
        grid=(n_tiles,),
        in_specs=[
            smem, smem, smem,                                            # schedule scalars
            pl.BlockSpec((Cc, tile_n), tile2),                           # x_T seed
            pl.BlockSpec((hidden, tile_n), tile2),                       # hoisted base
            pl.BlockSpec((n_steps, Cc, tile_n), lambda j: (0, 0, j)),    # noise slab
            pl.BlockSpec((n_steps, hidden, 1), lambda j: (0, 0, 0)),     # temb (resident)
            pl.BlockSpec((Cc, hidden, 1), lambda j: (0, 0, 0)),          # Wx (per-channel cols)
            pl.BlockSpec((hidden, Cc, 1), lambda j: (0, 0, 0)),          # W2 (per-hidden cols)
            pl.BlockSpec((Cc, 1), const2),                               # b2
        ],
        out_specs=pl.BlockSpec((Cc, tile_n), tile2),
        compiler_params=pltpu.CompilerParams(
            dimension_semantics=("parallel",)),
    )(inv_sqrt_alpha, coef_over_sa, sqrt_beta,
      x0_cn, base, noise_cn, temb_r, wx_r, w2_r, b2_r)

    out = out[:, :N]                                    # drop pixel padding
    return jnp.transpose(out.reshape(Cc, B, H, W), (1, 0, 2, 3))


if __name__ == "__main__":
    # Full-f32 matmuls so wrapper/XLA reference and kernel agree tightly.
    jax.config.update("jax_default_matmul_precision", "highest")

    key = jax.random.PRNGKey(0)
    B, H, W = 2, 16, 16
    keys = jax.random.split(key, 9)

    prevs = jax.random.normal(keys[0], (B, C, H, W), jnp.float32)
    subseq = jax.random.normal(keys[1], (B, C, H, W), jnp.float32)
    x0 = jax.random.normal(keys[2], (B, C, H, W), jnp.float32)        # x_T
    noise_seq = jax.random.normal(keys[3], (N_STEPS, B, C, H, W), jnp.float32)
    noise_seq = noise_seq.at[0].set(0.0)                               # torch: zeros at t == 0

    # synthetic denoiser weights (deterministic init)
    wp = 0.1 * jax.random.normal(keys[4], (C, HIDDEN), jnp.float32)
    wx = 0.1 * jax.random.normal(keys[5], (C, HIDDEN), jnp.float32)
    ws = 0.1 * jax.random.normal(keys[6], (C, HIDDEN), jnp.float32)
    b1 = jnp.zeros((HIDDEN,), jnp.float32)
    w2 = 0.1 * jax.random.normal(keys[7], (HIDDEN, C), jnp.float32)
    b2 = jnp.zeros((C,), jnp.float32)
    temb = 0.1 * jax.random.normal(keys[8], (N_STEPS, HIDDEN), jnp.float32)

    # DDPM schedule buffers (mirrors __init__: linspace / cumprod / sqrt)
    beta = jnp.linspace(0.0001, 0.02, N_STEPS).astype(jnp.float32)
    alpha = 1.0 - beta
    alpha_cumprod = jnp.cumprod(alpha)
    sqrt_1m_alpha_cumprod = jnp.sqrt(1.0 - alpha_cumprod)
    coef = beta / sqrt_1m_alpha_cumprod
    sqrt_alpha = jnp.sqrt(alpha)
    sqrt_beta = jnp.sqrt(beta)

    x = ddpm_sample(prevs, subseq, x0, noise_seq, temb,
                    wp, wx, ws, b1, w2, b2,
                    coef, sqrt_alpha, sqrt_beta, tile_n=256)   # 2 pixel tiles
    jax.block_until_ready(x)
    assert x.shape == (B, C, H, W) and x.dtype == jnp.float32

    # ---- pure-JAX reference (same synthetic denoiser, original update form) ----
    def reference():
        N = B * H * W
        tf = lambda a: jnp.transpose(a, (0, 2, 3, 1)).reshape(N, C)
        P, S = tf(prevs), tf(subseq)
        xx = tf(x0)
        for i in reversed(range(N_STEPS)):
            h = jnp.maximum(P @ wp + xx @ wx + S @ ws + b1[None, :] + temb[i][None, :], 0.0)
            nh = h @ w2 + b2[None, :]
            nz = tf(noise_seq[i])
            xx = (xx - coef[i] * nh) / sqrt_alpha[i] + sqrt_beta[i] * nz
        return jnp.transpose(xx.reshape(B, H, W, C), (0, 3, 1, 2))

    ref = reference()
    np.testing.assert_allclose(np.asarray(x), np.asarray(ref), rtol=1e-3, atol=1e-3)
    print("KERNEL_OK")
</pallas_src>

<mosaic_0001>
module attributes {stable_mosaic.version = 11 : i64} {
  func.func @ddpm_kernel(%arg0: i32, %arg1: memref<8xf32, #tpu.memory_space<smem>>, %arg2: memref<8xf32, #tpu.memory_space<smem>>, %arg3: memref<8xf32, #tpu.memory_space<smem>>, %arg4: memref<3x256xf32, #tpu.memory_space<vmem>>, %arg5: memref<32x256xf32, #tpu.memory_space<vmem>>, %arg6: memref<8x3x256xf32, #tpu.memory_space<vmem>>, %arg7: memref<8x32x1xf32, #tpu.memory_space<vmem>>, %arg8: memref<3x32x1xf32, #tpu.memory_space<vmem>>, %arg9: memref<32x3x1xf32, #tpu.memory_space<vmem>>, %arg10: memref<3x1xf32, #tpu.memory_space<vmem>>, %arg11: memref<3x256xf32, #tpu.memory_space<vmem>>) attributes {dimension_semantics = [#tpu.dimension_semantics<parallel>], iteration_bounds = array<i64: 2>, scalar_prefetch = 0 : i64, scratch_operands = 0 : i64, tpu.core_type = #tpu.core_type<tc>, window_params = [{transform_indices = @transform_0, window_bounds = array<i64: 8>}, {transform_indices = @transform_1, window_bounds = array<i64: 8>}, {transform_indices = @transform_2, window_bounds = array<i64: 8>}, {transform_indices = @transform_3, window_bounds = array<i64: 3, 256>}, {transform_indices = @transform_4, window_bounds = array<i64: 32, 256>}, {transform_indices = @transform_5, window_bounds = array<i64: 8, 3, 256>}, {pipeline_mode = #tpu.pipeline_mode<synchronous>, transform_indices = @transform_6, window_bounds = array<i64: 8, 32, 1>}, {pipeline_mode = #tpu.pipeline_mode<synchronous>, transform_indices = @transform_7, window_bounds = array<i64: 3, 32, 1>}, {pipeline_mode = #tpu.pipeline_mode<synchronous>, transform_indices = @transform_8, window_bounds = array<i64: 32, 3, 1>}, {pipeline_mode = #tpu.pipeline_mode<synchronous>, transform_indices = @transform_9, window_bounds = array<i64: 3, 1>}, {transform_indices = @transform_10, window_bounds = array<i64: 3, 256>}]} {
    %c0 = arith.constant 0 : index
    %c0_0 = arith.constant 0 : index
    %0 = vector.load %arg4[%c0, %c0_0] : memref<3x256xf32, #tpu.memory_space<vmem>>, vector<3x256xf32>
    %c0_1 = arith.constant 0 : index
    %c0_2 = arith.constant 0 : index
    %1 = vector.load %arg5[%c0_1, %c0_2] : memref<32x256xf32, #tpu.memory_space<vmem>>, vector<32x256xf32>
    %c0_3 = arith.constant 0 : index
    %c0_4 = arith.constant 0 : index
    %2 = vector.load %arg10[%c0_3, %c0_4] : memref<3x1xf32, #tpu.memory_space<vmem>>, vector<3x1xf32>
    %c0_5 = arith.constant 0 : index
    %c0_6 = arith.constant 0 : index
    %c0_7 = arith.constant 0 : index
    %3 = vector.load %arg8[%c0_5, %c0_6, %c0_7] : memref<3x32x1xf32, #tpu.memory_space<vmem>>, vector<1x32x1xf32>
    %4 = vector.shape_cast %3 : vector<1x32x1xf32> to vector<32x1xf32>
    %c1 = arith.constant 1 : index
    %c0_8 = arith.constant 0 : index
    %c0_9 = arith.constant 0 : index
    %5 = vector.load %arg8[%c1, %c0_8, %c0_9] : memref<3x32x1xf32, #tpu.memory_space<vmem>>, vector<1x32x1xf32>
    %6 = vector.shape_cast %5 : vector<1x32x1xf32> to vector<32x1xf32>
    %c2 = arith.constant 2 : index
    %c0_10 = arith.constant 0 : index
    %c0_11 = arith.constant 0 : index
    %7 = vector.load %arg8[%c2, %c0_10, %c0_11] : memref<3x32x1xf32, #tpu.memory_space<vmem>>, vector<1x32x1xf32>
    %8 = vector.shape_cast %7 : vector<1x32x1xf32> to vector<32x1xf32>
    %c0_12 = arith.constant 0 : index
    %c0_13 = arith.constant 0 : index
    %c0_14 = arith.constant 0 : index
    %9 = vector.load %arg9[%c0_12, %c0_13, %c0_14] : memref<32x3x1xf32, #tpu.memory_space<vmem>>, vector<1x3x1xf32>
    %10 = vector.shape_cast %9 : vector<1x3x1xf32> to vector<3x1xf32>
    %c1_15 = arith.constant 1 : index
    %c0_16 = arith.constant 0 : index
    %c0_17 = arith.constant 0 : index
    %11 = vector.load %arg9[%c1_15, %c0_16, %c0_17] : memref<32x3x1xf32, #tpu.memory_space<vmem>>, vector<1x3x1xf32>
    %12 = vector.shape_cast %11 : vector<1x3x1xf32> to vector<3x1xf32>
    %c2_18 = arith.constant 2 : index
    %c0_19 = arith.constant 0 : index
    %c0_20 = arith.constant 0 : index
    %13 = vector.load %arg9[%c2_18, %c0_19, %c0_20] : memref<32x3x1xf32, #tpu.memory_space<vmem>>, vector<1x3x1xf32>
    %14 = vector.shape_cast %13 : vector<1x3x1xf32> to vector<3x1xf32>
    %c3 = arith.constant 3 : index
    %c0_21 = arith.constant 0 : index
    %c0_22 = arith.constant 0 : index
    %15 = vector.load %arg9[%c3, %c0_21, %c0_22] : memref<32x3x1xf32, #tpu.memory_space<vmem>>, vector<1x3x1xf32>
    %16 = vector.shape_cast %15 : vector<1x3x1xf32> to vector<3x1xf32>
    %c4 = arith.constant 4 : index
    %c0_23 = arith.constant 0 : index
    %c0_24 = arith.constant 0 : index
    %17 = vector.load %arg9[%c4, %c0_23, %c0_24] : memref<32x3x1xf32, #tpu.memory_space<vmem>>, vector<1x3x1xf32>
    %18 = vector.shape_cast %17 : vector<1x3x1xf32> to vector<3x1xf32>
    %c5 = arith.constant 5 : index
    %c0_25 = arith.constant 0 : index
    %c0_26 = arith.constant 0 : index
    %19 = vector.load %arg9[%c5, %c0_25, %c0_26] : memref<32x3x1xf32, #tpu.memory_space<vmem>>, vector<1x3x1xf32>
    %20 = vector.shape_cast %19 : vector<1x3x1xf32> to vector<3x1xf32>
    %c6 = arith.constant 6 : index
    %c0_27 = arith.constant 0 : index
    %c0_28 = arith.constant 0 : index
    %21 = vector.load %arg9[%c6, %c0_27, %c0_28] : memref<32x3x1xf32, #tpu.memory_space<vmem>>, vector<1x3x1xf32>
    %22 = vector.shape_cast %21 : vector<1x3x1xf32> to vector<3x1xf32>
    %c7 = arith.constant 7 : index
    %c0_29 = arith.constant 0 : index
    %c0_30 = arith.constant 0 : index
    %23 = vector.load %arg9[%c7, %c0_29, %c0_30] : memref<32x3x1xf32, #tpu.memory_space<vmem>>, vector<1x3x1xf32>
    %24 = vector.shape_cast %23 : vector<1x3x1xf32> to vector<3x1xf32>
    %c8 = arith.constant 8 : index
    %c0_31 = arith.constant 0 : index
    %c0_32 = arith.constant 0 : index
    %25 = vector.load %arg9[%c8, %c0_31, %c0_32] : memref<32x3x1xf32, #tpu.memory_space<vmem>>, vector<1x3x1xf32>
    %26 = vector.shape_cast %25 : vector<1x3x1xf32> to vector<3x1xf32>
    %c9 = arith.constant 9 : index
    %c0_33 = arith.constant 0 : index
    %c0_34 = arith.constant 0 : index
    %27 = vector.load %arg9[%c9, %c0_33, %c0_34] : memref<32x3x1xf32, #tpu.memory_space<vmem>>, vector<1x3x1xf32>
    %28 = vector.shape_cast %27 : vector<1x3x1xf32> to vector<3x1xf32>
    %c10 = arith.constant 10 : index
    %c0_35 = arith.constant 0 : index
    %c0_36 = arith.constant 0 : index
    %29 = vector.load %arg9[%c10, %c0_35, %c0_36] : memref<32x3x1xf32, #tpu.memory_space<vmem>>, vector<1x3x1xf32>
    %30 = vector.shape_cast %29 : vector<1x3x1xf32> to vector<3x1xf32>
    %c11 = arith.constant 11 : index
    %c0_37 = arith.constant 0 : index
    %c0_38 = arith.constant 0 : index
    %31 = vector.load %arg9[%c11, %c0_37, %c0_38] : memref<32x3x1xf32, #tpu.memory_space<vmem>>, vector<1x3x1xf32>
    %32 = vector.shape_cast %31 : vector<1x3x1xf32> to vector<3x1xf32>
    %c12 = arith.constant 12 : index
    %c0_39 = arith.constant 0 : index
    %c0_40 = arith.constant 0 : index
    %33 = vector.load %arg9[%c12, %c0_39, %c0_40] : memref<32x3x1xf32, #tpu.memory_space<vmem>>, vector<1x3x1xf32>
    %34 = vector.shape_cast %33 : vector<1x3x1xf32> to vector<3x1xf32>
    %c13 = arith.constant 13 : index
    %c0_41 = arith.constant 0 : index
    %c0_42 = arith.constant 0 : index
    %35 = vector.load %arg9[%c13, %c0_41, %c0_42] : memref<32x3x1xf32, #tpu.memory_space<vmem>>, vector<1x3x1xf32>
    %36 = vector.shape_cast %35 : vector<1x3x1xf32> to vector<3x1xf32>
    %c14 = arith.constant 14 : index
    %c0_43 = arith.constant 0 : index
    %c0_44 = arith.constant 0 : index
    %37 = vector.load %arg9[%c14, %c0_43, %c0_44] : memref<32x3x1xf32, #tpu.memory_space<vmem>>, vector<1x3x1xf32>
    %38 = vector.shape_cast %37 : vector<1x3x1xf32> to vector<3x1xf32>
    %c15 = arith.constant 15 : index
    %c0_45 = arith.constant 0 : index
    %c0_46 = arith.constant 0 : index
    %39 = vector.load %arg9[%c15, %c0_45, %c0_46] : memref<32x3x1xf32, #tpu.memory_space<vmem>>, vector<1x3x1xf32>
    %40 = vector.shape_cast %39 : vector<1x3x1xf32> to vector<3x1xf32>
    %c16 = arith.constant 16 : index
    %c0_47 = arith.constant 0 : index
    %c0_48 = arith.constant 0 : index
    %41 = vector.load %arg9[%c16, %c0_47, %c0_48] : memref<32x3x1xf32, #tpu.memory_space<vmem>>, vector<1x3x1xf32>
    %42 = vector.shape_cast %41 : vector<1x3x1xf32> to vector<3x1xf32>
    %c17 = arith.constant 17 : index
    %c0_49 = arith.constant 0 : index
    %c0_50 = arith.constant 0 : index
    %43 = vector.load %arg9[%c17, %c0_49, %c0_50] : memref<32x3x1xf32, #tpu.memory_space<vmem>>, vector<1x3x1xf32>
    %44 = vector.shape_cast %43 : vector<1x3x1xf32> to vector<3x1xf32>
    %c18 = arith.constant 18 : index
    %c0_51 = arith.constant 0 : index
    %c0_52 = arith.constant 0 : index
    %45 = vector.load %arg9[%c18, %c0_51, %c0_52] : memref<32x3x1xf32, #tpu.memory_space<vmem>>, vector<1x3x1xf32>
    %46 = vector.shape_cast %45 : vector<1x3x1xf32> to vector<3x1xf32>
    %c19 = arith.constant 19 : index
    %c0_53 = arith.constant 0 : index
    %c0_54 = arith.constant 0 : index
    %47 = vector.load %arg9[%c19, %c0_53, %c0_54] : memref<32x3x1xf32, #tpu.memory_space<vmem>>, vector<1x3x1xf32>
    %48 = vector.shape_cast %47 : vector<1x3x1xf32> to vector<3x1xf32>
    %c20 = arith.constant 20 : index
    %c0_55 = arith.constant 0 : index
    %c0_56 = arith.constant 0 : index
    %49 = vector.load %arg9[%c20, %c0_55, %c0_56] : memref<32x3x1xf32, #tpu.memory_space<vmem>>, vector<1x3x1xf32>
    %50 = vector.shape_cast %49 : vector<1x3x1xf32> to vector<3x1xf32>
    %c21 = arith.constant 21 : index
    %c0_57 = arith.constant 0 : index
    %c0_58 = arith.constant 0 : index
    %51 = vector.load %arg9[%c21, %c0_57, %c0_58] : memref<32x3x1xf32, #tpu.memory_space<vmem>>, vector<1x3x1xf32>
    %52 = vector.shape_cast %51 : vector<1x3x1xf32> to vector<3x1xf32>
    %c22 = arith.constant 22 : index
    %c0_59 = arith.constant 0 : index
    %c0_60 = arith.constant 0 : index
    %53 = vector.load %arg9[%c22, %c0_59, %c0_60] : memref<32x3x1xf32, #tpu.memory_space<vmem>>, vector<1x3x1xf32>
    %54 = vector.shape_cast %53 : vector<1x3x1xf32> to vector<3x1xf32>
    %c23 = arith.constant 23 : index
    %c0_61 = arith.constant 0 : index
    %c0_62 = arith.constant 0 : index
    %55 = vector.load %arg9[%c23, %c0_61, %c0_62] : memref<32x3x1xf32, #tpu.memory_space<vmem>>, vector<1x3x1xf32>
    %56 = vector.shape_cast %55 : vector<1x3x1xf32> to vector<3x1xf32>
    %c24 = arith.constant 24 : index
    %c0_63 = arith.constant 0 : index
    %c0_64 = arith.constant 0 : index
    %57 = vector.load %arg9[%c24, %c0_63, %c0_64] : memref<32x3x1xf32, #tpu.memory_space<vmem>>, vector<1x3x1xf32>
    %58 = vector.shape_cast %57 : vector<1x3x1xf32> to vector<3x1xf32>
    %c25 = arith.constant 25 : index
    %c0_65 = arith.constant 0 : index
    %c0_66 = arith.constant 0 : index
    %59 = vector.load %arg9[%c25, %c0_65, %c0_66] : memref<32x3x1xf32, #tpu.memory_space<vmem>>, vector<1x3x1xf32>
    %60 = vector.shape_cast %59 : vector<1x3x1xf32> to vector<3x1xf32>
    %c26 = arith.constant 26 : index
    %c0_67 = arith.constant 0 : index
    %c0_68 = arith.constant 0 : index
    %61 = vector.load %arg9[%c26, %c0_67, %c0_68] : memref<32x3x1xf32, #tpu.memory_space<vmem>>, vector<1x3x1xf32>
    %62 = vector.shape_cast %61 : vector<1x3x1xf32> to vector<3x1xf32>
    %c27 = arith.constant 27 : index
    %c0_69 = arith.constant 0 : index
    %c0_70 = arith.constant 0 : index
    %63 = vector.load %arg9[%c27, %c0_69, %c0_70] : memref<32x3x1xf32, #tpu.memory_space<vmem>>, vector<1x3x1xf32>
    %64 = vector.shape_cast %63 : vector<1x3x1xf32> to vector<3x1xf32>
    %c28 = arith.constant 28 : index
    %c0_71 = arith.constant 0 : index
    %c0_72 = arith.constant 0 : index
    %65 = vector.load %arg9[%c28, %c0_71, %c0_72] : memref<32x3x1xf32, #tpu.memory_space<vmem>>, vector<1x3x1xf32>
    %66 = vector.shape_cast %65 : vector<1x3x1xf32> to vector<3x1xf32>
    %c29 = arith.constant 29 : index
    %c0_73 = arith.constant 0 : index
    %c0_74 = arith.constant 0 : index
    %67 = vector.load %arg9[%c29, %c0_73, %c0_74] : memref<32x3x1xf32, #tpu.memory_space<vmem>>, vector<1x3x1xf32>
    %68 = vector.shape_cast %67 : vector<1x3x1xf32> to vector<3x1xf32>
    %c30 = arith.constant 30 : index
    %c0_75 = arith.constant 0 : index
    %c0_76 = arith.constant 0 : index
    %69 = vector.load %arg9[%c30, %c0_75, %c0_76] : memref<32x3x1xf32, #tpu.memory_space<vmem>>, vector<1x3x1xf32>
    %70 = vector.shape_cast %69 : vector<1x3x1xf32> to vector<3x1xf32>
    %c31 = arith.constant 31 : index
    %c0_77 = arith.constant 0 : index
    %c0_78 = arith.constant 0 : index
    %71 = vector.load %arg9[%c31, %c0_77, %c0_78] : memref<32x3x1xf32, #tpu.memory_space<vmem>>, vector<1x3x1xf32>
    %72 = vector.shape_cast %71 : vector<1x3x1xf32> to vector<3x1xf32>
    %c7_79 = arith.constant 7 : index
    %c0_80 = arith.constant 0 : index
    %c0_81 = arith.constant 0 : index
    %73 = vector.load %arg7[%c7_79, %c0_80, %c0_81] : memref<8x32x1xf32, #tpu.memory_space<vmem>>, vector<1x32x1xf32>
    %74 = vector.shape_cast %73 : vector<1x32x1xf32> to vector<32x1xf32>
    %75 = vector.broadcast %74 : vector<32x1xf32> to vector<32x256xf32>
    %76 = arith.addf %1, %75 : vector<32x256xf32>
    %77 = vector.extract_strided_slice %0 {offsets = [0, 0], sizes = [1, 256], strides = [1, 1]} : vector<3x256xf32> to vector<1x256xf32>
    %78 = vector.broadcast %4 : vector<32x1xf32> to vector<32x256xf32>
    %79 = vector.broadcast %77 : vector<1x256xf32> to vector<32x256xf32>
    %80 = arith.mulf %78, %79 : vector<32x256xf32>
    %81 = arith.addf %76, %80 : vector<32x256xf32>
    %82 = vector.extract_strided_slice %0 {offsets = [1, 0], sizes = [1, 256], strides = [1, 1]} : vector<3x256xf32> to vector<1x256xf32>
    %83 = vector.broadcast %6 : vector<32x1xf32> to vector<32x256xf32>
    %84 = vector.broadcast %82 : vector<1x256xf32> to vector<32x256xf32>
    %85 = arith.mulf %83, %84 : vector<32x256xf32>
    %86 = arith.addf %81, %85 : vector<32x256xf32>
    %87 = vector.extract_strided_slice %0 {offsets = [2, 0], sizes = [1, 256], strides = [1, 1]} : vector<3x256xf32> to vector<1x256xf32>
    %88 = vector.broadcast %8 : vector<32x1xf32> to vector<32x256xf32>
    %89 = vector.broadcast %87 : vector<1x256xf32> to vector<32x256xf32>
    %90 = arith.mulf %88, %89 : vector<32x256xf32>
    %91 = arith.addf %86, %90 : vector<32x256xf32>
    %cst = arith.constant 0.000000e+00 : f32
    %92 = vector.broadcast %cst : f32 to vector<32x256xf32>
    %93 = arith.maximumf %91, %92 : vector<32x256xf32>
    %94 = vector.extract_strided_slice %93 {offsets = [0, 0], sizes = [1, 256], strides = [1, 1]} : vector<32x256xf32> to vector<1x256xf32>
    %95 = vector.broadcast %10 : vector<3x1xf32> to vector<3x256xf32>
    %96 = vector.broadcast %94 : vector<1x256xf32> to vector<3x256xf32>
    %97 = arith.mulf %95, %96 : vector<3x256xf32>
    %98 = vector.broadcast %2 : vector<3x1xf32> to vector<3x256xf32>
    %99 = arith.addf %98, %97 : vector<3x256xf32>
    %100 = vector.extract_strided_slice %93 {offsets = [1, 0], sizes = [1, 256], strides = [1, 1]} : vector<32x256xf32> to vector<1x256xf32>
    %101 = vector.broadcast %12 : vector<3x1xf32> to vector<3x256xf32>
    %102 = vector.broadcast %100 : vector<1x256xf32> to vector<3x256xf32>
    %103 = arith.mulf %101, %102 : vector<3x256xf32>
    %104 = arith.addf %99, %103 : vector<3x256xf32>
    %105 = vector.extract_strided_slice %93 {offsets = [2, 0], sizes = [1, 256], strides = [1, 1]} : vector<32x256xf32> to vector<1x256xf32>
    %106 = vector.broadcast %14 : vector<3x1xf32> to vector<3x256xf32>
    %107 = vector.broadcast %105 : vector<1x256xf32> to vector<3x256xf32>
    %108 = arith.mulf %106, %107 : vector<3x256xf32>
    %109 = arith.addf %104, %108 : vector<3x256xf32>
    %110 = vector.extract_strided_slice %93 {offsets = [3, 0], sizes = [1, 256], strides = [1, 1]} : vector<32x256xf32> to vector<1x256xf32>
    %111 = vector.broadcast %16 : vector<3x1xf32> to vector<3x256xf32>
    %112 = vector.broadcast %110 : vector<1x256xf32> to vector<3x256xf32>
    %113 = arith.mulf %111, %112 : vector<3x256xf32>
    %114 = arith.addf %109, %113 : vector<3x256xf32>
    %115 = vector.extract_strided_slice %93 {offsets = [4, 0], sizes = [1, 256], strides = [1, 1]} : vector<32x256xf32> to vector<1x256xf32>
    %116 = vector.broadcast %18 : vector<3x1xf32> to vector<3x256xf32>
    %117 = vector.broadcast %115 : vector<1x256xf32> to vector<3x256xf32>
    %118 = arith.mulf %116, %117 : vector<3x256xf32>
    %119 = arith.addf %114, %118 : vector<3x256xf32>
    %120 = vector.extract_strided_slice %93 {offsets = [5, 0], sizes = [1, 256], strides = [1, 1]} : vector<32x256xf32> to vector<1x256xf32>
    %121 = vector.broadcast %20 : vector<3x1xf32> to vector<3x256xf32>
    %122 = vector.broadcast %120 : vector<1x256xf32> to vector<3x256xf32>
    %123 = arith.mulf %121, %122 : vector<3x256xf32>
    %124 = arith.addf %119, %123 : vector<3x256xf32>
    %125 = vector.extract_strided_slice %93 {offsets = [6, 0], sizes = [1, 256], strides = [1, 1]} : vector<32x256xf32> to vector<1x256xf32>
    %126 = vector.broadcast %22 : vector<3x1xf32> to vector<3x256xf32>
    %127 = vector.broadcast %125 : vector<1x256xf32> to vector<3x256xf32>
    %128 = arith.mulf %126, %127 : vector<3x256xf32>
    %129 = arith.addf %124, %128 : vector<3x256xf32>
    %130 = vector.extract_strided_slice %93 {offsets = [7, 0], sizes = [1, 256], strides = [1, 1]} : vector<32x256xf32> to vector<1x256xf32>
    %131 = vector.broadcast %24 : vector<3x1xf32> to vector<3x256xf32>
    %132 = vector.broadcast %130 : vector<1x256xf32> to vector<3x256xf32>
    %133 = arith.mulf %131, %132 : vector<3x256xf32>
    %134 = arith.addf %129, %133 : vector<3x256xf32>
    %135 = vector.extract_strided_slice %93 {offsets = [8, 0], sizes = [1, 256], strides = [1, 1]} : vector<32x256xf32> to vector<1x256xf32>
    %136 = vector.broadcast %26 : vector<3x1xf32> to vector<3x256xf32>
    %137 = vector.broadcast %135 : vector<1x256xf32> to vector<3x256xf32>
    %138 = arith.mulf %136, %137 : vector<3x256xf32>
    %139 = arith.addf %134, %138 : vector<3x256xf32>
    %140 = vector.extract_strided_slice %93 {offsets = [9, 0], sizes = [1, 256], strides = [1, 1]} : vector<32x256xf32> to vector<1x256xf32>
    %141 = vector.broadcast %28 : vector<3x1xf32> to vector<3x256xf32>
    %142 = vector.broadcast %140 : vector<1x256xf32> to vector<3x256xf32>
    %143 = arith.mulf %141, %142 : vector<3x256xf32>
    %144 = arith.addf %139, %143 : vector<3x256xf32>
    %145 = vector.extract_strided_slice %93 {offsets = [10, 0], sizes = [1, 256], strides = [1, 1]} : vector<32x256xf32> to vector<1x256xf32>
    %146 = vector.broadcast %30 : vector<3x1xf32> to vector<3x256xf32>
    %147 = vector.broadcast %145 : vector<1x256xf32> to vector<3x256xf32>
    %148 = arith.mulf %146, %147 : vector<3x256xf32>
    %149 = arith.addf %144, %148 : vector<3x256xf32>
    %150 = vector.extract_strided_slice %93 {offsets = [11, 0], sizes = [1, 256], strides = [1, 1]} : vector<32x256xf32> to vector<1x256xf32>
    %151 = vector.broadcast %32 : vector<3x1xf32> to vector<3x256xf32>
    %152 = vector.broadcast %150 : vector<1x256xf32> to vector<3x256xf32>
    %153 = arith.mulf %151, %152 : vector<3x256xf32>
    %154 = arith.addf %149, %153 : vector<3x256xf32>
    %155 = vector.extract_strided_slice %93 {offsets = [12, 0], sizes = [1, 256], strides = [1, 1]} : vector<32x256xf32> to vector<1x256xf32>
    %156 = vector.broadcast %34 : vector<3x1xf32> to vector<3x256xf32>
    %157 = vector.broadcast %155 : vector<1x256xf32> to vector<3x256xf32>
    %158 = arith.mulf %156, %157 : vector<3x256xf32>
    %159 = arith.addf %154, %158 : vector<3x256xf32>
    %160 = vector.extract_strided_slice %93 {offsets = [13, 0], sizes = [1, 256], strides = [1, 1]} : vector<32x256xf32> to vector<1x256xf32>
    %161 = vector.broadcast %36 : vector<3x1xf32> to vector<3x256xf32>
    %162 = vector.broadcast %160 : vector<1x256xf32> to vector<3x256xf32>
    %163 = arith.mulf %161, %162 : vector<3x256xf32>
    %164 = arith.addf %159, %163 : vector<3x256xf32>
    %165 = vector.extract_strided_slice %93 {offsets = [14, 0], sizes = [1, 256], strides = [1, 1]} : vector<32x256xf32> to vector<1x256xf32>
    %166 = vector.broadcast %38 : vector<3x1xf32> to vector<3x256xf32>
    %167 = vector.broadcast %165 : vector<1x256xf32> to vector<3x256xf32>
    %168 = arith.mulf %166, %167 : vector<3x256xf32>
    %169 = arith.addf %164, %168 : vector<3x256xf32>
    %170 = vector.extract_strided_slice %93 {offsets = [15, 0], sizes = [1, 256], strides = [1, 1]} : vector<32x256xf32> to vector<1x256xf32>
    %171 = vector.broadcast %40 : vector<3x1xf32> to vector<3x256xf32>
    %172 = vector.broadcast %170 : vector<1x256xf32> to vector<3x256xf32>
    %173 = arith.mulf %171, %172 : vector<3x256xf32>
    %174 = arith.addf %169, %173 : vector<3x256xf32>
    %175 = vector.extract_strided_slice %93 {offsets = [16, 0], sizes = [1, 256], strides = [1, 1]} : vector<32x256xf32> to vector<1x256xf32>
    %176 = vector.broadcast %42 : vector<3x1xf32> to vector<3x256xf32>
    %177 = vector.broadcast %175 : vector<1x256xf32> to vector<3x256xf32>
    %178 = arith.mulf %176, %177 : vector<3x256xf32>
    %179 = arith.addf %174, %178 : vector<3x256xf32>
    %180 = vector.extract_strided_slice %93 {offsets = [17, 0], sizes = [1, 256], strides = [1, 1]} : vector<32x256xf32> to vector<1x256xf32>
    %181 = vector.broadcast %44 : vector<3x1xf32> to vector<3x256xf32>
    %182 = vector.broadcast %180 : vector<1x256xf32> to vector<3x256xf32>
    %183 = arith.mulf %181, %182 : vector<3x256xf32>
    %184 = arith.addf %179, %183 : vector<3x256xf32>
    %185 = vector.extract_strided_slice %93 {offsets = [18, 0], sizes = [1, 256], strides = [1, 1]} : vector<32x256xf32> to vector<1x256xf32>
    %186 = vector.broadcast %46 : vector<3x1xf32> to vector<3x256xf32>
    %187 = vector.broadcast %185 : vector<1x256xf32> to vector<3x256xf32>
    %188 = arith.mulf %186, %187 : vector<3x256xf32>
    %189 = arith.addf %184, %188 : vector<3x256xf32>
    %190 = vector.extract_strided_slice %93 {offsets = [19, 0], sizes = [1, 256], strides = [1, 1]} : vector<32x256xf32> to vector<1x256xf32>
    %191 = vector.broadcast %48 : vector<3x1xf32> to vector<3x256xf32>
    %192 = vector.broadcast %190 : vector<1x256xf32> to vector<3x256xf32>
    %193 = arith.mulf %191, %192 : vector<3x256xf32>
    %194 = arith.addf %189, %193 : vector<3x256xf32>
    %195 = vector.extract_strided_slice %93 {offsets = [20, 0], sizes = [1, 256], strides = [1, 1]} : vector<32x256xf32> to vector<1x256xf32>
    %196 = vector.broadcast %50 : vector<3x1xf32> to vector<3x256xf32>
    %197 = vector.broadcast %195 : vector<1x256xf32> to vector<3x256xf32>
    %198 = arith.mulf %196, %197 : vector<3x256xf32>
    %199 = arith.addf %194, %198 : vector<3x256xf32>
    %200 = vector.extract_strided_slice %93 {offsets = [21, 0], sizes = [1, 256], strides = [1, 1]} : vector<32x256xf32> to vector<1x256xf32>
    %201 = vector.broadcast %52 : vector<3x1xf32> to vector<3x256xf32>
    %202 = vector.broadcast %200 : vector<1x256xf32> to vector<3x256xf32>
    %203 = arith.mulf %201, %202 : vector<3x256xf32>
    %204 = arith.addf %199, %203 : vector<3x256xf32>
    %205 = vector.extract_strided_slice %93 {offsets = [22, 0], sizes = [1, 256], strides = [1, 1]} : vector<32x256xf32> to vector<1x256xf32>
    %206 = vector.broadcast %54 : vector<3x1xf32> to vector<3x256xf32>
    %207 = vector.broadcast %205 : vector<1x256xf32> to vector<3x256xf32>
    %208 = arith.mulf %206, %207 : vector<3x256xf32>
    %209 = arith.addf %204, %208 : vector<3x256xf32>
    %210 = vector.extract_strided_slice %93 {offsets = [23, 0], sizes = [1, 256], strides = [1, 1]} : vector<32x256xf32> to vector<1x256xf32>
    %211 = vector.broadcast %56 : vector<3x1xf32> to vector<3x256xf32>
    %212 = vector.broadcast %210 : vector<1x256xf32> to vector<3x256xf32>
    %213 = arith.mulf %211, %212 : vector<3x256xf32>
    %214 = arith.addf %209, %213 : vector<3x256xf32>
    %215 = vector.extract_strided_slice %93 {offsets = [24, 0], sizes = [1, 256], strides = [1, 1]} : vector<32x256xf32> to vector<1x256xf32>
    %216 = vector.broadcast %58 : vector<3x1xf32> to vector<3x256xf32>
    %217 = vector.broadcast %215 : vector<1x256xf32> to vector<3x256xf32>
    %218 = arith.mulf %216, %217 : vector<3x256xf32>
    %219 = arith.addf %214, %218 : vector<3x256xf32>
    %220 = vector.extract_strided_slice %93 {offsets = [25, 0], sizes = [1, 256], strides = [1, 1]} : vector<32x256xf32> to vector<1x256xf32>
    %221 = vector.broadcast %60 : vector<3x1xf32> to vector<3x256xf32>
    %222 = vector.broadcast %220 : vector<1x256xf32> to vector<3x256xf32>
    %223 = arith.mulf %221, %222 : vector<3x256xf32>
    %224 = arith.addf %219, %223 : vector<3x256xf32>
    %225 = vector.extract_strided_slice %93 {offsets = [26, 0], sizes = [1, 256], strides = [1, 1]} : vector<32x256xf32> to vector<1x256xf32>
    %226 = vector.broadcast %62 : vector<3x1xf32> to vector<3x256xf32>
    %227 = vector.broadcast %225 : vector<1x256xf32> to vector<3x256xf32>
    %228 = arith.mulf %226, %227 : vector<3x256xf32>
    %229 = arith.addf %224, %228 : vector<3x256xf32>
    %230 = vector.extract_strided_slice %93 {offsets = [27, 0], sizes = [1, 256], strides = [1, 1]} : vector<32x256xf32> to vector<1x256xf32>
    %231 = vector.broadcast %64 : vector<3x1xf32> to vector<3x256xf32>
    %232 = vector.broadcast %230 : vector<1x256xf32> to vector<3x256xf32>
    %233 = arith.mulf %231, %232 : vector<3x256xf32>
    %234 = arith.addf %229, %233 : vector<3x256xf32>
    %235 = vector.extract_strided_slice %93 {offsets = [28, 0], sizes = [1, 256], strides = [1, 1]} : vector<32x256xf32> to vector<1x256xf32>
    %236 = vector.broadcast %66 : vector<3x1xf32> to vector<3x256xf32>
    %237 = vector.broadcast %235 : vector<1x256xf32> to vector<3x256xf32>
    %238 = arith.mulf %236, %237 : vector<3x256xf32>
    %239 = arith.addf %234, %238 : vector<3x256xf32>
    %240 = vector.extract_strided_slice %93 {offsets = [29, 0], sizes = [1, 256], strides = [1, 1]} : vector<32x256xf32> to vector<1x256xf32>
    %241 = vector.broadcast %68 : vector<3x1xf32> to vector<3x256xf32>
    %242 = vector.broadcast %240 : vector<1x256xf32> to vector<3x256xf32>
    %243 = arith.mulf %241, %242 : vector<3x256xf32>
    %244 = arith.addf %239, %243 : vector<3x256xf32>
    %245 = vector.extract_strided_slice %93 {offsets = [30, 0], sizes = [1, 256], strides = [1, 1]} : vector<32x256xf32> to vector<1x256xf32>
    %246 = vector.broadcast %70 : vector<3x1xf32> to vector<3x256xf32>
    %247 = vector.broadcast %245 : vector<1x256xf32> to vector<3x256xf32>
    %248 = arith.mulf %246, %247 : vector<3x256xf32>
    %249 = arith.addf %244, %248 : vector<3x256xf32>
    %250 = vector.extract_strided_slice %93 {offsets = [31, 0], sizes = [1, 256], strides = [1, 1]} : vector<32x256xf32> to vector<1x256xf32>
    %251 = vector.broadcast %72 : vector<3x1xf32> to vector<3x256xf32>
    %252 = vector.broadcast %250 : vector<1x256xf32> to vector<3x256xf32>
    %253 = arith.mulf %251, %252 : vector<3x256xf32>
    %254 = arith.addf %249, %253 : vector<3x256xf32>
    %c7_82 = arith.constant 7 : index
    %255 = memref.load %arg1[%c7_82] : memref<8xf32, #tpu.memory_space<smem>>
    %256 = vector.broadcast %255 : f32 to vector<3x256xf32>
    %257 = arith.mulf %0, %256 : vector<3x256xf32>
    %c7_83 = arith.constant 7 : index
    %258 = memref.load %arg2[%c7_83] : memref<8xf32, #tpu.memory_space<smem>>
    %259 = vector.broadcast %258 : f32 to vector<3x256xf32>
    %260 = arith.mulf %259, %254 : vector<3x256xf32>
    %261 = arith.subf %257, %260 : vector<3x256xf32>
    %c7_84 = arith.constant 7 : index
    %262 = memref.load %arg3[%c7_84] : memref<8xf32, #tpu.memory_space<smem>>
    %c7_85 = arith.constant 7 : index
    %c0_86 = arith.constant 0 : index
    %c0_87 = arith.constant 0 : index
    %263 = vector.load %arg6[%c7_85, %c0_86, %c0_87] : memref<8x3x256xf32, #tpu.memory_space<vmem>>, vector<1x3x256xf32>
    %264 = vector.shape_cast %263 : vector<1x3x256xf32> to vector<3x256xf32>
    %265 = vector.broadcast %262 : f32 to vector<3x256xf32>
    %266 = arith.mulf %265, %264 : vector<3x256xf32>
    %267 = arith.addf %261, %266 : vector<3x256xf32>
    %c6_88 = arith.constant 6 : index
    %c0_89 = arith.constant 0 : index
    %c0_90 = arith.constant 0 : index
    %268 = vector.load %arg7[%c6_88, %c0_89, %c0_90] : memref<8x32x1xf32, #tpu.memory_space<vmem>>, vector<1x32x1xf32>
    %269 = vector.shape_cast %268 : vector<1x32x1xf32> to vector<32x1xf32>
    %270 = vector.broadcast %269 : vector<32x1xf32> to vector<32x256xf32>
    %271 = arith.addf %1, %270 : vector<32x256xf32>
    %272 = vector.extract_strided_slice %267 {offsets = [0, 0], sizes = [1, 256], strides = [1, 1]} : vector<3x256xf32> to vector<1x256xf32>
    %273 = vector.broadcast %4 : vector<32x1xf32> to vector<32x256xf32>
    %274 = vector.broadcast %272 : vector<1x256xf32> to vector<32x256xf32>
    %275 = arith.mulf %273, %274 : vector<32x256xf32>
    %276 = arith.addf %271, %275 : vector<32x256xf32>
    %277 = vector.extract_strided_slice %267 {offsets = [1, 0], sizes = [1, 256], strides = [1, 1]} : vector<3x256xf32> to vector<1x256xf32>
    %278 = vector.broadcast %6 : vector<32x1xf32> to vector<32x256xf32>
    %279 = vector.broadcast %277 : vector<1x256xf32> to vector<32x256xf32>
    %280 = arith.mulf %278, %279 : vector<32x256xf32>
    %281 = arith.addf %276, %280 : vector<32x256xf32>
    %282 = vector.extract_strided_slice %267 {offsets = [2, 0], sizes = [1, 256], strides = [1, 1]} : vector<3x256xf32> to vector<1x256xf32>
    %283 = vector.broadcast %8 : vector<32x1xf32> to vector<32x256xf32>
    %284 = vector.broadcast %282 : vector<1x256xf32> to vector<32x256xf32>
    %285 = arith.mulf %283, %284 : vector<32x256xf32>
    %286 = arith.addf %281, %285 : vector<32x256xf32>
    %cst_91 = arith.constant 0.000000e+00 : f32
    %287 = vector.broadcast %cst_91 : f32 to vector<32x256xf32>
    %288 = arith.maximumf %286, %287 : vector<32x256xf32>
    %289 = vector.extract_strided_slice %288 {offsets = [0, 0], sizes = [1, 256], strides = [1, 1]} : vector<32x256xf32> to vector<1x256xf32>
    %290 = vector.broadcast %10 : vector<3x1xf32> to vector<3x256xf32>
    %291 = vector.broadcast %289 : vector<1x256xf32> to vector<3x256xf32>
    %292 = arith.mulf %290, %291 : vector<3x256xf32>
    %293 = vector.broadcast %2 : vector<3x1xf32> to vector<3x256xf32>
    %294 = arith.addf %293, %292 : vector<3x256xf32>
    %295 = vector.extract_strided_slice %288 {offsets = [1, 0], sizes = [1, 256], strides = [1, 1]} : vector<32x256xf32> to vector<1x256xf32>
    %296 = vector.broadcast %12 : vector<3x1xf32> to vector<3x256xf32>
    %297 = vector.broadcast %295 : vector<1x256xf32> to vector<3x256xf32>
    %298 = arith.mulf %296, %297 : vector<3x256xf32>
    %299 = arith.addf %294, %298 : vector<3x256xf32>
    %300 = vector.extract_strided_slice %288 {offsets = [2, 0], sizes = [1, 256], strides = [1, 1]} : vector<32x256xf32> to vector<1x256xf32>
    %301 = vector.broadcast %14 : vector<3x1xf32> to vector<3x256xf32>
    %302 = vector.broadcast %300 : vector<1x256xf32> to vector<3x256xf32>
    %303 = arith.mulf %301, %302 : vector<3x256xf32>
    %304 = arith.addf %299, %303 : vector<3x256xf32>
    %305 = vector.extract_strided_slice %288 {offsets = [3, 0], sizes = [1, 256], strides = [1, 1]} : vector<32x256xf32> to vector<1x256xf32>
    %306 = vector.broadcast %16 : vector<3x1xf32> to vector<3x256xf32>
    %307 = vector.broadcast %305 : vector<1x256xf32> to vector<3x256xf32>
    %308 = arith.mulf %306, %307 : vector<3x256xf32>
    %309 = arith.addf %304, %308 : vector<3x256xf32>
    %310 = vector.extract_strided_slice %288 {offsets = [4, 0], sizes = [1, 256], strides = [1, 1]} : vector<32x256xf32> to vector<1x256xf32>
    %311 = vector.broadcast %18 : vector<3x1xf32> to vector<3x256xf32>
    %312 = vector.broadcast %310 : vector<1x256xf32> to vector<3x256xf32>
    %313 = arith.mulf %311, %312 : vector<3x256xf32>
    %314 = arith.addf %309, %313 : vector<3x256xf32>
    %315 = vector.extract_strided_slice %288 {offsets = [5, 0], sizes = [1, 256], strides = [1, 1]} : vector<32x256xf32> to vector<1x256xf32>
    %316 = vector.broadcast %20 : vector<3x1xf32> to vector<3x256xf32>
    %317 = vector.broadcast %315 : vector<1x256xf32> to vector<3x256xf32>
    %318 = arith.mulf %316, %317 : vector<3x256xf32>
    %319 = arith.addf %314, %318 : vector<3x256xf32>
    %320 = vector.extract_strided_slice %288 {offsets = [6, 0], sizes = [1, 256], strides = [1, 1]} : vector<32x256xf32> to vector<1x256xf32>
    %321 = vector.broadcast %22 : vector<3x1xf32> to vector<3x256xf32>
    %322 = vector.broadcast %320 : vector<1x256xf32> to vector<3x256xf32>
    %323 = arith.mulf %321, %322 : vector<3x256xf32>
    %324 = arith.addf %319, %323 : vector<3x256xf32>
    %325 = vector.extract_strided_slice %288 {offsets = [7, 0], sizes = [1, 256], strides = [1, 1]} : vector<32x256xf32> to vector<1x256xf32>
    %326 = vector.broadcast %24 : vector<3x1xf32> to vector<3x256xf32>
    %327 = vector.broadcast %325 : vector<1x256xf32> to vector<3x256xf32>
    %328 = arith.mulf %326, %327 : vector<3x256xf32>
    %329 = arith.addf %324, %328 : vector<3x256xf32>
    %330 = vector.extract_strided_slice %288 {offsets = [8, 0], sizes = [1, 256], strides = [1, 1]} : vector<32x256xf32> to vector<1x256xf32>
    %331 = vector.broadcast %26 : vector<3x1xf32> to vector<3x256xf32>
    %332 = vector.broadcast %330 : vector<1x256xf32> to vector<3x256xf32>
    %333 = arith.mulf %331, %332 : vector<3x256xf32>
    %334 = arith.addf %329, %333 : vector<3x256xf32>
    %335 = vector.extract_strided_slice %288 {offsets = [9, 0], sizes = [1, 256], strides = [1, 1]} : vector<32x256xf32> to vector<1x256xf32>
    %336 = vector.broadcast %28 : vector<3x1xf32> to vector<3x256xf32>
    %337 = vector.broadcast %335 : vector<1x256xf32> to vector<3x256xf32>
    %338 = arith.mulf %336, %337 : vector<3x256xf32>
    %339 = arith.addf %334, %338 : vector<3x256xf32>
    %340 = vector.extract_strided_slice %288 {offsets = [10, 0], sizes = [1, 256], strides = [1, 1]} : vector<32x256xf32> to vector<1x256xf32>
    %341 = vector.broadcast %30 : vector<3x1xf32> to vector<3x256xf32>
    %342 = vector.broadcast %340 : vector<1x256xf32> to vector<3x256xf32>
    %343 = arith.mulf %341, %342 : vector<3x256xf32>
    %344 = arith.addf %339, %343 : vector<3x256xf32>
    %345 = vector.extract_strided_slice %288 {offsets = [11, 0], sizes = [1, 256], strides = [1, 1]} : vector<32x256xf32> to vector<1x256xf32>
    %346 = vector.broadcast %32 : vector<3x1xf32> to vector<3x256xf32>
    %347 = vector.broadcast %345 : vector<1x256xf32> to vector<3x256xf32>
    %348 = arith.mulf %346, %347 : vector<3x256xf32>
    %349 = arith.addf %344, %348 : vector<3x256xf32>
    %350 = vector.extract_strided_slice %288 {offsets = [12, 0], sizes = [1, 256], strides = [1, 1]} : vector<32x256xf32> to vector<1x256xf32>
    %351 = vector.broadcast %34 : vector<3x1xf32> to vector<3x256xf32>
    %352 = vector.broadcast %350 : vector<1x256xf32> to vector<3x256xf32>
    %353 = arith.mulf %351, %352 : vector<3x256xf32>
    %354 = arith.addf %349, %353 : vector<3x256xf32>
    %355 = vector.extract_strided_slice %288 {offsets = [13, 0], sizes = [1, 256], strides = [1, 1]} : vector<32x256xf32> to vector<1x256xf32>
    %356 = vector.broadcast %36 : vector<3x1xf32> to vector<3x256xf32>
    %357 = vector.broadcast %355 : vector<1x256xf32> to vector<3x256xf32>
    %358 = arith.mulf %356, %357 : vector<3x256xf32>
    %359 = arith.addf %354, %358 : vector<3x256xf32>
    %360 = vector.extract_strided_slice %288 {offsets = [14, 0], sizes = [1, 256], strides = [1, 1]} : vector<32x256xf32> to vector<1x256xf32>
    %361 = vector.broadcast %38 : vector<3x1xf32> to vector<3x256xf32>
    %362 = vector.broadcast %360 : vector<1x256xf32> to vector<3x256xf32>
    %363 = arith.mulf %361, %362 : vector<3x256xf32>
    %364 = arith.addf %359, %363 : vector<3x256xf32>
    %365 = vector.extract_strided_slice %288 {offsets = [15, 0], sizes = [1, 256], strides = [1, 1]} : vector<32x256xf32> to vector<1x256xf32>
    %366 = vector.broadcast %40 : vector<3x1xf32> to vector<3x256xf32>
    %367 = vector.broadcast %365 : vector<1x256xf32> to vector<3x256xf32>
    %368 = arith.mulf %366, %367 : vector<3x256xf32>
    %369 = arith.addf %364, %368 : vector<3x256xf32>
    %370 = vector.extract_strided_slice %288 {offsets = [16, 0], sizes = [1, 256], strides = [1, 1]} : vector<32x256xf32> to vector<1x256xf32>
    %371 = vector.broadcast %42 : vector<3x1xf32> to vector<3x256xf32>
    %372 = vector.broadcast %370 : vector<1x256xf32> to vector<3x256xf32>
    %373 = arith.mulf %371, %372 : vector<3x256xf32>
    %374 = arith.addf %369, %373 : vector<3x256xf32>
    %375 = vector.extract_strided_slice %288 {offsets = [17, 0], sizes = [1, 256], strides = [1, 1]} : vector<32x256xf32> to vector<1x256xf32>
    %376 = vector.broadcast %44 : vector<3x1xf32> to vector<3x256xf32>
    %377 = vector.broadcast %375 : vector<1x256xf32> to vector<3x256xf32>
    %378 = arith.mulf %376, %377 : vector<3x256xf32>
    %379 = arith.addf %374, %378 : vector<3x256xf32>
    %380 = vector.extract_strided_slice %288 {offsets = [18, 0], sizes = [1, 256], strides = [1, 1]} : vector<32x256xf32> to vector<1x256xf32>
    %381 = vector.broadcast %46 : vector<3x1xf32> to vector<3x256xf32>
    %382 = vector.broadcast %380 : vector<1x256xf32> to vector<3x256xf32>
    %383 = arith.mulf %381, %382 : vector<3x256xf32>
    %384 = arith.addf %379, %383 : vector<3x256xf32>
    %385 = vector.extract_strided_slice %288 {offsets = [19, 0], sizes = [1, 256], strides = [1, 1]} : vector<32x256xf32> to vector<1x256xf32>
    %386 = vector.broadcast %48 : vector<3x1xf32> to vector<3x256xf32>
    %387 = vector.broadcast %385 : vector<1x256xf32> to vector<3x256xf32>
    %388 = arith.mulf %386, %387 : vector<3x256xf32>
    %389 = arith.addf %384, %388 : vector<3x256xf32>
    %390 = vector.extract_strided_slice %288 {offsets = [20, 0], sizes = [1, 256], strides = [1, 1]} : vector<32x256xf32> to vector<1x256xf32>
    %391 = vector.broadcast %50 : vector<3x1xf32> to vector<3x256xf32>
    %392 = vector.broadcast %390 : vector<1x256xf32> to vector<3x256xf32>
    %393 = arith.mulf %391, %392 : vector<3x256xf32>
    %394 = arith.addf %389, %393 : vector<3x256xf32>
    %395 = vector.extract_strided_slice %288 {offsets = [21, 0], sizes = [1, 256], strides = [1, 1]} : vector<32x256xf32> to vector<1x256xf32>
    %396 = vector.broadcast %52 : vector<3x1xf32> to vector<3x256xf32>
    %397 = vector.broadcast %395 : vector<1x256xf32> to vector<3x256xf32>
    %398 = arith.mulf %396, %397 : vector<3x256xf32>
    %399 = arith.addf %394, %398 : vector<3x256xf32>
    %400 = vector.extract_strided_slice %288 {offsets = [22, 0], sizes = [1, 256], strides = [1, 1]} : vector<32x256xf32> to vector<1x256xf32>
    %401 = vector.broadcast %54 : vector<3x1xf32> to vector<3x256xf32>
    %402 = vector.broadcast %400 : vector<1x256xf32> to vector<3x256xf32>
    %403 = arith.mulf %401, %402 : vector<3x256xf32>
    %404 = arith.addf %399, %403 : vector<3x256xf32>
    %405 = vector.extract_strided_slice %288 {offsets = [23, 0], sizes = [1, 256], strides = [1, 1]} : vector<32x256xf32> to vector<1x256xf32>
    %406 = vector.broadcast %56 : vector<3x1xf32> to vector<3x256xf32>
    %407 = vector.broadcast %405 : vector<1x256xf32> to vector<3x256xf32>
    %408 = arith.mulf %406, %407 : vector<3x256xf32>
    %409 = arith.addf %404, %408 : vector<3x256xf32>
    %410 = vector.extract_strided_slice %288 {offsets = [24, 0], sizes = [1, 256], strides = [1, 1]} : vector<32x256xf32> to vector<1x256xf32>
    %411 = vector.broadcast %58 : vector<3x1xf32> to vector<3x256xf32>
    %412 = vector.broadcast %410 : vector<1x256xf32> to vector<3x256xf32>
    %413 = arith.mulf %411, %412 : vector<3x256xf32>
    %414 = arith.addf %409, %413 : vector<3x256xf32>
    %415 = vector.extract_strided_slice %288 {offsets = [25, 0], sizes = [1, 256], strides = [1, 1]} : vector<32x256xf32> to vector<1x256xf32>
    %416 = vector.broadcast %60 : vector<3x1xf32> to vector<3x256xf32>
    %417 = vector.broadcast %415 : vector<1x256xf32> to vector<3x256xf32>
    %418 = arith.mulf %416, %417 : vector<3x256xf32>
    %419 = arith.addf %414, %418 : vector<3x256xf32>
    %420 = vector.extract_strided_slice %288 {offsets = [26, 0], sizes = [1, 256], strides = [1, 1]} : vector<32x256xf32> to vector<1x256xf32>
    %421 = vector.broadcast %62 : vector<3x1xf32> to vector<3x256xf32>
    %422 = vector.broadcast %420 : vector<1x256xf32> to vector<3x256xf32>
    %423 = arith.mulf %421, %422 : vector<3x256xf32>
    %424 = arith.addf %419, %423 : vector<3x256xf32>
    %425 = vector.extract_strided_slice %288 {offsets = [27, 0], sizes = [1, 256], strides = [1, 1]} : vector<32x256xf32> to vector<1x256xf32>
    %426 = vector.broadcast %64 : vector<3x1xf32> to vector<3x256xf32>
    %427 = vector.broadcast %425 : vector<1x256xf32> to vector<3x256xf32>
    %428 = arith.mulf %426, %427 : vector<3x256xf32>
    %429 = arith.addf %424, %428 : vector<3x256xf32>
    %430 = vector.extract_strided_slice %288 {offsets = [28, 0], sizes = [1, 256], strides = [1, 1]} : vector<32x256xf32> to vector<1x256xf32>
    %431 = vector.broadcast %66 : vector<3x1xf32> to vector<3x256xf32>
    %432 = vector.broadcast %430 : vector<1x256xf32> to vector<3x256xf32>
    %433 = arith.mulf %431, %432 : vector<3x256xf32>
    %434 = arith.addf %429, %433 : vector<3x256xf32>
    %435 = vector.extract_strided_slice %288 {offsets = [29, 0], sizes = [1, 256], strides = [1, 1]} : vector<32x256xf32> to vector<1x256xf32>
    %436 = vector.broadcast %68 : vector<3x1xf32> to vector<3x256xf32>
    %437 = vector.broadcast %435 : vector<1x256xf32> to vector<3x256xf32>
    %438 = arith.mulf %436, %437 : vector<3x256xf32>
    %439 = arith.addf %434, %438 : vector<3x256xf32>
    %440 = vector.extract_strided_slice %288 {offsets = [30, 0], sizes = [1, 256], strides = [1, 1]} : vector<32x256xf32> to vector<1x256xf32>
    %441 = vector.broadcast %70 : vector<3x1xf32> to vector<3x256xf32>
    %442 = vector.broadcast %440 : vector<1x256xf32> to vector<3x256xf32>
    %443 = arith.mulf %441, %442 : vector<3x256xf32>
    %444 = arith.addf %439, %443 : vector<3x256xf32>
    %445 = vector.extract_strided_slice %288 {offsets = [31, 0], sizes = [1, 256], strides = [1, 1]} : vector<32x256xf32> to vector<1x256xf32>
    %446 = vector.broadcast %72 : vector<3x1xf32> to vector<3x256xf32>
    %447 = vector.broadcast %445 : vector<1x256xf32> to vector<3x256xf32>
    %448 = arith.mulf %446, %447 : vector<3x256xf32>
    %449 = arith.addf %444, %448 : vector<3x256xf32>
    %c6_92 = arith.constant 6 : index
    %450 = memref.load %arg1[%c6_92] : memref<8xf32, #tpu.memory_space<smem>>
    %451 = vector.broadcast %450 : f32 to vector<3x256xf32>
    %452 = arith.mulf %267, %451 : vector<3x256xf32>
    %c6_93 = arith.constant 6 : index
    %453 = memref.load %arg2[%c6_93] : memref<8xf32, #tpu.memory_space<smem>>
    %454 = vector.broadcast %453 : f32 to vector<3x256xf32>
    %455 = arith.mulf %454, %449 : vector<3x256xf32>
    %456 = arith.subf %452, %455 : vector<3x256xf32>
    %c6_94 = arith.constant 6 : index
    %457 = memref.load %arg3[%c6_94] : memref<8xf32, #tpu.memory_space<smem>>
    %c6_95 = arith.constant 6 : index
    %c0_96 = arith.constant 0 : index
    %c0_97 = arith.constant 0 : index
    %458 = vector.load %arg6[%c6_95, %c0_96, %c0_97] : memref<8x3x256xf32, #tpu.memory_space<vmem>>, vector<1x3x256xf32>
    %459 = vector.shape_cast %458 : vector<1x3x256xf32> to vector<3x256xf32>
    %460 = vector.broadcast %457 : f32 to vector<3x256xf32>
    %461 = arith.mulf %460, %459 : vector<3x256xf32>
    %462 = arith.addf %456, %461 : vector<3x256xf32>
    %c5_98 = arith.constant 5 : index
    %c0_99 = arith.constant 0 : index
    %c0_100 = arith.constant 0 : index
    %463 = vector.load %arg7[%c5_98, %c0_99, %c0_100] : memref<8x32x1xf32, #tpu.memory_space<vmem>>, vector<1x32x1xf32>
    %464 = vector.shape_cast %463 : vector<1x32x1xf32> to vector<32x1xf32>
    %465 = vector.broadcast %464 : vector<32x1xf32> to vector<32x256xf32>
    %466 = arith.addf %1, %465 : vector<32x256xf32>
    %467 = vector.extract_strided_slice %462 {offsets = [0, 0], sizes = [1, 256], strides = [1, 1]} : vector<3x256xf32> to vector<1x256xf32>
    %468 = vector.broadcast %4 : vector<32x1xf32> to vector<32x256xf32>
    %469 = vector.broadcast %467 : vector<1x256xf32> to vector<32x256xf32>
    %470 = arith.mulf %468, %469 : vector<32x256xf32>
    %471 = arith.addf %466, %470 : vector<32x256xf32>
    %472 = vector.extract_strided_slice %462 {offsets = [1, 0], sizes = [1, 256], strides = [1, 1]} : vector<3x256xf32> to vector<1x256xf32>
    %473 = vector.broadcast %6 : vector<32x1xf32> to vector<32x256xf32>
    %474 = vector.broadcast %472 : vector<1x256xf32> to vector<32x256xf32>
    %475 = arith.mulf %473, %474 : vector<32x256xf32>
    %476 = arith.addf %471, %475 : vector<32x256xf32>
    %477 = vector.extract_strided_slice %462 {offsets = [2, 0], sizes = [1, 256], strides = [1, 1]} : vector<3x256xf32> to vector<1x256xf32>
    %478 = vector.broadcast %8 : vector<32x1xf32> to vector<32x256xf32>
    %479 = vector.broadcast %477 : vector<1x256xf32> to vector<32x256xf32>
    %480 = arith.mulf %478, %479 : vector<32x256xf32>
    %481 = arith.addf %476, %480 : vector<32x256xf32>
    %cst_101 = arith.constant 0.000000e+00 : f32
    %482 = vector.broadcast %cst_101 : f32 to vector<32x256xf32>
    %483 = arith.maximumf %481, %482 : vector<32x256xf32>
    %484 = vector.extract_strided_slice %483 {offsets = [0, 0], sizes = [1, 256], strides = [1, 1]} : vector<32x256xf32> to vector<1x256xf32>
    %485 = vector.broadcast %10 : vector<3x1xf32> to vector<3x256xf32>
    %486 = vector.broadcast %484 : vector<1x256xf32> to vector<3x256xf32>
    %487 = arith.mulf %485, %486 : vector<3x256xf32>
    %488 = vector.broadcast %2 : vector<3x1xf32> to vector<3x256xf32>
    %489 = arith.addf %488, %487 : vector<3x256xf32>
    %490 = vector.extract_strided_slice %483 {offsets = [1, 0], sizes = [1, 256], strides = [1, 1]} : vector<32x256xf32> to vector<1x256xf32>
    %491 = vector.broadcast %12 : vector<3x1xf32> to vector<3x256xf32>
    %492 = vector.broadcast %490 : vector<1x256xf32> to vector<3x256xf32>
    %493 = arith.mulf %491, %492 : vector<3x256xf32>
    %494 = arith.addf %489, %493 : vector<3x256xf32>
    %495 = vector.extract_strided_slice %483 {offsets = [2, 0], sizes = [1, 256], strides = [1, 1]} : vector<32x256xf32> to vector<1x256xf32>
    %496 = vector.broadcast %14 : vector<3x1xf32> to vector<3x256xf32>
    %497 = vector.broadcast %495 : vector<1x256xf32> to vector<3x256xf32>
    %498 = arith.mulf %496, %497 : vector<3x256xf32>
    %499 = arith.addf %494, %498 : vector<3x256xf32>
    %500 = vector.extract_strided_slice %483 {offsets = [3, 0], sizes = [1, 256], strides = [1, 1]} : vector<32x256xf32> to vector<1x256xf32>
    %501 = vector.broadcast %16 : vector<3x1xf32> to vector<3x256xf32>
    %502 = vector.broadcast %500 : vector<1x256xf32> to vector<3x256xf32>
    %503 = arith.mulf %501, %502 : vector<3x256xf32>
    %504 = arith.addf %499, %503 : vector<3x256xf32>
    %505 = vector.extract_strided_slice %483 {offsets = [4, 0], sizes = [1, 256], strides = [1, 1]} : vector<32x256xf32> to vector<1x256xf32>
    %506 = vector.broadcast %18 : vector<3x1xf32> to vector<3x256xf32>
    %507 = vector.broadcast %505 : vector<1x256xf32> to vector<3x256xf32>
    %508 = arith.mulf %506, %507 : vector<3x256xf32>
    %509 = arith.addf %504, %508 : vector<3x256xf32>
    %510 = vector.extract_strided_slice %483 {offsets = [5, 0], sizes = [1, 256], strides = [1, 1]} : vector<32x256xf32> to vector<1x256xf32>
    %511 = vector.broadcast %20 : vector<3x1xf32> to vector<3x256xf32>
    %512 = vector.broadcast %510 : vector<1x256xf32> to vector<3x256xf32>
    %513 = arith.mulf %511, %512 : vector<3x256xf32>
    %514 = arith.addf %509, %513 : vector<3x256xf32>
    %515 = vector.extract_strided_slice %483 {offsets = [6, 0], sizes = [1, 256], strides = [1, 1]} : vector<32x256xf32> to vector<1x256xf32>
    %516 = vector.broadcast %22 : vector<3x1xf32> to vector<3x256xf32>
    %517 = vector.broadcast %515 : vector<1x256xf32> to vector<3x256xf32>
    %518 = arith.mulf %516, %517 : vector<3x256xf32>
    %519 = arith.addf %514, %518 : vector<3x256xf32>
    %520 = vector.extract_strided_slice %483 {offsets = [7, 0], sizes = [1, 256], strides = [1, 1]} : vector<32x256xf32> to vector<1x256xf32>
    %521 = vector.broadcast %24 : vector<3x1xf32> to vector<3x256xf32>
    %522 = vector.broadcast %520 : vector<1x256xf32> to vector<3x256xf32>
    %523 = arith.mulf %521, %522 : vector<3x256xf32>
    %524 = arith.addf %519, %523 : vector<3x256xf32>
    %525 = vector.extract_strided_slice %483 {offsets = [8, 0], sizes = [1, 256], strides = [1, 1]} : vector<32x256xf32> to vector<1x256xf32>
    %526 = vector.broadcast %26 : vector<3x1xf32> to vector<3x256xf32>
    %527 = vector.broadcast %525 : vector<1x256xf32> to vector<3x256xf32>
    %528 = arith.mulf %526, %527 : vector<3x256xf32>
    %529 = arith.addf %524, %528 : vector<3x256xf32>
    %530 = vector.extract_strided_slice %483 {offsets = [9, 0], sizes = [1, 256], strides = [1, 1]} : vector<32x256xf32> to vector<1x256xf32>
    %531 = vector.broadcast %28 : vector<3x1xf32> to vector<3x256xf32>
    %532 = vector.broadcast %530 : vector<1x256xf32> to vector<3x256xf32>
    %533 = arith.mulf %531, %532 : vector<3x256xf32>
    %534 = arith.addf %529, %533 : vector<3x256xf32>
    %535 = vector.extract_strided_slice %483 {offsets = [10, 0], sizes = [1, 256], strides = [1, 1]} : vector<32x256xf32> to vector<1x256xf32>
    %536 = vector.broadcast %30 : vector<3x1xf32> to vector<3x256xf32>
    %537 = vector.broadcast %535 : vector<1x256xf32> to vector<3x256xf32>
    %538 = arith.mulf %536, %537 : vector<3x256xf32>
    %539 = arith.addf %534, %538 : vector<3x256xf32>
    %540 = vector.extract_strided_slice %483 {offsets = [11, 0], sizes = [1, 256], strides = [1, 1]} : vector<32x256xf32> to vector<1x256xf32>
    %541 = vector.broadcast %32 : vector<3x1xf32> to vector<3x256xf32>
    %542 = vector.broadcast %540 : vector<1x256xf32> to vector<3x256xf32>
    %543 = arith.mulf %541, %542 : vector<3x256xf32>
    %544 = arith.addf %539, %543 : vector<3x256xf32>
    %545 = vector.extract_strided_slice %483 {offsets = [12, 0], sizes = [1, 256], strides = [1, 1]} : vector<32x256xf32> to vector<1x256xf32>
    %546 = vector.broadcast %34 : vector<3x1xf32> to vector<3x256xf32>
    %547 = vector.broadcast %545 : vector<1x256xf32> to vector<3x256xf32>
    %548 = arith.mulf %546, %547 : vector<3x256xf32>
    %549 = arith.addf %544, %548 : vector<3x256xf32>
    %550 = vector.extract_strided_slice %483 {offsets = [13, 0], sizes = [1, 256], strides = [1, 1]} : vector<32x256xf32> to vector<1x256xf32>
    %551 = vector.broadcast %36 : vector<3x1xf32> to vector<3x256xf32>
    %552 = vector.broadcast %550 : vector<1x256xf32> to vector<3x256xf32>
    %553 = arith.mulf %551, %552 : vector<3x256xf32>
    %554 = arith.addf %549, %553 : vector<3x256xf32>
    %555 = vector.extract_strided_slice %483 {offsets = [14, 0], sizes = [1, 256], strides = [1, 1]} : vector<32x256xf32> to vector<1x256xf32>
    %556 = vector.broadcast %38 : vector<3x1xf32> to vector<3x256xf32>
    %557 = vector.broadcast %555 : vector<1x256xf32> to vector<3x256xf32>
    %558 = arith.mulf %556, %557 : vector<3x256xf32>
    %559 = arith.addf %554, %558 : vector<3x256xf32>
    %560 = vector.extract_strided_slice %483 {offsets = [15, 0], sizes = [1, 256], strides = [1, 1]} : vector<32x256xf32> to vector<1x256xf32>
    %561 = vector.broadcast %40 : vector<3x1xf32> to vector<3x256xf32>
    %562 = vector.broadcast %560 : vector<1x256xf32> to vector<3x256xf32>
    %563 = arith.mulf %561, %562 : vector<3x256xf32>
    %564 = arith.addf %559, %563 : vector<3x256xf32>
    %565 = vector.extract_strided_slice %483 {offsets = [16, 0], sizes = [1, 256], strides = [1, 1]} : vector<32x256xf32> to vector<1x256xf32>
    %566 = vector.broadcast %42 : vector<3x1xf32> to vector<3x256xf32>
    %567 = vector.broadcast %565 : vector<1x256xf32> to vector<3x256xf32>
    %568 = arith.mulf %566, %567 : vector<3x256xf32>
    %569 = arith.addf %564, %568 : vector<3x256xf32>
    %570 = vector.extract_strided_slice %483 {offsets = [17, 0], sizes = [1, 256], strides = [1, 1]} : vector<32x256xf32> to vector<1x256xf32>
    %571 = vector.broadcast %44 : vector<3x1xf32> to vector<3x256xf32>
    %572 = vector.broadcast %570 : vector<1x256xf32> to vector<3x256xf32>
    %573 = arith.mulf %571, %572 : vector<3x256xf32>
    %574 = arith.addf %569, %573 : vector<3x256xf32>
    %575 = vector.extract_strided_slice %483 {offsets = [18, 0], sizes = [1, 256], strides = [1, 1]} : vector<32x256xf32> to vector<1x256xf32>
    %576 = vector.broadcast %46 : vector<3x1xf32> to vector<3x256xf32>
    %577 = vector.broadcast %575 : vector<1x256xf32> to vector<3x256xf32>
    %578 = arith.mulf %576, %577 : vector<3x256xf32>
    %579 = arith.addf %574, %578 : vector<3x256xf32>
    %580 = vector.extract_strided_slice %483 {offsets = [19, 0], sizes = [1, 256], strides = [1, 1]} : vector<32x256xf32> to vector<1x256xf32>
    %581 = vector.broadcast %48 : vector<3x1xf32> to vector<3x256xf32>
    %582 = vector.broadcast %580 : vector<1x256xf32> to vector<3x256xf32>
    %583 = arith.mulf %581, %582 : vector<3x256xf32>
    %584 = arith.addf %579, %583 : vector<3x256xf32>
    %585 = vector.extract_strided_slice %483 {offsets = [20, 0], sizes = [1, 256], strides = [1, 1]} : vector<32x256xf32> to vector<1x256xf32>
    %586 = vector.broadcast %50 : vector<3x1xf32> to vector<3x256xf32>
    %587 = vector.broadcast %585 : vector<1x256xf32> to vector<3x256xf32>
    %588 = arith.mulf %586, %587 : vector<3x256xf32>
    %589 = arith.addf %584, %588 : vector<3x256xf32>
    %590 = vector.extract_strided_slice %483 {offsets = [21, 0], sizes = [1, 256], strides = [1, 1]} : vector<32x256xf32> to vector<1x256xf32>
    %591 = vector.broadcast %52 : vector<3x1xf32> to vector<3x256xf32>
    %592 = vector.broadcast %590 : vector<1x256xf32> to vector<3x256xf32>
    %593 = arith.mulf %591, %592 : vector<3x256xf32>
    %594 = arith.addf %589, %593 : vector<3x256xf32>
    %595 = vector.extract_strided_slice %483 {offsets = [22, 0], sizes = [1, 256], strides = [1, 1]} : vector<32x256xf32> to vector<1x256xf32>
    %596 = vector.broadcast %54 : vector<3x1xf32> to vector<3x256xf32>
    %597 = vector.broadcast %595 : vector<1x256xf32> to vector<3x256xf32>
    %598 = arith.mulf %596, %597 : vector<3x256xf32>
    %599 = arith.addf %594, %598 : vector<3x256xf32>
    %600 = vector.extract_strided_slice %483 {offsets = [23, 0], sizes = [1, 256], strides = [1, 1]} : vector<32x256xf32> to vector<1x256xf32>
    %601 = vector.broadcast %56 : vector<3x1xf32> to vector<3x256xf32>
    %602 = vector.broadcast %600 : vector<1x256xf32> to vector<3x256xf32>
    %603 = arith.mulf %601, %602 : vector<3x256xf32>
    %604 = arith.addf %599, %603 : vector<3x256xf32>
    %605 = vector.extract_strided_slice %483 {offsets = [24, 0], sizes = [1, 256], strides = [1, 1]} : vector<32x256xf32> to vector<1x256xf32>
    %606 = vector.broadcast %58 : vector<3x1xf32> to vector<3x256xf32>
    %607 = vector.broadcast %605 : vector<1x256xf32> to vector<3x256xf32>
    %608 = arith.mulf %606, %607 : vector<3x256xf32>
    %609 = arith.addf %604, %608 : vector<3x256xf32>
    %610 = vector.extract_strided_slice %483 {offsets = [25, 0], sizes = [1, 256], strides = [1, 1]} : vector<32x256xf32> to vector<1x256xf32>
    %611 = vector.broadcast %60 : vector<3x1xf32> to vector<3x256xf32>
    %612 = vector.broadcast %610 : vector<1x256xf32> to vector<3x256xf32>
    %613 = arith.mulf %611, %612 : vector<3x256xf32>
    %614 = arith.addf %609, %613 : vector<3x256xf32>
    %615 = vector.extract_strided_slice %483 {offsets = [26, 0], sizes = [1, 256], strides = [1, 1]} : vector<32x256xf32> to vector<1x256xf32>
    %616 = vector.broadcast %62 : vector<3x1xf32> to vector<3x256xf32>
    %617 = vector.broadcast %615 : vector<1x256xf32> to vector<3x256xf32>
    %618 = arith.mulf %616, %617 : vector<3x256xf32>
    %619 = arith.addf %614, %618 : vector<3x256xf32>
    %620 = vector.extract_strided_slice %483 {offsets = [27, 0], sizes = [1, 256], strides = [1, 1]} : vector<32x256xf32> to vector<1x256xf32>
    %621 = vector.broadcast %64 : vector<3x1xf32> to vector<3x256xf32>
    %622 = vector.broadcast %620 : vector<1x256xf32> to vector<3x256xf32>
    %623 = arith.mulf %621, %622 : vector<3x256xf32>
    %624 = arith.addf %619, %623 : vector<3x256xf32>
    %625 = vector.extract_strided_slice %483 {offsets = [28, 0], sizes = [1, 256], strides = [1, 1]} : vector<32x256xf32> to vector<1x256xf32>
    %626 = vector.broadcast %66 : vector<3x1xf32> to vector<3x256xf32>
    %627 = vector.broadcast %625 : vector<1x256xf32> to vector<3x256xf32>
    %628 = arith.mulf %626, %627 : vector<3x256xf32>
    %629 = arith.addf %624, %628 : vector<3x256xf32>
    %630 = vector.extract_strided_slice %483 {offsets = [29, 0], sizes = [1, 256], strides = [1, 1]} : vector<32x256xf32> to vector<1x256xf32>
    %631 = vector.broadcast %68 : vector<3x1xf32> to vector<3x256xf32>
    %632 = vector.broadcast %630 : vector<1x256xf32> to vector<3x256xf32>
    %633 = arith.mulf %631, %632 : vector<3x256xf32>
    %634 = arith.addf %629, %633 : vector<3x256xf32>
    %635 = vector.extract_strided_slice %483 {offsets = [30, 0], sizes = [1, 256], strides = [1, 1]} : vector<32x256xf32> to vector<1x256xf32>
    %636 = vector.broadcast %70 : vector<3x1xf32> to vector<3x256xf32>
    %637 = vector.broadcast %635 : vector<1x256xf32> to vector<3x256xf32>
    %638 = arith.mulf %636, %637 : vector<3x256xf32>
    %639 = arith.addf %634, %638 : vector<3x256xf32>
    %640 = vector.extract_strided_slice %483 {offsets = [31, 0], sizes = [1, 256], strides = [1, 1]} : vector<32x256xf32> to vector<1x256xf32>
    %641 = vector.broadcast %72 : vector<3x1xf32> to vector<3x256xf32>
    %642 = vector.broadcast %640 : vector<1x256xf32> to vector<3x256xf32>
    %643 = arith.mulf %641, %642 : vector<3x256xf32>
    %644 = arith.addf %639, %643 : vector<3x256xf32>
    %c5_102 = arith.constant 5 : index
    %645 = memref.load %arg1[%c5_102] : memref<8xf32, #tpu.memory_space<smem>>
    %646 = vector.broadcast %645 : f32 to vector<3x256xf32>
    %647 = arith.mulf %462, %646 : vector<3x256xf32>
    %c5_103 = arith.constant 5 : index
    %648 = memref.load %arg2[%c5_103] : memref<8xf32, #tpu.memory_space<smem>>
    %649 = vector.broadcast %648 : f32 to vector<3x256xf32>
    %650 = arith.mulf %649, %644 : vector<3x256xf32>
    %651 = arith.subf %647, %650 : vector<3x256xf32>
    %c5_104 = arith.constant 5 : index
    %652 = memref.load %arg3[%c5_104] : memref<8xf32, #tpu.memory_space<smem>>
    %c5_105 = arith.constant 5 : index
    %c0_106 = arith.constant 0 : index
    %c0_107 = arith.constant 0 : index
    %653 = vector.load %arg6[%c5_105, %c0_106, %c0_107] : memref<8x3x256xf32, #tpu.memory_space<vmem>>, vector<1x3x256xf32>
    %654 = vector.shape_cast %653 : vector<1x3x256xf32> to vector<3x256xf32>
    %655 = vector.broadcast %652 : f32 to vector<3x256xf32>
    %656 = arith.mulf %655, %654 : vector<3x256xf32>
    %657 = arith.addf %651, %656 : vector<3x256xf32>
    %c4_108 = arith.constant 4 : index
    %c0_109 = arith.constant 0 : index
    %c0_110 = arith.constant 0 : index
    %658 = vector.load %arg7[%c4_108, %c0_109, %c0_110] : memref<8x32x1xf32, #tpu.memory_space<vmem>>, vector<1x32x1xf32>
    %659 = vector.shape_cast %658 : vector<1x32x1xf32> to vector<32x1xf32>
    %660 = vector.broadcast %659 : vector<32x1xf32> to vector<32x256xf32>
    %661 = arith.addf %1, %660 : vector<32x256xf32>
    %662 = vector.extract_strided_slice %657 {offsets = [0, 0], sizes = [1, 256], strides = [1, 1]} : vector<3x256xf32> to vector<1x256xf32>
    %663 = vector.broadcast %4 : vector<32x1xf32> to vector<32x256xf32>
    %664 = vector.broadcast %662 : vector<1x256xf32> to vector<32x256xf32>
    %665 = arith.mulf %663, %664 : vector<32x256xf32>
    %666 = arith.addf %661, %665 : vector<32x256xf32>
    %667 = vector.extract_strided_slice %657 {offsets = [1, 0], sizes = [1, 256], strides = [1, 1]} : vector<3x256xf32> to vector<1x256xf32>
    %668 = vector.broadcast %6 : vector<32x1xf32> to vector<32x256xf32>
    %669 = vector.broadcast %667 : vector<1x256xf32> to vector<32x256xf32>
    %670 = arith.mulf %668, %669 : vector<32x256xf32>
    %671 = arith.addf %666, %670 : vector<32x256xf32>
    %672 = vector.extract_strided_slice %657 {offsets = [2, 0], sizes = [1, 256], strides = [1, 1]} : vector<3x256xf32> to vector<1x256xf32>
    %673 = vector.broadcast %8 : vector<32x1xf32> to vector<32x256xf32>
    %674 = vector.broadcast %672 : vector<1x256xf32> to vector<32x256xf32>
    %675 = arith.mulf %673, %674 : vector<32x256xf32>
    %676 = arith.addf %671, %675 : vector<32x256xf32>
    %cst_111 = arith.constant 0.000000e+00 : f32
    %677 = vector.broadcast %cst_111 : f32 to vector<32x256xf32>
    %678 = arith.maximumf %676, %677 : vector<32x256xf32>
    %679 = vector.extract_strided_slice %678 {offsets = [0, 0], sizes = [1, 256], strides = [1, 1]} : vector<32x256xf32> to vector<1x256xf32>
    %680 = vector.broadcast %10 : vector<3x1xf32> to vector<3x256xf32>
    %681 = vector.broadcast %679 : vector<1x256xf32> to vector<3x256xf32>
    %682 = arith.mulf %680, %681 : vector<3x256xf32>
    %683 = vector.broadcast %2 : vector<3x1xf32> to vector<3x256xf32>
    %684 = arith.addf %683, %682 : vector<3x256xf32>
    %685 = vector.extract_strided_slice %678 {offsets = [1, 0], sizes = [1, 256], strides = [1, 1]} : vector<32x256xf32> to vector<1x256xf32>
    %686 = vector.broadcast %12 : vector<3x1xf32> to vector<3x256xf32>
    %687 = vector.broadcast %685 : vector<1x256xf32> to vector<3x256xf32>
    %688 = arith.mulf %686, %687 : vector<3x256xf32>
    %689 = arith.addf %684, %688 : vector<3x256xf32>
    %690 = vector.extract_strided_slice %678 {offsets = [2, 0], sizes = [1, 256], strides = [1, 1]} : vector<32x256xf32> to vector<1x256xf32>
    %691 = vector.broadcast %14 : vector<3x1xf32> to vector<3x256xf32>
    %692 = vector.broadcast %690 : vector<1x256xf32> to vector<3x256xf32>
    %693 = arith.mulf %691, %692 : vector<3x256xf32>
    %694 = arith.addf %689, %693 : vector<3x256xf32>
    %695 = vector.extract_strided_slice %678 {offsets = [3, 0], sizes = [1, 256], strides = [1, 1]} : vector<32x256xf32> to vector<1x256xf32>
    %696 = vector.broadcast %16 : vector<3x1xf32> to vector<3x256xf32>
    %697 = vector.broadcast %695 : vector<1x256xf32> to vector<3x256xf32>
    %698 = arith.mulf %696, %697 : vector<3x256xf32>
    %699 = arith.addf %694, %698 : vector<3x256xf32>
    %700 = vector.extract_strided_slice %678 {offsets = [4, 0], sizes = [1, 256], strides = [1, 1]} : vector<32x256xf32> to vector<1x256xf32>
    %701 = vector.broadcast %18 : vector<3x1xf32> to vector<3x256xf32>
    %702 = vector.broadcast %700 : vector<1x256xf32> to vector<3x256xf32>
    %703 = arith.mulf %701, %702 : vector<3x256xf32>
    %704 = arith.addf %699, %703 : vector<3x256xf32>
    %705 = vector.extract_strided_slice %678 {offsets = [5, 0], sizes = [1, 256], strides = [1, 1]} : vector<32x256xf32> to vector<1x256xf32>
    %706 = vector.broadcast %20 : vector<3x1xf32> to vector<3x256xf32>
    %707 = vector.broadcast %705 : vector<1x256xf32> to vector<3x256xf32>
    %708 = arith.mulf %706, %707 : vector<3x256xf32>
    %709 = arith.addf %704, %708 : vector<3x256xf32>
    %710 = vector.extract_strided_slice %678 {offsets = [6, 0], sizes = [1, 256], strides = [1, 1]} : vector<32x256xf32> to vector<1x256xf32>
    %711 = vector.broadcast %22 : vector<3x1xf32> to vector<3x256xf32>
    %712 = vector.broadcast %710 : vector<1x256xf32> to vector<3x256xf32>
    %713 = arith.mulf %711, %712 : vector<3x256xf32>
    %714 = arith.addf %709, %713 : vector<3x256xf32>
    %715 = vector.extract_strided_slice %678 {offsets = [7, 0], sizes = [1, 256], strides = [1, 1]} : vector<32x256xf32> to vector<1x256xf32>
    %716 = vector.broadcast %24 : vector<3x1xf32> to vector<3x256xf32>
    %717 = vector.broadcast %715 : vector<1x256xf32> to vector<3x256xf32>
    %718 = arith.mulf %716, %717 : vector<3x256xf32>
    %719 = arith.addf %714, %718 : vector<3x256xf32>
    %720 = vector.extract_strided_slice %678 {offsets = [8, 0], sizes = [1, 256], strides = [1, 1]} : vector<32x256xf32> to vector<1x256xf32>
    %721 = vector.broadcast %26 : vector<3x1xf32> to vector<3x256xf32>
    %722 = vector.broadcast %720 : vector<1x256xf32> to vector<3x256xf32>
    %723 = arith.mulf %721, %722 : vector<3x256xf32>
    %724 = arith.addf %719, %723 : vector<3x256xf32>
    %725 = vector.extract_strided_slice %678 {offsets = [9, 0], sizes = [1, 256], strides = [1, 1]} : vector<32x256xf32> to vector<1x256xf32>
    %726 = vector.broadcast %28 : vector<3x1xf32> to vector<3x256xf32>
    %727 = vector.broadcast %725 : vector<1x256xf32> to vector<3x256xf32>
    %728 = arith.mulf %726, %727 : vector<3x256xf32>
    %729 = arith.addf %724, %728 : vector<3x256xf32>
    %730 = vector.extract_strided_slice %678 {offsets = [10, 0], sizes = [1, 256], strides = [1, 1]} : vector<32x256xf32> to vector<1x256xf32>
    %731 = vector.broadcast %30 : vector<3x1xf32> to vector<3x256xf32>
    %732 = vector.broadcast %730 : vector<1x256xf32> to vector<3x256xf32>
    %733 = arith.mulf %731, %732 : vector<3x256xf32>
    %734 = arith.addf %729, %733 : vector<3x256xf32>
    %735 = vector.extract_strided_slice %678 {offsets = [11, 0], sizes = [1, 256], strides = [1, 1]} : vector<32x256xf32> to vector<1x256xf32>
    %736 = vector.broadcast %32 : vector<3x1xf32> to vector<3x256xf32>
    %737 = vector.broadcast %735 : vector<1x256xf32> to vector<3x256xf32>
    %738 = arith.mulf %736, %737 : vector<3x256xf32>
    %739 = arith.addf %734, %738 : vector<3x256xf32>
    %740 = vector.extract_strided_slice %678 {offsets = [12, 0], sizes = [1, 256], strides = [1, 1]} : vector<32x256xf32> to vector<1x256xf32>
    %741 = vector.broadcast %34 : vector<3x1xf32> to vector<3x256xf32>
    %742 = vector.broadcast %740 : vector<1x256xf32> to vector<3x256xf32>
    %743 = arith.mulf %741, %742 : vector<3x256xf32>
    %744 = arith.addf %739, %743 : vector<3x256xf32>
    %745 = vector.extract_strided_slice %678 {offsets = [13, 0], sizes = [1, 256], strides = [1, 1]} : vector<32x256xf32> to vector<1x256xf32>
    %746 = vector.broadcast %36 : vector<3x1xf32> to vector<3x256xf32>
    %747 = vector.broadcast %745 : vector<1x256xf32> to vector<3x256xf32>
    %748 = arith.mulf %746, %747 : vector<3x256xf32>
    %749 = arith.addf %744, %748 : vector<3x256xf32>
    %750 = vector.extract_strided_slice %678 {offsets = [14, 0], sizes = [1, 256], strides = [1, 1]} : vector<32x256xf32> to vector<1x256xf32>
    %751 = vector.broadcast %38 : vector<3x1xf32> to vector<3x256xf32>
    %752 = vector.broadcast %750 : vector<1x256xf32> to vector<3x256xf32>
    %753 = arith.mulf %751, %752 : vector<3x256xf32>
    %754 = arith.addf %749, %753 : vector<3x256xf32>
    %755 = vector.extract_strided_slice %678 {offsets = [15, 0], sizes = [1, 256], strides = [1, 1]} : vector<32x256xf32> to vector<1x256xf32>
    %756 = vector.broadcast %40 : vector<3x1xf32> to vector<3x256xf32>
    %757 = vector.broadcast %755 : vector<1x256xf32> to vector<3x256xf32>
    %758 = arith.mulf %756, %757 : vector<3x256xf32>
    %759 = arith.addf %754, %758 : vector<3x256xf32>
    %760 = vector.extract_strided_slice %678 {offsets = [16, 0], sizes = [1, 256], strides = [1, 1]} : vector<32x256xf32> to vector<1x256xf32>
    %761 = vector.broadcast %42 : vector<3x1xf32> to vector<3x256xf32>
    %762 = vector.broadcast %760 : vector<1x256xf32> to vector<3x256xf32>
    %763 = arith.mulf %761, %762 : vector<3x256xf32>
    %764 = arith.addf %759, %763 : vector<3x256xf32>
    %765 = vector.extract_strided_slice %678 {offsets = [17, 0], sizes = [1, 256], strides = [1, 1]} : vector<32x256xf32> to vector<1x256xf32>
    %766 = vector.broadcast %44 : vector<3x1xf32> to vector<3x256xf32>
    %767 = vector.broadcast %765 : vector<1x256xf32> to vector<3x256xf32>
    %768 = arith.mulf %766, %767 : vector<3x256xf32>
    %769 = arith.addf %764, %768 : vector<3x256xf32>
    %770 = vector.extract_strided_slice %678 {offsets = [18, 0], sizes = [1, 256], strides = [1, 1]} : vector<32x256xf32> to vector<1x256xf32>
    %771 = vector.broadcast %46 : vector<3x1xf32> to vector<3x256xf32>
    %772 = vector.broadcast %770 : vector<1x256xf32> to vector<3x256xf32>
    %773 = arith.mulf %771, %772 : vector<3x256xf32>
    %774 = arith.addf %769, %773 : vector<3x256xf32>
    %775 = vector.extract_strided_slice %678 {offsets = [19, 0], sizes = [1, 256], strides = [1, 1]} : vector<32x256xf32> to vector<1x256xf32>
    %776 = vector.broadcast %48 : vector<3x1xf32> to vector<3x256xf32>
    %777 = vector.broadcast %775 : vector<1x256xf32> to vector<3x256xf32>
    %778 = arith.mulf %776, %777 : vector<3x256xf32>
    %779 = arith.addf %774, %778 : vector<3x256xf32>
    %780 = vector.extract_strided_slice %678 {offsets = [20, 0], sizes = [1, 256], strides = [1, 1]} : vector<32x256xf32> to vector<1x256xf32>
    %781 = vector.broadcast %50 : vector<3x1xf32> to vector<3x256xf32>
    %782 = vector.broadcast %780 : vector<1x256xf32> to vector<3x256xf32>
    %783 = arith.mulf %781, %782 : vector<3x256xf32>
    %784 = arith.addf %779, %783 : vector<3x256xf32>
    %785 = vector.extract_strided_slice %678 {offsets = [21, 0], sizes = [1, 256], strides = [1, 1]} : vector<32x256xf32> to vector<1x256xf32>
    %786 = vector.broadcast %52 : vector<3x1xf32> to vector<3x256xf32>
    %787 = vector.broadcast %785 : vector<1x256xf32> to vector<3x256xf32>
    %788 = arith.mulf %786, %787 : vector<3x256xf32>
    %789 = arith.addf %784, %788 : vector<3x256xf32>
    %790 = vector.extract_strided_slice %678 {offsets = [22, 0], sizes = [1, 256], strides = [1, 1]} : vector<32x256xf32> to vector<1x256xf32>
    %791 = vector.broadcast %54 : vector<3x1xf32> to vector<3x256xf32>
    %792 = vector.broadcast %790 : vector<1x256xf32> to vector<3x256xf32>
    %793 = arith.mulf %791, %792 : vector<3x256xf32>
    %794 = arith.addf %789, %793 : vector<3x256xf32>
    %795 = vector.extract_strided_slice %678 {offsets = [23, 0], sizes = [1, 256], strides = [1, 1]} : vector<32x256xf32> to vector<1x256xf32>
    %796 = vector.broadcast %56 : vector<3x1xf32> to vector<3x256xf32>
    %797 = vector.broadcast %795 : vector<1x256xf32> to vector<3x256xf32>
    %798 = arith.mulf %796, %797 : vector<3x256xf32>
    %799 = arith.addf %794, %798 : vector<3x256xf32>
    %800 = vector.extract_strided_slice %678 {offsets = [24, 0], sizes = [1, 256], strides = [1, 1]} : vector<32x256xf32> to vector<1x256xf32>
    %801 = vector.broadcast %58 : vector<3x1xf32> to vector<3x256xf32>
    %802 = vector.broadcast %800 : vector<1x256xf32> to vector<3x256xf32>
    %803 = arith.mulf %801, %802 : vector<3x256xf32>
    %804 = arith.addf %799, %803 : vector<3x256xf32>
    %805 = vector.extract_strided_slice %678 {offsets = [25, 0], sizes = [1, 256], strides = [1, 1]} : vector<32x256xf32> to vector<1x256xf32>
    %806 = vector.broadcast %60 : vector<3x1xf32> to vector<3x256xf32>
    %807 = vector.broadcast %805 : vector<1x256xf32> to vector<3x256xf32>
    %808 = arith.mulf %806, %807 : vector<3x256xf32>
    %809 = arith.addf %804, %808 : vector<3x256xf32>
    %810 = vector.extract_strided_slice %678 {offsets = [26, 0], sizes = [1, 256], strides = [1, 1]} : vector<32x256xf32> to vector<1x256xf32>
    %811 = vector.broadcast %62 : vector<3x1xf32> to vector<3x256xf32>
    %812 = vector.broadcast %810 : vector<1x256xf32> to vector<3x256xf32>
    %813 = arith.mulf %811, %812 : vector<3x256xf32>
    %814 = arith.addf %809, %813 : vector<3x256xf32>
    %815 = vector.extract_strided_slice %678 {offsets = [27, 0], sizes = [1, 256], strides = [1, 1]} : vector<32x256xf32> to vector<1x256xf32>
    %816 = vector.broadcast %64 : vector<3x1xf32> to vector<3x256xf32>
    %817 = vector.broadcast %815 : vector<1x256xf32> to vector<3x256xf32>
    %818 = arith.mulf %816, %817 : vector<3x256xf32>
    %819 = arith.addf %814, %818 : vector<3x256xf32>
    %820 = vector.extract_strided_slice %678 {offsets = [28, 0], sizes = [1, 256], strides = [1, 1]} : vector<32x256xf32> to vector<1x256xf32>
    %821 = vector.broadcast %66 : vector<3x1xf32> to vector<3x256xf32>
    %822 = vector.broadcast %820 : vector<1x256xf32> to vector<3x256xf32>
    %823 = arith.mulf %821, %822 : vector<3x256xf32>
    %824 = arith.addf %819, %823 : vector<3x256xf32>
    %825 = vector.extract_strided_slice %678 {offsets = [29, 0], sizes = [1, 256], strides = [1, 1]} : vector<32x256xf32> to vector<1x256xf32>
    %826 = vector.broadcast %68 : vector<3x1xf32> to vector<3x256xf32>
    %827 = vector.broadcast %825 : vector<1x256xf32> to vector<3x256xf32>
    %828 = arith.mulf %826, %827 : vector<3x256xf32>
    %829 = arith.addf %824, %828 : vector<3x256xf32>
    %830 = vector.extract_strided_slice %678 {offsets = [30, 0], sizes = [1, 256], strides = [1, 1]} : vector<32x256xf32> to vector<1x256xf32>
    %831 = vector.broadcast %70 : vector<3x1xf32> to vector<3x256xf32>
    %832 = vector.broadcast %830 : vector<1x256xf32> to vector<3x256xf32>
    %833 = arith.mulf %831, %832 : vector<3x256xf32>
    %834 = arith.addf %829, %833 : vector<3x256xf32>
    %835 = vector.extract_strided_slice %678 {offsets = [31, 0], sizes = [1, 256], strides = [1, 1]} : vector<32x256xf32> to vector<1x256xf32>
    %836 = vector.broadcast %72 : vector<3x1xf32> to vector<3x256xf32>
    %837 = vector.broadcast %835 : vector<1x256xf32> to vector<3x256xf32>
    %838 = arith.mulf %836, %837 : vector<3x256xf32>
    %839 = arith.addf %834, %838 : vector<3x256xf32>
    %c4_112 = arith.constant 4 : index
    %840 = memref.load %arg1[%c4_112] : memref<8xf32, #tpu.memory_space<smem>>
    %841 = vector.broadcast %840 : f32 to vector<3x256xf32>
    %842 = arith.mulf %657, %841 : vector<3x256xf32>
    %c4_113 = arith.constant 4 : index
    %843 = memref.load %arg2[%c4_113] : memref<8xf32, #tpu.memory_space<smem>>
    %844 = vector.broadcast %843 : f32 to vector<3x256xf32>
    %845 = arith.mulf %844, %839 : vector<3x256xf32>
    %846 = arith.subf %842, %845 : vector<3x256xf32>
    %c4_114 = arith.constant 4 : index
    %847 = memref.load %arg3[%c4_114] : memref<8xf32, #tpu.memory_space<smem>>
    %c4_115 = arith.constant 4 : index
    %c0_116 = arith.constant 0 : index
    %c0_117 = arith.constant 0 : index
    %848 = vector.load %arg6[%c4_115, %c0_116, %c0_117] : memref<8x3x256xf32, #tpu.memory_space<vmem>>, vector<1x3x256xf32>
    %849 = vector.shape_cast %848 : vector<1x3x256xf32> to vector<3x256xf32>
    %850 = vector.broadcast %847 : f32 to vector<3x256xf32>
    %851 = arith.mulf %850, %849 : vector<3x256xf32>
    %852 = arith.addf %846, %851 : vector<3x256xf32>
    %c3_118 = arith.constant 3 : index
    %c0_119 = arith.constant 0 : index
    %c0_120 = arith.constant 0 : index
    %853 = vector.load %arg7[%c3_118, %c0_119, %c0_120] : memref<8x32x1xf32, #tpu.memory_space<vmem>>, vector<1x32x1xf32>
    %854 = vector.shape_cast %853 : vector<1x32x1xf32> to vector<32x1xf32>
    %855 = vector.broadcast %854 : vector<32x1xf32> to vector<32x256xf32>
    %856 = arith.addf %1, %855 : vector<32x256xf32>
    %857 = vector.extract_strided_slice %852 {offsets = [0, 0], sizes = [1, 256], strides = [1, 1]} : vector<3x256xf32> to vector<1x256xf32>
    %858 = vector.broadcast %4 : vector<32x1xf32> to vector<32x256xf32>
    %859 = vector.broadcast %857 : vector<1x256xf32> to vector<32x256xf32>
    %860 = arith.mulf %858, %859 : vector<32x256xf32>
    %861 = arith.addf %856, %860 : vector<32x256xf32>
    %862 = vector.extract_strided_slice %852 {offsets = [1, 0], sizes = [1, 256], strides = [1, 1]} : vector<3x256xf32> to vector<1x256xf32>
    %863 = vector.broadcast %6 : vector<32x1xf32> to vector<32x256xf32>
    %864 = vector.broadcast %862 : vector<1x256xf32> to vector<32x256xf32>
    %865 = arith.mulf %863, %864 : vector<32x256xf32>
    %866 = arith.addf %861, %865 : vector<32x256xf32>
    %867 = vector.extract_strided_slice %852 {offsets = [2, 0], sizes = [1, 256], strides = [1, 1]} : vector<3x256xf32> to vector<1x256xf32>
    %868 = vector.broadcast %8 : vector<32x1xf32> to vector<32x256xf32>
    %869 = vector.broadcast %867 : vector<1x256xf32> to vector<32x256xf32>
    %870 = arith.mulf %868, %869 : vector<32x256xf32>
    %871 = arith.addf %866, %870 : vector<32x256xf32>
    %cst_121 = arith.constant 0.000000e+00 : f32
    %872 = vector.broadcast %cst_121 : f32 to vector<32x256xf32>
    %873 = arith.maximumf %871, %872 : vector<32x256xf32>
    %874 = vector.extract_strided_slice %873 {offsets = [0, 0], sizes = [1, 256], strides = [1, 1]} : vector<32x256xf32> to vector<1x256xf32>
    %875 = vector.broadcast %10 : vector<3x1xf32> to vector<3x256xf32>
    %876 = vector.broadcast %874 : vector<1x256xf32> to vector<3x256xf32>
    %877 = arith.mulf %875, %876 : vector<3x256xf32>
    %878 = vector.broadcast %2 : vector<3x1xf32> to vector<3x256xf32>
    %879 = arith.addf %878, %877 : vector<3x256xf32>
    %880 = vector.extract_strided_slice %873 {offsets = [1, 0], sizes = [1, 256], strides = [1, 1]} : vector<32x256xf32> to vector<1x256xf32>
    %881 = vector.broadcast %12 : vector<3x1xf32> to vector<3x256xf32>
    %882 = vector.broadcast %880 : vector<1x256xf32> to vector<3x256xf32>
    %883 = arith.mulf %881, %882 : vector<3x256xf32>
    %884 = arith.addf %879, %883 : vector<3x256xf32>
    %885 = vector.extract_strided_slice %873 {offsets = [2, 0], sizes = [1, 256], strides = [1, 1]} : vector<32x256xf32> to vector<1x256xf32>
    %886 = vector.broadcast %14 : vector<3x1xf32> to vector<3x256xf32>
    %887 = vector.broadcast %885 : vector<1x256xf32> to vector<3x256xf32>
    %888 = arith.mulf %886, %887 : vector<3x256xf32>
    %889 = arith.addf %884, %888 : vector<3x256xf32>
    %890 = vector.extract_strided_slice %873 {offsets = [3, 0], sizes = [1, 256], strides = [1, 1]} : vector<32x256xf32> to vector<1x256xf32>
    %891 = vector.broadcast %16 : vector<3x1xf32> to vector<3x256xf32>
    %892 = vector.broadcast %890 : vector<1x256xf32> to vector<3x256xf32>
    %893 = arith.mulf %891, %892 : vector<3x256xf32>
    %894 = arith.addf %889, %893 : vector<3x256xf32>
    %895 = vector.extract_strided_slice %873 {offsets = [4, 0], sizes = [1, 256], strides = [1, 1]} : vector<32x256xf32> to vector<1x256xf32>
    %896 = vector.broadcast %18 : vector<3x1xf32> to vector<3x256xf32>
    %897 = vector.broadcast %895 : vector<1x256xf32> to vector<3x256xf32>
    %898 = arith.mulf %896, %897 : vector<3x256xf32>
    %899 = arith.addf %894, %898 : vector<3x256xf32>
    %900 = vector.extract_strided_slice %873 {offsets = [5, 0], sizes = [1, 256], strides = [1, 1]} : vector<32x256xf32> to vector<1x256xf32>
    %901 = vector.broadcast %20 : vector<3x1xf32> to vector<3x256xf32>
    %902 = vector.broadcast %900 : vector<1x256xf32> to vector<3x256xf32>
    %903 = arith.mulf %901, %902 : vector<3x256xf32>
    %904 = arith.addf %899, %903 : vector<3x256xf32>
    %905 = vector.extract_strided_slice %873 {offsets = [6, 0], sizes = [1, 256], strides = [1, 1]} : vector<32x256xf32> to vector<1x256xf32>
    %906 = vector.broadcast %22 : vector<3x1xf32> to vector<3x256xf32>
    %907 = vector.broadcast %905 : vector<1x256xf32> to vector<3x256xf32>
    %908 = arith.mulf %906, %907 : vector<3x256xf32>
    %909 = arith.addf %904, %908 : vector<3x256xf32>
    %910 = vector.extract_strided_slice %873 {offsets = [7, 0], sizes = [1, 256], strides = [1, 1]} : vector<32x256xf32> to vector<1x256xf32>
    %911 = vector.broadcast %24 : vector<3x1xf32> to vector<3x256xf32>
    %912 = vector.broadcast %910 : vector<1x256xf32> to vector<3x256xf32>
    %913 = arith.mulf %911, %912 : vector<3x256xf32>
    %914 = arith.addf %909, %913 : vector<3x256xf32>
    %915 = vector.extract_strided_slice %873 {offsets = [8, 0], sizes = [1, 256], strides = [1, 1]} : vector<32x256xf32> to vector<1x256xf32>
    %916 = vector.broadcast %26 : vector<3x1xf32> to vector<3x256xf32>
    %917 = vector.broadcast %915 : vector<1x256xf32> to vector<3x256xf32>
    %918 = arith.mulf %916, %917 : vector<3x256xf32>
    %919 = arith.addf %914, %918 : vector<3x256xf32>
    %920 = vector.extract_strided_slice %873 {offsets = [9, 0], sizes = [1, 256], strides = [1, 1]} : vector<32x256xf32> to vector<1x256xf32>
    %921 = vector.broadcast %28 : vector<3x1xf32> to vector<3x256xf32>
    %922 = vector.broadcast %920 : vector<1x256xf32> to vector<3x256xf32>
    %923 = arith.mulf %921, %922 : vector<3x256xf32>
    %924 = arith.addf %919, %923 : vector<3x256xf32>
    %925 = vector.extract_strided_slice %873 {offsets = [10, 0], sizes = [1, 256], strides = [1, 1]} : vector<32x256xf32> to vector<1x256xf32>
    %926 = vector.broadcast %30 : vector<3x1xf32> to vector<3x256xf32>
    %927 = vector.broadcast %925 : vector<1x256xf32> to vector<3x256xf32>
    %928 = arith.mulf %926, %927 : vector<3x256xf32>
    %929 = arith.addf %924, %928 : vector<3x256xf32>
    %930 = vector.extract_strided_slice %873 {offsets = [11, 0], sizes = [1, 256], strides = [1, 1]} : vector<32x256xf32> to vector<1x256xf32>
    %931 = vector.broadcast %32 : vector<3x1xf32> to vector<3x256xf32>
    %932 = vector.broadcast %930 : vector<1x256xf32> to vector<3x256xf32>
    %933 = arith.mulf %931, %932 : vector<3x256xf32>
    %934 = arith.addf %929, %933 : vector<3x256xf32>
    %935 = vector.extract_strided_slice %873 {offsets = [12, 0], sizes = [1, 256], strides = [1, 1]} : vector<32x256xf32> to vector<1x256xf32>
    %936 = vector.broadcast %34 : vector<3x1xf32> to vector<3x256xf32>
    %937 = vector.broadcast %935 : vector<1x256xf32> to vector<3x256xf32>
    %938 = arith.mulf %936, %937 : vector<3x256xf32>
    %939 = arith.addf %934, %938 : vector<3x256xf32>
    %940 = vector.extract_strided_slice %873 {offsets = [13, 0], sizes = [1, 256], strides = [1, 1]} : vector<32x256xf32> to vector<1x256xf32>
    %941 = vector.broadcast %36 : vector<3x1xf32> to vector<3x256xf32>
    %942 = vector.broadcast %940 : vector<1x256xf32> to vector<3x256xf32>
    %943 = arith.mulf %941, %942 : vector<3x256xf32>
    %944 = arith.addf %939, %943 : vector<3x256xf32>
    %945 = vector.extract_strided_slice %873 {offsets = [14, 0], sizes = [1, 256], strides = [1, 1]} : vector<32x256xf32> to vector<1x256xf32>
    %946 = vector.broadcast %38 : vector<3x1xf32> to vector<3x256xf32>
    %947 = vector.broadcast %945 : vector<1x256xf32> to vector<3x256xf32>
    %948 = arith.mulf %946, %947 : vector<3x256xf32>
    %949 = arith.addf %944, %948 : vector<3x256xf32>
    %950 = vector.extract_strided_slice %873 {offsets = [15, 0], sizes = [1, 256], strides = [1, 1]} : vector<32x256xf32> to vector<1x256xf32>
    %951 = vector.broadcast %40 : vector<3x1xf32> to vector<3x256xf32>
    %952 = vector.broadcast %950 : vector<1x256xf32> to vector<3x256xf32>
    %953 = arith.mulf %951, %952 : vector<3x256xf32>
    %954 = arith.addf %949, %953 : vector<3x256xf32>
    %955 = vector.extract_strided_slice %873 {offsets = [16, 0], sizes = [1, 256], strides = [1, 1]} : vector<32x256xf32> to vector<1x256xf32>
    %956 = vector.broadcast %42 : vector<3x1xf32> to vector<3x256xf32>
    %957 = vector.broadcast %955 : vector<1x256xf32> to vector<3x256xf32>
    %958 = arith.mulf %956, %957 : vector<3x256xf32>
    %959 = arith.addf %954, %958 : vector<3x256xf32>
    %960 = vector.extract_strided_slice %873 {offsets = [17, 0], sizes = [1, 256], strides = [1, 1]} : vector<32x256xf32> to vector<1x256xf32>
    %961 = vector.broadcast %44 : vector<3x1xf32> to vector<3x256xf32>
    %962 = vector.broadcast %960 : vector<1x256xf32> to vector<3x256xf32>
    %963 = arith.mulf %961, %962 : vector<3x256xf32>
    %964 = arith.addf %959, %963 : vector<3x256xf32>
    %965 = vector.extract_strided_slice %873 {offsets = [18, 0], sizes = [1, 256], strides = [1, 1]} : vector<32x256xf32> to vector<1x256xf32>
    %966 = vector.broadcast %46 : vector<3x1xf32> to vector<3x256xf32>
    %967 = vector.broadcast %965 : vector<1x256xf32> to vector<3x256xf32>
    %968 = arith.mulf %966, %967 : vector<3x256xf32>
    %969 = arith.addf %964, %968 : vector<3x256xf32>
    %970 = vector.extract_strided_slice %873 {offsets = [19, 0], sizes = [1, 256], strides = [1, 1]} : vector<32x256xf32> to vector<1x256xf32>
    %971 = vector.broadcast %48 : vector<3x1xf32> to vector<3x256xf32>
    %972 = vector.broadcast %970 : vector<1x256xf32> to vector<3x256xf32>
    %973 = arith.mulf %971, %972 : vector<3x256xf32>
    %974 = arith.addf %969, %973 : vector<3x256xf32>
    %975 = vector.extract_strided_slice %873 {offsets = [20, 0], sizes = [1, 256], strides = [1, 1]} : vector<32x256xf32> to vector<1x256xf32>
    %976 = vector.broadcast %50 : vector<3x1xf32> to vector<3x256xf32>
    %977 = vector.broadcast %975 : vector<1x256xf32> to vector<3x256xf32>
    %978 = arith.mulf %976, %977 : vector<3x256xf32>
    %979 = arith.addf %974, %978 : vector<3x256xf32>
    %980 = vector.extract_strided_slice %873 {offsets = [21, 0], sizes = [1, 256], strides = [1, 1]} : vector<32x256xf32> to vector<1x256xf32>
    %981 = vector.broadcast %52 : vector<3x1xf32> to vector<3x256xf32>
    %982 = vector.broadcast %980 : vector<1x256xf32> to vector<3x256xf32>
    %983 = arith.mulf %981, %982 : vector<3x256xf32>
    %984 = arith.addf %979, %983 : vector<3x256xf32>
    %985 = vector.extract_strided_slice %873 {offsets = [22, 0], sizes = [1, 256], strides = [1, 1]} : vector<32x256xf32> to vector<1x256xf32>
    %986 = vector.broadcast %54 : vector<3x1xf32> to vector<3x256xf32>
    %987 = vector.broadcast %985 : vector<1x256xf32> to vector<3x256xf32>
    %988 = arith.mulf %986, %987 : vector<3x256xf32>
    %989 = arith.addf %984, %988 : vector<3x256xf32>
    %990 = vector.extract_strided_slice %873 {offsets = [23, 0], sizes = [1, 256], strides = [1, 1]} : vector<32x256xf32> to vector<1x256xf32>
    %991 = vector.broadcast %56 : vector<3x1xf32> to vector<3x256xf32>
    %992 = vector.broadcast %990 : vector<1x256xf32> to vector<3x256xf32>
    %993 = arith.mulf %991, %992 : vector<3x256xf32>
    %994 = arith.addf %989, %993 : vector<3x256xf32>
    %995 = vector.extract_strided_slice %873 {offsets = [24, 0], sizes = [1, 256], strides = [1, 1]} : vector<32x256xf32> to vector<1x256xf32>
    %996 = vector.broadcast %58 : vector<3x1xf32> to vector<3x256xf32>
    %997 = vector.broadcast %995 : vector<1x256xf32> to vector<3x256xf32>
    %998 = arith.mulf %996, %997 : vector<3x256xf32>
    %999 = arith.addf %994, %998 : vector<3x256xf32>
    %1000 = vector.extract_strided_slice %873 {offsets = [25, 0], sizes = [1, 256], strides = [1, 1]} : vector<32x256xf32> to vector<1x256xf32>
    %1001 = vector.broadcast %60 : vector<3x1xf32> to vector<3x256xf32>
    %1002 = vector.broadcast %1000 : vector<1x256xf32> to vector<3x256xf32>
    %1003 = arith.mulf %1001, %1002 : vector<3x256xf32>
    %1004 = arith.addf %999, %1003 : vector<3x256xf32>
    %1005 = vector.extract_strided_slice %873 {offsets = [26, 0], sizes = [1, 256], strides = [1, 1]} : vector<32x256xf32> to vector<1x256xf32>
    %1006 = vector.broadcast %62 : vector<3x1xf32> to vector<3x256xf32>
    %1007 = vector.broadcast %1005 : vector<1x256xf32> to vector<3x256xf32>
    %1008 = arith.mulf %1006, %1007 : vector<3x256xf32>
    %1009 = arith.addf %1004, %1008 : vector<3x256xf32>
    %1010 = vector.extract_strided_slice %873 {offsets = [27, 0], sizes = [1, 256], strides = [1, 1]} : vector<32x256xf32> to vector<1x256xf32>
    %1011 = vector.broadcast %64 : vector<3x1xf32> to vector<3x256xf32>
    %1012 = vector.broadcast %1010 : vector<1x256xf32> to vector<3x256xf32>
    %1013 = arith.mulf %1011, %1012 : vector<3x256xf32>
    %1014 = arith.addf %1009, %1013 : vector<3x256xf32>
    %1015 = vector.extract_strided_slice %873 {offsets = [28, 0], sizes = [1, 256], strides = [1, 1]} : vector<32x256xf32> to vector<1x256xf32>
    %1016 = vector.broadcast %66 : vector<3x1xf32> to vector<3x256xf32>
    %1017 = vector.broadcast %1015 : vector<1x256xf32> to vector<3x256xf32>
    %1018 = arith.mulf %1016, %1017 : vector<3x256xf32>
    %1019 = arith.addf %1014, %1018 : vector<3x256xf32>
    %1020 = vector.extract_strided_slice %873 {offsets = [29, 0], sizes = [1, 256], strides = [1, 1]} : vector<32x256xf32> to vector<1x256xf32>
    %1021 = vector.broadcast %68 : vector<3x1xf32> to vector<3x256xf32>
    %1022 = vector.broadcast %1020 : vector<1x256xf32> to vector<3x256xf32>
    %1023 = arith.mulf %1021, %1022 : vector<3x256xf32>
    %1024 = arith.addf %1019, %1023 : vector<3x256xf32>
    %1025 = vector.extract_strided_slice %873 {offsets = [30, 0], sizes = [1, 256], strides = [1, 1]} : vector<32x256xf32> to vector<1x256xf32>
    %1026 = vector.broadcast %70 : vector<3x1xf32> to vector<3x256xf32>
    %1027 = vector.broadcast %1025 : vector<1x256xf32> to vector<3x256xf32>
    %1028 = arith.mulf %1026, %1027 : vector<3x256xf32>
    %1029 = arith.addf %1024, %1028 : vector<3x256xf32>
    %1030 = vector.extract_strided_slice %873 {offsets = [31, 0], sizes = [1, 256], strides = [1, 1]} : vector<32x256xf32> to vector<1x256xf32>
    %1031 = vector.broadcast %72 : vector<3x1xf32> to vector<3x256xf32>
    %1032 = vector.broadcast %1030 : vector<1x256xf32> to vector<3x256xf32>
    %1033 = arith.mulf %1031, %1032 : vector<3x256xf32>
    %1034 = arith.addf %1029, %1033 : vector<3x256xf32>
    %c3_122 = arith.constant 3 : index
    %1035 = memref.load %arg1[%c3_122] : memref<8xf32, #tpu.memory_space<smem>>
    %1036 = vector.broadcast %1035 : f32 to vector<3x256xf32>
    %1037 = arith.mulf %852, %1036 : vector<3x256xf32>
    %c3_123 = arith.constant 3 : index
    %1038 = memref.load %arg2[%c3_123] : memref<8xf32, #tpu.memory_space<smem>>
    %1039 = vector.broadcast %1038 : f32 to vector<3x256xf32>
    %1040 = arith.mulf %1039, %1034 : vector<3x256xf32>
    %1041 = arith.subf %1037, %1040 : vector<3x256xf32>
    %c3_124 = arith.constant 3 : index
    %1042 = memref.load %arg3[%c3_124] : memref<8xf32, #tpu.memory_space<smem>>
    %c3_125 = arith.constant 3 : index
    %c0_126 = arith.constant 0 : index
    %c0_127 = arith.constant 0 : index
    %1043 = vector.load %arg6[%c3_125, %c0_126, %c0_127] : memref<8x3x256xf32, #tpu.memory_space<vmem>>, vector<1x3x256xf32>
    %1044 = vector.shape_cast %1043 : vector<1x3x256xf32> to vector<3x256xf32>
    %1045 = vector.broadcast %1042 : f32 to vector<3x256xf32>
    %1046 = arith.mulf %1045, %1044 : vector<3x256xf32>
    %1047 = arith.addf %1041, %1046 : vector<3x256xf32>
    %c2_128 = arith.constant 2 : index
    %c0_129 = arith.constant 0 : index
    %c0_130 = arith.constant 0 : index
    %1048 = vector.load %arg7[%c2_128, %c0_129, %c0_130] : memref<8x32x1xf32, #tpu.memory_space<vmem>>, vector<1x32x1xf32>
    %1049 = vector.shape_cast %1048 : vector<1x32x1xf32> to vector<32x1xf32>
    %1050 = vector.broadcast %1049 : vector<32x1xf32> to vector<32x256xf32>
    %1051 = arith.addf %1, %1050 : vector<32x256xf32>
    %1052 = vector.extract_strided_slice %1047 {offsets = [0, 0], sizes = [1, 256], strides = [1, 1]} : vector<3x256xf32> to vector<1x256xf32>
    %1053 = vector.broadcast %4 : vector<32x1xf32> to vector<32x256xf32>
    %1054 = vector.broadcast %1052 : vector<1x256xf32> to vector<32x256xf32>
    %1055 = arith.mulf %1053, %1054 : vector<32x256xf32>
    %1056 = arith.addf %1051, %1055 : vector<32x256xf32>
    %1057 = vector.extract_strided_slice %1047 {offsets = [1, 0], sizes = [1, 256], strides = [1, 1]} : vector<3x256xf32> to vector<1x256xf32>
    %1058 = vector.broadcast %6 : vector<32x1xf32> to vector<32x256xf32>
    %1059 = vector.broadcast %1057 : vector<1x256xf32> to vector<32x256xf32>
    %1060 = arith.mulf %1058, %1059 : vector<32x256xf32>
    %1061 = arith.addf %1056, %1060 : vector<32x256xf32>
    %1062 = vector.extract_strided_slice %1047 {offsets = [2, 0], sizes = [1, 256], strides = [1, 1]} : vector<3x256xf32> to vector<1x256xf32>
    %1063 = vector.broadcast %8 : vector<32x1xf32> to vector<32x256xf32>
    %1064 = vector.broadcast %1062 : vector<1x256xf32> to vector<32x256xf32>
    %1065 = arith.mulf %1063, %1064 : vector<32x256xf32>
    %1066 = arith.addf %1061, %1065 : vector<32x256xf32>
    %cst_131 = arith.constant 0.000000e+00 : f32
    %1067 = vector.broadcast %cst_131 : f32 to vector<32x256xf32>
    %1068 = arith.maximumf %1066, %1067 : vector<32x256xf32>
    %1069 = vector.extract_strided_slice %1068 {offsets = [0, 0], sizes = [1, 256], strides = [1, 1]} : vector<32x256xf32> to vector<1x256xf32>
    %1070 = vector.broadcast %10 : vector<3x1xf32> to vector<3x256xf32>
    %1071 = vector.broadcast %1069 : vector<1x256xf32> to vector<3x256xf32>
    %1072 = arith.mulf %1070, %1071 : vector<3x256xf32>
    %1073 = vector.broadcast %2 : vector<3x1xf32> to vector<3x256xf32>
    %1074 = arith.addf %1073, %1072 : vector<3x256xf32>
    %1075 = vector.extract_strided_slice %1068 {offsets = [1, 0], sizes = [1, 256], strides = [1, 1]} : vector<32x256xf32> to vector<1x256xf32>
    %1076 = vector.broadcast %12 : vector<3x1xf32> to vector<3x256xf32>
    %1077 = vector.broadcast %1075 : vector<1x256xf32> to vector<3x256xf32>
    %1078 = arith.mulf %1076, %1077 : vector<3x256xf32>
    %1079 = arith.addf %1074, %1078 : vector<3x256xf32>
    %1080 = vector.extract_strided_slice %1068 {offsets = [2, 0], sizes = [1, 256], strides = [1, 1]} : vector<32x256xf32> to vector<1x256xf32>
    %1081 = vector.broadcast %14 : vector<3x1xf32> to vector<3x256xf32>
    %1082 = vector.broadcast %1080 : vector<1x256xf32> to vector<3x256xf32>
    %1083 = arith.mulf %1081, %1082 : vector<3x256xf32>
    %1084 = arith.addf %1079, %1083 : vector<3x256xf32>
    %1085 = vector.extract_strided_slice %1068 {offsets = [3, 0], sizes = [1, 256], strides = [1, 1]} : vector<32x256xf32> to vector<1x256xf32>
    %1086 = vector.broadcast %16 : vector<3x1xf32> to vector<3x256xf32>
    %1087 = vector.broadcast %1085 : vector<1x256xf32> to vector<3x256xf32>
    %1088 = arith.mulf %1086, %1087 : vector<3x256xf32>
    %1089 = arith.addf %1084, %1088 : vector<3x256xf32>
    %1090 = vector.extract_strided_slice %1068 {offsets = [4, 0], sizes = [1, 256], strides = [1, 1]} : vector<32x256xf32> to vector<1x256xf32>
    %1091 = vector.broadcast %18 : vector<3x1xf32> to vector<3x256xf32>
    %1092 = vector.broadcast %1090 : vector<1x256xf32> to vector<3x256xf32>
    %1093 = arith.mulf %1091, %1092 : vector<3x256xf32>
    %1094 = arith.addf %1089, %1093 : vector<3x256xf32>
    %1095 = vector.extract_strided_slice %1068 {offsets = [5, 0], sizes = [1, 256], strides = [1, 1]} : vector<32x256xf32> to vector<1x256xf32>
    %1096 = vector.broadcast %20 : vector<3x1xf32> to vector<3x256xf32>
    %1097 = vector.broadcast %1095 : vector<1x256xf32> to vector<3x256xf32>
    %1098 = arith.mulf %1096, %1097 : vector<3x256xf32>
    %1099 = arith.addf %1094, %1098 : vector<3x256xf32>
    %1100 = vector.extract_strided_slice %1068 {offsets = [6, 0], sizes = [1, 256], strides = [1, 1]} : vector<32x256xf32> to vector<1x256xf32>
    %1101 = vector.broadcast %22 : vector<3x1xf32> to vector<3x256xf32>
    %1102 = vector.broadcast %1100 : vector<1x256xf32> to vector<3x256xf32>
    %1103 = arith.mulf %1101, %1102 : vector<3x256xf32>
    %1104 = arith.addf %1099, %1103 : vector<3x256xf32>
    %1105 = vector.extract_strided_slice %1068 {offsets = [7, 0], sizes = [1, 256], strides = [1, 1]} : vector<32x256xf32> to vector<1x256xf32>
    %1106 = vector.broadcast %24 : vector<3x1xf32> to vector<3x256xf32>
    %1107 = vector.broadcast %1105 : vector<1x256xf32> to vector<3x256xf32>
    %1108 = arith.mulf %1106, %1107 : vector<3x256xf32>
    %1109 = arith.addf %1104, %1108 : vector<3x256xf32>
    %1110 = vector.extract_strided_slice %1068 {offsets = [8, 0], sizes = [1, 256], strides = [1, 1]} : vector<32x256xf32> to vector<1x256xf32>
    %1111 = vector.broadcast %26 : vector<3x1xf32> to vector<3x256xf32>
    %1112 = vector.broadcast %1110 : vector<1x256xf32> to vector<3x256xf32>
    %1113 = arith.mulf %1111, %1112 : vector<3x256xf32>
    %1114 = arith.addf %1109, %1113 : vector<3x256xf32>
    %1115 = vector.extract_strided_slice %1068 {offsets = [9, 0], sizes = [1, 256], strides = [1, 1]} : vector<32x256xf32> to vector<1x256xf32>
    %1116 = vector.broadcast %28 : vector<3x1xf32> to vector<3x256xf32>
    %1117 = vector.broadcast %1115 : vector<1x256xf32> to vector<3x256xf32>
    %1118 = arith.mulf %1116, %1117 : vector<3x256xf32>
    %1119 = arith.addf %1114, %1118 : vector<3x256xf32>
    %1120 = vector.extract_strided_slice %1068 {offsets = [10, 0], sizes = [1, 256], strides = [1, 1]} : vector<32x256xf32> to vector<1x256xf32>
    %1121 = vector.broadcast %30 : vector<3x1xf32> to vector<3x256xf32>
    %1122 = vector.broadcast %1120 : vector<1x256xf32> to vector<3x256xf32>
    %1123 = arith.mulf %1121, %1122 : vector<3x256xf32>
    %1124 = arith.addf %1119, %1123 : vector<3x256xf32>
    %1125 = vector.extract_strided_slice %1068 {offsets = [11, 0], sizes = [1, 256], strides = [1, 1]} : vector<32x256xf32> to vector<1x256xf32>
    %1126 = vector.broadcast %32 : vector<3x1xf32> to vector<3x256xf32>
    %1127 = vector.broadcast %1125 : vector<1x256xf32> to vector<3x256xf32>
    %1128 = arith.mulf %1126, %1127 : vector<3x256xf32>
    %1129 = arith.addf %1124, %1128 : vector<3x256xf32>
    %1130 = vector.extract_strided_slice %1068 {offsets = [12, 0], sizes = [1, 256], strides = [1, 1]} : vector<32x256xf32> to vector<1x256xf32>
    %1131 = vector.broadcast %34 : vector<3x1xf32> to vector<3x256xf32>
    %1132 = vector.broadcast %1130 : vector<1x256xf32> to vector<3x256xf32>
    %1133 = arith.mulf %1131, %1132 : vector<3x256xf32>
    %1134 = arith.addf %1129, %1133 : vector<3x256xf32>
    %1135 = vector.extract_strided_slice %1068 {offsets = [13, 0], sizes = [1, 256], strides = [1, 1]} : vector<32x256xf32> to vector<1x256xf32>
    %1136 = vector.broadcast %36 : vector<3x1xf32> to vector<3x256xf32>
    %1137 = vector.broadcast %1135 : vector<1x256xf32> to vector<3x256xf32>
    %1138 = arith.mulf %1136, %1137 : vector<3x256xf32>
    %1139 = arith.addf %1134, %1138 : vector<3x256xf32>
    %1140 = vector.extract_strided_slice %1068 {offsets = [14, 0], sizes = [1, 256], strides = [1, 1]} : vector<32x256xf32> to vector<1x256xf32>
    %1141 = vector.broadcast %38 : vector<3x1xf32> to vector<3x256xf32>
    %1142 = vector.broadcast %1140 : vector<1x256xf32> to vector<3x256xf32>
    %1143 = arith.mulf %1141, %1142 : vector<3x256xf32>
    %1144 = arith.addf %1139, %1143 : vector<3x256xf32>
    %1145 = vector.extract_strided_slice %1068 {offsets = [15, 0], sizes = [1, 256], strides = [1, 1]} : vector<32x256xf32> to vector<1x256xf32>
    %1146 = vector.broadcast %40 : vector<3x1xf32> to vector<3x256xf32>
    %1147 = vector.broadcast %1145 : vector<1x256xf32> to vector<3x256xf32>
    %1148 = arith.mulf %1146, %1147 : vector<3x256xf32>
    %1149 = arith.addf %1144, %1148 : vector<3x256xf32>
    %1150 = vector.extract_strided_slice %1068 {offsets = [16, 0], sizes = [1, 256], strides = [1, 1]} : vector<32x256xf32> to vector<1x256xf32>
    %1151 = vector.broadcast %42 : vector<3x1xf32> to vector<3x256xf32>
    %1152 = vector.broadcast %1150 : vector<1x256xf32> to vector<3x256xf32>
    %1153 = arith.mulf %1151, %1152 : vector<3x256xf32>
    %1154 = arith.addf %1149, %1153 : vector<3x256xf32>
    %1155 = vector.extract_strided_slice %1068 {offsets = [17, 0], sizes = [1, 256], strides = [1, 1]} : vector<32x256xf32> to vector<1x256xf32>
    %1156 = vector.broadcast %44 : vector<3x1xf32> to vector<3x256xf32>
    %1157 = vector.broadcast %1155 : vector<1x256xf32> to vector<3x256xf32>
    %1158 = arith.mulf %1156, %1157 : vector<3x256xf32>
    %1159 = arith.addf %1154, %1158 : vector<3x256xf32>
    %1160 = vector.extract_strided_slice %1068 {offsets = [18, 0], sizes = [1, 256], strides = [1, 1]} : vector<32x256xf32> to vector<1x256xf32>
    %1161 = vector.broadcast %46 : vector<3x1xf32> to vector<3x256xf32>
    %1162 = vector.broadcast %1160 : vector<1x256xf32> to vector<3x256xf32>
    %1163 = arith.mulf %1161, %1162 : vector<3x256xf32>
    %1164 = arith.addf %1159, %1163 : vector<3x256xf32>
    %1165 = vector.extract_strided_slice %1068 {offsets = [19, 0], sizes = [1, 256], strides = [1, 1]} : vector<32x256xf32> to vector<1x256xf32>
    %1166 = vector.broadcast %48 : vector<3x1xf32> to vector<3x256xf32>
    %1167 = vector.broadcast %1165 : vector<1x256xf32> to vector<3x256xf32>
    %1168 = arith.mulf %1166, %1167 : vector<3x256xf32>
    %1169 = arith.addf %1164, %1168 : vector<3x256xf32>
    %1170 = vector.extract_strided_slice %1068 {offsets = [20, 0], sizes = [1, 256], strides = [1, 1]} : vector<32x256xf32> to vector<1x256xf32>
    %1171 = vector.broadcast %50 : vector<3x1xf32> to vector<3x256xf32>
    %1172 = vector.broadcast %1170 : vector<1x256xf32> to vector<3x256xf32>
    %1173 = arith.mulf %1171, %1172 : vector<3x256xf32>
    %1174 = arith.addf %1169, %1173 : vector<3x256xf32>
    %1175 = vector.extract_strided_slice %1068 {offsets = [21, 0], sizes = [1, 256], strides = [1, 1]} : vector<32x256xf32> to vector<1x256xf32>
    %1176 = vector.broadcast %52 : vector<3x1xf32> to vector<3x256xf32>
    %1177 = vector.broadcast %1175 : vector<1x256xf32> to vector<3x256xf32>
    %1178 = arith.mulf %1176, %1177 : vector<3x256xf32>
    %1179 = arith.addf %1174, %1178 : vector<3x256xf32>
    %1180 = vector.extract_strided_slice %1068 {offsets = [22, 0], sizes = [1, 256], strides = [1, 1]} : vector<32x256xf32> to vector<1x256xf32>
    %1181 = vector.broadcast %54 : vector<3x1xf32> to vector<3x256xf32>
    %1182 = vector.broadcast %1180 : vector<1x256xf32> to vector<3x256xf32>
    %1183 = arith.mulf %1181, %1182 : vector<3x256xf32>
    %1184 = arith.addf %1179, %1183 : vector<3x256xf32>
    %1185 = vector.extract_strided_slice %1068 {offsets = [23, 0], sizes = [1, 256], strides = [1, 1]} : vector<32x256xf32> to vector<1x256xf32>
    %1186 = vector.broadcast %56 : vector<3x1xf32> to vector<3x256xf32>
    %1187 = vector.broadcast %1185 : vector<1x256xf32> to vector<3x256xf32>
    %1188 = arith.mulf %1186, %1187 : vector<3x256xf32>
    %1189 = arith.addf %1184, %1188 : vector<3x256xf32>
    %1190 = vector.extract_strided_slice %1068 {offsets = [24, 0], sizes = [1, 256], strides = [1, 1]} : vector<32x256xf32> to vector<1x256xf32>
    %1191 = vector.broadcast %58 : vector<3x1xf32> to vector<3x256xf32>
    %1192 = vector.broadcast %1190 : vector<1x256xf32> to vector<3x256xf32>
    %1193 = arith.mulf %1191, %1192 : vector<3x256xf32>
    %1194 = arith.addf %1189, %1193 : vector<3x256xf32>
    %1195 = vector.extract_strided_slice %1068 {offsets = [25, 0], sizes = [1, 256], strides = [1, 1]} : vector<32x256xf32> to vector<1x256xf32>
    %1196 = vector.broadcast %60 : vector<3x1xf32> to vector<3x256xf32>
    %1197 = vector.broadcast %1195 : vector<1x256xf32> to vector<3x256xf32>
    %1198 = arith.mulf %1196, %1197 : vector<3x256xf32>
    %1199 = arith.addf %1194, %1198 : vector<3x256xf32>
    %1200 = vector.extract_strided_slice %1068 {offsets = [26, 0], sizes = [1, 256], strides = [1, 1]} : vector<32x256xf32> to vector<1x256xf32>
    %1201 = vector.broadcast %62 : vector<3x1xf32> to vector<3x256xf32>
    %1202 = vector.broadcast %1200 : vector<1x256xf32> to vector<3x256xf32>
    %1203 = arith.mulf %1201, %1202 : vector<3x256xf32>
    %1204 = arith.addf %1199, %1203 : vector<3x256xf32>
    %1205 = vector.extract_strided_slice %1068 {offsets = [27, 0], sizes = [1, 256], strides = [1, 1]} : vector<32x256xf32> to vector<1x256xf32>
    %1206 = vector.broadcast %64 : vector<3x1xf32> to vector<3x256xf32>
    %1207 = vector.broadcast %1205 : vector<1x256xf32> to vector<3x256xf32>
    %1208 = arith.mulf %1206, %1207 : vector<3x256xf32>
    %1209 = arith.addf %1204, %1208 : vector<3x256xf32>
    %1210 = vector.extract_strided_slice %1068 {offsets = [28, 0], sizes = [1, 256], strides = [1, 1]} : vector<32x256xf32> to vector<1x256xf32>
    %1211 = vector.broadcast %66 : vector<3x1xf32> to vector<3x256xf32>
    %1212 = vector.broadcast %1210 : vector<1x256xf32> to vector<3x256xf32>
    %1213 = arith.mulf %1211, %1212 : vector<3x256xf32>
    %1214 = arith.addf %1209, %1213 : vector<3x256xf32>
    %1215 = vector.extract_strided_slice %1068 {offsets = [29, 0], sizes = [1, 256], strides = [1, 1]} : vector<32x256xf32> to vector<1x256xf32>
    %1216 = vector.broadcast %68 : vector<3x1xf32> to vector<3x256xf32>
    %1217 = vector.broadcast %1215 : vector<1x256xf32> to vector<3x256xf32>
    %1218 = arith.mulf %1216, %1217 : vector<3x256xf32>
    %1219 = arith.addf %1214, %1218 : vector<3x256xf32>
    %1220 = vector.extract_strided_slice %1068 {offsets = [30, 0], sizes = [1, 256], strides = [1, 1]} : vector<32x256xf32> to vector<1x256xf32>
    %1221 = vector.broadcast %70 : vector<3x1xf32> to vector<3x256xf32>
    %1222 = vector.broadcast %1220 : vector<1x256xf32> to vector<3x256xf32>
    %1223 = arith.mulf %1221, %1222 : vector<3x256xf32>
    %1224 = arith.addf %1219, %1223 : vector<3x256xf32>
    %1225 = vector.extract_strided_slice %1068 {offsets = [31, 0], sizes = [1, 256], strides = [1, 1]} : vector<32x256xf32> to vector<1x256xf32>
    %1226 = vector.broadcast %72 : vector<3x1xf32> to vector<3x256xf32>
    %1227 = vector.broadcast %1225 : vector<1x256xf32> to vector<3x256xf32>
    %1228 = arith.mulf %1226, %1227 : vector<3x256xf32>
    %1229 = arith.addf %1224, %1228 : vector<3x256xf32>
    %c2_132 = arith.constant 2 : index
    %1230 = memref.load %arg1[%c2_132] : memref<8xf32, #tpu.memory_space<smem>>
    %1231 = vector.broadcast %1230 : f32 to vector<3x256xf32>
    %1232 = arith.mulf %1047, %1231 : vector<3x256xf32>
    %c2_133 = arith.constant 2 : index
    %1233 = memref.load %arg2[%c2_133] : memref<8xf32, #tpu.memory_space<smem>>
    %1234 = vector.broadcast %1233 : f32 to vector<3x256xf32>
    %1235 = arith.mulf %1234, %1229 : vector<3x256xf32>
    %1236 = arith.subf %1232, %1235 : vector<3x256xf32>
    %c2_134 = arith.constant 2 : index
    %1237 = memref.load %arg3[%c2_134] : memref<8xf32, #tpu.memory_space<smem>>
    %c2_135 = arith.constant 2 : index
    %c0_136 = arith.constant 0 : index
    %c0_137 = arith.constant 0 : index
    %1238 = vector.load %arg6[%c2_135, %c0_136, %c0_137] : memref<8x3x256xf32, #tpu.memory_space<vmem>>, vector<1x3x256xf32>
    %1239 = vector.shape_cast %1238 : vector<1x3x256xf32> to vector<3x256xf32>
    %1240 = vector.broadcast %1237 : f32 to vector<3x256xf32>
    %1241 = arith.mulf %1240, %1239 : vector<3x256xf32>
    %1242 = arith.addf %1236, %1241 : vector<3x256xf32>
    %c1_138 = arith.constant 1 : index
    %c0_139 = arith.constant 0 : index
    %c0_140 = arith.constant 0 : index
    %1243 = vector.load %arg7[%c1_138, %c0_139, %c0_140] : memref<8x32x1xf32, #tpu.memory_space<vmem>>, vector<1x32x1xf32>
    %1244 = vector.shape_cast %1243 : vector<1x32x1xf32> to vector<32x1xf32>
    %1245 = vector.broadcast %1244 : vector<32x1xf32> to vector<32x256xf32>
    %1246 = arith.addf %1, %1245 : vector<32x256xf32>
    %1247 = vector.extract_strided_slice %1242 {offsets = [0, 0], sizes = [1, 256], strides = [1, 1]} : vector<3x256xf32> to vector<1x256xf32>
    %1248 = vector.broadcast %4 : vector<32x1xf32> to vector<32x256xf32>
    %1249 = vector.broadcast %1247 : vector<1x256xf32> to vector<32x256xf32>
    %1250 = arith.mulf %1248, %1249 : vector<32x256xf32>
    %1251 = arith.addf %1246, %1250 : vector<32x256xf32>
    %1252 = vector.extract_strided_slice %1242 {offsets = [1, 0], sizes = [1, 256], strides = [1, 1]} : vector<3x256xf32> to vector<1x256xf32>
    %1253 = vector.broadcast %6 : vector<32x1xf32> to vector<32x256xf32>
    %1254 = vector.broadcast %1252 : vector<1x256xf32> to vector<32x256xf32>
    %1255 = arith.mulf %1253, %1254 : vector<32x256xf32>
    %1256 = arith.addf %1251, %1255 : vector<32x256xf32>
    %1257 = vector.extract_strided_slice %1242 {offsets = [2, 0], sizes = [1, 256], strides = [1, 1]} : vector<3x256xf32> to vector<1x256xf32>
    %1258 = vector.broadcast %8 : vector<32x1xf32> to vector<32x256xf32>
    %1259 = vector.broadcast %1257 : vector<1x256xf32> to vector<32x256xf32>
    %1260 = arith.mulf %1258, %1259 : vector<32x256xf32>
    %1261 = arith.addf %1256, %1260 : vector<32x256xf32>
    %cst_141 = arith.constant 0.000000e+00 : f32
    %1262 = vector.broadcast %cst_141 : f32 to vector<32x256xf32>
    %1263 = arith.maximumf %1261, %1262 : vector<32x256xf32>
    %1264 = vector.extract_strided_slice %1263 {offsets = [0, 0], sizes = [1, 256], strides = [1, 1]} : vector<32x256xf32> to vector<1x256xf32>
    %1265 = vector.broadcast %10 : vector<3x1xf32> to vector<3x256xf32>
    %1266 = vector.broadcast %1264 : vector<1x256xf32> to vector<3x256xf32>
    %1267 = arith.mulf %1265, %1266 : vector<3x256xf32>
    %1268 = vector.broadcast %2 : vector<3x1xf32> to vector<3x256xf32>
    %1269 = arith.addf %1268, %1267 : vector<3x256xf32>
    %1270 = vector.extract_strided_slice %1263 {offsets = [1, 0], sizes = [1, 256], strides = [1, 1]} : vector<32x256xf32> to vector<1x256xf32>
    %1271 = vector.broadcast %12 : vector<3x1xf32> to vector<3x256xf32>
    %1272 = vector.broadcast %1270 : vector<1x256xf32> to vector<3x256xf32>
    %1273 = arith.mulf %1271, %1272 : vector<3x256xf32>
    %1274 = arith.addf %1269, %1273 : vector<3x256xf32>
    %1275 = vector.extract_strided_slice %1263 {offsets = [2, 0], sizes = [1, 256], strides = [1, 1]} : vector<32x256xf32> to vector<1x256xf32>
    %1276 = vector.broadcast %14 : vector<3x1xf32> to vector<3x256xf32>
    %1277 = vector.broadcast %1275 : vector<1x256xf32> to vector<3x256xf32>
    %1278 = arith.mulf %1276, %1277 : vector<3x256xf32>
    %1279 = arith.addf %1274, %1278 : vector<3x256xf32>
    %1280 = vector.extract_strided_slice %1263 {offsets = [3, 0], sizes = [1, 256], strides = [1, 1]} : vector<32x256xf32> to vector<1x256xf32>
    %1281 = vector.broadcast %16 : vector<3x1xf32> to vector<3x256xf32>
    %1282 = vector.broadcast %1280 : vector<1x256xf32> to vector<3x256xf32>
    %1283 = arith.mulf %1281, %1282 : vector<3x256xf32>
    %1284 = arith.addf %1279, %1283 : vector<3x256xf32>
    %1285 = vector.extract_strided_slice %1263 {offsets = [4, 0], sizes = [1, 256], strides = [1, 1]} : vector<32x256xf32> to vector<1x256xf32>
    %1286 = vector.broadcast %18 : vector<3x1xf32> to vector<3x256xf32>
    %1287 = vector.broadcast %1285 : vector<1x256xf32> to vector<3x256xf32>
    %1288 = arith.mulf %1286, %1287 : vector<3x256xf32>
    %1289 = arith.addf %1284, %1288 : vector<3x256xf32>
    %1290 = vector.extract_strided_slice %1263 {offsets = [5, 0], sizes = [1, 256], strides = [1, 1]} : vector<32x256xf32> to vector<1x256xf32>
    %1291 = vector.broadcast %20 : vector<3x1xf32> to vector<3x256xf32>
    %1292 = vector.broadcast %1290 : vector<1x256xf32> to vector<3x256xf32>
    %1293 = arith.mulf %1291, %1292 : vector<3x256xf32>
    %1294 = arith.addf %1289, %1293 : vector<3x256xf32>
    %1295 = vector.extract_strided_slice %1263 {offsets = [6, 0], sizes = [1, 256], strides = [1, 1]} : vector<32x256xf32> to vector<1x256xf32>
    %1296 = vector.broadcast %22 : vector<3x1xf32> to vector<3x256xf32>
    %1297 = vector.broadcast %1295 : vector<1x256xf32> to vector<3x256xf32>
    %1298 = arith.mulf %1296, %1297 : vector<3x256xf32>
    %1299 = arith.addf %1294, %1298 : vector<3x256xf32>
    %1300 = vector.extract_strided_slice %1263 {offsets = [7, 0], sizes = [1, 256], strides = [1, 1]} : vector<32x256xf32> to vector<1x256xf32>
    %1301 = vector.broadcast %24 : vector<3x1xf32> to vector<3x256xf32>
    %1302 = vector.broadcast %1300 : vector<1x256xf32> to vector<3x256xf32>
    %1303 = arith.mulf %1301, %1302 : vector<3x256xf32>
    %1304 = arith.addf %1299, %1303 : vector<3x256xf32>
    %1305 = vector.extract_strided_slice %1263 {offsets = [8, 0], sizes = [1, 256], strides = [1, 1]} : vector<32x256xf32> to vector<1x256xf32>
    %1306 = vector.broadcast %26 : vector<3x1xf32> to vector<3x256xf32>
    %1307 = vector.broadcast %1305 : vector<1x256xf32> to vector<3x256xf32>
    %1308 = arith.mulf %1306, %1307 : vector<3x256xf32>
    %1309 = arith.addf %1304, %1308 : vector<3x256xf32>
    %1310 = vector.extract_strided_slice %1263 {offsets = [9, 0], sizes = [1, 256], strides = [1, 1]} : vector<32x256xf32> to vector<1x256xf32>
    %1311 = vector.broadcast %28 : vector<3x1xf32> to vector<3x256xf32>
    %1312 = vector.broadcast %1310 : vector<1x256xf32> to vector<3x256xf32>
    %1313 = arith.mulf %1311, %1312 : vector<3x256xf32>
    %1314 = arith.addf %1309, %1313 : vector<3x256xf32>
    %1315 = vector.extract_strided_slice %1263 {offsets = [10, 0], sizes = [1, 256], strides = [1, 1]} : vector<32x256xf32> to vector<1x256xf32>
    %1316 = vector.broadcast %30 : vector<3x1xf32> to vector<3x256xf32>
    %1317 = vector.broadcast %1315 : vector<1x256xf32> to vector<3x256xf32>
    %1318 = arith.mulf %1316, %1317 : vector<3x256xf32>
    %1319 = arith.addf %1314, %1318 : vector<3x256xf32>
    %1320 = vector.extract_strided_slice %1263 {offsets = [11, 0], sizes = [1, 256], strides = [1, 1]} : vector<32x256xf32> to vector<1x256xf32>
    %1321 = vector.broadcast %32 : vector<3x1xf32> to vector<3x256xf32>
    %1322 = vector.broadcast %1320 : vector<1x256xf32> to vector<3x256xf32>
    %1323 = arith.mulf %1321, %1322 : vector<3x256xf32>
    %1324 = arith.addf %1319, %1323 : vector<3x256xf32>
    %1325 = vector.extract_strided_slice %1263 {offsets = [12, 0], sizes = [1, 256], strides = [1, 1]} : vector<32x256xf32> to vector<1x256xf32>
    %1326 = vector.broadcast %34 : vector<3x1xf32> to vector<3x256xf32>
    %1327 = vector.broadcast %1325 : vector<1x256xf32> to vector<3x256xf32>
    %1328 = arith.mulf %1326, %1327 : vector<3x256xf32>
    %1329 = arith.addf %1324, %1328 : vector<3x256xf32>
    %1330 = vector.extract_strided_slice %1263 {offsets = [13, 0], sizes = [1, 256], strides = [1, 1]} : vector<32x256xf32> to vector<1x256xf32>
    %1331 = vector.broadcast %36 : vector<3x1xf32> to vector<3x256xf32>
    %1332 = vector.broadcast %1330 : vector<1x256xf32> to vector<3x256xf32>
    %1333 = arith.mulf %1331, %1332 : vector<3x256xf32>
    %1334 = arith.addf %1329, %1333 : vector<3x256xf32>
    %1335 = vector.extract_strided_slice %1263 {offsets = [14, 0], sizes = [1, 256], strides = [1, 1]} : vector<32x256xf32> to vector<1x256xf32>
    %1336 = vector.broadcast %38 : vector<3x1xf32> to vector<3x256xf32>
    %1337 = vector.broadcast %1335 : vector<1x256xf32> to vector<3x256xf32>
    %1338 = arith.mulf %1336, %1337 : vector<3x256xf32>
    %1339 = arith.addf %1334, %1338 : vector<3x256xf32>
    %1340 = vector.extract_strided_slice %1263 {offsets = [15, 0], sizes = [1, 256], strides = [1, 1]} : vector<32x256xf32> to vector<1x256xf32>
    %1341 = vector.broadcast %40 : vector<3x1xf32> to vector<3x256xf32>
    %1342 = vector.broadcast %1340 : vector<1x256xf32> to vector<3x256xf32>
    %1343 = arith.mulf %1341, %1342 : vector<3x256xf32>
    %1344 = arith.addf %1339, %1343 : vector<3x256xf32>
    %1345 = vector.extract_strided_slice %1263 {offsets = [16, 0], sizes = [1, 256], strides = [1, 1]} : vector<32x256xf32> to vector<1x256xf32>
    %1346 = vector.broadcast %42 : vector<3x1xf32> to vector<3x256xf32>
    %1347 = vector.broadcast %1345 : vector<1x256xf32> to vector<3x256xf32>
    %1348 = arith.mulf %1346, %1347 : vector<3x256xf32>
    %1349 = arith.addf %1344, %1348 : vector<3x256xf32>
    %1350 = vector.extract_strided_slice %1263 {offsets = [17, 0], sizes = [1, 256], strides = [1, 1]} : vector<32x256xf32> to vector<1x256xf32>
    %1351 = vector.broadcast %44 : vector<3x1xf32> to vector<3x256xf32>
    %1352 = vector.broadcast %1350 : vector<1x256xf32> to vector<3x256xf32>
    %1353 = arith.mulf %1351, %1352 : vector<3x256xf32>
    %1354 = arith.addf %1349, %1353 : vector<3x256xf32>
    %1355 = vector.extract_strided_slice %1263 {offsets = [18, 0], sizes = [1, 256], strides = [1, 1]} : vector<32x256xf32> to vector<1x256xf32>
    %1356 = vector.broadcast %46 : vector<3x1xf32> to vector<3x256xf32>
    %1357 = vector.broadcast %1355 : vector<1x256xf32> to vector<3x256xf32>
    %1358 = arith.mulf %1356, %1357 : vector<3x256xf32>
    %1359 = arith.addf %1354, %1358 : vector<3x256xf32>
    %1360 = vector.extract_strided_slice %1263 {offsets = [19, 0], sizes = [1, 256], strides = [1, 1]} : vector<32x256xf32> to vector<1x256xf32>
    %1361 = vector.broadcast %48 : vector<3x1xf32> to vector<3x256xf32>
    %1362 = vector.broadcast %1360 : vector<1x256xf32> to vector<3x256xf32>
    %1363 = arith.mulf %1361, %1362 : vector<3x256xf32>
    %1364 = arith.addf %1359, %1363 : vector<3x256xf32>
    %1365 = vector.extract_strided_slice %1263 {offsets = [20, 0], sizes = [1, 256], strides = [1, 1]} : vector<32x256xf32> to vector<1x256xf32>
    %1366 = vector.broadcast %50 : vector<3x1xf32> to vector<3x256xf32>
    %1367 = vector.broadcast %1365 : vector<1x256xf32> to vector<3x256xf32>
    %1368 = arith.mulf %1366, %1367 : vector<3x256xf32>
    %1369 = arith.addf %1364, %1368 : vector<3x256xf32>
    %1370 = vector.extract_strided_slice %1263 {offsets = [21, 0], sizes = [1, 256], strides = [1, 1]} : vector<32x256xf32> to vector<1x256xf32>
    %1371 = vector.broadcast %52 : vector<3x1xf32> to vector<3x256xf32>
    %1372 = vector.broadcast %1370 : vector<1x256xf32> to vector<3x256xf32>
    %1373 = arith.mulf %1371, %1372 : vector<3x256xf32>
    %1374 = arith.addf %1369, %1373 : vector<3x256xf32>
    %1375 = vector.extract_strided_slice %1263 {offsets = [22, 0], sizes = [1, 256], strides = [1, 1]} : vector<32x256xf32> to vector<1x256xf32>
    %1376 = vector.broadcast %54 : vector<3x1xf32> to vector<3x256xf32>
    %1377 = vector.broadcast %1375 : vector<1x256xf32> to vector<3x256xf32>
    %1378 = arith.mulf %1376, %1377 : vector<3x256xf32>
    %1379 = arith.addf %1374, %1378 : vector<3x256xf32>
    %1380 = vector.extract_strided_slice %1263 {offsets = [23, 0], sizes = [1, 256], strides = [1, 1]} : vector<32x256xf32> to vector<1x256xf32>
    %1381 = vector.broadcast %56 : vector<3x1xf32> to vector<3x256xf32>
    %1382 = vector.broadcast %1380 : vector<1x256xf32> to vector<3x256xf32>
    %1383 = arith.mulf %1381, %1382 : vector<3x256xf32>
    %1384 = arith.addf %1379, %1383 : vector<3x256xf32>
    %1385 = vector.extract_strided_slice %1263 {offsets = [24, 0], sizes = [1, 256], strides = [1, 1]} : vector<32x256xf32> to vector<1x256xf32>
    %1386 = vector.broadcast %58 : vector<3x1xf32> to vector<3x256xf32>
    %1387 = vector.broadcast %1385 : vector<1x256xf32> to vector<3x256xf32>
    %1388 = arith.mulf %1386, %1387 : vector<3x256xf32>
    %1389 = arith.addf %1384, %1388 : vector<3x256xf32>
    %1390 = vector.extract_strided_slice %1263 {offsets = [25, 0], sizes = [1, 256], strides = [1, 1]} : vector<32x256xf32> to vector<1x256xf32>
    %1391 = vector.broadcast %60 : vector<3x1xf32> to vector<3x256xf32>
    %1392 = vector.broadcast %1390 : vector<1x256xf32> to vector<3x256xf32>
    %1393 = arith.mulf %1391, %1392 : vector<3x256xf32>
    %1394 = arith.addf %1389, %1393 : vector<3x256xf32>
    %1395 = vector.extract_strided_slice %1263 {offsets = [26, 0], sizes = [1, 256], strides = [1, 1]} : vector<32x256xf32> to vector<1x256xf32>
    %1396 = vector.broadcast %62 : vector<3x1xf32> to vector<3x256xf32>
    %1397 = vector.broadcast %1395 : vector<1x256xf32> to vector<3x256xf32>
    %1398 = arith.mulf %1396, %1397 : vector<3x256xf32>
    %1399 = arith.addf %1394, %1398 : vector<3x256xf32>
    %1400 = vector.extract_strided_slice %1263 {offsets = [27, 0], sizes = [1, 256], strides = [1, 1]} : vector<32x256xf32> to vector<1x256xf32>
    %1401 = vector.broadcast %64 : vector<3x1xf32> to vector<3x256xf32>
    %1402 = vector.broadcast %1400 : vector<1x256xf32> to vector<3x256xf32>
    %1403 = arith.mulf %1401, %1402 : vector<3x256xf32>
    %1404 = arith.addf %1399, %1403 : vector<3x256xf32>
    %1405 = vector.extract_strided_slice %1263 {offsets = [28, 0], sizes = [1, 256], strides = [1, 1]} : vector<32x256xf32> to vector<1x256xf32>
    %1406 = vector.broadcast %66 : vector<3x1xf32> to vector<3x256xf32>
    %1407 = vector.broadcast %1405 : vector<1x256xf32> to vector<3x256xf32>
    %1408 = arith.mulf %1406, %1407 : vector<3x256xf32>
    %1409 = arith.addf %1404, %1408 : vector<3x256xf32>
    %1410 = vector.extract_strided_slice %1263 {offsets = [29, 0], sizes = [1, 256], strides = [1, 1]} : vector<32x256xf32> to vector<1x256xf32>
    %1411 = vector.broadcast %68 : vector<3x1xf32> to vector<3x256xf32>
    %1412 = vector.broadcast %1410 : vector<1x256xf32> to vector<3x256xf32>
    %1413 = arith.mulf %1411, %1412 : vector<3x256xf32>
    %1414 = arith.addf %1409, %1413 : vector<3x256xf32>
    %1415 = vector.extract_strided_slice %1263 {offsets = [30, 0], sizes = [1, 256], strides = [1, 1]} : vector<32x256xf32> to vector<1x256xf32>
    %1416 = vector.broadcast %70 : vector<3x1xf32> to vector<3x256xf32>
    %1417 = vector.broadcast %1415 : vector<1x256xf32> to vector<3x256xf32>
    %1418 = arith.mulf %1416, %1417 : vector<3x256xf32>
    %1419 = arith.addf %1414, %1418 : vector<3x256xf32>
    %1420 = vector.extract_strided_slice %1263 {offsets = [31, 0], sizes = [1, 256], strides = [1, 1]} : vector<32x256xf32> to vector<1x256xf32>
    %1421 = vector.broadcast %72 : vector<3x1xf32> to vector<3x256xf32>
    %1422 = vector.broadcast %1420 : vector<1x256xf32> to vector<3x256xf32>
    %1423 = arith.mulf %1421, %1422 : vector<3x256xf32>
    %1424 = arith.addf %1419, %1423 : vector<3x256xf32>
    %c1_142 = arith.constant 1 : index
    %1425 = memref.load %arg1[%c1_142] : memref<8xf32, #tpu.memory_space<smem>>
    %1426 = vector.broadcast %1425 : f32 to vector<3x256xf32>
    %1427 = arith.mulf %1242, %1426 : vector<3x256xf32>
    %c1_143 = arith.constant 1 : index
    %1428 = memref.load %arg2[%c1_143] : memref<8xf32, #tpu.memory_space<smem>>
    %1429 = vector.broadcast %1428 : f32 to vector<3x256xf32>
    %1430 = arith.mulf %1429, %1424 : vector<3x256xf32>
    %1431 = arith.subf %1427, %1430 : vector<3x256xf32>
    %c1_144 = arith.constant 1 : index
    %1432 = memref.load %arg3[%c1_144] : memref<8xf32, #tpu.memory_space<smem>>
    %c1_145 = arith.constant 1 : index
    %c0_146 = arith.constant 0 : index
    %c0_147 = arith.constant 0 : index
    %1433 = vector.load %arg6[%c1_145, %c0_146, %c0_147] : memref<8x3x256xf32, #tpu.memory_space<vmem>>, vector<1x3x256xf32>
    %1434 = vector.shape_cast %1433 : vector<1x3x256xf32> to vector<3x256xf32>
    %1435 = vector.broadcast %1432 : f32 to vector<3x256xf32>
    %1436 = arith.mulf %1435, %1434 : vector<3x256xf32>
    %1437 = arith.addf %1431, %1436 : vector<3x256xf32>
    %c0_148 = arith.constant 0 : index
    %c0_149 = arith.constant 0 : index
    %c0_150 = arith.constant 0 : index
    %1438 = vector.load %arg7[%c0_148, %c0_149, %c0_150] : memref<8x32x1xf32, #tpu.memory_space<vmem>>, vector<1x32x1xf32>
    %1439 = vector.shape_cast %1438 : vector<1x32x1xf32> to vector<32x1xf32>
    %1440 = vector.broadcast %1439 : vector<32x1xf32> to vector<32x256xf32>
    %1441 = arith.addf %1, %1440 : vector<32x256xf32>
    %1442 = vector.extract_strided_slice %1437 {offsets = [0, 0], sizes = [1, 256], strides = [1, 1]} : vector<3x256xf32> to vector<1x256xf32>
    %1443 = vector.broadcast %4 : vector<32x1xf32> to vector<32x256xf32>
    %1444 = vector.broadcast %1442 : vector<1x256xf32> to vector<32x256xf32>
    %1445 = arith.mulf %1443, %1444 : vector<32x256xf32>
    %1446 = arith.addf %1441, %1445 : vector<32x256xf32>
    %1447 = vector.extract_strided_slice %1437 {offsets = [1, 0], sizes = [1, 256], strides = [1, 1]} : vector<3x256xf32> to vector<1x256xf32>
    %1448 = vector.broadcast %6 : vector<32x1xf32> to vector<32x256xf32>
    %1449 = vector.broadcast %1447 : vector<1x256xf32> to vector<32x256xf32>
    %1450 = arith.mulf %1448, %1449 : vector<32x256xf32>
    %1451 = arith.addf %1446, %1450 : vector<32x256xf32>
    %1452 = vector.extract_strided_slice %1437 {offsets = [2, 0], sizes = [1, 256], strides = [1, 1]} : vector<3x256xf32> to vector<1x256xf32>
    %1453 = vector.broadcast %8 : vector<32x1xf32> to vector<32x256xf32>
    %1454 = vector.broadcast %1452 : vector<1x256xf32> to vector<32x256xf32>
    %1455 = arith.mulf %1453, %1454 : vector<32x256xf32>
    %1456 = arith.addf %1451, %1455 : vector<32x256xf32>
    %cst_151 = arith.constant 0.000000e+00 : f32
    %1457 = vector.broadcast %cst_151 : f32 to vector<32x256xf32>
    %1458 = arith.maximumf %1456, %1457 : vector<32x256xf32>
    %1459 = vector.extract_strided_slice %1458 {offsets = [0, 0], sizes = [1, 256], strides = [1, 1]} : vector<32x256xf32> to vector<1x256xf32>
    %1460 = vector.broadcast %10 : vector<3x1xf32> to vector<3x256xf32>
    %1461 = vector.broadcast %1459 : vector<1x256xf32> to vector<3x256xf32>
    %1462 = arith.mulf %1460, %1461 : vector<3x256xf32>
    %1463 = vector.broadcast %2 : vector<3x1xf32> to vector<3x256xf32>
    %1464 = arith.addf %1463, %1462 : vector<3x256xf32>
    %1465 = vector.extract_strided_slice %1458 {offsets = [1, 0], sizes = [1, 256], strides = [1, 1]} : vector<32x256xf32> to vector<1x256xf32>
    %1466 = vector.broadcast %12 : vector<3x1xf32> to vector<3x256xf32>
    %1467 = vector.broadcast %1465 : vector<1x256xf32> to vector<3x256xf32>
    %1468 = arith.mulf %1466, %1467 : vector<3x256xf32>
    %1469 = arith.addf %1464, %1468 : vector<3x256xf32>
    %1470 = vector.extract_strided_slice %1458 {offsets = [2, 0], sizes = [1, 256], strides = [1, 1]} : vector<32x256xf32> to vector<1x256xf32>
    %1471 = vector.broadcast %14 : vector<3x1xf32> to vector<3x256xf32>
    %1472 = vector.broadcast %1470 : vector<1x256xf32> to vector<3x256xf32>
    %1473 = arith.mulf %1471, %1472 : vector<3x256xf32>
    %1474 = arith.addf %1469, %1473 : vector<3x256xf32>
    %1475 = vector.extract_strided_slice %1458 {offsets = [3, 0], sizes = [1, 256], strides = [1, 1]} : vector<32x256xf32> to vector<1x256xf32>
    %1476 = vector.broadcast %16 : vector<3x1xf32> to vector<3x256xf32>
    %1477 = vector.broadcast %1475 : vector<1x256xf32> to vector<3x256xf32>
    %1478 = arith.mulf %1476, %1477 : vector<3x256xf32>
    %1479 = arith.addf %1474, %1478 : vector<3x256xf32>
    %1480 = vector.extract_strided_slice %1458 {offsets = [4, 0], sizes = [1, 256], strides = [1, 1]} : vector<32x256xf32> to vector<1x256xf32>
    %1481 = vector.broadcast %18 : vector<3x1xf32> to vector<3x256xf32>
    %1482 = vector.broadcast %1480 : vector<1x256xf32> to vector<3x256xf32>
    %1483 = arith.mulf %1481, %1482 : vector<3x256xf32>
    %1484 = arith.addf %1479, %1483 : vector<3x256xf32>
    %1485 = vector.extract_strided_slice %1458 {offsets = [5, 0], sizes = [1, 256], strides = [1, 1]} : vector<32x256xf32> to vector<1x256xf32>
    %1486 = vector.broadcast %20 : vector<3x1xf32> to vector<3x256xf32>
    %1487 = vector.broadcast %1485 : vector<1x256xf32> to vector<3x256xf32>
    %1488 = arith.mulf %1486, %1487 : vector<3x256xf32>
    %1489 = arith.addf %1484, %1488 : vector<3x256xf32>
    %1490 = vector.extract_strided_slice %1458 {offsets = [6, 0], sizes = [1, 256], strides = [1, 1]} : vector<32x256xf32> to vector<1x256xf32>
    %1491 = vector.broadcast %22 : vector<3x1xf32> to vector<3x256xf32>
    %1492 = vector.broadcast %1490 : vector<1x256xf32> to vector<3x256xf32>
    %1493 = arith.mulf %1491, %1492 : vector<3x256xf32>
    %1494 = arith.addf %1489, %1493 : vector<3x256xf32>
    %1495 = vector.extract_strided_slice %1458 {offsets = [7, 0], sizes = [1, 256], strides = [1, 1]} : vector<32x256xf32> to vector<1x256xf32>
    %1496 = vector.broadcast %24 : vector<3x1xf32> to vector<3x256xf32>
    %1497 = vector.broadcast %1495 : vector<1x256xf32> to vector<3x256xf32>
    %1498 = arith.mulf %1496, %1497 : vector<3x256xf32>
    %1499 = arith.addf %1494, %1498 : vector<3x256xf32>
    %1500 = vector.extract_strided_slice %1458 {offsets = [8, 0], sizes = [1, 256], strides = [1, 1]} : vector<32x256xf32> to vector<1x256xf32>
    %1501 = vector.broadcast %26 : vector<3x1xf32> to vector<3x256xf32>
    %1502 = vector.broadcast %1500 : vector<1x256xf32> to vector<3x256xf32>
    %1503 = arith.mulf %1501, %1502 : vector<3x256xf32>
    %1504 = arith.addf %1499, %1503 : vector<3x256xf32>
    %1505 = vector.extract_strided_slice %1458 {offsets = [9, 0], sizes = [1, 256], strides = [1, 1]} : vector<32x256xf32> to vector<1x256xf32>
    %1506 = vector.broadcast %28 : vector<3x1xf32> to vector<3x256xf32>
    %1507 = vector.broadcast %1505 : vector<1x256xf32> to vector<3x256xf32>
    %1508 = arith.mulf %1506, %1507 : vector<3x256xf32>
    %1509 = arith.addf %1504, %1508 : vector<3x256xf32>
    %1510 = vector.extract_strided_slice %1458 {offsets = [10, 0], sizes = [1, 256], strides = [1, 1]} : vector<32x256xf32> to vector<1x256xf32>
    %1511 = vector.broadcast %30 : vector<3x1xf32> to vector<3x256xf32>
    %1512 = vector.broadcast %1510 : vector<1x256xf32> to vector<3x256xf32>
    %1513 = arith.mulf %1511, %1512 : vector<3x256xf32>
    %1514 = arith.addf %1509, %1513 : vector<3x256xf32>
    %1515 = vector.extract_strided_slice %1458 {offsets = [11, 0], sizes = [1, 256], strides = [1, 1]} : vector<32x256xf32> to vector<1x256xf32>
    %1516 = vector.broadcast %32 : vector<3x1xf32> to vector<3x256xf32>
    %1517 = vector.broadcast %1515 : vector<1x256xf32> to vector<3x256xf32>
    %1518 = arith.mulf %1516, %1517 : vector<3x256xf32>
    %1519 = arith.addf %1514, %1518 : vector<3x256xf32>
    %1520 = vector.extract_strided_slice %1458 {offsets = [12, 0], sizes = [1, 256], strides = [1, 1]} : vector<32x256xf32> to vector<1x256xf32>
    %1521 = vector.broadcast %34 : vector<3x1xf32> to vector<3x256xf32>
    %1522 = vector.broadcast %1520 : vector<1x256xf32> to vector<3x256xf32>
    %1523 = arith.mulf %1521, %1522 : vector<3x256xf32>
    %1524 = arith.addf %1519, %1523 : vector<3x256xf32>
    %1525 = vector.extract_strided_slice %1458 {offsets = [13, 0], sizes = [1, 256], strides = [1, 1]} : vector<32x256xf32> to vector<1x256xf32>
    %1526 = vector.broadcast %36 : vector<3x1xf32> to vector<3x256xf32>
    %1527 = vector.broadcast %1525 : vector<1x256xf32> to vector<3x256xf32>
    %1528 = arith.mulf %1526, %1527 : vector<3x256xf32>
    %1529 = arith.addf %1524, %1528 : vector<3x256xf32>
    %1530 = vector.extract_strided_slice %1458 {offsets = [14, 0], sizes = [1, 256], strides = [1, 1]} : vector<32x256xf32> to vector<1x256xf32>
    %1531 = vector.broadcast %38 : vector<3x1xf32> to vector<3x256xf32>
    %1532 = vector.broadcast %1530 : vector<1x256xf32> to vector<3x256xf32>
    %1533 = arith.mulf %1531, %1532 : vector<3x256xf32>
    %1534 = arith.addf %1529, %1533 : vector<3x256xf32>
    %1535 = vector.extract_strided_slice %1458 {offsets = [15, 0], sizes = [1, 256], strides = [1, 1]} : vector<32x256xf32> to vector<1x256xf32>
    %1536 = vector.broadcast %40 : vector<3x1xf32> to vector<3x256xf32>
    %1537 = vector.broadcast %1535 : vector<1x256xf32> to vector<3x256xf32>
    %1538 = arith.mulf %1536, %1537 : vector<3x256xf32>
    %1539 = arith.addf %1534, %1538 : vector<3x256xf32>
    %1540 = vector.extract_strided_slice %1458 {offsets = [16, 0], sizes = [1, 256], strides = [1, 1]} : vector<32x256xf32> to vector<1x256xf32>
    %1541 = vector.broadcast %42 : vector<3x1xf32> to vector<3x256xf32>
    %1542 = vector.broadcast %1540 : vector<1x256xf32> to vector<3x256xf32>
    %1543 = arith.mulf %1541, %1542 : vector<3x256xf32>
    %1544 = arith.addf %1539, %1543 : vector<3x256xf32>
    %1545 = vector.extract_strided_slice %1458 {offsets = [17, 0], sizes = [1, 256], strides = [1, 1]} : vector<32x256xf32> to vector<1x256xf32>
    %1546 = vector.broadcast %44 : vector<3x1xf32> to vector<3x256xf32>
    %1547 = vector.broadcast %1545 : vector<1x256xf32> to vector<3x256xf32>
    %1548 = arith.mulf %1546, %1547 : vector<3x256xf32>
    %1549 = arith.addf %1544, %1548 : vector<3x256xf32>
    %1550 = vector.extract_strided_slice %1458 {offsets = [18, 0], sizes = [1, 256], strides = [1, 1]} : vector<32x256xf32> to vector<1x256xf32>
    %1551 = vector.broadcast %46 : vector<3x1xf32> to vector<3x256xf32>
    %1552 = vector.broadcast %1550 : vector<1x256xf32> to vector<3x256xf32>
    %1553 = arith.mulf %1551, %1552 : vector<3x256xf32>
    %1554 = arith.addf %1549, %1553 : vector<3x256xf32>
    %1555 = vector.extract_strided_slice %1458 {offsets = [19, 0], sizes = [1, 256], strides = [1, 1]} : vector<32x256xf32> to vector<1x256xf32>
    %1556 = vector.broadcast %48 : vector<3x1xf32> to vector<3x256xf32>
    %1557 = vector.broadcast %1555 : vector<1x256xf32> to vector<3x256xf32>
    %1558 = arith.mulf %1556, %1557 : vector<3x256xf32>
    %1559 = arith.addf %1554, %1558 : vector<3x256xf32>
    %1560 = vector.extract_strided_slice %1458 {offsets = [20, 0], sizes = [1, 256], strides = [1, 1]} : vector<32x256xf32> to vector<1x256xf32>
    %1561 = vector.broadcast %50 : vector<3x1xf32> to vector<3x256xf32>
    %1562 = vector.broadcast %1560 : vector<1x256xf32> to vector<3x256xf32>
    %1563 = arith.mulf %1561, %1562 : vector<3x256xf32>
    %1564 = arith.addf %1559, %1563 : vector<3x256xf32>
    %1565 = vector.extract_strided_slice %1458 {offsets = [21, 0], sizes = [1, 256], strides = [1, 1]} : vector<32x256xf32> to vector<1x256xf32>
    %1566 = vector.broadcast %52 : vector<3x1xf32> to vector<3x256xf32>
    %1567 = vector.broadcast %1565 : vector<1x256xf32> to vector<3x256xf32>
    %1568 = arith.mulf %1566, %1567 : vector<3x256xf32>
    %1569 = arith.addf %1564, %1568 : vector<3x256xf32>
    %1570 = vector.extract_strided_slice %1458 {offsets = [22, 0], sizes = [1, 256], strides = [1, 1]} : vector<32x256xf32> to vector<1x256xf32>
    %1571 = vector.broadcast %54 : vector<3x1xf32> to vector<3x256xf32>
    %1572 = vector.broadcast %1570 : vector<1x256xf32> to vector<3x256xf32>
    %1573 = arith.mulf %1571, %1572 : vector<3x256xf32>
    %1574 = arith.addf %1569, %1573 : vector<3x256xf32>
    %1575 = vector.extract_strided_slice %1458 {offsets = [23, 0], sizes = [1, 256], strides = [1, 1]} : vector<32x256xf32> to vector<1x256xf32>
    %1576 = vector.broadcast %56 : vector<3x1xf32> to vector<3x256xf32>
    %1577 = vector.broadcast %1575 : vector<1x256xf32> to vector<3x256xf32>
    %1578 = arith.mulf %1576, %1577 : vector<3x256xf32>
    %1579 = arith.addf %1574, %1578 : vector<3x256xf32>
    %1580 = vector.extract_strided_slice %1458 {offsets = [24, 0], sizes = [1, 256], strides = [1, 1]} : vector<32x256xf32> to vector<1x256xf32>
    %1581 = vector.broadcast %58 : vector<3x1xf32> to vector<3x256xf32>
    %1582 = vector.broadcast %1580 : vector<1x256xf32> to vector<3x256xf32>
    %1583 = arith.mulf %1581, %1582 : vector<3x256xf32>
    %1584 = arith.addf %1579, %1583 : vector<3x256xf32>
    %1585 = vector.extract_strided_slice %1458 {offsets = [25, 0], sizes = [1, 256], strides = [1, 1]} : vector<32x256xf32> to vector<1x256xf32>
    %1586 = vector.broadcast %60 : vector<3x1xf32> to vector<3x256xf32>
    %1587 = vector.broadcast %1585 : vector<1x256xf32> to vector<3x256xf32>
    %1588 = arith.mulf %1586, %1587 : vector<3x256xf32>
    %1589 = arith.addf %1584, %1588 : vector<3x256xf32>
    %1590 = vector.extract_strided_slice %1458 {offsets = [26, 0], sizes = [1, 256], strides = [1, 1]} : vector<32x256xf32> to vector<1x256xf32>
    %1591 = vector.broadcast %62 : vector<3x1xf32> to vector<3x256xf32>
    %1592 = vector.broadcast %1590 : vector<1x256xf32> to vector<3x256xf32>
    %1593 = arith.mulf %1591, %1592 : vector<3x256xf32>
    %1594 = arith.addf %1589, %1593 : vector<3x256xf32>
    %1595 = vector.extract_strided_slice %1458 {offsets = [27, 0], sizes = [1, 256], strides = [1, 1]} : vector<32x256xf32> to vector<1x256xf32>
    %1596 = vector.broadcast %64 : vector<3x1xf32> to vector<3x256xf32>
    %1597 = vector.broadcast %1595 : vector<1x256xf32> to vector<3x256xf32>
    %1598 = arith.mulf %1596, %1597 : vector<3x256xf32>
    %1599 = arith.addf %1594, %1598 : vector<3x256xf32>
    %1600 = vector.extract_strided_slice %1458 {offsets = [28, 0], sizes = [1, 256], strides = [1, 1]} : vector<32x256xf32> to vector<1x256xf32>
    %1601 = vector.broadcast %66 : vector<3x1xf32> to vector<3x256xf32>
    %1602 = vector.broadcast %1600 : vector<1x256xf32> to vector<3x256xf32>
    %1603 = arith.mulf %1601, %1602 : vector<3x256xf32>
    %1604 = arith.addf %1599, %1603 : vector<3x256xf32>
    %1605 = vector.extract_strided_slice %1458 {offsets = [29, 0], sizes = [1, 256], strides = [1, 1]} : vector<32x256xf32> to vector<1x256xf32>
    %1606 = vector.broadcast %68 : vector<3x1xf32> to vector<3x256xf32>
    %1607 = vector.broadcast %1605 : vector<1x256xf32> to vector<3x256xf32>
    %1608 = arith.mulf %1606, %1607 : vector<3x256xf32>
    %1609 = arith.addf %1604, %1608 : vector<3x256xf32>
    %1610 = vector.extract_strided_slice %1458 {offsets = [30, 0], sizes = [1, 256], strides = [1, 1]} : vector<32x256xf32> to vector<1x256xf32>
    %1611 = vector.broadcast %70 : vector<3x1xf32> to vector<3x256xf32>
    %1612 = vector.broadcast %1610 : vector<1x256xf32> to vector<3x256xf32>
    %1613 = arith.mulf %1611, %1612 : vector<3x256xf32>
    %1614 = arith.addf %1609, %1613 : vector<3x256xf32>
    %1615 = vector.extract_strided_slice %1458 {offsets = [31, 0], sizes = [1, 256], strides = [1, 1]} : vector<32x256xf32> to vector<1x256xf32>
    %1616 = vector.broadcast %72 : vector<3x1xf32> to vector<3x256xf32>
    %1617 = vector.broadcast %1615 : vector<1x256xf32> to vector<3x256xf32>
    %1618 = arith.mulf %1616, %1617 : vector<3x256xf32>
    %1619 = arith.addf %1614, %1618 : vector<3x256xf32>
    %c0_152 = arith.constant 0 : index
    %1620 = memref.load %arg1[%c0_152] : memref<8xf32, #tpu.memory_space<smem>>
    %1621 = vector.broadcast %1620 : f32 to vector<3x256xf32>
    %1622 = arith.mulf %1437, %1621 : vector<3x256xf32>
    %c0_153 = arith.constant 0 : index
    %1623 = memref.load %arg2[%c0_153] : memref<8xf32, #tpu.memory_space<smem>>
    %1624 = vector.broadcast %1623 : f32 to vector<3x256xf32>
    %1625 = arith.mulf %1624, %1619 : vector<3x256xf32>
    %1626 = arith.subf %1622, %1625 : vector<3x256xf32>
    %c0_154 = arith.constant 0 : index
    %1627 = memref.load %arg3[%c0_154] : memref<8xf32, #tpu.memory_space<smem>>
    %c0_155 = arith.constant 0 : index
    %c0_156 = arith.constant 0 : index
    %c0_157 = arith.constant 0 : index
    %1628 = vector.load %arg6[%c0_155, %c0_156, %c0_157] : memref<8x3x256xf32, #tpu.memory_space<vmem>>, vector<1x3x256xf32>
    %1629 = vector.shape_cast %1628 : vector<1x3x256xf32> to vector<3x256xf32>
    %1630 = vector.broadcast %1627 : f32 to vector<3x256xf32>
    %1631 = arith.mulf %1630, %1629 : vector<3x256xf32>
    %1632 = arith.addf %1626, %1631 : vector<3x256xf32>
    %c0_158 = arith.constant 0 : index
    %c0_159 = arith.constant 0 : index
    %1633 = vector.load %arg11[%c0_158, %c0_159] : memref<3x256xf32, #tpu.memory_space<vmem>>, vector<3x256xf32>
    tpu.vector_store %arg11[%c0_158, %c0_159], %1632 {strides = array<i32>} : memref<3x256xf32, #tpu.memory_space<vmem>>, vector<3x256xf32>,
    return
  }
  func.func @transform_0(%arg0: i32) -> i32 {
    %c0_i32 = arith.constant 0 : i32
    %c0_i32_0 = arith.constant 0 : i32
    return %c0_i32 : i32
  }
  func.func @transform_1(%arg0: i32) -> i32 {
    %c0_i32 = arith.constant 0 : i32
    %c0_i32_0 = arith.constant 0 : i32
    return %c0_i32 : i32
  }
  func.func @transform_2(%arg0: i32) -> i32 {
    %c0_i32 = arith.constant 0 : i32
    %c0_i32_0 = arith.constant 0 : i32
    return %c0_i32 : i32
  }
  func.func @transform_3(%arg0: i32) -> (i32, i32) {
    %c0_i32 = arith.constant 0 : i32
    %c0_i32_0 = arith.constant 0 : i32
    return %c0_i32, %arg0 : i32, i32
  }
  func.func @transform_4(%arg0: i32) -> (i32, i32) {
    %c0_i32 = arith.constant 0 : i32
    %c0_i32_0 = arith.constant 0 : i32
    return %c0_i32, %arg0 : i32, i32
  }
  func.func @transform_5(%arg0: i32) -> (i32, i32, i32) {
    %c0_i32 = arith.constant 0 : i32
    %c0_i32_0 = arith.constant 0 : i32
    %c0_i32_1 = arith.constant 0 : i32
    return %c0_i32, %c0_i32_0, %arg0 : i32, i32, i32
  }
  func.func @transform_6(%arg0: i32) -> (i32, i32, i32) {
    %c0_i32 = arith.constant 0 : i32
    %c0_i32_0 = arith.constant 0 : i32
    %c0_i32_1 = arith.constant 0 : i32
    %c0_i32_2 = arith.constant 0 : i32
    return %c0_i32, %c0_i32_0, %c0_i32_1 : i32, i32, i32
  }
  func.func @transform_7(%arg0: i32) -> (i32, i32, i32) {
    %c0_i32 = arith.constant 0 : i32
    %c0_i32_0 = arith.constant 0 : i32
    %c0_i32_1 = arith.constant 0 : i32
    %c0_i32_2 = arith.constant 0 : i32
    return %c0_i32, %c0_i32_0, %c0_i32_1 : i32, i32, i32
  }
  func.func @transform_8(%arg0: i32) -> (i32, i32, i32) {
    %c0_i32 = arith.constant 0 : i32
    %c0_i32_0 = arith.constant 0 : i32
    %c0_i32_1 = arith.constant 0 : i32
    %c0_i32_2 = arith.constant 0 : i32
    return %c0_i32, %c0_i32_0, %c0_i32_1 : i32, i32, i32
  }
  func.func @transform_9(%arg0: i32) -> (i32, i32) {
    %c0_i32 = arith.constant 0 : i32
    %c0_i32_0 = arith.constant 0 : i32
    %c0_i32_1 = arith.constant 0 : i32
    return %c0_i32, %c0_i32_0 : i32, i32
  }
  func.func @transform_10(%arg0: i32) -> (i32, i32) {
    %c0_i32 = arith.constant 0 : i32
    %c0_i32_0 = arith.constant 0 : i32
    return %c0_i32, %arg0 : i32, i32
  }
}

</mosaic_0001>

<llo_original>
// kernel: tpu_custom_call.1
$region0: #{tpu_custom_call.1}
  #allocation0 [shape = 'u32[]', space=smem, size = 0x4, offset = 0x4, fixed_abs, tag = 'smem constant byte address 0x4 - core index']
  #allocation1 [shape = 'u32[144,128]{1,0:T(1,128)}', space=vmem, size = 0x12000, scoped, tag = 'internal scratch']
  %s0 = inlined_call_operand.vmem [shape: f32[8], index: 0, kind: input, shape index: {}]
  %s1 = inlined_call_operand.vmem [shape: f32[8], index: 1, kind: input, shape index: {}]
  %s2 = inlined_call_operand.vmem [shape: f32[8], index: 2, kind: input, shape index: {}]
  %s3 = inlined_call_operand.vmem [shape: f32[3,512], index: 3, kind: input, shape index: {}]
  %s4 = inlined_call_operand.vmem [shape: f32[32,512], index: 4, kind: input, shape index: {}]
  %s5 = inlined_call_operand.vmem [shape: f32[8,3,512], index: 5, kind: input, shape index: {}]
  %s6 = inlined_call_operand.vmem [shape: f32[8,32,1], index: 6, kind: input, shape index: {}]
  %s7 = inlined_call_operand.vmem [shape: f32[3,32,1], index: 7, kind: input, shape index: {}]
  %s8 = inlined_call_operand.vmem [shape: f32[32,3,1], index: 8, kind: input, shape index: {}]
  %s9 = inlined_call_operand.vmem [shape: f32[3,1], index: 9, kind: input, shape index: {}]
  %s10 = inlined_call_operand.hbm [shape: f32[3,512], index: 10, kind: output, shape index: {}]
  %s11 = sld [smem:[#allocation0]]
  $region146: #{tpu_custom_call.1} parent=0
    _
  %s13 = ssub.s32 1, %s11
  %s14 = scalar_select 0, %s13, %s11
  $region1: #{tpu_custom_call.1} parent=0
    #allocation2 [shape = 'u8[512]{0}', space=smem, size = 0x200, scoped, tag = 'input window, operand 0, single buffered']
    #allocation3 [shape = 's32[2]{0}', space=sflag, size = 0x8, scoped, tag = 'scoped memory for tpu_custom_call.1']
    #allocation4 [shape = 's32[2]{0}', space=sflag, size = 0x8, scoped, tag = 'scoped memory for tpu_custom_call.1']
    #allocation5 [shape = 'u8[512]{0}', space=smem, size = 0x200, scoped, tag = 'input window, operand 1, single buffered']
    #allocation6 [shape = 's32[1]{0}', space=sflag, size = 0x4, scoped, tag = 'scoped memory for tpu_custom_call.1']
    #allocation7 [shape = 'u8[512]{0}', space=smem, size = 0x200, scoped, tag = 'input window, operand 2, single buffered']
    #allocation8 [shape = 'u8[65536]{0}', space=vmem, size = 0x10000, scoped, tag = 'input window, operand 4']
    #allocation9 [shape = 'u8[65536]{0}', space=vmem, size = 0x10000, scoped, tag = 'input window, operand 5']
    #allocation10 [shape = 'u8[8192]{0}', space=vmem, size = 0x2000, scoped, tag = 'output window, operand 0']
    %15 = vsyncpa [#allocation4], 0
    %16 = vsyncpa [#allocation6], 0
    %17 = vsyncpa [#allocation3], 0
    %s18 = scalar_lea.sflag [#allocation3], 1
    %19 = vsyncpa %s18, 0
    loop: start=0, step=1, limit=4
    $region2: #{tpu_custom_call.1} parent=1 // loop_pre_header
      _
    $region3: #{tpu_custom_call.1} parent=1 // loop_header
      %s21 = sphi 0, %s25
      %p22 = scmp.ge.s32.totalorder %s21, 4
      %s29 = sphi 0, %s29
      %s31 = sphi 0, %s29
      %s32 = sphi 0, %s31
      %s46 = sphi 0, %s32
      %s50 = sphi 0, %s50
      %s52 = sphi 0, %s50
      %s53 = sphi 0, %s52
      %s67 = sphi 0, %s53
      %s71 = sphi 0, %s71
      %s73 = sphi 0, %s71
      %s74 = sphi 0, %s73
      %s88 = sphi 0, %s74
      %s94 = sphi 0, %s96
      %s97 = sphi 0, %s94
      %s98 = sphi 0, %s97
      %s114 = sphi 0, %s98
      %s120 = sphi 0, %s122
      %s123 = sphi 0, %s120
      %s124 = sphi 0, %s123
      %s140 = sphi 0, %s124
      %s146 = sphi 0, %s148
      %s149 = sphi 0, %s146
      %s150 = sphi 0, %s149
      %s166 = sphi 0, %s150
      %s170 = sphi 0, %s170
      %s172 = sphi 0, %s170
      %s173 = sphi 0, %s172
      %s187 = sphi 0, %s173
      %s191 = sphi 0, %s191
      %s193 = sphi 0, %s191
      %s194 = sphi 0, %s193
      %s208 = sphi 0, %s194
      %s212 = sphi 0, %s212
      %s214 = sphi 0, %s212
      %s215 = sphi 0, %s214
      %s229 = sphi 0, %s215
      %s233 = sphi 0, %s233
      %s235 = sphi 0, %s233
      %s236 = sphi 0, %s235
      %s250 = sphi 0, %s236
      %s256 = sphi 0, %s258
      %s259 = sphi 0, %s256
      %s260 = sphi 0, %s259
      %s276 = sphi 0, %s260
    $region4: #{tpu_custom_call.1} parent=1 // loop_header_branch
      %24 = sbr.rel (%p22) target = $region8
    $region5: #{tpu_custom_call.1} parent=1 // loop_body
      %s26 = ssub.s32 %s21, 1
      %s27 = ssub.s32 %s21, 2
      %s28 = sadd.s32 %s21, 1
      %s30 = sadd.s32 %s29, 1
      %p33 = scmp.eq.s32.totalorder %s21, 1
      %p34 = scmp.ne.s32.totalorder %s29, %s31
      %p35 = scmp.eq.s32.totalorder %s21, 0
      %p36 = por %p34, %p35
      %p37 = scmp.ne.s32.totalorder %s29, %s31
      %p38 = scmp.eq.s32.totalorder %s26, 1
      %p39 = por %p37, %p38
      %p40 = scmp.ne.s32.totalorder %s31, %s32
      %p41 = scmp.eq.s32.totalorder %s26, 0
      %p42 = por %p40, %p41
      %p43 = scmp.ne.s32.totalorder %s31, %s32
      %p44 = scmp.eq.s32.totalorder %s27, 1
      %p45 = por %p43, %p44
      %p47 = scmp.ne.s32.totalorder %s32, %s46
      %p48 = scmp.eq.s32.totalorder %s27, 0
      %p49 = por %p47, %p48
      %s51 = sadd.s32 %s50, 1
      %p54 = scmp.eq.s32.totalorder %s21, 1
      %p55 = scmp.ne.s32.totalorder %s50, %s52
      %p56 = scmp.eq.s32.totalorder %s21, 0
      %p57 = por %p55, %p56
      %p58 = scmp.ne.s32.totalorder %s50, %s52
      %p59 = scmp.eq.s32.totalorder %s26, 1
      %p60 = por %p58, %p59
      %p61 = scmp.ne.s32.totalorder %s52, %s53
      %p62 = scmp.eq.s32.totalorder %s26, 0
      %p63 = por %p61, %p62
      %p64 = scmp.ne.s32.totalorder %s52, %s53
      %p65 = scmp.eq.s32.totalorder %s27, 1
      %p66 = por %p64, %p65
      %p68 = scmp.ne.s32.totalorder %s53, %s67
      %p69 = scmp.eq.s32.totalorder %s27, 0
      %p70 = por %p68, %p69
      %s72 = sadd.s32 %s71, 1
      %p75 = scmp.eq.s32.totalorder %s21, 1
      %p76 = scmp.ne.s32.totalorder %s71, %s73
      %p77 = scmp.eq.s32.totalorder %s21, 0
      %p78 = por %p76, %p77
      %p79 = scmp.ne.s32.totalorder %s71, %s73
      %p80 = scmp.eq.s32.totalorder %s26, 1
      %p81 = por %p79, %p80
      %p82 = scmp.ne.s32.totalorder %s73, %s74
      %p83 = scmp.eq.s32.totalorder %s26, 0
      %p84 = por %p82, %p83
      %p85 = scmp.ne.s32.totalorder %s73, %s74
      %p86 = scmp.eq.s32.totalorder %s27, 1
      %p87 = por %p85, %p86
      %p89 = scmp.ne.s32.totalorder %s74, %s88
      %p90 = scmp.eq.s32.totalorder %s27, 0
      %p91 = por %p89, %p90
      %s92 = ssub.s32 %s21, %s28
      %p93 = scmp.eq.s32.totalorder %s92, 0
      %s95 = sadd.s32 %s94, 1
      %s96 = scalar_select %p93, %s94, %s95
      %p99 = pneg %p93
      %p100 = scmp.eq.s32.totalorder %s21, 1
      %p101 = por %p99, %p100
      %p102 = scmp.ne.s32.totalorder %s94, %s97
      %p103 = scmp.eq.s32.totalorder %s21, 0
      %p104 = por %p102, %p103
      %p105 = scmp.ne.s32.totalorder %s94, %s97
      %p106 = scmp.eq.s32.totalorder %s26, 1
      %p107 = por %p105, %p106
      %p108 = scmp.ne.s32.totalorder %s97, %s98
      %p109 = scmp.eq.s32.totalorder %s26, 0
      %p110 = por %p108, %p109
      %p111 = scmp.ne.s32.totalorder %s97, %s98
      %p112 = scmp.eq.s32.totalorder %s27, 1
      %p113 = por %p111, %p112
      %p115 = scmp.ne.s32.totalorder %s98, %s114
      %p116 = scmp.eq.s32.totalorder %s27, 0
      %p117 = por %p115, %p116
      %s118 = ssub.s32 %s21, %s28
      %p119 = scmp.eq.s32.totalorder %s118, 0
      %s121 = sadd.s32 %s120, 1
      %s122 = scalar_select %p119, %s120, %s121
      %p125 = pneg %p119
      %p126 = scmp.eq.s32.totalorder %s21, 1
      %p127 = por %p125, %p126
      %p128 = scmp.ne.s32.totalorder %s120, %s123
      %p129 = scmp.eq.s32.totalorder %s21, 0
      %p130 = por %p128, %p129
      %p131 = scmp.ne.s32.totalorder %s120, %s123
      %p132 = scmp.eq.s32.totalorder %s26, 1
      %p133 = por %p131, %p132
      %p134 = scmp.ne.s32.totalorder %s123, %s124
      %p135 = scmp.eq.s32.totalorder %s26, 0
      %p136 = por %p134, %p135
      %p137 = scmp.ne.s32.totalorder %s123, %s124
      %p138 = scmp.eq.s32.totalorder %s27, 1
      %p139 = por %p137, %p138
      %p141 = scmp.ne.s32.totalorder %s124, %s140
      %p142 = scmp.eq.s32.totalorder %s27, 0
      %p143 = por %p141, %p142
      %s144 = ssub.s32 %s21, %s28
      %p145 = scmp.eq.s32.totalorder %s144, 0
      %s147 = sadd.s32 %s146, 1
      %s148 = scalar_select %p145, %s146, %s147
      %p151 = pneg %p145
      %p152 = scmp.eq.s32.totalorder %s21, 1
      %p153 = por %p151, %p152
      %p154 = scmp.ne.s32.totalorder %s146, %s149
      %p155 = scmp.eq.s32.totalorder %s21, 0
      %p156 = por %p154, %p155
      %p157 = scmp.ne.s32.totalorder %s146, %s149
      %p158 = scmp.eq.s32.totalorder %s26, 1
      %p159 = por %p157, %p158
      %p160 = scmp.ne.s32.totalorder %s149, %s150
      %p161 = scmp.eq.s32.totalorder %s26, 0
      %p162 = por %p160, %p161
      %p163 = scmp.ne.s32.totalorder %s149, %s150
      %p164 = scmp.eq.s32.totalorder %s27, 1
      %p165 = por %p163, %p164
      %p167 = scmp.ne.s32.totalorder %s150, %s166
      %p168 = scmp.eq.s32.totalorder %s27, 0
      %p169 = por %p167, %p168
      %s171 = sadd.s32 %s170, 1
      %p174 = scmp.eq.s32.totalorder %s21, 1
      %p175 = scmp.ne.s32.totalorder %s170, %s172
      %p176 = scmp.eq.s32.totalorder %s21, 0
      %p177 = por %p175, %p176
      %p178 = scmp.ne.s32.totalorder %s170, %s172
      %p179 = scmp.eq.s32.totalorder %s26, 1
      %p180 = por %p178, %p179
      %p181 = scmp.ne.s32.totalorder %s172, %s173
      %p182 = scmp.eq.s32.totalorder %s26, 0
      %p183 = por %p181, %p182
      %p184 = scmp.ne.s32.totalorder %s172, %s173
      %p185 = scmp.eq.s32.totalorder %s27, 1
      %p186 = por %p184, %p185
      %p188 = scmp.ne.s32.totalorder %s173, %s187
      %p189 = scmp.eq.s32.totalorder %s27, 0
      %p190 = por %p188, %p189
      %s192 = sadd.s32 %s191, 1
      %p195 = scmp.eq.s32.totalorder %s21, 1
      %p196 = scmp.ne.s32.totalorder %s191, %s193
      %p197 = scmp.eq.s32.totalorder %s21, 0
      %p198 = por %p196, %p197
      %p199 = scmp.ne.s32.totalorder %s191, %s193
      %p200 = scmp.eq.s32.totalorder %s26, 1
      %p201 = por %p199, %p200
      %p202 = scmp.ne.s32.totalorder %s193, %s194
      %p203 = scmp.eq.s32.totalorder %s26, 0
      %p204 = por %p202, %p203
      %p205 = scmp.ne.s32.totalorder %s193, %s194
      %p206 = scmp.eq.s32.totalorder %s27, 1
      %p207 = por %p205, %p206
      %p209 = scmp.ne.s32.totalorder %s194, %s208
      %p210 = scmp.eq.s32.totalorder %s27, 0
      %p211 = por %p209, %p210
      %s213 = sadd.s32 %s212, 1
      %p216 = scmp.eq.s32.totalorder %s21, 1
      %p217 = scmp.ne.s32.totalorder %s212, %s214
      %p218 = scmp.eq.s32.totalorder %s21, 0
      %p219 = por %p217, %p218
      %p220 = scmp.ne.s32.totalorder %s212, %s214
      %p221 = scmp.eq.s32.totalorder %s26, 1
      %p222 = por %p220, %p221
      %p223 = scmp.ne.s32.totalorder %s214, %s215
      %p224 = scmp.eq.s32.totalorder %s26, 0
      %p225 = por %p223, %p224
      %p226 = scmp.ne.s32.totalorder %s214, %s215
      %p227 = scmp.eq.s32.totalorder %s27, 1
      %p228 = por %p226, %p227
      %p230 = scmp.ne.s32.totalorder %s215, %s229
      %p231 = scmp.eq.s32.totalorder %s27, 0
      %p232 = por %p230, %p231
      %s234 = sadd.s32 %s233, 1
      %p237 = scmp.eq.s32.totalorder %s21, 1
      %p238 = scmp.ne.s32.totalorder %s233, %s235
      %p239 = scmp.eq.s32.totalorder %s21, 0
      %p240 = por %p238, %p239
      %p241 = scmp.ne.s32.totalorder %s233, %s235
      %p242 = scmp.eq.s32.totalorder %s26, 1
      %p243 = por %p241, %p242
      %p244 = scmp.ne.s32.totalorder %s235, %s236
      %p245 = scmp.eq.s32.totalorder %s26, 0
      %p246 = por %p244, %p245
      %p247 = scmp.ne.s32.totalorder %s235, %s236
      %p248 = scmp.eq.s32.totalorder %s27, 1
      %p249 = por %p247, %p248
      %p251 = scmp.ne.s32.totalorder %s236, %s250
      %p252 = scmp.eq.s32.totalorder %s27, 0
      %p253 = por %p251, %p252
      %s254 = ssub.s32 %s21, %s28
      %p255 = scmp.eq.s32.totalorder %s254, 0
      %s257 = sadd.s32 %s256, 1
      %s258 = scalar_select %p255, %s256, %s257
      %p261 = pneg %p255
      %p262 = scmp.eq.s32.totalorder %s21, 1
      %p263 = por %p261, %p262
      %p264 = scmp.ne.s32.totalorder %s256, %s259
      %p265 = scmp.eq.s32.totalorder %s21, 0
      %p266 = por %p264, %p265
      %p267 = scmp.ne.s32.totalorder %s256, %s259
      %p268 = scmp.eq.s32.totalorder %s26, 1
      %p269 = por %p267, %p268
      %p270 = scmp.ne.s32.totalorder %s259, %s260
      %p271 = scmp.eq.s32.totalorder %s26, 0
      %p272 = por %p270, %p271
      %p273 = scmp.ne.s32.totalorder %s259, %s260
      %p274 = scmp.eq.s32.totalorder %s27, 1
      %p275 = por %p273, %p274
      %p277 = scmp.ne.s32.totalorder %s260, %s276
      %p278 = scmp.eq.s32.totalorder %s27, 0
      %p279 = por %p277, %p278
      %p280 = scmp.le.s32.totalorder 1, %s21
      %p281 = scmp.lt.s32.totalorder %s21, 3
      %p282 = pnand %p280, %p281
      %p283 = pneg %p282
      // Predicated region
      $region9: #{tpu_custom_call.1} parent=5 // pred_check
        _
      $region10: #{tpu_custom_call.1} parent=5 // pred_check_branch
        %285 = sbr.rel (%p282) target = $region12
      $region11: #{tpu_custom_call.1} parent=5 // pred_region
        %s286 = ssub.s32 %s21, 1
        // Predicated region
        $region13: #{tpu_custom_call.1} parent=11 // pred_check
          %p287 = pneg %p42
        $region14: #{tpu_custom_call.1} parent=11 // pred_check_branch
          %289 = sbr.rel (%p287) target = $region16
        $region15: #{tpu_custom_call.1} parent=11 // pred_region
          %s291 = ssub.s32 16, 16
          %292 = vsyncadd [#allocation4], %s291
          %s294 = sshll.u32 %s0, 4
          %s295 = int_to_ptr.vmem [resolvable:$true] %s294
          %297 = dma.vmem_to_smem %s295, 16, [#allocation2], [#allocation4]
        $region16: #{tpu_custom_call.1} parent=11 // pred_fallthru
          _
        // Predicated region
        $region17: #{tpu_custom_call.1} parent=11 // pred_check
          %p298 = pneg %p63
        $region18: #{tpu_custom_call.1} parent=11 // pred_check_branch
          %300 = sbr.rel (%p298) target = $region20
        $region19: #{tpu_custom_call.1} parent=11 // pred_region
          %s302 = ssub.s32 16, 16
          %303 = vsyncadd [#allocation6], %s302
          %s305 = sshll.u32 %s1, 4
          %s306 = int_to_ptr.vmem [resolvable:$true] %s305
          %308 = dma.vmem_to_smem %s306, 16, [#allocation5], [#allocation6]
        $region20: #{tpu_custom_call.1} parent=11 // pred_fallthru
          _
        // Predicated region
        $region21: #{tpu_custom_call.1} parent=11 // pred_check
          %p309 = pneg %p84
        $region22: #{tpu_custom_call.1} parent=11 // pred_check_branch
          %311 = sbr.rel (%p309) target = $region24
        $region23: #{tpu_custom_call.1} parent=11 // pred_region
          %s313 = ssub.s32 16, 16
          %314 = vsyncadd [#allocation6], %s313
          %s316 = sshll.u32 %s2, 4
          %s317 = int_to_ptr.vmem [resolvable:$true] %s316
          %319 = dma.vmem_to_smem %s317, 16, [#allocation7], [#allocation6]
        $region24: #{tpu_custom_call.1} parent=11 // pred_fallthru
          _
        // Predicated region
        $region25: #{tpu_custom_call.1} parent=11 // pred_check
          %p320 = pneg %p183
        $region26: #{tpu_custom_call.1} parent=11 // pred_check_branch
          %322 = sbr.rel (%p320) target = $region28
        $region27: #{tpu_custom_call.1} parent=11 // pred_region
          _
        $region28: #{tpu_custom_call.1} parent=11 // pred_fallthru
          _
        // Predicated region
        $region29: #{tpu_custom_call.1} parent=11 // pred_check
          %p323 = pneg %p204
        $region30: #{tpu_custom_call.1} parent=11 // pred_check_branch
          %325 = sbr.rel (%p323) target = $region32
        $region31: #{tpu_custom_call.1} parent=11 // pred_region
          _
        $region32: #{tpu_custom_call.1} parent=11 // pred_fallthru
          _
        // Predicated region
        $region33: #{tpu_custom_call.1} parent=11 // pred_check
          %p326 = pneg %p225
        $region34: #{tpu_custom_call.1} parent=11 // pred_check_branch
          %328 = sbr.rel (%p326) target = $region36
        $region35: #{tpu_custom_call.1} parent=11 // pred_region
          _
        $region36: #{tpu_custom_call.1} parent=11 // pred_fallthru
          _
        // Predicated region
        $region37: #{tpu_custom_call.1} parent=11 // pred_check
          %p329 = pneg %p246
        $region38: #{tpu_custom_call.1} parent=11 // pred_check_branch
          %331 = sbr.rel (%p329) target = $region40
        $region39: #{tpu_custom_call.1} parent=11 // pred_region
          _
        $region40: #{tpu_custom_call.1} parent=11 // pred_fallthru
          _
      $region12: #{tpu_custom_call.1} parent=5 // pred_fallthru
        _
      %p332 = scmp.lt.s32.totalorder %s21, 2
      // Predicated region
      $region41: #{tpu_custom_call.1} parent=5 // pred_check
        %p333 = pneg %p332
      $region42: #{tpu_custom_call.1} parent=5 // pred_check_branch
        %335 = sbr.rel (%p333) target = $region44
      $region43: #{tpu_custom_call.1} parent=5 // pred_region
        // Predicated region
        $region45: #{tpu_custom_call.1} parent=43 // pred_check
          %p336 = pneg %p104
        $region46: #{tpu_custom_call.1} parent=43 // pred_check_branch
          %338 = sbr.rel (%p336) target = $region48
        $region47: #{tpu_custom_call.1} parent=43 // pred_region
          %s339 = smul.u32 2, %s21
          %p340 = scmp.lt.s32.totalorder %s339, 3
          %s341 = scalar_select %p340, %s339, 3
          %s342 = smul.addr %s341, 4
          %s343 = scalar_lea.vmem %s3, %s342
          %s344 = smul.u32 2, %s21
        $region48: #{tpu_custom_call.1} parent=43 // pred_fallthru
          _
        // Predicated region
        $region49: #{tpu_custom_call.1} parent=43 // pred_check
          %p345 = pneg %p130
        $region50: #{tpu_custom_call.1} parent=43 // pred_check_branch
          %347 = sbr.rel (%p345) target = $region52
        $region51: #{tpu_custom_call.1} parent=43 // pred_region
          %s348 = sand.u32 %s120, 1
          %s349 = sand.u32 %s120, 1
          %s350 = smul.addr %s349, 64
          %s351 = scalar_lea.vmem [#allocation8], %s350
          %s352 = smul.u32 2, %s21
          %s353 = smul.addr %s352, 8
          %s354 = scalar_lea.vmem %s4, %s353
          // Predicated region
          $region53: #{tpu_custom_call.1} parent=51 // pred_check
            _
          $region54: #{tpu_custom_call.1} parent=51 // pred_check_branch
            %356 = sbr.rel (0) target = $region56
          $region55: #{tpu_custom_call.1} parent=51 // pred_region
            // Predicated region
            $region57: #{tpu_custom_call.1} parent=55 // pred_check
              _
            $region58: #{tpu_custom_call.1} parent=55 // pred_check_branch
              %358 = sbr.rel (0) target = $region60
            $region59: #{tpu_custom_call.1} parent=55 // pred_region
              loop: start=0, step=1, limit=1
              $region61: #{tpu_custom_call.1} parent=59 // loop_pre_header
                _
              $region62: #{tpu_custom_call.1} parent=59 // loop_header
                %s360 = sphi 0, %s364
                %p361 = scmp.ge.s32.totalorder %s360, 1
                %s365 = sphi %s354, %s354
                %s366 = sphi %s351, %s351
              $region63: #{tpu_custom_call.1} parent=59 // loop_header_branch
                %363 = sbr.rel (%p361) target = $region67
              $region64: #{tpu_custom_call.1} parent=59 // loop_body
                %v367 = vld [vmem:[%s365] sm:$0xff]
                %368 = vst [vmem:[%s366] sm:$0xff] %v367
                %v369 = vld [vmem:[%s365 + $0x8] sm:$0xff]
                %370 = vst [vmem:[%s366 + $0x8] sm:$0xff] %v369
                %v371 = vld [vmem:[%s365 + $0x20] sm:$0xff]
                %372 = vst [vmem:[%s366 + $0x10] sm:$0xff] %v371
                %v373 = vld [vmem:[%s365 + $0x28] sm:$0xff]
                %374 = vst [vmem:[%s366 + $0x18] sm:$0xff] %v373
                %v375 = vld [vmem:[%s365 + $0x40] sm:$0xff]
                %376 = vst [vmem:[%s366 + $0x20] sm:$0xff] %v375
                %v377 = vld [vmem:[%s365 + $0x48] sm:$0xff]
                %378 = vst [vmem:[%s366 + $0x28] sm:$0xff] %v377
                %v379 = vld [vmem:[%s365 + $0x60] sm:$0xff]
                %380 = vst [vmem:[%s366 + $0x30] sm:$0xff] %v379
                %v381 = vld [vmem:[%s365 + $0x68] sm:$0xff]
                %382 = vst [vmem:[%s366 + $0x38] sm:$0xff] %v381
              $region65: #{tpu_custom_call.1} parent=59 // loop_footer
                %s364 = sadd.s32 1, %s360
              $region66: #{tpu_custom_call.1} parent=59 // loop_footer_branch
                %359 = sbr.rel target = $region62
              $region67: #{tpu_custom_call.1} parent=59 // loop_exit
                _
            $region60: #{tpu_custom_call.1} parent=55 // pred_fallthru
              _
            // Predicated region
            $region68: #{tpu_custom_call.1} parent=55 // pred_check
              _
            $region69: #{tpu_custom_call.1} parent=55 // pred_check_branch
              %384 = sbr.rel target = $region71
            $region70: #{tpu_custom_call.1} parent=55 // pred_region
              _
            $region71: #{tpu_custom_call.1} parent=55 // pred_fallthru
              _
          $region56: #{tpu_custom_call.1} parent=51 // pred_fallthru
            _
          %385 = vnop
        $region52: #{tpu_custom_call.1} parent=43 // pred_fallthru
          _
        // Predicated region
        $region72: #{tpu_custom_call.1} parent=43 // pred_check
          %p386 = pneg %p156
        $region73: #{tpu_custom_call.1} parent=43 // pred_check_branch
          %388 = sbr.rel (%p386) target = $region75
        $region74: #{tpu_custom_call.1} parent=43 // pred_region
          %s389 = sand.u32 %s146, 1
          %s390 = sand.u32 %s146, 1
          %s391 = smul.addr %s390, 64
          %s392 = scalar_lea.vmem [#allocation9], %s391
          %s393 = smul.u32 2, %s21
          %s394 = smul.addr %s393, 4
          %s395 = scalar_lea.vmem %s5, %s394
          // Predicated region
          $region76: #{tpu_custom_call.1} parent=74 // pred_check
            _
          $region77: #{tpu_custom_call.1} parent=74 // pred_check_branch
            %397 = sbr.rel (0) target = $region79
          $region78: #{tpu_custom_call.1} parent=74 // pred_region
            // Predicated region
            $region80: #{tpu_custom_call.1} parent=78 // pred_check
              _
            $region81: #{tpu_custom_call.1} parent=78 // pred_check_branch
              %399 = sbr.rel (0) target = $region83
            $region82: #{tpu_custom_call.1} parent=78 // pred_region
              // Predicated region
              $region95: #{tpu_custom_call.1} parent=82 // pred_check
                _
              $region96: #{tpu_custom_call.1} parent=82 // pred_check_branch
                %429 = sbr.rel (0) target = $region98
              $region97: #{tpu_custom_call.1} parent=82 // pred_region
                loop: start=0, step=1, limit=1
                $region99: #{tpu_custom_call.1} parent=97 // loop_pre_header
                  _
                $region100: #{tpu_custom_call.1} parent=97 // loop_header
                  %s431 = sphi 0, %s435
                  %p432 = scmp.ge.s32.totalorder %s431, 1
                  %s436 = sphi %s395, %s395
                  %s437 = sphi %s392, %s392
                $region101: #{tpu_custom_call.1} parent=97 // loop_header_branch
                  %434 = sbr.rel (%p432) target = $region105
                $region102: #{tpu_custom_call.1} parent=97 // loop_body
                  %v438 = vld [vmem:[%s436] sm:$0xff]
                  %439 = vst [vmem:[%s437] sm:$0xff] %v438
                  %v440 = vld [vmem:[%s436 + $0x10] sm:$0xff]
                  %441 = vst [vmem:[%s437 + $0x8] sm:$0xff] %v440
                  %v442 = vld [vmem:[%s436 + $0x20] sm:$0xff]
                  %443 = vst [vmem:[%s437 + $0x10] sm:$0xff] %v442
                  %v444 = vld [vmem:[%s436 + $0x30] sm:$0xff]
                  %445 = vst [vmem:[%s437 + $0x18] sm:$0xff] %v444
                  %v446 = vld [vmem:[%s436 + $0x40] sm:$0xff]
                  %447 = vst [vmem:[%s437 + $0x20] sm:$0xff] %v446
                  %v448 = vld [vmem:[%s436 + $0x50] sm:$0xff]
                  %449 = vst [vmem:[%s437 + $0x28] sm:$0xff] %v448
                  %v450 = vld [vmem:[%s436 + $0x60] sm:$0xff]
                  %451 = vst [vmem:[%s437 + $0x30] sm:$0xff] %v450
                  %v452 = vld [vmem:[%s436 + $0x70] sm:$0xff]
                  %453 = vst [vmem:[%s437 + $0x38] sm:$0xff] %v452
                $region103: #{tpu_custom_call.1} parent=97 // loop_footer
                  %s435 = sadd.s32 1, %s431
                $region104: #{tpu_custom_call.1} parent=97 // loop_footer_branch
                  %430 = sbr.rel target = $region100
                $region105: #{tpu_custom_call.1} parent=97 // loop_exit
                  _
              $region98: #{tpu_custom_call.1} parent=82 // pred_fallthru
                _
              // Predicated region
              $region106: #{tpu_custom_call.1} parent=82 // pred_check
                _
              $region107: #{tpu_custom_call.1} parent=82 // pred_check_branch
                %455 = sbr.rel target = $region109
              $region108: #{tpu_custom_call.1} parent=82 // pred_region
                _
              $region109: #{tpu_custom_call.1} parent=82 // pred_fallthru
                _
            $region83: #{tpu_custom_call.1} parent=78 // pred_fallthru
              _
            // Predicated region
            $region84: #{tpu_custom_call.1} parent=78 // pred_check
              _
            $region85: #{tpu_custom_call.1} parent=78 // pred_check_branch
              %401 = sbr.rel target = $region87
            $region86: #{tpu_custom_call.1} parent=78 // pred_region
              %s403 = ssub.s32 256, 1
              loop: start=0, step=1, limit=1
              $region88: #{tpu_custom_call.1} parent=86 // loop_pre_header
                _
              $region89: #{tpu_custom_call.1} parent=86 // loop_header
                %s405 = sphi 0, %s409
                %p406 = scmp.ge.s32.totalorder %s405, 1
                %s410 = sphi %s395, %s395
                %s411 = sphi %s392, %s392
              $region90: #{tpu_custom_call.1} parent=86 // loop_header_branch
                %408 = sbr.rel (%p406) target = $region94
              $region91: #{tpu_custom_call.1} parent=86 // loop_body
                %v412 = vld [vmem:[%s410] sm:%s403]
                %413 = vst [vmem:[%s411] sm:%s403] %v412
                %v414 = vld [vmem:[%s410 + $0x10] sm:%s403]
                %415 = vst [vmem:[%s411 + $0x8] sm:%s403] %v414
                %v416 = vld [vmem:[%s410 + $0x20] sm:%s403]
                %417 = vst [vmem:[%s411 + $0x10] sm:%s403] %v416
                %v418 = vld [vmem:[%s410 + $0x30] sm:%s403]
                %419 = vst [vmem:[%s411 + $0x18] sm:%s403] %v418
                %v420 = vld [vmem:[%s410 + $0x40] sm:%s403]
                %421 = vst [vmem:[%s411 + $0x20] sm:%s403] %v420
                %v422 = vld [vmem:[%s410 + $0x50] sm:%s403]
                %423 = vst [vmem:[%s411 + $0x28] sm:%s403] %v422
                %v424 = vld [vmem:[%s410 + $0x60] sm:%s403]
                %425 = vst [vmem:[%s411 + $0x30] sm:%s403] %v424
                %v426 = vld [vmem:[%s410 + $0x70] sm:%s403]
                %427 = vst [vmem:[%s411 + $0x38] sm:%s403] %v426
              $region92: #{tpu_custom_call.1} parent=86 // loop_footer
                %s409 = sadd.s32 1, %s405
              $region93: #{tpu_custom_call.1} parent=86 // loop_footer_branch
                %404 = sbr.rel target = $region89
              $region94: #{tpu_custom_call.1} parent=86 // loop_exit
                _
            $region87: #{tpu_custom_call.1} parent=78 // pred_fallthru
              _
          $region79: #{tpu_custom_call.1} parent=74 // pred_fallthru
            _
          %456 = vnop
        $region75: #{tpu_custom_call.1} parent=43 // pred_fallthru
          _
      $region44: #{tpu_custom_call.1} parent=5 // pred_fallthru
        _
      %p457 = scmp.le.s32.totalorder 1, %s21
      %p458 = scmp.lt.s32.totalorder %s21, 3
      %p459 = pnand %p457, %p458
      %p460 = pneg %p459
      // Predicated region
      $region110: #{tpu_custom_call.1} parent=5 // pred_check
        _
      $region111: #{tpu_custom_call.1} parent=5 // pred_check_branch
        %462 = sbr.rel (%p459) target = $region113
      $region112: #{tpu_custom_call.1} parent=5 // pred_region
        %s463 = ssub.s32 %s21, 1
        // Predicated region
        $region114: #{tpu_custom_call.1} parent=112 // pred_check
          %p464 = pneg %p42
        $region115: #{tpu_custom_call.1} parent=112 // pred_check_branch
          %466 = sbr.rel (%p464) target = $region117
        $region116: #{tpu_custom_call.1} parent=112 // pred_region
          %467 = dma.done [#allocation4], 16
        $region117: #{tpu_custom_call.1} parent=112 // pred_fallthru
          _
        // Predicated region
        $region118: #{tpu_custom_call.1} parent=112 // pred_check
          %p468 = pneg %p63
        $region119: #{tpu_custom_call.1} parent=112 // pred_check_branch
          %470 = sbr.rel (%p468) target = $region121
        $region120: #{tpu_custom_call.1} parent=112 // pred_region
          %471 = dma.done [#allocation6], 16
        $region121: #{tpu_custom_call.1} parent=112 // pred_fallthru
          _
        // Predicated region
        $region122: #{tpu_custom_call.1} parent=112 // pred_check
          %p472 = pneg %p84
        $region123: #{tpu_custom_call.1} parent=112 // pred_check_branch
          %474 = sbr.rel (%p472) target = $region125
        $region124: #{tpu_custom_call.1} parent=112 // pred_region
          %475 = dma.done [#allocation6], 16
        $region125: #{tpu_custom_call.1} parent=112 // pred_fallthru
          _
        %s476 = sand.u32 %s123, 1
        %s477 = sand.u32 %s123, 1
        %s478 = smul.addr %s477, 64
        %s479 = scalar_lea.vmem [#allocation8], %s478
        // Predicated region
        $region126: #{tpu_custom_call.1} parent=112 // pred_check
          %p480 = pneg %p136
        $region127: #{tpu_custom_call.1} parent=112 // pred_check_branch
          %482 = sbr.rel (%p480) target = $region129
        $region128: #{tpu_custom_call.1} parent=112 // pred_region
          _
        $region129: #{tpu_custom_call.1} parent=112 // pred_fallthru
          _
        %s483 = sand.u32 %s149, 1
        %s484 = sand.u32 %s149, 1
        %s485 = smul.addr %s484, 64
        %s486 = scalar_lea.vmem [#allocation9], %s485
        // Predicated region
        $region130: #{tpu_custom_call.1} parent=112 // pred_check
          %p487 = pneg %p162
        $region131: #{tpu_custom_call.1} parent=112 // pred_check_branch
          %489 = sbr.rel (%p487) target = $region133
        $region132: #{tpu_custom_call.1} parent=112 // pred_region
          _
        $region133: #{tpu_custom_call.1} parent=112 // pred_fallthru
          _
        %490 = sfence
        %p491 = pneg %p42
        %p492 = pneg %p39
        %p493 = pneg %p63
        %p494 = pneg %p60
        %p495 = pneg %p84
        %p496 = pneg %p81
        %s497 = smul.u32 2, %s26
        %p498 = scmp.lt.s32.totalorder %s497, 3
        %s499 = scalar_select %p498, %s497, 3
        %s500 = smul.addr %s499, 4
        %s501 = scalar_lea.vmem %s3, %s500
        %p502 = pneg %p110
        %p503 = pneg %p107
        %s504 = sand.u32 %s123, 1
        %s505 = sand.u32 %s123, 1
        %s506 = smul.addr %s505, 64
        %s507 = scalar_lea.vmem [#allocation8], %s506
        %p508 = pneg %p136
        %p509 = pneg %p133
        %s510 = sand.u32 %s149, 1
        %s511 = sand.u32 %s149, 1
        %s512 = smul.addr %s511, 64
        %s513 = scalar_lea.vmem [#allocation9], %s512
        %p514 = pneg %p162
        %p515 = pneg %p159
        %p516 = pneg %p183
        %p517 = pneg %p180
        %p518 = pneg %p204
        %p519 = pneg %p201
        %p520 = pneg %p225
        %p521 = pneg %p222
        %p522 = pneg %p246
        %p523 = pneg %p243
        %p524 = pneg %p272
        %p525 = pneg %p269
        %s526 = sand.u32 %s259, 1
        %s527 = scalar_lea.sflag [#allocation3], %s526
        %s528 = sand.u32 %s259, 1
        %s529 = smul.addr %s528, 8
        %s530 = scalar_lea.vmem [#allocation10], %s529
        %s531 = smul.u32 2, %s26
        %p532 = scmp.lt.s32.totalorder %s531, 3
        %s533 = scalar_select %p532, %s531, 3
        %s534 = smul.addr %s533, 4
        %s535 = scalar_lea.vmem %s3, %s534
        %s536 = smul.u32 2, %s26
        %s537 = smul.u32 2, %s26
        %s538 = smul.u32 2, %s26
        %s539 = smul.u32 2, %s26
        %v540 = vld [vmem:[%s535] sm:$0x77]
        %v541 = vld [vmem:[%s479] sm:$0xff]
        %v542 = vld [vmem:[%s479 + $0x8] sm:$0xff]
        %v543 = vld [vmem:[%s479 + $0x10] sm:$0xff]
        %v544 = vld [vmem:[%s479 + $0x18] sm:$0xff]
        %v545 = vld [vmem:[%s479 + $0x20] sm:$0xff]
        %v546 = vld [vmem:[%s479 + $0x28] sm:$0xff]
        %v547 = vld [vmem:[%s479 + $0x30] sm:$0xff]
        %v548 = vld [vmem:[%s479 + $0x38] sm:$0xff]
        %v549 = vld [vmem:[%s9] sm:$0x7]
        %v550 = vld [vmem:[%s7] sm:$0xff]
        %v551 = vld [vmem:[%s7 + $0x8] sm:$0xff]
        %v552 = vld [vmem:[%s7 + $0x10] sm:$0xff]
        %v553 = vld [vmem:[%s7 + $0x18] sm:$0xff]
        %s554 = scalar_lea.vmem %s7, 32
        %v555 = vld [vmem:[%s554] sm:$0xff]
        %v556 = vld [vmem:[%s554 + $0x8] sm:$0xff]
        %v557 = vld [vmem:[%s554 + $0x10] sm:$0xff]
        %v558 = vld [vmem:[%s554 + $0x18] sm:$0xff]
        %s559 = scalar_lea.vmem %s7, 64
        %v560 = vld [vmem:[%s559] sm:$0xff]
        %v561 = vld [vmem:[%s559 + $0x8] sm:$0xff]
        %v562 = vld [vmem:[%s559 + $0x10] sm:$0xff]
        %v563 = vld [vmem:[%s559 + $0x18] sm:$0xff]
        %v564 = vld [vmem:[%s8] sm:$0x7]
        %s565 = scalar_lea.vmem %s8, 4
        %v566 = vld [vmem:[%s565] sm:$0x7]
        %s567 = scalar_lea.vmem %s8, 8
        %v568 = vld [vmem:[%s567] sm:$0x7]
        %s569 = scalar_lea.vmem %s8, 12
        %v570 = vld [vmem:[%s569] sm:$0x7]
        %s571 = scalar_lea.vmem %s8, 16
        %v572 = vld [vmem:[%s571] sm:$0x7]
        %s573 = scalar_lea.vmem %s8, 20
        %v574 = vld [vmem:[%s573] sm:$0x7]
        %s575 = scalar_lea.vmem %s8, 24
        %v576 = vld [vmem:[%s575] sm:$0x7]
        %s577 = scalar_lea.vmem %s8, 28
        %v578 = vld [vmem:[%s577] sm:$0x7]
        %s579 = scalar_lea.vmem %s8, 32
        %v580 = vld [vmem:[%s579] sm:$0x7]
        %s581 = scalar_lea.vmem %s8, 36
        %v582 = vld [vmem:[%s581] sm:$0x7]
        %s583 = scalar_lea.vmem %s8, 40
        %v584 = vld [vmem:[%s583] sm:$0x7]
        %s585 = scalar_lea.vmem %s8, 44
        %v586 = vld [vmem:[%s585] sm:$0x7]
        %s587 = scalar_lea.vmem %s8, 48
        %v588 = vld [vmem:[%s587] sm:$0x7]
        %s589 = scalar_lea.vmem %s8, 52
        %v590 = vld [vmem:[%s589] sm:$0x7]
        %s591 = scalar_lea.vmem %s8, 56
        %v592 = vld [vmem:[%s591] sm:$0x7]
        %s593 = scalar_lea.vmem %s8, 60
        %v594 = vld [vmem:[%s593] sm:$0x7]
        %s595 = scalar_lea.vmem %s8, 64
        %v596 = vld [vmem:[%s595] sm:$0x7]
        %s597 = scalar_lea.vmem %s8, 68
        %v598 = vld [vmem:[%s597] sm:$0x7]
        %s599 = scalar_lea.vmem %s8, 72
        %v600 = vld [vmem:[%s599] sm:$0x7]
        %s601 = scalar_lea.vmem %s8, 76
        %v602 = vld [vmem:[%s601] sm:$0x7]
        %s603 = scalar_lea.vmem %s8, 80
        %v604 = vld [vmem:[%s603] sm:$0x7]
        %s605 = scalar_lea.vmem %s8, 84
        %v606 = vld [vmem:[%s605] sm:$0x7]
        %s607 = scalar_lea.vmem %s8, 88
        %v608 = vld [vmem:[%s607] sm:$0x7]
        %s609 = scalar_lea.vmem %s8, 92
        %v610 = vld [vmem:[%s609] sm:$0x7]
        %s611 = scalar_lea.vmem %s8, 96
        %v612 = vld [vmem:[%s611] sm:$0x7]
        %s613 = scalar_lea.vmem %s8, 100
        %v614 = vld [vmem:[%s613] sm:$0x7]
        %s615 = scalar_lea.vmem %s8, 104
        %v616 = vld [vmem:[%s615] sm:$0x7]
        %s617 = scalar_lea.vmem %s8, 108
        %v618 = vld [vmem:[%s617] sm:$0x7]
        %s619 = scalar_lea.vmem %s8, 112
        %v620 = vld [vmem:[%s619] sm:$0x7]
        %s621 = scalar_lea.vmem %s8, 116
        %v622 = vld [vmem:[%s621] sm:$0x7]
        %s623 = scalar_lea.vmem %s8, 120
        %v624 = vld [vmem:[%s623] sm:$0x7]
        %s625 = scalar_lea.vmem %s8, 124
        %v626 = vld [vmem:[%s625] sm:$0x7]
        %s627 = scalar_lea.vmem %s6, 224
        %v628 = vld [vmem:[%s627] sm:$0xff]
        %v629 = vld [vmem:[%s627 + $0x8] sm:$0xff]
        %v630 = vld [vmem:[%s627 + $0x10] sm:$0xff]
        %v631 = vld [vmem:[%s627 + $0x18] sm:$0xff]
        %633 = vset.pattern.permute.xlu0 0
        %634 = vperm.xlu0 %633, %v628
        %v635 = vpop.permute.xlu0 %634
        %638 = vset.pattern.permute.xlu0 0
        %639 = vperm.xlu0 %638, %v629
        %v640 = vpop.permute.xlu0 %639
        %643 = vset.pattern.permute.xlu0 0
        %644 = vperm.xlu0 %643, %v630
        %v645 = vpop.permute.xlu0 %644
        %648 = vset.pattern.permute.xlu0 0
        %649 = vperm.xlu0 %648, %v631
        %v650 = vpop.permute.xlu0 %649
        %v652 = vadd.f32 %v541, %v635
        %v653 = vadd.f32 %v542, %v635
        %v654 = vadd.f32 %v543, %v640
        %v655 = vadd.f32 %v544, %v640
        %v656 = vadd.f32 %v545, %v645
        %v657 = vadd.f32 %v546, %v645
        %v658 = vadd.f32 %v547, %v650
        %v659 = vadd.f32 %v548, %v650
        %661 = vset.pattern.permute.xlu0 0
        %662 = vperm.xlu0 %661, %v550
        %v663 = vpop.permute.xlu0 %662
        %666 = vset.pattern.permute.xlu0 0
        %667 = vperm.xlu0 %666, %v551
        %v668 = vpop.permute.xlu0 %667
        %671 = vset.pattern.permute.xlu0 0
        %672 = vperm.xlu0 %671, %v552
        %v673 = vpop.permute.xlu0 %672
        %676 = vset.pattern.permute.xlu0 0
        %677 = vperm.xlu0 %676, %v553
        %v678 = vpop.permute.xlu0 %677
        %v681 = vlaneseq
        %v682 = vshrl.u32 %v681, 7
        %v683 = vsub.s32 0, %v682
        %v684 = vrot.slane %v540, %v683
        %v685 = vlaneseq
        %v686 = vshrl.u32 %v685, 7
        %v687 = vsub.s32 4, %v686
        %v688 = vrot.slane %v540, %v687
        %v691 = vlaneseq
        %v692 = vshrl.u32 %v691, 7
        %v693 = vsub.s32 0, %v692
        %v694 = vrot.slane %v684, %v693
        %v695 = vlaneseq
        %v696 = vshrl.u32 %v695, 7
        %v697 = vsub.s32 0, %v696
        %v698 = vrot.slane %v688, %v697
        %v699 = vmul.f32 %v663, %v694
        %v700 = vmul.f32 %v663, %v698
        %v701 = vmul.f32 %v668, %v694
        %v702 = vmul.f32 %v668, %v698
        %v703 = vmul.f32 %v673, %v694
        %v704 = vmul.f32 %v673, %v698
        %v705 = vmul.f32 %v678, %v694
        %v706 = vmul.f32 %v678, %v698
        %v707 = vadd.f32 %v652, %v699
        %v708 = vadd.f32 %v653, %v700
        %v709 = vadd.f32 %v654, %v701
        %v710 = vadd.f32 %v655, %v702
        %v711 = vadd.f32 %v656, %v703
        %v712 = vadd.f32 %v657, %v704
        %v713 = vadd.f32 %v658, %v705
        %v714 = vadd.f32 %v659, %v706
        %716 = vset.pattern.permute.xlu0 0
        %717 = vperm.xlu0 %716, %v555
        %v718 = vpop.permute.xlu0 %717
        %721 = vset.pattern.permute.xlu0 0
        %722 = vperm.xlu0 %721, %v556
        %v723 = vpop.permute.xlu0 %722
        %726 = vset.pattern.permute.xlu0 0
        %727 = vperm.xlu0 %726, %v557
        %v728 = vpop.permute.xlu0 %727
        %731 = vset.pattern.permute.xlu0 0
        %732 = vperm.xlu0 %731, %v558
        %v733 = vpop.permute.xlu0 %732
        %v735 = vlaneseq
        %v736 = vshrl.u32 %v735, 7
        %v737 = vsub.s32 1, %v736
        %v738 = vrot.slane %v540, %v737
        %v739 = vlaneseq
        %v740 = vshrl.u32 %v739, 7
        %v741 = vsub.s32 5, %v740
        %v742 = vrot.slane %v540, %v741
        %v745 = vlaneseq
        %v746 = vshrl.u32 %v745, 7
        %v747 = vsub.s32 1, %v746
        %v748 = vrot.slane %v738, %v747
        %v749 = vlaneseq
        %v750 = vshrl.u32 %v749, 7
        %v751 = vsub.s32 1, %v750
        %v752 = vrot.slane %v742, %v751
        %v753 = vmul.f32 %v718, %v748
        %v754 = vmul.f32 %v718, %v752
        %v755 = vmul.f32 %v723, %v748
        %v756 = vmul.f32 %v723, %v752
        %v757 = vmul.f32 %v728, %v748
        %v758 = vmul.f32 %v728, %v752
        %v759 = vmul.f32 %v733, %v748
        %v760 = vmul.f32 %v733, %v752
        %v761 = vadd.f32 %v707, %v753
        %v762 = vadd.f32 %v708, %v754
        %v763 = vadd.f32 %v709, %v755
        %v764 = vadd.f32 %v710, %v756
        %v765 = vadd.f32 %v711, %v757
        %v766 = vadd.f32 %v712, %v758
        %v767 = vadd.f32 %v713, %v759
        %v768 = vadd.f32 %v714, %v760
        %770 = vset.pattern.permute.xlu0 0
        %771 = vperm.xlu0 %770, %v560
        %v772 = vpop.permute.xlu0 %771
        %775 = vset.pattern.permute.xlu0 0
        %776 = vperm.xlu0 %775, %v561
        %v777 = vpop.permute.xlu0 %776
        %780 = vset.pattern.permute.xlu0 0
        %781 = vperm.xlu0 %780, %v562
        %v782 = vpop.permute.xlu0 %781
        %785 = vset.pattern.permute.xlu0 0
        %786 = vperm.xlu0 %785, %v563
        %v787 = vpop.permute.xlu0 %786
        %v789 = vlaneseq
        %v790 = vshrl.u32 %v789, 7
        %v791 = vsub.s32 2, %v790
        %v792 = vrot.slane %v540, %v791
        %v793 = vlaneseq
        %v794 = vshrl.u32 %v793, 7
        %v795 = vsub.s32 6, %v794
        %v796 = vrot.slane %v540, %v795
        %v799 = vlaneseq
        %v800 = vshrl.u32 %v799, 7
        %v801 = vsub.s32 2, %v800
        %v802 = vrot.slane %v792, %v801
        %v803 = vlaneseq
        %v804 = vshrl.u32 %v803, 7
        %v805 = vsub.s32 2, %v804
        %v806 = vrot.slane %v796, %v805
        %v807 = vmul.f32 %v772, %v802
        %v808 = vmul.f32 %v772, %v806
        %v809 = vmul.f32 %v777, %v802
        %v810 = vmul.f32 %v777, %v806
        %v811 = vmul.f32 %v782, %v802
        %v812 = vmul.f32 %v782, %v806
        %v813 = vmul.f32 %v787, %v802
        %v814 = vmul.f32 %v787, %v806
        %v815 = vadd.f32 %v761, %v807
        %v816 = vadd.f32 %v762, %v808
        %v817 = vadd.f32 %v763, %v809
        %v818 = vadd.f32 %v764, %v810
        %v819 = vadd.f32 %v765, %v811
        %v820 = vadd.f32 %v766, %v812
        %v821 = vadd.f32 %v767, %v813
        %v822 = vadd.f32 %v768, %v814
        %v823 = vmax.f32 %v815, 0.0
        %v824 = vmax.f32 %v816, 0.0
        %v825 = vmax.f32 %v817, 0.0
        %v826 = vmax.f32 %v818, 0.0
        %v827 = vmax.f32 %v819, 0.0
        %v828 = vmax.f32 %v820, 0.0
        %v829 = vmax.f32 %v821, 0.0
        %v830 = vmax.f32 %v822, 0.0
        %832 = vset.pattern.permute.xlu0 0
        %833 = vperm.xlu0 %832, %v564
        %v834 = vpop.permute.xlu0 %833
        %v836 = vlaneseq
        %v837 = vshrl.u32 %v836, 7
        %v838 = vsub.s32 0, %v837
        %v839 = vrot.slane %v823, %v838
        %v840 = vlaneseq
        %v841 = vshrl.u32 %v840, 7
        %v842 = vsub.s32 0, %v841
        %v843 = vrot.slane %v824, %v842
        %v844 = vmul.f32 %v834, %v839
        %v845 = vmul.f32 %v834, %v843
        %847 = vset.pattern.permute.xlu0 0
        %848 = vperm.xlu0 %847, %v549
        %v849 = vpop.permute.xlu0 %848
        %v851 = vadd.f32 %v849, %v844
        %v852 = vadd.f32 %v849, %v845
        %854 = vset.pattern.permute.xlu0 0
        %855 = vperm.xlu0 %854, %v566
        %v856 = vpop.permute.xlu0 %855
        %v858 = vlaneseq
        %v859 = vshrl.u32 %v858, 7
        %v860 = vsub.s32 1, %v859
        %v861 = vrot.slane %v823, %v860
        %v862 = vlaneseq
        %v863 = vshrl.u32 %v862, 7
        %v864 = vsub.s32 1, %v863
        %v865 = vrot.slane %v824, %v864
        %v866 = vmul.f32 %v856, %v861
        %v867 = vmul.f32 %v856, %v865
        %v868 = vadd.f32 %v851, %v866
        %v869 = vadd.f32 %v852, %v867
        %871 = vset.pattern.permute.xlu0 0
        %872 = vperm.xlu0 %871, %v568
        %v873 = vpop.permute.xlu0 %872
        %v875 = vlaneseq
        %v876 = vshrl.u32 %v875, 7
        %v877 = vsub.s32 2, %v876
        %v878 = vrot.slane %v823, %v877
        %v879 = vlaneseq
        %v880 = vshrl.u32 %v879, 7
        %v881 = vsub.s32 2, %v880
        %v882 = vrot.slane %v824, %v881
        %v883 = vmul.f32 %v873, %v878
        %v884 = vmul.f32 %v873, %v882
        %v885 = vadd.f32 %v868, %v883
        %v886 = vadd.f32 %v869, %v884
        %888 = vset.pattern.permute.xlu0 0
        %889 = vperm.xlu0 %888, %v570
        %v890 = vpop.permute.xlu0 %889
        %v892 = vlaneseq
        %v893 = vshrl.u32 %v892, 7
        %v894 = vsub.s32 3, %v893
        %v895 = vrot.slane %v823, %v894
        %v896 = vlaneseq
        %v897 = vshrl.u32 %v896, 7
        %v898 = vsub.s32 3, %v897
        %v899 = vrot.slane %v824, %v898
        %v900 = vmul.f32 %v890, %v895
        %v901 = vmul.f32 %v890, %v899
        %v902 = vadd.f32 %v885, %v900
        %v903 = vadd.f32 %v886, %v901
        %905 = vset.pattern.permute.xlu0 0
        %906 = vperm.xlu0 %905, %v572
        %v907 = vpop.permute.xlu0 %906
        %v909 = vlaneseq
        %v910 = vshrl.u32 %v909, 7
        %v911 = vsub.s32 4, %v910
        %v912 = vrot.slane %v823, %v911
        %v913 = vlaneseq
        %v914 = vshrl.u32 %v913, 7
        %v915 = vsub.s32 4, %v914
        %v916 = vrot.slane %v824, %v915
        %v917 = vmul.f32 %v907, %v912
        %v918 = vmul.f32 %v907, %v916
        %v919 = vadd.f32 %v902, %v917
        %v920 = vadd.f32 %v903, %v918
        %922 = vset.pattern.permute.xlu0 0
        %923 = vperm.xlu0 %922, %v574
        %v924 = vpop.permute.xlu0 %923
        %v926 = vlaneseq
        %v927 = vshrl.u32 %v926, 7
        %v928 = vsub.s32 5, %v927
        %v929 = vrot.slane %v823, %v928
        %v930 = vlaneseq
        %v931 = vshrl.u32 %v930, 7
        %v932 = vsub.s32 5, %v931
        %v933 = vrot.slane %v824, %v932
        %v934 = vmul.f32 %v924, %v929
        %v935 = vmul.f32 %v924, %v933
        %v936 = vadd.f32 %v919, %v934
        %v937 = vadd.f32 %v920, %v935
        %939 = vset.pattern.permute.xlu0 0
        %940 = vperm.xlu0 %939, %v576
        %v941 = vpop.permute.xlu0 %940
        %v943 = vlaneseq
        %v944 = vshrl.u32 %v943, 7
        %v945 = vsub.s32 6, %v944
        %v946 = vrot.slane %v823, %v945
        %v947 = vlaneseq
        %v948 = vshrl.u32 %v947, 7
        %v949 = vsub.s32 6, %v948
        %v950 = vrot.slane %v824, %v949
        %v951 = vmul.f32 %v941, %v946
        %v952 = vmul.f32 %v941, %v950
        %v953 = vadd.f32 %v936, %v951
        %v954 = vadd.f32 %v937, %v952
        %956 = vset.pattern.permute.xlu0 0
        %957 = vperm.xlu0 %956, %v578
        %v958 = vpop.permute.xlu0 %957
        %v960 = vlaneseq
        %v961 = vshrl.u32 %v960, 7
        %v962 = vsub.s32 7, %v961
        %v963 = vrot.slane %v823, %v962
        %v964 = vlaneseq
        %v965 = vshrl.u32 %v964, 7
        %v966 = vsub.s32 7, %v965
        %v967 = vrot.slane %v824, %v966
        %v968 = vmul.f32 %v958, %v963
        %v969 = vmul.f32 %v958, %v967
        %v970 = vadd.f32 %v953, %v968
        %v971 = vadd.f32 %v954, %v969
        %973 = vset.pattern.permute.xlu0 0
        %974 = vperm.xlu0 %973, %v580
        %v975 = vpop.permute.xlu0 %974
        %v977 = vlaneseq
        %v978 = vshrl.u32 %v977, 7
        %v979 = vsub.s32 0, %v978
        %v980 = vrot.slane %v825, %v979
        %v981 = vlaneseq
        %v982 = vshrl.u32 %v981, 7
        %v983 = vsub.s32 0, %v982
        %v984 = vrot.slane %v826, %v983
        %v985 = vmul.f32 %v975, %v980
        %v986 = vmul.f32 %v975, %v984
        %v987 = vadd.f32 %v970, %v985
        %v988 = vadd.f32 %v971, %v986
        %990 = vset.pattern.permute.xlu0 0
        %991 = vperm.xlu0 %990, %v582
        %v992 = vpop.permute.xlu0 %991
        %v994 = vlaneseq
        %v995 = vshrl.u32 %v994, 7
        %v996 = vsub.s32 1, %v995
        %v997 = vrot.slane %v825, %v996
        %v998 = vlaneseq
        %v999 = vshrl.u32 %v998, 7
        %v1000 = vsub.s32 1, %v999
        %v1001 = vrot.slane %v826, %v1000
        %v1002 = vmul.f32 %v992, %v997
        %v1003 = vmul.f32 %v992, %v1001
        %v1004 = vadd.f32 %v987, %v1002
        %v1005 = vadd.f32 %v988, %v1003
        %1007 = vset.pattern.permute.xlu0 0
        %1008 = vperm.xlu0 %1007, %v584
        %v1009 = vpop.permute.xlu0 %1008
        %v1011 = vlaneseq
        %v1012 = vshrl.u32 %v1011, 7
        %v1013 = vsub.s32 2, %v1012
        %v1014 = vrot.slane %v825, %v1013
        %v1015 = vlaneseq
        %v1016 = vshrl.u32 %v1015, 7
        %v1017 = vsub.s32 2, %v1016
        %v1018 = vrot.slane %v826, %v1017
        %v1019 = vmul.f32 %v1009, %v1014
        %v1020 = vmul.f32 %v1009, %v1018
        %v1021 = vadd.f32 %v1004, %v1019
        %v1022 = vadd.f32 %v1005, %v1020
        %1024 = vset.pattern.permute.xlu0 0
        %1025 = vperm.xlu0 %1024, %v586
        %v1026 = vpop.permute.xlu0 %1025
        %v1028 = vlaneseq
        %v1029 = vshrl.u32 %v1028, 7
        %v1030 = vsub.s32 3, %v1029
        %v1031 = vrot.slane %v825, %v1030
        %v1032 = vlaneseq
        %v1033 = vshrl.u32 %v1032, 7
        %v1034 = vsub.s32 3, %v1033
        %v1035 = vrot.slane %v826, %v1034
        %v1036 = vmul.f32 %v1026, %v1031
        %v1037 = vmul.f32 %v1026, %v1035
        %v1038 = vadd.f32 %v1021, %v1036
        %v1039 = vadd.f32 %v1022, %v1037
        %1041 = vset.pattern.permute.xlu0 0
        %1042 = vperm.xlu0 %1041, %v588
        %v1043 = vpop.permute.xlu0 %1042
        %v1045 = vlaneseq
        %v1046 = vshrl.u32 %v1045, 7
        %v1047 = vsub.s32 4, %v1046
        %v1048 = vrot.slane %v825, %v1047
        %v1049 = vlaneseq
        %v1050 = vshrl.u32 %v1049, 7
        %v1051 = vsub.s32 4, %v1050
        %v1052 = vrot.slane %v826, %v1051
        %v1053 = vmul.f32 %v1043, %v1048
        %v1054 = vmul.f32 %v1043, %v1052
        %v1055 = vadd.f32 %v1038, %v1053
        %v1056 = vadd.f32 %v1039, %v1054
        %1058 = vset.pattern.permute.xlu0 0
        %1059 = vperm.xlu0 %1058, %v590
        %v1060 = vpop.permute.xlu0 %1059
        %v1062 = vlaneseq
        %v1063 = vshrl.u32 %v1062, 7
        %v1064 = vsub.s32 5, %v1063
        %v1065 = vrot.slane %v825, %v1064
        %v1066 = vlaneseq
        %v1067 = vshrl.u32 %v1066, 7
        %v1068 = vsub.s32 5, %v1067
        %v1069 = vrot.slane %v826, %v1068
        %v1070 = vmul.f32 %v1060, %v1065
        %v1071 = vmul.f32 %v1060, %v1069
        %v1072 = vadd.f32 %v1055, %v1070
        %v1073 = vadd.f32 %v1056, %v1071
        %1075 = vset.pattern.permute.xlu0 0
        %1076 = vperm.xlu0 %1075, %v592
        %v1077 = vpop.permute.xlu0 %1076
        %v1079 = vlaneseq
        %v1080 = vshrl.u32 %v1079, 7
        %v1081 = vsub.s32 6, %v1080
        %v1082 = vrot.slane %v825, %v1081
        %v1083 = vlaneseq
        %v1084 = vshrl.u32 %v1083, 7
        %v1085 = vsub.s32 6, %v1084
        %v1086 = vrot.slane %v826, %v1085
        %v1087 = vmul.f32 %v1077, %v1082
        %v1088 = vmul.f32 %v1077, %v1086
        %v1089 = vadd.f32 %v1072, %v1087
        %v1090 = vadd.f32 %v1073, %v1088
        %1092 = vset.pattern.permute.xlu0 0
        %1093 = vperm.xlu0 %1092, %v594
        %v1094 = vpop.permute.xlu0 %1093
        %v1096 = vlaneseq
        %v1097 = vshrl.u32 %v1096, 7
        %v1098 = vsub.s32 7, %v1097
        %v1099 = vrot.slane %v825, %v1098
        %v1100 = vlaneseq
        %v1101 = vshrl.u32 %v1100, 7
        %v1102 = vsub.s32 7, %v1101
        %v1103 = vrot.slane %v826, %v1102
        %v1104 = vmul.f32 %v1094, %v1099
        %v1105 = vmul.f32 %v1094, %v1103
        %v1106 = vadd.f32 %v1089, %v1104
        %v1107 = vadd.f32 %v1090, %v1105
        %1109 = vset.pattern.permute.xlu0 0
        %1110 = vperm.xlu0 %1109, %v596
        %v1111 = vpop.permute.xlu0 %1110
        %v1113 = vlaneseq
        %v1114 = vshrl.u32 %v1113, 7
        %v1115 = vsub.s32 0, %v1114
        %v1116 = vrot.slane %v827, %v1115
        %v1117 = vlaneseq
        %v1118 = vshrl.u32 %v1117, 7
        %v1119 = vsub.s32 0, %v1118
        %v1120 = vrot.slane %v828, %v1119
        %v1121 = vmul.f32 %v1111, %v1116
        %v1122 = vmul.f32 %v1111, %v1120
        %v1123 = vadd.f32 %v1106, %v1121
        %v1124 = vadd.f32 %v1107, %v1122
        %1126 = vset.pattern.permute.xlu0 0
        %1127 = vperm.xlu0 %1126, %v598
        %v1128 = vpop.permute.xlu0 %1127
        %v1130 = vlaneseq
        %v1131 = vshrl.u32 %v1130, 7
        %v1132 = vsub.s32 1, %v1131
        %v1133 = vrot.slane %v827, %v1132
        %v1134 = vlaneseq
        %v1135 = vshrl.u32 %v1134, 7
        %v1136 = vsub.s32 1, %v1135
        %v1137 = vrot.slane %v828, %v1136
        %v1138 = vmul.f32 %v1128, %v1133
        %v1139 = vmul.f32 %v1128, %v1137
        %v1140 = vadd.f32 %v1123, %v1138
        %v1141 = vadd.f32 %v1124, %v1139
        %1143 = vset.pattern.permute.xlu0 0
        %1144 = vperm.xlu0 %1143, %v600
        %v1145 = vpop.permute.xlu0 %1144
        %v1147 = vlaneseq
        %v1148 = vshrl.u32 %v1147, 7
        %v1149 = vsub.s32 2, %v1148
        %v1150 = vrot.slane %v827, %v1149
        %v1151 = vlaneseq
        %v1152 = vshrl.u32 %v1151, 7
        %v1153 = vsub.s32 2, %v1152
        %v1154 = vrot.slane %v828, %v1153
        %v1155 = vmul.f32 %v1145, %v1150
        %v1156 = vmul.f32 %v1145, %v1154
        %v1157 = vadd.f32 %v1140, %v1155
        %v1158 = vadd.f32 %v1141, %v1156
        %1160 = vset.pattern.permute.xlu0 0
        %1161 = vperm.xlu0 %1160, %v602
        %v1162 = vpop.permute.xlu0 %1161
        %v1164 = vlaneseq
        %v1165 = vshrl.u32 %v1164, 7
        %v1166 = vsub.s32 3, %v1165
        %v1167 = vrot.slane %v827, %v1166
        %v1168 = vlaneseq
        %v1169 = vshrl.u32 %v1168, 7
        %v1170 = vsub.s32 3, %v1169
        %v1171 = vrot.slane %v828, %v1170
        %v1172 = vmul.f32 %v1162, %v1167
        %v1173 = vmul.f32 %v1162, %v1171
        %v1174 = vadd.f32 %v1157, %v1172
        %v1175 = vadd.f32 %v1158, %v1173
        %1177 = vset.pattern.permute.xlu0 0
        %1178 = vperm.xlu0 %1177, %v604
        %v1179 = vpop.permute.xlu0 %1178
        %v1181 = vlaneseq
        %v1182 = vshrl.u32 %v1181, 7
        %v1183 = vsub.s32 4, %v1182
        %v1184 = vrot.slane %v827, %v1183
        %v1185 = vlaneseq
        %v1186 = vshrl.u32 %v1185, 7
        %v1187 = vsub.s32 4, %v1186
        %v1188 = vrot.slane %v828, %v1187
        %v1189 = vmul.f32 %v1179, %v1184
        %v1190 = vmul.f32 %v1179, %v1188
        %v1191 = vadd.f32 %v1174, %v1189
        %v1192 = vadd.f32 %v1175, %v1190
        %1194 = vset.pattern.permute.xlu0 0
        %1195 = vperm.xlu0 %1194, %v606
        %v1196 = vpop.permute.xlu0 %1195
        %v1198 = vlaneseq
        %v1199 = vshrl.u32 %v1198, 7
        %v1200 = vsub.s32 5, %v1199
        %v1201 = vrot.slane %v827, %v1200
        %v1202 = vlaneseq
        %v1203 = vshrl.u32 %v1202, 7
        %v1204 = vsub.s32 5, %v1203
        %v1205 = vrot.slane %v828, %v1204
        %v1206 = vmul.f32 %v1196, %v1201
        %v1207 = vmul.f32 %v1196, %v1205
        %v1208 = vadd.f32 %v1191, %v1206
        %v1209 = vadd.f32 %v1192, %v1207
        %1211 = vset.pattern.permute.xlu0 0
        %1212 = vperm.xlu0 %1211, %v608
        %v1213 = vpop.permute.xlu0 %1212
        %v1215 = vlaneseq
        %v1216 = vshrl.u32 %v1215, 7
        %v1217 = vsub.s32 6, %v1216
        %v1218 = vrot.slane %v827, %v1217
        %v1219 = vlaneseq
        %v1220 = vshrl.u32 %v1219, 7
        %v1221 = vsub.s32 6, %v1220
        %v1222 = vrot.slane %v828, %v1221
        %v1223 = vmul.f32 %v1213, %v1218
        %v1224 = vmul.f32 %v1213, %v1222
        %v1225 = vadd.f32 %v1208, %v1223
        %v1226 = vadd.f32 %v1209, %v1224
        %1228 = vset.pattern.permute.xlu0 0
        %1229 = vperm.xlu0 %1228, %v610
        %v1230 = vpop.permute.xlu0 %1229
        %v1232 = vlaneseq
        %v1233 = vshrl.u32 %v1232, 7
        %v1234 = vsub.s32 7, %v1233
        %v1235 = vrot.slane %v827, %v1234
        %v1236 = vlaneseq
        %v1237 = vshrl.u32 %v1236, 7
        %v1238 = vsub.s32 7, %v1237
        %v1239 = vrot.slane %v828, %v1238
        %v1240 = vmul.f32 %v1230, %v1235
        %v1241 = vmul.f32 %v1230, %v1239
        %v1242 = vadd.f32 %v1225, %v1240
        %v1243 = vadd.f32 %v1226, %v1241
        %1245 = vset.pattern.permute.xlu0 0
        %1246 = vperm.xlu0 %1245, %v612
        %v1247 = vpop.permute.xlu0 %1246
        %v1249 = vlaneseq
        %v1250 = vshrl.u32 %v1249, 7
        %v1251 = vsub.s32 0, %v1250
        %v1252 = vrot.slane %v829, %v1251
        %v1253 = vlaneseq
        %v1254 = vshrl.u32 %v1253, 7
        %v1255 = vsub.s32 0, %v1254
        %v1256 = vrot.slane %v830, %v1255
        %v1257 = vmul.f32 %v1247, %v1252
        %v1258 = vmul.f32 %v1247, %v1256
        %v1259 = vadd.f32 %v1242, %v1257
        %v1260 = vadd.f32 %v1243, %v1258
        %1262 = vset.pattern.permute.xlu0 0
        %1263 = vperm.xlu0 %1262, %v614
        %v1264 = vpop.permute.xlu0 %1263
        %v1266 = vlaneseq
        %v1267 = vshrl.u32 %v1266, 7
        %v1268 = vsub.s32 1, %v1267
        %v1269 = vrot.slane %v829, %v1268
        %v1270 = vlaneseq
        %v1271 = vshrl.u32 %v1270, 7
        %v1272 = vsub.s32 1, %v1271
        %v1273 = vrot.slane %v830, %v1272
        %v1274 = vmul.f32 %v1264, %v1269
        %v1275 = vmul.f32 %v1264, %v1273
        %v1276 = vadd.f32 %v1259, %v1274
        %v1277 = vadd.f32 %v1260, %v1275
        %1279 = vset.pattern.permute.xlu0 0
        %1280 = vperm.xlu0 %1279, %v616
        %v1281 = vpop.permute.xlu0 %1280
        %v1283 = vlaneseq
        %v1284 = vshrl.u32 %v1283, 7
        %v1285 = vsub.s32 2, %v1284
        %v1286 = vrot.slane %v829, %v1285
        %v1287 = vlaneseq
        %v1288 = vshrl.u32 %v1287, 7
        %v1289 = vsub.s32 2, %v1288
        %v1290 = vrot.slane %v830, %v1289
        %v1291 = vmul.f32 %v1281, %v1286
        %v1292 = vmul.f32 %v1281, %v1290
        %v1293 = vadd.f32 %v1276, %v1291
        %v1294 = vadd.f32 %v1277, %v1292
        %1296 = vset.pattern.permute.xlu0 0
        %1297 = vperm.xlu0 %1296, %v618
        %v1298 = vpop.permute.xlu0 %1297
        %v1300 = vlaneseq
        %v1301 = vshrl.u32 %v1300, 7
        %v1302 = vsub.s32 3, %v1301
        %v1303 = vrot.slane %v829, %v1302
        %v1304 = vlaneseq
        %v1305 = vshrl.u32 %v1304, 7
        %v1306 = vsub.s32 3, %v1305
        %v1307 = vrot.slane %v830, %v1306
        %v1308 = vmul.f32 %v1298, %v1303
        %v1309 = vmul.f32 %v1298, %v1307
        %v1310 = vadd.f32 %v1293, %v1308
        %v1311 = vadd.f32 %v1294, %v1309
        %1313 = vset.pattern.permute.xlu0 0
        %1314 = vperm.xlu0 %1313, %v620
        %v1315 = vpop.permute.xlu0 %1314
        %v1317 = vlaneseq
        %v1318 = vshrl.u32 %v1317, 7
        %v1319 = vsub.s32 4, %v1318
        %v1320 = vrot.slane %v829, %v1319
        %v1321 = vlaneseq
        %v1322 = vshrl.u32 %v1321, 7
        %v1323 = vsub.s32 4, %v1322
        %v1324 = vrot.slane %v830, %v1323
        %v1325 = vmul.f32 %v1315, %v1320
        %v1326 = vmul.f32 %v1315, %v1324
        %v1327 = vadd.f32 %v1310, %v1325
        %v1328 = vadd.f32 %v1311, %v1326
        %1330 = vset.pattern.permute.xlu0 0
        %1331 = vperm.xlu0 %1330, %v622
        %v1332 = vpop.permute.xlu0 %1331
        %v1334 = vlaneseq
        %v1335 = vshrl.u32 %v1334, 7
        %v1336 = vsub.s32 5, %v1335
        %v1337 = vrot.slane %v829, %v1336
        %v1338 = vlaneseq
        %v1339 = vshrl.u32 %v1338, 7
        %v1340 = vsub.s32 5, %v1339
        %v1341 = vrot.slane %v830, %v1340
        %v1342 = vmul.f32 %v1332, %v1337
        %v1343 = vmul.f32 %v1332, %v1341
        %v1344 = vadd.f32 %v1327, %v1342
        %v1345 = vadd.f32 %v1328, %v1343
        %1347 = vset.pattern.permute.xlu0 0
        %1348 = vperm.xlu0 %1347, %v624
        %v1349 = vpop.permute.xlu0 %1348
        %v1351 = vlaneseq
        %v1352 = vshrl.u32 %v1351, 7
        %v1353 = vsub.s32 6, %v1352
        %v1354 = vrot.slane %v829, %v1353
        %v1355 = vlaneseq
        %v1356 = vshrl.u32 %v1355, 7
        %v1357 = vsub.s32 6, %v1356
        %v1358 = vrot.slane %v830, %v1357
        %v1359 = vmul.f32 %v1349, %v1354
        %v1360 = vmul.f32 %v1349, %v1358
        %v1361 = vadd.f32 %v1344, %v1359
        %v1362 = vadd.f32 %v1345, %v1360
        %1364 = vset.pattern.permute.xlu0 0
        %1365 = vperm.xlu0 %1364, %v626
        %v1366 = vpop.permute.xlu0 %1365
        %v1368 = vlaneseq
        %v1369 = vshrl.u32 %v1368, 7
        %v1370 = vsub.s32 7, %v1369
        %v1371 = vrot.slane %v829, %v1370
        %v1372 = vlaneseq
        %v1373 = vshrl.u32 %v1372, 7
        %v1374 = vsub.s32 7, %v1373
        %v1375 = vrot.slane %v830, %v1374
        %v1376 = vmul.f32 %v1366, %v1371
        %v1377 = vmul.f32 %v1366, %v1375
        %v1378 = vadd.f32 %v1361, %v1376
        %v1379 = vadd.f32 %v1362, %v1377
        %s1380 = sld [smem:[#allocation2 + $0x7]]
        %v1381 = vstv %s1380
        %v1382 = vmul.f32 %v540, %v1381
        %s1383 = sld [smem:[#allocation5 + $0x7]]
        %v1384 = vstv %s1383
        %v1385 = vmul.f32 %v1384, %v1378
        %v1386 = vmul.f32 %v1384, %v1379
        %v1389 = vcombine.low %v1385, %v1386
        %v1391 = vsub.f32 %v1382, %v1389
        %s1392 = sld [smem:[#allocation7 + $0x7]]
        %s1393 = scalar_lea.vmem %s486, 56 [#allocation9]
        %v1394 = vld [vmem:[%s1393] sm:$0x77]
        %v1395 = vstv %s1392
        %v1396 = vmul.f32 %v1395, %v1394
        %v1397 = vadd.f32 %v1391, %v1396
        %s1398 = scalar_lea.vmem %s6, 192
        %v1399 = vld [vmem:[%s1398] sm:$0xff]
        %v1400 = vld [vmem:[%s1398 + $0x8] sm:$0xff]
        %v1401 = vld [vmem:[%s1398 + $0x10] sm:$0xff]
        %v1402 = vld [vmem:[%s1398 + $0x18] sm:$0xff]
        %1404 = vset.pattern.permute.xlu0 0
        %1405 = vperm.xlu0 %1404, %v1399
        %v1406 = vpop.permute.xlu0 %1405
        %1409 = vset.pattern.permute.xlu0 0
        %1410 = vperm.xlu0 %1409, %v1400
        %v1411 = vpop.permute.xlu0 %1410
        %1414 = vset.pattern.permute.xlu0 0
        %1415 = vperm.xlu0 %1414, %v1401
        %v1416 = vpop.permute.xlu0 %1415
        %1419 = vset.pattern.permute.xlu0 0
        %1420 = vperm.xlu0 %1419, %v1402
        %v1421 = vpop.permute.xlu0 %1420
        %v1423 = vadd.f32 %v541, %v1406
        %v1424 = vadd.f32 %v542, %v1406
        %v1425 = vadd.f32 %v543, %v1411
        %v1426 = vadd.f32 %v544, %v1411
        %v1427 = vadd.f32 %v545, %v1416
        %v1428 = vadd.f32 %v546, %v1416
        %v1429 = vadd.f32 %v547, %v1421
        %v1430 = vadd.f32 %v548, %v1421
        %v1432 = vlaneseq
        %v1433 = vshrl.u32 %v1432, 7
        %v1434 = vsub.s32 0, %v1433
        %v1435 = vrot.slane %v1397, %v1434
        %v1436 = vlaneseq
        %v1437 = vshrl.u32 %v1436, 7
        %v1438 = vsub.s32 4, %v1437
        %v1439 = vrot.slane %v1397, %v1438
        %v1442 = vlaneseq
        %v1443 = vshrl.u32 %v1442, 7
        %v1444 = vsub.s32 0, %v1443
        %v1445 = vrot.slane %v1435, %v1444
        %v1446 = vlaneseq
        %v1447 = vshrl.u32 %v1446, 7
        %v1448 = vsub.s32 0, %v1447
        %v1449 = vrot.slane %v1439, %v1448
        %v1450 = vmul.f32 %v663, %v1445
        %v1451 = vmul.f32 %v663, %v1449
        %v1452 = vmul.f32 %v668, %v1445
        %v1453 = vmul.f32 %v668, %v1449
        %v1454 = vmul.f32 %v673, %v1445
        %v1455 = vmul.f32 %v673, %v1449
        %v1456 = vmul.f32 %v678, %v1445
        %v1457 = vmul.f32 %v678, %v1449
        %v1458 = vadd.f32 %v1423, %v1450
        %v1459 = vadd.f32 %v1424, %v1451
        %v1460 = vadd.f32 %v1425, %v1452
        %v1461 = vadd.f32 %v1426, %v1453
        %v1462 = vadd.f32 %v1427, %v1454
        %v1463 = vadd.f32 %v1428, %v1455
        %v1464 = vadd.f32 %v1429, %v1456
        %v1465 = vadd.f32 %v1430, %v1457
        %v1466 = vlaneseq
        %v1467 = vshrl.u32 %v1466, 7
        %v1468 = vsub.s32 1, %v1467
        %v1469 = vrot.slane %v1397, %v1468
        %v1470 = vlaneseq
        %v1471 = vshrl.u32 %v1470, 7
        %v1472 = vsub.s32 5, %v1471
        %v1473 = vrot.slane %v1397, %v1472
        %v1476 = vlaneseq
        %v1477 = vshrl.u32 %v1476, 7
        %v1478 = vsub.s32 1, %v1477
        %v1479 = vrot.slane %v1469, %v1478
        %v1480 = vlaneseq
        %v1481 = vshrl.u32 %v1480, 7
        %v1482 = vsub.s32 1, %v1481
        %v1483 = vrot.slane %v1473, %v1482
        %v1484 = vmul.f32 %v718, %v1479
        %v1485 = vmul.f32 %v718, %v1483
        %v1486 = vmul.f32 %v723, %v1479
        %v1487 = vmul.f32 %v723, %v1483
        %v1488 = vmul.f32 %v728, %v1479
        %v1489 = vmul.f32 %v728, %v1483
        %v1490 = vmul.f32 %v733, %v1479
        %v1491 = vmul.f32 %v733, %v1483
        %v1492 = vadd.f32 %v1458, %v1484
        %v1493 = vadd.f32 %v1459, %v1485
        %v1494 = vadd.f32 %v1460, %v1486
        %v1495 = vadd.f32 %v1461, %v1487
        %v1496 = vadd.f32 %v1462, %v1488
        %v1497 = vadd.f32 %v1463, %v1489
        %v1498 = vadd.f32 %v1464, %v1490
        %v1499 = vadd.f32 %v1465, %v1491
        %v1500 = vlaneseq
        %v1501 = vshrl.u32 %v1500, 7
        %v1502 = vsub.s32 2, %v1501
        %v1503 = vrot.slane %v1397, %v1502
        %v1504 = vlaneseq
        %v1505 = vshrl.u32 %v1504, 7
        %v1506 = vsub.s32 6, %v1505
        %v1507 = vrot.slane %v1397, %v1506
        %v1510 = vlaneseq
        %v1511 = vshrl.u32 %v1510, 7
        %v1512 = vsub.s32 2, %v1511
        %v1513 = vrot.slane %v1503, %v1512
        %v1514 = vlaneseq
        %v1515 = vshrl.u32 %v1514, 7
        %v1516 = vsub.s32 2, %v1515
        %v1517 = vrot.slane %v1507, %v1516
        %v1518 = vmul.f32 %v772, %v1513
        %v1519 = vmul.f32 %v772, %v1517
        %v1520 = vmul.f32 %v777, %v1513
        %v1521 = vmul.f32 %v777, %v1517
        %v1522 = vmul.f32 %v782, %v1513
        %v1523 = vmul.f32 %v782, %v1517
        %v1524 = vmul.f32 %v787, %v1513
        %v1525 = vmul.f32 %v787, %v1517
        %v1526 = vadd.f32 %v1492, %v1518
        %v1527 = vadd.f32 %v1493, %v1519
        %v1528 = vadd.f32 %v1494, %v1520
        %v1529 = vadd.f32 %v1495, %v1521
        %v1530 = vadd.f32 %v1496, %v1522
        %v1531 = vadd.f32 %v1497, %v1523
        %v1532 = vadd.f32 %v1498, %v1524
        %v1533 = vadd.f32 %v1499, %v1525
        %v1534 = vmax.f32 %v1526, 0.0
        %v1535 = vmax.f32 %v1527, 0.0
        %v1536 = vmax.f32 %v1528, 0.0
        %v1537 = vmax.f32 %v1529, 0.0
        %v1538 = vmax.f32 %v1530, 0.0
        %v1539 = vmax.f32 %v1531, 0.0
        %v1540 = vmax.f32 %v1532, 0.0
        %v1541 = vmax.f32 %v1533, 0.0
        %v1542 = vlaneseq
        %v1543 = vshrl.u32 %v1542, 7
        %v1544 = vsub.s32 0, %v1543
        %v1545 = vrot.slane %v1534, %v1544
        %v1546 = vlaneseq
        %v1547 = vshrl.u32 %v1546, 7
        %v1548 = vsub.s32 0, %v1547
        %v1549 = vrot.slane %v1535, %v1548
        %v1550 = vmul.f32 %v834, %v1545
        %v1551 = vmul.f32 %v834, %v1549
        %v1552 = vadd.f32 %v849, %v1550
        %v1553 = vadd.f32 %v849, %v1551
        %v1554 = vlaneseq
        %v1555 = vshrl.u32 %v1554, 7
        %v1556 = vsub.s32 1, %v1555
        %v1557 = vrot.slane %v1534, %v1556
        %v1558 = vlaneseq
        %v1559 = vshrl.u32 %v1558, 7
        %v1560 = vsub.s32 1, %v1559
        %v1561 = vrot.slane %v1535, %v1560
        %v1562 = vmul.f32 %v856, %v1557
        %v1563 = vmul.f32 %v856, %v1561
        %v1564 = vadd.f32 %v1552, %v1562
        %v1565 = vadd.f32 %v1553, %v1563
        %v1566 = vlaneseq
        %v1567 = vshrl.u32 %v1566, 7
        %v1568 = vsub.s32 2, %v1567
        %v1569 = vrot.slane %v1534, %v1568
        %v1570 = vlaneseq
        %v1571 = vshrl.u32 %v1570, 7
        %v1572 = vsub.s32 2, %v1571
        %v1573 = vrot.slane %v1535, %v1572
        %v1574 = vmul.f32 %v873, %v1569
        %v1575 = vmul.f32 %v873, %v1573
        %v1576 = vadd.f32 %v1564, %v1574
        %v1577 = vadd.f32 %v1565, %v1575
        %v1578 = vlaneseq
        %v1579 = vshrl.u32 %v1578, 7
        %v1580 = vsub.s32 3, %v1579
        %v1581 = vrot.slane %v1534, %v1580
        %v1582 = vlaneseq
        %v1583 = vshrl.u32 %v1582, 7
        %v1584 = vsub.s32 3, %v1583
        %v1585 = vrot.slane %v1535, %v1584
        %v1586 = vmul.f32 %v890, %v1581
        %v1587 = vmul.f32 %v890, %v1585
        %v1588 = vadd.f32 %v1576, %v1586
        %v1589 = vadd.f32 %v1577, %v1587
        %v1590 = vlaneseq
        %v1591 = vshrl.u32 %v1590, 7
        %v1592 = vsub.s32 4, %v1591
        %v1593 = vrot.slane %v1534, %v1592
        %v1594 = vlaneseq
        %v1595 = vshrl.u32 %v1594, 7
        %v1596 = vsub.s32 4, %v1595
        %v1597 = vrot.slane %v1535, %v1596
        %v1598 = vmul.f32 %v907, %v1593
        %v1599 = vmul.f32 %v907, %v1597
        %v1600 = vadd.f32 %v1588, %v1598
        %v1601 = vadd.f32 %v1589, %v1599
        %v1602 = vlaneseq
        %v1603 = vshrl.u32 %v1602, 7
        %v1604 = vsub.s32 5, %v1603
        %v1605 = vrot.slane %v1534, %v1604
        %v1606 = vlaneseq
        %v1607 = vshrl.u32 %v1606, 7
        %v1608 = vsub.s32 5, %v1607
        %v1609 = vrot.slane %v1535, %v1608
        %v1610 = vmul.f32 %v924, %v1605
        %v1611 = vmul.f32 %v924, %v1609
        %v1612 = vadd.f32 %v1600, %v1610
        %v1613 = vadd.f32 %v1601, %v1611
        %v1614 = vlaneseq
        %v1615 = vshrl.u32 %v1614, 7
        %v1616 = vsub.s32 6, %v1615
        %v1617 = vrot.slane %v1534, %v1616
        %v1618 = vlaneseq
        %v1619 = vshrl.u32 %v1618, 7
        %v1620 = vsub.s32 6, %v1619
        %v1621 = vrot.slane %v1535, %v1620
        %v1622 = vmul.f32 %v941, %v1617
        %v1623 = vmul.f32 %v941, %v1621
        %v1624 = vadd.f32 %v1612, %v1622
        %v1625 = vadd.f32 %v1613, %v1623
        %v1626 = vlaneseq
        %v1627 = vshrl.u32 %v1626, 7
        %v1628 = vsub.s32 7, %v1627
        %v1629 = vrot.slane %v1534, %v1628
        %v1630 = vlaneseq
        %v1631 = vshrl.u32 %v1630, 7
        %v1632 = vsub.s32 7, %v1631
        %v1633 = vrot.slane %v1535, %v1632
        %v1634 = vmul.f32 %v958, %v1629
        %v1635 = vmul.f32 %v958, %v1633
        %v1636 = vadd.f32 %v1624, %v1634
        %v1637 = vadd.f32 %v1625, %v1635
        %v1638 = vlaneseq
        %v1639 = vshrl.u32 %v1638, 7
        %v1640 = vsub.s32 0, %v1639
        %v1641 = vrot.slane %v1536, %v1640
        %v1642 = vlaneseq
        %v1643 = vshrl.u32 %v1642, 7
        %v1644 = vsub.s32 0, %v1643
        %v1645 = vrot.slane %v1537, %v1644
        %v1646 = vmul.f32 %v975, %v1641
        %v1647 = vmul.f32 %v975, %v1645
        %v1648 = vadd.f32 %v1636, %v1646
        %v1649 = vadd.f32 %v1637, %v1647
        %v1650 = vlaneseq
        %v1651 = vshrl.u32 %v1650, 7
        %v1652 = vsub.s32 1, %v1651
        %v1653 = vrot.slane %v1536, %v1652
        %v1654 = vlaneseq
        %v1655 = vshrl.u32 %v1654, 7
        %v1656 = vsub.s32 1, %v1655
        %v1657 = vrot.slane %v1537, %v1656
        %v1658 = vmul.f32 %v992, %v1653
        %v1659 = vmul.f32 %v992, %v1657
        %v1660 = vadd.f32 %v1648, %v1658
        %v1661 = vadd.f32 %v1649, %v1659
        %v1662 = vlaneseq
        %v1663 = vshrl.u32 %v1662, 7
        %v1664 = vsub.s32 2, %v1663
        %v1665 = vrot.slane %v1536, %v1664
        %v1666 = vlaneseq
        %v1667 = vshrl.u32 %v1666, 7
        %v1668 = vsub.s32 2, %v1667
        %v1669 = vrot.slane %v1537, %v1668
        %v1670 = vmul.f32 %v1009, %v1665
        %v1671 = vmul.f32 %v1009, %v1669
        %v1672 = vadd.f32 %v1660, %v1670
        %v1673 = vadd.f32 %v1661, %v1671
        %v1674 = vlaneseq
        %v1675 = vshrl.u32 %v1674, 7
        %v1676 = vsub.s32 3, %v1675
        %v1677 = vrot.slane %v1536, %v1676
        %v1678 = vlaneseq
        %v1679 = vshrl.u32 %v1678, 7
        %v1680 = vsub.s32 3, %v1679
        %v1681 = vrot.slane %v1537, %v1680
        %v1682 = vmul.f32 %v1026, %v1677
        %v1683 = vmul.f32 %v1026, %v1681
        %v1684 = vadd.f32 %v1672, %v1682
        %v1685 = vadd.f32 %v1673, %v1683
        %v1686 = vlaneseq
        %v1687 = vshrl.u32 %v1686, 7
        %v1688 = vsub.s32 4, %v1687
        %v1689 = vrot.slane %v1536, %v1688
        %v1690 = vlaneseq
        %v1691 = vshrl.u32 %v1690, 7
        %v1692 = vsub.s32 4, %v1691
        %v1693 = vrot.slane %v1537, %v1692
        %v1694 = vmul.f32 %v1043, %v1689
        %v1695 = vmul.f32 %v1043, %v1693
        %v1696 = vadd.f32 %v1684, %v1694
        %v1697 = vadd.f32 %v1685, %v1695
        %v1698 = vlaneseq
        %v1699 = vshrl.u32 %v1698, 7
        %v1700 = vsub.s32 5, %v1699
        %v1701 = vrot.slane %v1536, %v1700
        %v1702 = vlaneseq
        %v1703 = vshrl.u32 %v1702, 7
        %v1704 = vsub.s32 5, %v1703
        %v1705 = vrot.slane %v1537, %v1704
        %v1706 = vmul.f32 %v1060, %v1701
        %v1707 = vmul.f32 %v1060, %v1705
        %v1708 = vadd.f32 %v1696, %v1706
        %v1709 = vadd.f32 %v1697, %v1707
        %v1710 = vlaneseq
        %v1711 = vshrl.u32 %v1710, 7
        %v1712 = vsub.s32 6, %v1711
        %v1713 = vrot.slane %v1536, %v1712
        %v1714 = vlaneseq
        %v1715 = vshrl.u32 %v1714, 7
        %v1716 = vsub.s32 6, %v1715
        %v1717 = vrot.slane %v1537, %v1716
        %v1718 = vmul.f32 %v1077, %v1713
        %v1719 = vmul.f32 %v1077, %v1717
        %v1720 = vadd.f32 %v1708, %v1718
        %v1721 = vadd.f32 %v1709, %v1719
        %v1722 = vlaneseq
        %v1723 = vshrl.u32 %v1722, 7
        %v1724 = vsub.s32 7, %v1723
        %v1725 = vrot.slane %v1536, %v1724
        %v1726 = vlaneseq
        %v1727 = vshrl.u32 %v1726, 7
        %v1728 = vsub.s32 7, %v1727
        %v1729 = vrot.slane %v1537, %v1728
        %v1730 = vmul.f32 %v1094, %v1725
        %v1731 = vmul.f32 %v1094, %v1729
        %v1732 = vadd.f32 %v1720, %v1730
        %v1733 = vadd.f32 %v1721, %v1731
        %v1734 = vlaneseq
        %v1735 = vshrl.u32 %v1734, 7
        %v1736 = vsub.s32 0, %v1735
        %v1737 = vrot.slane %v1538, %v1736
        %v1738 = vlaneseq
        %v1739 = vshrl.u32 %v1738, 7
        %v1740 = vsub.s32 0, %v1739
        %v1741 = vrot.slane %v1539, %v1740
        %v1742 = vmul.f32 %v1111, %v1737
        %v1743 = vmul.f32 %v1111, %v1741
        %v1744 = vadd.f32 %v1732, %v1742
        %v1745 = vadd.f32 %v1733, %v1743
        %v1746 = vlaneseq
        %v1747 = vshrl.u32 %v1746, 7
        %v1748 = vsub.s32 1, %v1747
        %v1749 = vrot.slane %v1538, %v1748
        %v1750 = vlaneseq
        %v1751 = vshrl.u32 %v1750, 7
        %v1752 = vsub.s32 1, %v1751
        %v1753 = vrot.slane %v1539, %v1752
        %v1754 = vmul.f32 %v1128, %v1749
        %v1755 = vmul.f32 %v1128, %v1753
        %v1756 = vadd.f32 %v1744, %v1754
        %v1757 = vadd.f32 %v1745, %v1755
        %v1758 = vlaneseq
        %v1759 = vshrl.u32 %v1758, 7
        %v1760 = vsub.s32 2, %v1759
        %v1761 = vrot.slane %v1538, %v1760
        %v1762 = vlaneseq
        %v1763 = vshrl.u32 %v1762, 7
        %v1764 = vsub.s32 2, %v1763
        %v1765 = vrot.slane %v1539, %v1764
        %v1766 = vmul.f32 %v1145, %v1761
        %v1767 = vmul.f32 %v1145, %v1765
        %v1768 = vadd.f32 %v1756, %v1766
        %v1769 = vadd.f32 %v1757, %v1767
        %v1770 = vlaneseq
        %v1771 = vshrl.u32 %v1770, 7
        %v1772 = vsub.s32 3, %v1771
        %v1773 = vrot.slane %v1538, %v1772
        %v1774 = vlaneseq
        %v1775 = vshrl.u32 %v1774, 7
        %v1776 = vsub.s32 3, %v1775
        %v1777 = vrot.slane %v1539, %v1776
        %v1778 = vmul.f32 %v1162, %v1773
        %v1779 = vmul.f32 %v1162, %v1777
        %v1780 = vadd.f32 %v1768, %v1778
        %v1781 = vadd.f32 %v1769, %v1779
        %v1782 = vlaneseq
        %v1783 = vshrl.u32 %v1782, 7
        %v1784 = vsub.s32 4, %v1783
        %v1785 = vrot.slane %v1538, %v1784
        %v1786 = vlaneseq
        %v1787 = vshrl.u32 %v1786, 7
        %v1788 = vsub.s32 4, %v1787
        %v1789 = vrot.slane %v1539, %v1788
        %v1790 = vmul.f32 %v1179, %v1785
        %v1791 = vmul.f32 %v1179, %v1789
        %v1792 = vadd.f32 %v1780, %v1790
        %v1793 = vadd.f32 %v1781, %v1791
        %v1794 = vlaneseq
        %v1795 = vshrl.u32 %v1794, 7
        %v1796 = vsub.s32 5, %v1795
        %v1797 = vrot.slane %v1538, %v1796
        %v1798 = vlaneseq
        %v1799 = vshrl.u32 %v1798, 7
        %v1800 = vsub.s32 5, %v1799
        %v1801 = vrot.slane %v1539, %v1800
        %v1802 = vmul.f32 %v1196, %v1797
        %v1803 = vmul.f32 %v1196, %v1801
        %v1804 = vadd.f32 %v1792, %v1802
        %v1805 = vadd.f32 %v1793, %v1803
        %v1806 = vlaneseq
        %v1807 = vshrl.u32 %v1806, 7
        %v1808 = vsub.s32 6, %v1807
        %v1809 = vrot.slane %v1538, %v1808
        %v1810 = vlaneseq
        %v1811 = vshrl.u32 %v1810, 7
        %v1812 = vsub.s32 6, %v1811
        %v1813 = vrot.slane %v1539, %v1812
        %v1814 = vmul.f32 %v1213, %v1809
        %v1815 = vmul.f32 %v1213, %v1813
        %v1816 = vadd.f32 %v1804, %v1814
        %v1817 = vadd.f32 %v1805, %v1815
        %v1818 = vlaneseq
        %v1819 = vshrl.u32 %v1818, 7
        %v1820 = vsub.s32 7, %v1819
        %v1821 = vrot.slane %v1538, %v1820
        %v1822 = vlaneseq
        %v1823 = vshrl.u32 %v1822, 7
        %v1824 = vsub.s32 7, %v1823
        %v1825 = vrot.slane %v1539, %v1824
        %v1826 = vmul.f32 %v1230, %v1821
        %v1827 = vmul.f32 %v1230, %v1825
        %v1828 = vadd.f32 %v1816, %v1826
        %v1829 = vadd.f32 %v1817, %v1827
        %v1830 = vlaneseq
        %v1831 = vshrl.u32 %v1830, 7
        %v1832 = vsub.s32 0, %v1831
        %v1833 = vrot.slane %v1540, %v1832
        %v1834 = vlaneseq
        %v1835 = vshrl.u32 %v1834, 7
        %v1836 = vsub.s32 0, %v1835
        %v1837 = vrot.slane %v1541, %v1836
        %v1838 = vmul.f32 %v1247, %v1833
        %v1839 = vmul.f32 %v1247, %v1837
        %v1840 = vadd.f32 %v1828, %v1838
        %v1841 = vadd.f32 %v1829, %v1839
        %v1842 = vlaneseq
        %v1843 = vshrl.u32 %v1842, 7
        %v1844 = vsub.s32 1, %v1843
        %v1845 = vrot.slane %v1540, %v1844
        %v1846 = vlaneseq
        %v1847 = vshrl.u32 %v1846, 7
        %v1848 = vsub.s32 1, %v1847
        %v1849 = vrot.slane %v1541, %v1848
        %v1850 = vmul.f32 %v1264, %v1845
        %v1851 = vmul.f32 %v1264, %v1849
        %v1852 = vadd.f32 %v1840, %v1850
        %v1853 = vadd.f32 %v1841, %v1851
        %v1854 = vlaneseq
        %v1855 = vshrl.u32 %v1854, 7
        %v1856 = vsub.s32 2, %v1855
        %v1857 = vrot.slane %v1540, %v1856
        %v1858 = vlaneseq
        %v1859 = vshrl.u32 %v1858, 7
        %v1860 = vsub.s32 2, %v1859
        %v1861 = vrot.slane %v1541, %v1860
        %v1862 = vmul.f32 %v1281, %v1857
        %v1863 = vmul.f32 %v1281, %v1861
        %v1864 = vadd.f32 %v1852, %v1862
        %v1865 = vadd.f32 %v1853, %v1863
        %v1866 = vlaneseq
        %v1867 = vshrl.u32 %v1866, 7
        %v1868 = vsub.s32 3, %v1867
        %v1869 = vrot.slane %v1540, %v1868
        %v1870 = vlaneseq
        %v1871 = vshrl.u32 %v1870, 7
        %v1872 = vsub.s32 3, %v1871
        %v1873 = vrot.slane %v1541, %v1872
        %v1874 = vmul.f32 %v1298, %v1869
        %v1875 = vmul.f32 %v1298, %v1873
        %v1876 = vadd.f32 %v1864, %v1874
        %v1877 = vadd.f32 %v1865, %v1875
        %v1878 = vlaneseq
        %v1879 = vshrl.u32 %v1878, 7
        %v1880 = vsub.s32 4, %v1879
        %v1881 = vrot.slane %v1540, %v1880
        %v1882 = vlaneseq
        %v1883 = vshrl.u32 %v1882, 7
        %v1884 = vsub.s32 4, %v1883
        %v1885 = vrot.slane %v1541, %v1884
        %v1886 = vmul.f32 %v1315, %v1881
        %v1887 = vmul.f32 %v1315, %v1885
        %v1888 = vadd.f32 %v1876, %v1886
        %v1889 = vadd.f32 %v1877, %v1887
        %v1890 = vlaneseq
        %v1891 = vshrl.u32 %v1890, 7
        %v1892 = vsub.s32 5, %v1891
        %v1893 = vrot.slane %v1540, %v1892
        %v1894 = vlaneseq
        %v1895 = vshrl.u32 %v1894, 7
        %v1896 = vsub.s32 5, %v1895
        %v1897 = vrot.slane %v1541, %v1896
        %v1898 = vmul.f32 %v1332, %v1893
        %v1899 = vmul.f32 %v1332, %v1897
        %v1900 = vadd.f32 %v1888, %v1898
        %v1901 = vadd.f32 %v1889, %v1899
        %v1902 = vlaneseq
        %v1903 = vshrl.u32 %v1902, 7
        %v1904 = vsub.s32 6, %v1903
        %v1905 = vrot.slane %v1540, %v1904
        %v1906 = vlaneseq
        %v1907 = vshrl.u32 %v1906, 7
        %v1908 = vsub.s32 6, %v1907
        %v1909 = vrot.slane %v1541, %v1908
        %v1910 = vmul.f32 %v1349, %v1905
        %v1911 = vmul.f32 %v1349, %v1909
        %v1912 = vadd.f32 %v1900, %v1910
        %v1913 = vadd.f32 %v1901, %v1911
        %v1914 = vlaneseq
        %v1915 = vshrl.u32 %v1914, 7
        %v1916 = vsub.s32 7, %v1915
        %v1917 = vrot.slane %v1540, %v1916
        %v1918 = vlaneseq
        %v1919 = vshrl.u32 %v1918, 7
        %v1920 = vsub.s32 7, %v1919
        %v1921 = vrot.slane %v1541, %v1920
        %v1922 = vmul.f32 %v1366, %v1917
        %v1923 = vmul.f32 %v1366, %v1921
        %v1924 = vadd.f32 %v1912, %v1922
        %v1925 = vadd.f32 %v1913, %v1923
        %s1926 = sld [smem:[#allocation2 + $0x6]]
        %v1927 = vstv %s1926
        %v1928 = vmul.f32 %v1397, %v1927
        %s1929 = sld [smem:[#allocation5 + $0x6]]
        %v1930 = vstv %s1929
        %v1931 = vmul.f32 %v1930, %v1924
        %v1932 = vmul.f32 %v1930, %v1925
        %v1935 = vcombine.low %v1931, %v1932
        %v1937 = vsub.f32 %v1928, %v1935
        %s1938 = sld [smem:[#allocation7 + $0x6]]
        %s1939 = scalar_lea.vmem %s486, 48 [#allocation9]
        %v1940 = vld [vmem:[%s1939] sm:$0x77]
        %v1941 = vstv %s1938
        %v1942 = vmul.f32 %v1941, %v1940
        %v1943 = vadd.f32 %v1937, %v1942
        %s1944 = scalar_lea.vmem %s6, 160
        %v1945 = vld [vmem:[%s1944] sm:$0xff]
        %v1946 = vld [vmem:[%s1944 + $0x8] sm:$0xff]
        %v1947 = vld [vmem:[%s1944 + $0x10] sm:$0xff]
        %v1948 = vld [vmem:[%s1944 + $0x18] sm:$0xff]
        %1950 = vset.pattern.permute.xlu0 0
        %1951 = vperm.xlu0 %1950, %v1945
        %v1952 = vpop.permute.xlu0 %1951
        %1955 = vset.pattern.permute.xlu0 0
        %1956 = vperm.xlu0 %1955, %v1946
        %v1957 = vpop.permute.xlu0 %1956
        %1960 = vset.pattern.permute.xlu0 0
        %1961 = vperm.xlu0 %1960, %v1947
        %v1962 = vpop.permute.xlu0 %1961
        %1965 = vset.pattern.permute.xlu0 0
        %1966 = vperm.xlu0 %1965, %v1948
        %v1967 = vpop.permute.xlu0 %1966
        %v1969 = vadd.f32 %v541, %v1952
        %v1970 = vadd.f32 %v542, %v1952
        %v1971 = vadd.f32 %v543, %v1957
        %v1972 = vadd.f32 %v544, %v1957
        %v1973 = vadd.f32 %v545, %v1962
        %v1974 = vadd.f32 %v546, %v1962
        %v1975 = vadd.f32 %v547, %v1967
        %v1976 = vadd.f32 %v548, %v1967
        %v1978 = vlaneseq
        %v1979 = vshrl.u32 %v1978, 7
        %v1980 = vsub.s32 0, %v1979
        %v1981 = vrot.slane %v1943, %v1980
        %v1982 = vlaneseq
        %v1983 = vshrl.u32 %v1982, 7
        %v1984 = vsub.s32 4, %v1983
        %v1985 = vrot.slane %v1943, %v1984
        %v1988 = vlaneseq
        %v1989 = vshrl.u32 %v1988, 7
        %v1990 = vsub.s32 0, %v1989
        %v1991 = vrot.slane %v1981, %v1990
        %v1992 = vlaneseq
        %v1993 = vshrl.u32 %v1992, 7
        %v1994 = vsub.s32 0, %v1993
        %v1995 = vrot.slane %v1985, %v1994
        %v1996 = vmul.f32 %v663, %v1991
        %v1997 = vmul.f32 %v663, %v1995
        %v1998 = vmul.f32 %v668, %v1991
        %v1999 = vmul.f32 %v668, %v1995
        %v2000 = vmul.f32 %v673, %v1991
        %v2001 = vmul.f32 %v673, %v1995
        %v2002 = vmul.f32 %v678, %v1991
        %v2003 = vmul.f32 %v678, %v1995
        %v2004 = vadd.f32 %v1969, %v1996
        %v2005 = vadd.f32 %v1970, %v1997
        %v2006 = vadd.f32 %v1971, %v1998
        %v2007 = vadd.f32 %v1972, %v1999
        %v2008 = vadd.f32 %v1973, %v2000
        %v2009 = vadd.f32 %v1974, %v2001
        %v2010 = vadd.f32 %v1975, %v2002
        %v2011 = vadd.f32 %v1976, %v2003
        %v2012 = vlaneseq
        %v2013 = vshrl.u32 %v2012, 7
        %v2014 = vsub.s32 1, %v2013
        %v2015 = vrot.slane %v1943, %v2014
        %v2016 = vlaneseq
        %v2017 = vshrl.u32 %v2016, 7
        %v2018 = vsub.s32 5, %v2017
        %v2019 = vrot.slane %v1943, %v2018
        %v2022 = vlaneseq
        %v2023 = vshrl.u32 %v2022, 7
        %v2024 = vsub.s32 1, %v2023
        %v2025 = vrot.slane %v2015, %v2024
        %v2026 = vlaneseq
        %v2027 = vshrl.u32 %v2026, 7
        %v2028 = vsub.s32 1, %v2027
        %v2029 = vrot.slane %v2019, %v2028
        %v2030 = vmul.f32 %v718, %v2025
        %v2031 = vmul.f32 %v718, %v2029
        %v2032 = vmul.f32 %v723, %v2025
        %v2033 = vmul.f32 %v723, %v2029
        %v2034 = vmul.f32 %v728, %v2025
        %v2035 = vmul.f32 %v728, %v2029
        %v2036 = vmul.f32 %v733, %v2025
        %v2037 = vmul.f32 %v733, %v2029
        %v2038 = vadd.f32 %v2004, %v2030
        %v2039 = vadd.f32 %v2005, %v2031
        %v2040 = vadd.f32 %v2006, %v2032
        %v2041 = vadd.f32 %v2007, %v2033
        %v2042 = vadd.f32 %v2008, %v2034
        %v2043 = vadd.f32 %v2009, %v2035
        %v2044 = vadd.f32 %v2010, %v2036
        %v2045 = vadd.f32 %v2011, %v2037
        %v2046 = vlaneseq
        %v2047 = vshrl.u32 %v2046, 7
        %v2048 = vsub.s32 2, %v2047
        %v2049 = vrot.slane %v1943, %v2048
        %v2050 = vlaneseq
        %v2051 = vshrl.u32 %v2050, 7
        %v2052 = vsub.s32 6, %v2051
        %v2053 = vrot.slane %v1943, %v2052
        %v2056 = vlaneseq
        %v2057 = vshrl.u32 %v2056, 7
        %v2058 = vsub.s32 2, %v2057
        %v2059 = vrot.slane %v2049, %v2058
        %v2060 = vlaneseq
        %v2061 = vshrl.u32 %v2060, 7
        %v2062 = vsub.s32 2, %v2061
        %v2063 = vrot.slane %v2053, %v2062
        %v2064 = vmul.f32 %v772, %v2059
        %v2065 = vmul.f32 %v772, %v2063
        %v2066 = vmul.f32 %v777, %v2059
        %v2067 = vmul.f32 %v777, %v2063
        %v2068 = vmul.f32 %v782, %v2059
        %v2069 = vmul.f32 %v782, %v2063
        %v2070 = vmul.f32 %v787, %v2059
        %v2071 = vmul.f32 %v787, %v2063
        %v2072 = vadd.f32 %v2038, %v2064
        %v2073 = vadd.f32 %v2039, %v2065
        %v2074 = vadd.f32 %v2040, %v2066
        %v2075 = vadd.f32 %v2041, %v2067
        %v2076 = vadd.f32 %v2042, %v2068
        %v2077 = vadd.f32 %v2043, %v2069
        %v2078 = vadd.f32 %v2044, %v2070
        %v2079 = vadd.f32 %v2045, %v2071
        %v2080 = vmax.f32 %v2072, 0.0
        %v2081 = vmax.f32 %v2073, 0.0
        %v2082 = vmax.f32 %v2074, 0.0
        %v2083 = vmax.f32 %v2075, 0.0
        %v2084 = vmax.f32 %v2076, 0.0
        %v2085 = vmax.f32 %v2077, 0.0
        %v2086 = vmax.f32 %v2078, 0.0
        %v2087 = vmax.f32 %v2079, 0.0
        %v2088 = vlaneseq
        %v2089 = vshrl.u32 %v2088, 7
        %v2090 = vsub.s32 0, %v2089
        %v2091 = vrot.slane %v2080, %v2090
        %v2092 = vlaneseq
        %v2093 = vshrl.u32 %v2092, 7
        %v2094 = vsub.s32 0, %v2093
        %v2095 = vrot.slane %v2081, %v2094
        %v2096 = vmul.f32 %v834, %v2091
        %v2097 = vmul.f32 %v834, %v2095
        %v2098 = vadd.f32 %v849, %v2096
        %v2099 = vadd.f32 %v849, %v2097
        %v2100 = vlaneseq
        %v2101 = vshrl.u32 %v2100, 7
        %v2102 = vsub.s32 1, %v2101
        %v2103 = vrot.slane %v2080, %v2102
        %v2104 = vlaneseq
        %v2105 = vshrl.u32 %v2104, 7
        %v2106 = vsub.s32 1, %v2105
        %v2107 = vrot.slane %v2081, %v2106
        %v2108 = vmul.f32 %v856, %v2103
        %v2109 = vmul.f32 %v856, %v2107
        %v2110 = vadd.f32 %v2098, %v2108
        %v2111 = vadd.f32 %v2099, %v2109
        %v2112 = vlaneseq
        %v2113 = vshrl.u32 %v2112, 7
        %v2114 = vsub.s32 2, %v2113
        %v2115 = vrot.slane %v2080, %v2114
        %v2116 = vlaneseq
        %v2117 = vshrl.u32 %v2116, 7
        %v2118 = vsub.s32 2, %v2117
        %v2119 = vrot.slane %v2081, %v2118
        %v2120 = vmul.f32 %v873, %v2115
        %v2121 = vmul.f32 %v873, %v2119
        %v2122 = vadd.f32 %v2110, %v2120
        %v2123 = vadd.f32 %v2111, %v2121
        %v2124 = vlaneseq
        %v2125 = vshrl.u32 %v2124, 7
        %v2126 = vsub.s32 3, %v2125
        %v2127 = vrot.slane %v2080, %v2126
        %v2128 = vlaneseq
        %v2129 = vshrl.u32 %v2128, 7
        %v2130 = vsub.s32 3, %v2129
        %v2131 = vrot.slane %v2081, %v2130
        %v2132 = vmul.f32 %v890, %v2127
        %v2133 = vmul.f32 %v890, %v2131
        %v2134 = vadd.f32 %v2122, %v2132
        %v2135 = vadd.f32 %v2123, %v2133
        %v2136 = vlaneseq
        %v2137 = vshrl.u32 %v2136, 7
        %v2138 = vsub.s32 4, %v2137
        %v2139 = vrot.slane %v2080, %v2138
        %v2140 = vlaneseq
        %v2141 = vshrl.u32 %v2140, 7
        %v2142 = vsub.s32 4, %v2141
        %v2143 = vrot.slane %v2081, %v2142
        %v2144 = vmul.f32 %v907, %v2139
        %v2145 = vmul.f32 %v907, %v2143
        %v2146 = vadd.f32 %v2134, %v2144
        %v2147 = vadd.f32 %v2135, %v2145
        %v2148 = vlaneseq
        %v2149 = vshrl.u32 %v2148, 7
        %v2150 = vsub.s32 5, %v2149
        %v2151 = vrot.slane %v2080, %v2150
        %v2152 = vlaneseq
        %v2153 = vshrl.u32 %v2152, 7
        %v2154 = vsub.s32 5, %v2153
        %v2155 = vrot.slane %v2081, %v2154
        %v2156 = vmul.f32 %v924, %v2151
        %v2157 = vmul.f32 %v924, %v2155
        %v2158 = vadd.f32 %v2146, %v2156
        %v2159 = vadd.f32 %v2147, %v2157
        %v2160 = vlaneseq
        %v2161 = vshrl.u32 %v2160, 7
        %v2162 = vsub.s32 6, %v2161
        %v2163 = vrot.slane %v2080, %v2162
        %v2164 = vlaneseq
        %v2165 = vshrl.u32 %v2164, 7
        %v2166 = vsub.s32 6, %v2165
        %v2167 = vrot.slane %v2081, %v2166
        %v2168 = vmul.f32 %v941, %v2163
        %v2169 = vmul.f32 %v941, %v2167
        %v2170 = vadd.f32 %v2158, %v2168
        %v2171 = vadd.f32 %v2159, %v2169
        %v2172 = vlaneseq
        %v2173 = vshrl.u32 %v2172, 7
        %v2174 = vsub.s32 7, %v2173
        %v2175 = vrot.slane %v2080, %v2174
        %v2176 = vlaneseq
        %v2177 = vshrl.u32 %v2176, 7
        %v2178 = vsub.s32 7, %v2177
        %v2179 = vrot.slane %v2081, %v2178
        %v2180 = vmul.f32 %v958, %v2175
        %v2181 = vmul.f32 %v958, %v2179
        %v2182 = vadd.f32 %v2170, %v2180
        %v2183 = vadd.f32 %v2171, %v2181
        %v2184 = vlaneseq
        %v2185 = vshrl.u32 %v2184, 7
        %v2186 = vsub.s32 0, %v2185
        %v2187 = vrot.slane %v2082, %v2186
        %v2188 = vlaneseq
        %v2189 = vshrl.u32 %v2188, 7
        %v2190 = vsub.s32 0, %v2189
        %v2191 = vrot.slane %v2083, %v2190
        %v2192 = vmul.f32 %v975, %v2187
        %v2193 = vmul.f32 %v975, %v2191
        %v2194 = vadd.f32 %v2182, %v2192
        %v2195 = vadd.f32 %v2183, %v2193
        %v2196 = vlaneseq
        %v2197 = vshrl.u32 %v2196, 7
        %v2198 = vsub.s32 1, %v2197
        %v2199 = vrot.slane %v2082, %v2198
        %v2200 = vlaneseq
        %v2201 = vshrl.u32 %v2200, 7
        %v2202 = vsub.s32 1, %v2201
        %v2203 = vrot.slane %v2083, %v2202
        %v2204 = vmul.f32 %v992, %v2199
        %v2205 = vmul.f32 %v992, %v2203
        %v2206 = vadd.f32 %v2194, %v2204
        %v2207 = vadd.f32 %v2195, %v2205
        %v2208 = vlaneseq
        %v2209 = vshrl.u32 %v2208, 7
        %v2210 = vsub.s32 2, %v2209
        %v2211 = vrot.slane %v2082, %v2210
        %v2212 = vlaneseq
        %v2213 = vshrl.u32 %v2212, 7
        %v2214 = vsub.s32 2, %v2213
        %v2215 = vrot.slane %v2083, %v2214
        %v2216 = vmul.f32 %v1009, %v2211
        %v2217 = vmul.f32 %v1009, %v2215
        %v2218 = vadd.f32 %v2206, %v2216
        %v2219 = vadd.f32 %v2207, %v2217
        %v2220 = vlaneseq
        %v2221 = vshrl.u32 %v2220, 7
        %v2222 = vsub.s32 3, %v2221
        %v2223 = vrot.slane %v2082, %v2222
        %v2224 = vlaneseq
        %v2225 = vshrl.u32 %v2224, 7
        %v2226 = vsub.s32 3, %v2225
        %v2227 = vrot.slane %v2083, %v2226
        %v2228 = vmul.f32 %v1026, %v2223
        %v2229 = vmul.f32 %v1026, %v2227
        %v2230 = vadd.f32 %v2218, %v2228
        %v2231 = vadd.f32 %v2219, %v2229
        %v2232 = vlaneseq
        %v2233 = vshrl.u32 %v2232, 7
        %v2234 = vsub.s32 4, %v2233
        %v2235 = vrot.slane %v2082, %v2234
        %v2236 = vlaneseq
        %v2237 = vshrl.u32 %v2236, 7
        %v2238 = vsub.s32 4, %v2237
        %v2239 = vrot.slane %v2083, %v2238
        %v2240 = vmul.f32 %v1043, %v2235
        %v2241 = vmul.f32 %v1043, %v2239
        %v2242 = vadd.f32 %v2230, %v2240
        %v2243 = vadd.f32 %v2231, %v2241
        %v2244 = vlaneseq
        %v2245 = vshrl.u32 %v2244, 7
        %v2246 = vsub.s32 5, %v2245
        %v2247 = vrot.slane %v2082, %v2246
        %v2248 = vlaneseq
        %v2249 = vshrl.u32 %v2248, 7
        %v2250 = vsub.s32 5, %v2249
        %v2251 = vrot.slane %v2083, %v2250
        %v2252 = vmul.f32 %v1060, %v2247
        %v2253 = vmul.f32 %v1060, %v2251
        %v2254 = vadd.f32 %v2242, %v2252
        %v2255 = vadd.f32 %v2243, %v2253
        %v2256 = vlaneseq
        %v2257 = vshrl.u32 %v2256, 7
        %v2258 = vsub.s32 6, %v2257
        %v2259 = vrot.slane %v2082, %v2258
        %v2260 = vlaneseq
        %v2261 = vshrl.u32 %v2260, 7
        %v2262 = vsub.s32 6, %v2261
        %v2263 = vrot.slane %v2083, %v2262
        %v2264 = vmul.f32 %v1077, %v2259
        %v2265 = vmul.f32 %v1077, %v2263
        %v2266 = vadd.f32 %v2254, %v2264
        %v2267 = vadd.f32 %v2255, %v2265
        %v2268 = vlaneseq
        %v2269 = vshrl.u32 %v2268, 7
        %v2270 = vsub.s32 7, %v2269
        %v2271 = vrot.slane %v2082, %v2270
        %v2272 = vlaneseq
        %v2273 = vshrl.u32 %v2272, 7
        %v2274 = vsub.s32 7, %v2273
        %v2275 = vrot.slane %v2083, %v2274
        %v2276 = vmul.f32 %v1094, %v2271
        %v2277 = vmul.f32 %v1094, %v2275
        %v2278 = vadd.f32 %v2266, %v2276
        %v2279 = vadd.f32 %v2267, %v2277
        %v2280 = vlaneseq
        %v2281 = vshrl.u32 %v2280, 7
        %v2282 = vsub.s32 0, %v2281
        %v2283 = vrot.slane %v2084, %v2282
        %v2284 = vlaneseq
        %v2285 = vshrl.u32 %v2284, 7
        %v2286 = vsub.s32 0, %v2285
        %v2287 = vrot.slane %v2085, %v2286
        %v2288 = vmul.f32 %v1111, %v2283
        %v2289 = vmul.f32 %v1111, %v2287
        %v2290 = vadd.f32 %v2278, %v2288
        %v2291 = vadd.f32 %v2279, %v2289
        %v2292 = vlaneseq
        %v2293 = vshrl.u32 %v2292, 7
        %v2294 = vsub.s32 1, %v2293
        %v2295 = vrot.slane %v2084, %v2294
        %v2296 = vlaneseq
        %v2297 = vshrl.u32 %v2296, 7
        %v2298 = vsub.s32 1, %v2297
        %v2299 = vrot.slane %v2085, %v2298
        %v2300 = vmul.f32 %v1128, %v2295
        %v2301 = vmul.f32 %v1128, %v2299
        %v2302 = vadd.f32 %v2290, %v2300
        %v2303 = vadd.f32 %v2291, %v2301
        %v2304 = vlaneseq
        %v2305 = vshrl.u32 %v2304, 7
        %v2306 = vsub.s32 2, %v2305
        %v2307 = vrot.slane %v2084, %v2306
        %v2308 = vlaneseq
        %v2309 = vshrl.u32 %v2308, 7
        %v2310 = vsub.s32 2, %v2309
        %v2311 = vrot.slane %v2085, %v2310
        %v2312 = vmul.f32 %v1145, %v2307
        %v2313 = vmul.f32 %v1145, %v2311
        %v2314 = vadd.f32 %v2302, %v2312
        %v2315 = vadd.f32 %v2303, %v2313
        %v2316 = vlaneseq
        %v2317 = vshrl.u32 %v2316, 7
        %v2318 = vsub.s32 3, %v2317
        %v2319 = vrot.slane %v2084, %v2318
        %v2320 = vlaneseq
        %v2321 = vshrl.u32 %v2320, 7
        %v2322 = vsub.s32 3, %v2321
        %v2323 = vrot.slane %v2085, %v2322
        %v2324 = vmul.f32 %v1162, %v2319
        %v2325 = vmul.f32 %v1162, %v2323
        %v2326 = vadd.f32 %v2314, %v2324
        %v2327 = vadd.f32 %v2315, %v2325
        %v2328 = vlaneseq
        %v2329 = vshrl.u32 %v2328, 7
        %v2330 = vsub.s32 4, %v2329
        %v2331 = vrot.slane %v2084, %v2330
        %v2332 = vlaneseq
        %v2333 = vshrl.u32 %v2332, 7
        %v2334 = vsub.s32 4, %v2333
        %v2335 = vrot.slane %v2085, %v2334
        %v2336 = vmul.f32 %v1179, %v2331
        %v2337 = vmul.f32 %v1179, %v2335
        %v2338 = vadd.f32 %v2326, %v2336
        %v2339 = vadd.f32 %v2327, %v2337
        %v2340 = vlaneseq
        %v2341 = vshrl.u32 %v2340, 7
        %v2342 = vsub.s32 5, %v2341
        %v2343 = vrot.slane %v2084, %v2342
        %v2344 = vlaneseq
        %v2345 = vshrl.u32 %v2344, 7
        %v2346 = vsub.s32 5, %v2345
        %v2347 = vrot.slane %v2085, %v2346
        %v2348 = vmul.f32 %v1196, %v2343
        %v2349 = vmul.f32 %v1196, %v2347
        %v2350 = vadd.f32 %v2338, %v2348
        %v2351 = vadd.f32 %v2339, %v2349
        %v2352 = vlaneseq
        %v2353 = vshrl.u32 %v2352, 7
        %v2354 = vsub.s32 6, %v2353
        %v2355 = vrot.slane %v2084, %v2354
        %v2356 = vlaneseq
        %v2357 = vshrl.u32 %v2356, 7
        %v2358 = vsub.s32 6, %v2357
        %v2359 = vrot.slane %v2085, %v2358
        %v2360 = vmul.f32 %v1213, %v2355
        %v2361 = vmul.f32 %v1213, %v2359
        %v2362 = vadd.f32 %v2350, %v2360
        %v2363 = vadd.f32 %v2351, %v2361
        %v2364 = vlaneseq
        %v2365 = vshrl.u32 %v2364, 7
        %v2366 = vsub.s32 7, %v2365
        %v2367 = vrot.slane %v2084, %v2366
        %v2368 = vlaneseq
        %v2369 = vshrl.u32 %v2368, 7
        %v2370 = vsub.s32 7, %v2369
        %v2371 = vrot.slane %v2085, %v2370
        %v2372 = vmul.f32 %v1230, %v2367
        %v2373 = vmul.f32 %v1230, %v2371
        %v2374 = vadd.f32 %v2362, %v2372
        %v2375 = vadd.f32 %v2363, %v2373
        %v2376 = vlaneseq
        %v2377 = vshrl.u32 %v2376, 7
        %v2378 = vsub.s32 0, %v2377
        %v2379 = vrot.slane %v2086, %v2378
        %v2380 = vlaneseq
        %v2381 = vshrl.u32 %v2380, 7
        %v2382 = vsub.s32 0, %v2381
        %v2383 = vrot.slane %v2087, %v2382
        %v2384 = vmul.f32 %v1247, %v2379
        %v2385 = vmul.f32 %v1247, %v2383
        %v2386 = vadd.f32 %v2374, %v2384
        %v2387 = vadd.f32 %v2375, %v2385
        %v2388 = vlaneseq
        %v2389 = vshrl.u32 %v2388, 7
        %v2390 = vsub.s32 1, %v2389
        %v2391 = vrot.slane %v2086, %v2390
        %v2392 = vlaneseq
        %v2393 = vshrl.u32 %v2392, 7
        %v2394 = vsub.s32 1, %v2393
        %v2395 = vrot.slane %v2087, %v2394
        %v2396 = vmul.f32 %v1264, %v2391
        %v2397 = vmul.f32 %v1264, %v2395
        %v2398 = vadd.f32 %v2386, %v2396
        %v2399 = vadd.f32 %v2387, %v2397
        %v2400 = vlaneseq
        %v2401 = vshrl.u32 %v2400, 7
        %v2402 = vsub.s32 2, %v2401
        %v2403 = vrot.slane %v2086, %v2402
        %v2404 = vlaneseq
        %v2405 = vshrl.u32 %v2404, 7
        %v2406 = vsub.s32 2, %v2405
        %v2407 = vrot.slane %v2087, %v2406
        %v2408 = vmul.f32 %v1281, %v2403
        %v2409 = vmul.f32 %v1281, %v2407
        %v2410 = vadd.f32 %v2398, %v2408
        %v2411 = vadd.f32 %v2399, %v2409
        %v2412 = vlaneseq
        %v2413 = vshrl.u32 %v2412, 7
        %v2414 = vsub.s32 3, %v2413
        %v2415 = vrot.slane %v2086, %v2414
        %v2416 = vlaneseq
        %v2417 = vshrl.u32 %v2416, 7
        %v2418 = vsub.s32 3, %v2417
        %v2419 = vrot.slane %v2087, %v2418
        %v2420 = vmul.f32 %v1298, %v2415
        %v2421 = vmul.f32 %v1298, %v2419
        %v2422 = vadd.f32 %v2410, %v2420
        %v2423 = vadd.f32 %v2411, %v2421
        %v2424 = vlaneseq
        %v2425 = vshrl.u32 %v2424, 7
        %v2426 = vsub.s32 4, %v2425
        %v2427 = vrot.slane %v2086, %v2426
        %v2428 = vlaneseq
        %v2429 = vshrl.u32 %v2428, 7
        %v2430 = vsub.s32 4, %v2429
        %v2431 = vrot.slane %v2087, %v2430
        %v2432 = vmul.f32 %v1315, %v2427
        %v2433 = vmul.f32 %v1315, %v2431
        %v2434 = vadd.f32 %v2422, %v2432
        %v2435 = vadd.f32 %v2423, %v2433
        %v2436 = vlaneseq
        %v2437 = vshrl.u32 %v2436, 7
        %v2438 = vsub.s32 5, %v2437
        %v2439 = vrot.slane %v2086, %v2438
        %v2440 = vlaneseq
        %v2441 = vshrl.u32 %v2440, 7
        %v2442 = vsub.s32 5, %v2441
        %v2443 = vrot.slane %v2087, %v2442
        %v2444 = vmul.f32 %v1332, %v2439
        %v2445 = vmul.f32 %v1332, %v2443
        %v2446 = vadd.f32 %v2434, %v2444
        %v2447 = vadd.f32 %v2435, %v2445
        %v2448 = vlaneseq
        %v2449 = vshrl.u32 %v2448, 7
        %v2450 = vsub.s32 6, %v2449
        %v2451 = vrot.slane %v2086, %v2450
        %v2452 = vlaneseq
        %v2453 = vshrl.u32 %v2452, 7
        %v2454 = vsub.s32 6, %v2453
        %v2455 = vrot.slane %v2087, %v2454
        %v2456 = vmul.f32 %v1349, %v2451
        %v2457 = vmul.f32 %v1349, %v2455
        %v2458 = vadd.f32 %v2446, %v2456
        %v2459 = vadd.f32 %v2447, %v2457
        %v2460 = vlaneseq
        %v2461 = vshrl.u32 %v2460, 7
        %v2462 = vsub.s32 7, %v2461
        %v2463 = vrot.slane %v2086, %v2462
        %v2464 = vlaneseq
        %v2465 = vshrl.u32 %v2464, 7
        %v2466 = vsub.s32 7, %v2465
        %v2467 = vrot.slane %v2087, %v2466
        %v2468 = vmul.f32 %v1366, %v2463
        %v2469 = vmul.f32 %v1366, %v2467
        %v2470 = vadd.f32 %v2458, %v2468
        %v2471 = vadd.f32 %v2459, %v2469
        %s2472 = sld [smem:[#allocation2 + $0x5]]
        %v2473 = vstv %s2472
        %v2474 = vmul.f32 %v1943, %v2473
        %s2475 = sld [smem:[#allocation5 + $0x5]]
        %v2476 = vstv %s2475
        %v2477 = vmul.f32 %v2476, %v2470
        %v2478 = vmul.f32 %v2476, %v2471
        %v2481 = vcombine.low %v2477, %v2478
        %v2483 = vsub.f32 %v2474, %v2481
        %s2484 = sld [smem:[#allocation7 + $0x5]]
        %s2485 = scalar_lea.vmem %s486, 40 [#allocation9]
        %v2486 = vld [vmem:[%s2485] sm:$0x77]
        %v2487 = vstv %s2484
        %v2488 = vmul.f32 %v2487, %v2486
        %v2489 = vadd.f32 %v2483, %v2488
        %s2490 = scalar_lea.vmem %s6, 128
        %v2491 = vld [vmem:[%s2490] sm:$0xff]
        %v2492 = vld [vmem:[%s2490 + $0x8] sm:$0xff]
        %v2493 = vld [vmem:[%s2490 + $0x10] sm:$0xff]
        %v2494 = vld [vmem:[%s2490 + $0x18] sm:$0xff]
        %2496 = vset.pattern.permute.xlu0 0
        %2497 = vperm.xlu0 %2496, %v2491
        %v2498 = vpop.permute.xlu0 %2497
        %2501 = vset.pattern.permute.xlu0 0
        %2502 = vperm.xlu0 %2501, %v2492
        %v2503 = vpop.permute.xlu0 %2502
        %2506 = vset.pattern.permute.xlu0 0
        %2507 = vperm.xlu0 %2506, %v2493
        %v2508 = vpop.permute.xlu0 %2507
        %2511 = vset.pattern.permute.xlu0 0
        %2512 = vperm.xlu0 %2511, %v2494
        %v2513 = vpop.permute.xlu0 %2512
        %v2515 = vadd.f32 %v541, %v2498
        %v2516 = vadd.f32 %v542, %v2498
        %v2517 = vadd.f32 %v543, %v2503
        %v2518 = vadd.f32 %v544, %v2503
        %v2519 = vadd.f32 %v545, %v2508
        %v2520 = vadd.f32 %v546, %v2508
        %v2521 = vadd.f32 %v547, %v2513
        %v2522 = vadd.f32 %v548, %v2513
        %v2524 = vlaneseq
        %v2525 = vshrl.u32 %v2524, 7
        %v2526 = vsub.s32 0, %v2525
        %v2527 = vrot.slane %v2489, %v2526
        %v2528 = vlaneseq
        %v2529 = vshrl.u32 %v2528, 7
        %v2530 = vsub.s32 4, %v2529
        %v2531 = vrot.slane %v2489, %v2530
        %v2534 = vlaneseq
        %v2535 = vshrl.u32 %v2534, 7
        %v2536 = vsub.s32 0, %v2535
        %v2537 = vrot.slane %v2527, %v2536
        %v2538 = vlaneseq
        %v2539 = vshrl.u32 %v2538, 7
        %v2540 = vsub.s32 0, %v2539
        %v2541 = vrot.slane %v2531, %v2540
        %v2542 = vmul.f32 %v663, %v2537
        %v2543 = vmul.f32 %v663, %v2541
        %v2544 = vmul.f32 %v668, %v2537
        %v2545 = vmul.f32 %v668, %v2541
        %v2546 = vmul.f32 %v673, %v2537
        %v2547 = vmul.f32 %v673, %v2541
        %v2548 = vmul.f32 %v678, %v2537
        %v2549 = vmul.f32 %v678, %v2541
        %v2550 = vadd.f32 %v2515, %v2542
        %v2551 = vadd.f32 %v2516, %v2543
        %v2552 = vadd.f32 %v2517, %v2544
        %v2553 = vadd.f32 %v2518, %v2545
        %v2554 = vadd.f32 %v2519, %v2546
        %v2555 = vadd.f32 %v2520, %v2547
        %v2556 = vadd.f32 %v2521, %v2548
        %v2557 = vadd.f32 %v2522, %v2549
        %v2558 = vlaneseq
        %v2559 = vshrl.u32 %v2558, 7
        %v2560 = vsub.s32 1, %v2559
        %v2561 = vrot.slane %v2489, %v2560
        %v2562 = vlaneseq
        %v2563 = vshrl.u32 %v2562, 7
        %v2564 = vsub.s32 5, %v2563
        %v2565 = vrot.slane %v2489, %v2564
        %v2568 = vlaneseq
        %v2569 = vshrl.u32 %v2568, 7
        %v2570 = vsub.s32 1, %v2569
        %v2571 = vrot.slane %v2561, %v2570
        %v2572 = vlaneseq
        %v2573 = vshrl.u32 %v2572, 7
        %v2574 = vsub.s32 1, %v2573
        %v2575 = vrot.slane %v2565, %v2574
        %v2576 = vmul.f32 %v718, %v2571
        %v2577 = vmul.f32 %v718, %v2575
        %v2578 = vmul.f32 %v723, %v2571
        %v2579 = vmul.f32 %v723, %v2575
        %v2580 = vmul.f32 %v728, %v2571
        %v2581 = vmul.f32 %v728, %v2575
        %v2582 = vmul.f32 %v733, %v2571
        %v2583 = vmul.f32 %v733, %v2575
        %v2584 = vadd.f32 %v2550, %v2576
        %v2585 = vadd.f32 %v2551, %v2577
        %v2586 = vadd.f32 %v2552, %v2578
        %v2587 = vadd.f32 %v2553, %v2579
        %v2588 = vadd.f32 %v2554, %v2580
        %v2589 = vadd.f32 %v2555, %v2581
        %v2590 = vadd.f32 %v2556, %v2582
        %v2591 = vadd.f32 %v2557, %v2583
        %v2592 = vlaneseq
        %v2593 = vshrl.u32 %v2592, 7
        %v2594 = vsub.s32 2, %v2593
        %v2595 = vrot.slane %v2489, %v2594
        %v2596 = vlaneseq
        %v2597 = vshrl.u32 %v2596, 7
        %v2598 = vsub.s32 6, %v2597
        %v2599 = vrot.slane %v2489, %v2598
        %v2602 = vlaneseq
        %v2603 = vshrl.u32 %v2602, 7
        %v2604 = vsub.s32 2, %v2603
        %v2605 = vrot.slane %v2595, %v2604
        %v2606 = vlaneseq
        %v2607 = vshrl.u32 %v2606, 7
        %v2608 = vsub.s32 2, %v2607
        %v2609 = vrot.slane %v2599, %v2608
        %v2610 = vmul.f32 %v772, %v2605
        %v2611 = vmul.f32 %v772, %v2609
        %v2612 = vmul.f32 %v777, %v2605
        %v2613 = vmul.f32 %v777, %v2609
        %v2614 = vmul.f32 %v782, %v2605
        %v2615 = vmul.f32 %v782, %v2609
        %v2616 = vmul.f32 %v787, %v2605
        %v2617 = vmul.f32 %v787, %v2609
        %v2618 = vadd.f32 %v2584, %v2610
        %v2619 = vadd.f32 %v2585, %v2611
        %v2620 = vadd.f32 %v2586, %v2612
        %v2621 = vadd.f32 %v2587, %v2613
        %v2622 = vadd.f32 %v2588, %v2614
        %v2623 = vadd.f32 %v2589, %v2615
        %v2624 = vadd.f32 %v2590, %v2616
        %v2625 = vadd.f32 %v2591, %v2617
        %v2626 = vmax.f32 %v2618, 0.0
        %v2627 = vmax.f32 %v2619, 0.0
        %v2628 = vmax.f32 %v2620, 0.0
        %v2629 = vmax.f32 %v2621, 0.0
        %v2630 = vmax.f32 %v2622, 0.0
        %v2631 = vmax.f32 %v2623, 0.0
        %v2632 = vmax.f32 %v2624, 0.0
        %v2633 = vmax.f32 %v2625, 0.0
        %v2634 = vlaneseq
        %v2635 = vshrl.u32 %v2634, 7
        %v2636 = vsub.s32 0, %v2635
        %v2637 = vrot.slane %v2626, %v2636
        %v2638 = vlaneseq
        %v2639 = vshrl.u32 %v2638, 7
        %v2640 = vsub.s32 0, %v2639
        %v2641 = vrot.slane %v2627, %v2640
        %v2642 = vmul.f32 %v834, %v2637
        %v2643 = vmul.f32 %v834, %v2641
        %v2644 = vadd.f32 %v849, %v2642
        %v2645 = vadd.f32 %v849, %v2643
        %v2646 = vlaneseq
        %v2647 = vshrl.u32 %v2646, 7
        %v2648 = vsub.s32 1, %v2647
        %v2649 = vrot.slane %v2626, %v2648
        %v2650 = vlaneseq
        %v2651 = vshrl.u32 %v2650, 7
        %v2652 = vsub.s32 1, %v2651
        %v2653 = vrot.slane %v2627, %v2652
        %v2654 = vmul.f32 %v856, %v2649
        %v2655 = vmul.f32 %v856, %v2653
        %v2656 = vadd.f32 %v2644, %v2654
        %v2657 = vadd.f32 %v2645, %v2655
        %v2658 = vlaneseq
        %v2659 = vshrl.u32 %v2658, 7
        %v2660 = vsub.s32 2, %v2659
        %v2661 = vrot.slane %v2626, %v2660
        %v2662 = vlaneseq
        %v2663 = vshrl.u32 %v2662, 7
        %v2664 = vsub.s32 2, %v2663
        %v2665 = vrot.slane %v2627, %v2664
        %v2666 = vmul.f32 %v873, %v2661
        %v2667 = vmul.f32 %v873, %v2665
        %v2668 = vadd.f32 %v2656, %v2666
        %v2669 = vadd.f32 %v2657, %v2667
        %v2670 = vlaneseq
        %v2671 = vshrl.u32 %v2670, 7
        %v2672 = vsub.s32 3, %v2671
        %v2673 = vrot.slane %v2626, %v2672
        %v2674 = vlaneseq
        %v2675 = vshrl.u32 %v2674, 7
        %v2676 = vsub.s32 3, %v2675
        %v2677 = vrot.slane %v2627, %v2676
        %v2678 = vmul.f32 %v890, %v2673
        %v2679 = vmul.f32 %v890, %v2677
        %v2680 = vadd.f32 %v2668, %v2678
        %v2681 = vadd.f32 %v2669, %v2679
        %v2682 = vlaneseq
        %v2683 = vshrl.u32 %v2682, 7
        %v2684 = vsub.s32 4, %v2683
        %v2685 = vrot.slane %v2626, %v2684
        %v2686 = vlaneseq
        %v2687 = vshrl.u32 %v2686, 7
        %v2688 = vsub.s32 4, %v2687
        %v2689 = vrot.slane %v2627, %v2688
        %v2690 = vmul.f32 %v907, %v2685
        %v2691 = vmul.f32 %v907, %v2689
        %v2692 = vadd.f32 %v2680, %v2690
        %v2693 = vadd.f32 %v2681, %v2691
        %v2694 = vlaneseq
        %v2695 = vshrl.u32 %v2694, 7
        %v2696 = vsub.s32 5, %v2695
        %v2697 = vrot.slane %v2626, %v2696
        %v2698 = vlaneseq
        %v2699 = vshrl.u32 %v2698, 7
        %v2700 = vsub.s32 5, %v2699
        %v2701 = vrot.slane %v2627, %v2700
        %v2702 = vmul.f32 %v924, %v2697
        %v2703 = vmul.f32 %v924, %v2701
        %v2704 = vadd.f32 %v2692, %v2702
        %v2705 = vadd.f32 %v2693, %v2703
        %v2706 = vlaneseq
        %v2707 = vshrl.u32 %v2706, 7
        %v2708 = vsub.s32 6, %v2707
        %v2709 = vrot.slane %v2626, %v2708
        %v2710 = vlaneseq
        %v2711 = vshrl.u32 %v2710, 7
        %v2712 = vsub.s32 6, %v2711
        %v2713 = vrot.slane %v2627, %v2712
        %v2714 = vmul.f32 %v941, %v2709
        %v2715 = vmul.f32 %v941, %v2713
        %v2716 = vadd.f32 %v2704, %v2714
        %v2717 = vadd.f32 %v2705, %v2715
        %v2718 = vlaneseq
        %v2719 = vshrl.u32 %v2718, 7
        %v2720 = vsub.s32 7, %v2719
        %v2721 = vrot.slane %v2626, %v2720
        %v2722 = vlaneseq
        %v2723 = vshrl.u32 %v2722, 7
        %v2724 = vsub.s32 7, %v2723
        %v2725 = vrot.slane %v2627, %v2724
        %v2726 = vmul.f32 %v958, %v2721
        %v2727 = vmul.f32 %v958, %v2725
        %v2728 = vadd.f32 %v2716, %v2726
        %v2729 = vadd.f32 %v2717, %v2727
        %v2730 = vlaneseq
        %v2731 = vshrl.u32 %v2730, 7
        %v2732 = vsub.s32 0, %v2731
        %v2733 = vrot.slane %v2628, %v2732
        %v2734 = vlaneseq
        %v2735 = vshrl.u32 %v2734, 7
        %v2736 = vsub.s32 0, %v2735
        %v2737 = vrot.slane %v2629, %v2736
        %v2738 = vmul.f32 %v975, %v2733
        %v2739 = vmul.f32 %v975, %v2737
        %v2740 = vadd.f32 %v2728, %v2738
        %v2741 = vadd.f32 %v2729, %v2739
        %v2742 = vlaneseq
        %v2743 = vshrl.u32 %v2742, 7
        %v2744 = vsub.s32 1, %v2743
        %v2745 = vrot.slane %v2628, %v2744
        %v2746 = vlaneseq
        %v2747 = vshrl.u32 %v2746, 7
        %v2748 = vsub.s32 1, %v2747
        %v2749 = vrot.slane %v2629, %v2748
        %v2750 = vmul.f32 %v992, %v2745
        %v2751 = vmul.f32 %v992, %v2749
        %v2752 = vadd.f32 %v2740, %v2750
        %v2753 = vadd.f32 %v2741, %v2751
        %v2754 = vlaneseq
        %v2755 = vshrl.u32 %v2754, 7
        %v2756 = vsub.s32 2, %v2755
        %v2757 = vrot.slane %v2628, %v2756
        %v2758 = vlaneseq
        %v2759 = vshrl.u32 %v2758, 7
        %v2760 = vsub.s32 2, %v2759
        %v2761 = vrot.slane %v2629, %v2760
        %v2762 = vmul.f32 %v1009, %v2757
        %v2763 = vmul.f32 %v1009, %v2761
        %v2764 = vadd.f32 %v2752, %v2762
        %v2765 = vadd.f32 %v2753, %v2763
        %v2766 = vlaneseq
        %v2767 = vshrl.u32 %v2766, 7
        %v2768 = vsub.s32 3, %v2767
        %v2769 = vrot.slane %v2628, %v2768
        %v2770 = vlaneseq
        %v2771 = vshrl.u32 %v2770, 7
        %v2772 = vsub.s32 3, %v2771
        %v2773 = vrot.slane %v2629, %v2772
        %v2774 = vmul.f32 %v1026, %v2769
        %v2775 = vmul.f32 %v1026, %v2773
        %v2776 = vadd.f32 %v2764, %v2774
        %v2777 = vadd.f32 %v2765, %v2775
        %v2778 = vlaneseq
        %v2779 = vshrl.u32 %v2778, 7
        %v2780 = vsub.s32 4, %v2779
        %v2781 = vrot.slane %v2628, %v2780
        %v2782 = vlaneseq
        %v2783 = vshrl.u32 %v2782, 7
        %v2784 = vsub.s32 4, %v2783
        %v2785 = vrot.slane %v2629, %v2784
        %v2786 = vmul.f32 %v1043, %v2781
        %v2787 = vmul.f32 %v1043, %v2785
        %v2788 = vadd.f32 %v2776, %v2786
        %v2789 = vadd.f32 %v2777, %v2787
        %v2790 = vlaneseq
        %v2791 = vshrl.u32 %v2790, 7
        %v2792 = vsub.s32 5, %v2791
        %v2793 = vrot.slane %v2628, %v2792
        %v2794 = vlaneseq
        %v2795 = vshrl.u32 %v2794, 7
        %v2796 = vsub.s32 5, %v2795
        %v2797 = vrot.slane %v2629, %v2796
        %v2798 = vmul.f32 %v1060, %v2793
        %v2799 = vmul.f32 %v1060, %v2797
        %v2800 = vadd.f32 %v2788, %v2798
        %v2801 = vadd.f32 %v2789, %v2799
        %v2802 = vlaneseq
        %v2803 = vshrl.u32 %v2802, 7
        %v2804 = vsub.s32 6, %v2803
        %v2805 = vrot.slane %v2628, %v2804
        %v2806 = vlaneseq
        %v2807 = vshrl.u32 %v2806, 7
        %v2808 = vsub.s32 6, %v2807
        %v2809 = vrot.slane %v2629, %v2808
        %v2810 = vmul.f32 %v1077, %v2805
        %v2811 = vmul.f32 %v1077, %v2809
        %v2812 = vadd.f32 %v2800, %v2810
        %v2813 = vadd.f32 %v2801, %v2811
        %v2814 = vlaneseq
        %v2815 = vshrl.u32 %v2814, 7
        %v2816 = vsub.s32 7, %v2815
        %v2817 = vrot.slane %v2628, %v2816
        %v2818 = vlaneseq
        %v2819 = vshrl.u32 %v2818, 7
        %v2820 = vsub.s32 7, %v2819
        %v2821 = vrot.slane %v2629, %v2820
        %v2822 = vmul.f32 %v1094, %v2817
        %v2823 = vmul.f32 %v1094, %v2821
        %v2824 = vadd.f32 %v2812, %v2822
        %v2825 = vadd.f32 %v2813, %v2823
        %v2826 = vlaneseq
        %v2827 = vshrl.u32 %v2826, 7
        %v2828 = vsub.s32 0, %v2827
        %v2829 = vrot.slane %v2630, %v2828
        %v2830 = vlaneseq
        %v2831 = vshrl.u32 %v2830, 7
        %v2832 = vsub.s32 0, %v2831
        %v2833 = vrot.slane %v2631, %v2832
        %v2834 = vmul.f32 %v1111, %v2829
        %v2835 = vmul.f32 %v1111, %v2833
        %v2836 = vadd.f32 %v2824, %v2834
        %v2837 = vadd.f32 %v2825, %v2835
        %v2838 = vlaneseq
        %v2839 = vshrl.u32 %v2838, 7
        %v2840 = vsub.s32 1, %v2839
        %v2841 = vrot.slane %v2630, %v2840
        %v2842 = vlaneseq
        %v2843 = vshrl.u32 %v2842, 7
        %v2844 = vsub.s32 1, %v2843
        %v2845 = vrot.slane %v2631, %v2844
        %v2846 = vmul.f32 %v1128, %v2841
        %v2847 = vmul.f32 %v1128, %v2845
        %v2848 = vadd.f32 %v2836, %v2846
        %v2849 = vadd.f32 %v2837, %v2847
        %v2850 = vlaneseq
        %v2851 = vshrl.u32 %v2850, 7
        %v2852 = vsub.s32 2, %v2851
        %v2853 = vrot.slane %v2630, %v2852
        %v2854 = vlaneseq
        %v2855 = vshrl.u32 %v2854, 7
        %v2856 = vsub.s32 2, %v2855
        %v2857 = vrot.slane %v2631, %v2856
        %v2858 = vmul.f32 %v1145, %v2853
        %v2859 = vmul.f32 %v1145, %v2857
        %v2860 = vadd.f32 %v2848, %v2858
        %v2861 = vadd.f32 %v2849, %v2859
        %v2862 = vlaneseq
        %v2863 = vshrl.u32 %v2862, 7
        %v2864 = vsub.s32 3, %v2863
        %v2865 = vrot.slane %v2630, %v2864
        %v2866 = vlaneseq
        %v2867 = vshrl.u32 %v2866, 7
        %v2868 = vsub.s32 3, %v2867
        %v2869 = vrot.slane %v2631, %v2868
        %v2870 = vmul.f32 %v1162, %v2865
        %v2871 = vmul.f32 %v1162, %v2869
        %v2872 = vadd.f32 %v2860, %v2870
        %v2873 = vadd.f32 %v2861, %v2871
        %v2874 = vlaneseq
        %v2875 = vshrl.u32 %v2874, 7
        %v2876 = vsub.s32 4, %v2875
        %v2877 = vrot.slane %v2630, %v2876
        %v2878 = vlaneseq
        %v2879 = vshrl.u32 %v2878, 7
        %v2880 = vsub.s32 4, %v2879
        %v2881 = vrot.slane %v2631, %v2880
        %v2882 = vmul.f32 %v1179, %v2877
        %v2883 = vmul.f32 %v1179, %v2881
        %v2884 = vadd.f32 %v2872, %v2882
        %v2885 = vadd.f32 %v2873, %v2883
        %v2886 = vlaneseq
        %v2887 = vshrl.u32 %v2886, 7
        %v2888 = vsub.s32 5, %v2887
        %v2889 = vrot.slane %v2630, %v2888
        %v2890 = vlaneseq
        %v2891 = vshrl.u32 %v2890, 7
        %v2892 = vsub.s32 5, %v2891
        %v2893 = vrot.slane %v2631, %v2892
        %v2894 = vmul.f32 %v1196, %v2889
        %v2895 = vmul.f32 %v1196, %v2893
        %v2896 = vadd.f32 %v2884, %v2894
        %v2897 = vadd.f32 %v2885, %v2895
        %v2898 = vlaneseq
        %v2899 = vshrl.u32 %v2898, 7
        %v2900 = vsub.s32 6, %v2899
        %v2901 = vrot.slane %v2630, %v2900
        %v2902 = vlaneseq
        %v2903 = vshrl.u32 %v2902, 7
        %v2904 = vsub.s32 6, %v2903
        %v2905 = vrot.slane %v2631, %v2904
        %v2906 = vmul.f32 %v1213, %v2901
        %v2907 = vmul.f32 %v1213, %v2905
        %v2908 = vadd.f32 %v2896, %v2906
        %v2909 = vadd.f32 %v2897, %v2907
        %v2910 = vlaneseq
        %v2911 = vshrl.u32 %v2910, 7
        %v2912 = vsub.s32 7, %v2911
        %v2913 = vrot.slane %v2630, %v2912
        %v2914 = vlaneseq
        %v2915 = vshrl.u32 %v2914, 7
        %v2916 = vsub.s32 7, %v2915
        %v2917 = vrot.slane %v2631, %v2916
        %v2918 = vmul.f32 %v1230, %v2913
        %v2919 = vmul.f32 %v1230, %v2917
        %v2920 = vadd.f32 %v2908, %v2918
        %v2921 = vadd.f32 %v2909, %v2919
        %v2922 = vlaneseq
        %v2923 = vshrl.u32 %v2922, 7
        %v2924 = vsub.s32 0, %v2923
        %v2925 = vrot.slane %v2632, %v2924
        %v2926 = vlaneseq
        %v2927 = vshrl.u32 %v2926, 7
        %v2928 = vsub.s32 0, %v2927
        %v2929 = vrot.slane %v2633, %v2928
        %v2930 = vmul.f32 %v1247, %v2925
        %v2931 = vmul.f32 %v1247, %v2929
        %v2932 = vadd.f32 %v2920, %v2930
        %v2933 = vadd.f32 %v2921, %v2931
        %v2934 = vlaneseq
        %v2935 = vshrl.u32 %v2934, 7
        %v2936 = vsub.s32 1, %v2935
        %v2937 = vrot.slane %v2632, %v2936
        %v2938 = vlaneseq
        %v2939 = vshrl.u32 %v2938, 7
        %v2940 = vsub.s32 1, %v2939
        %v2941 = vrot.slane %v2633, %v2940
        %v2942 = vmul.f32 %v1264, %v2937
        %v2943 = vmul.f32 %v1264, %v2941
        %v2944 = vadd.f32 %v2932, %v2942
        %v2945 = vadd.f32 %v2933, %v2943
        %v2946 = vlaneseq
        %v2947 = vshrl.u32 %v2946, 7
        %v2948 = vsub.s32 2, %v2947
        %v2949 = vrot.slane %v2632, %v2948
        %v2950 = vlaneseq
        %v2951 = vshrl.u32 %v2950, 7
        %v2952 = vsub.s32 2, %v2951
        %v2953 = vrot.slane %v2633, %v2952
        %v2954 = vmul.f32 %v1281, %v2949
        %v2955 = vmul.f32 %v1281, %v2953
        %v2956 = vadd.f32 %v2944, %v2954
        %v2957 = vadd.f32 %v2945, %v2955
        %v2958 = vlaneseq
        %v2959 = vshrl.u32 %v2958, 7
        %v2960 = vsub.s32 3, %v2959
        %v2961 = vrot.slane %v2632, %v2960
        %v2962 = vlaneseq
        %v2963 = vshrl.u32 %v2962, 7
        %v2964 = vsub.s32 3, %v2963
        %v2965 = vrot.slane %v2633, %v2964
        %v2966 = vmul.f32 %v1298, %v2961
        %v2967 = vmul.f32 %v1298, %v2965
        %v2968 = vadd.f32 %v2956, %v2966
        %v2969 = vadd.f32 %v2957, %v2967
        %v2970 = vlaneseq
        %v2971 = vshrl.u32 %v2970, 7
        %v2972 = vsub.s32 4, %v2971
        %v2973 = vrot.slane %v2632, %v2972
        %v2974 = vlaneseq
        %v2975 = vshrl.u32 %v2974, 7
        %v2976 = vsub.s32 4, %v2975
        %v2977 = vrot.slane %v2633, %v2976
        %v2978 = vmul.f32 %v1315, %v2973
        %v2979 = vmul.f32 %v1315, %v2977
        %v2980 = vadd.f32 %v2968, %v2978
        %v2981 = vadd.f32 %v2969, %v2979
        %v2982 = vlaneseq
        %v2983 = vshrl.u32 %v2982, 7
        %v2984 = vsub.s32 5, %v2983
        %v2985 = vrot.slane %v2632, %v2984
        %v2986 = vlaneseq
        %v2987 = vshrl.u32 %v2986, 7
        %v2988 = vsub.s32 5, %v2987
        %v2989 = vrot.slane %v2633, %v2988
        %v2990 = vmul.f32 %v1332, %v2985
        %v2991 = vmul.f32 %v1332, %v2989
        %v2992 = vadd.f32 %v2980, %v2990
        %v2993 = vadd.f32 %v2981, %v2991
        %v2994 = vlaneseq
        %v2995 = vshrl.u32 %v2994, 7
        %v2996 = vsub.s32 6, %v2995
        %v2997 = vrot.slane %v2632, %v2996
        %v2998 = vlaneseq
        %v2999 = vshrl.u32 %v2998, 7
        %v3000 = vsub.s32 6, %v2999
        %v3001 = vrot.slane %v2633, %v3000
        %v3002 = vmul.f32 %v1349, %v2997
        %v3003 = vmul.f32 %v1349, %v3001
        %v3004 = vadd.f32 %v2992, %v3002
        %v3005 = vadd.f32 %v2993, %v3003
        %v3006 = vlaneseq
        %v3007 = vshrl.u32 %v3006, 7
        %v3008 = vsub.s32 7, %v3007
        %v3009 = vrot.slane %v2632, %v3008
        %v3010 = vlaneseq
        %v3011 = vshrl.u32 %v3010, 7
        %v3012 = vsub.s32 7, %v3011
        %v3013 = vrot.slane %v2633, %v3012
        %v3014 = vmul.f32 %v1366, %v3009
        %v3015 = vmul.f32 %v1366, %v3013
        %v3016 = vadd.f32 %v3004, %v3014
        %v3017 = vadd.f32 %v3005, %v3015
        %s3018 = sld [smem:[#allocation2 + $0x4]]
        %v3019 = vstv %s3018
        %v3020 = vmul.f32 %v2489, %v3019
        %s3021 = sld [smem:[#allocation5 + $0x4]]
        %v3022 = vstv %s3021
        %v3023 = vmul.f32 %v3022, %v3016
        %v3024 = vmul.f32 %v3022, %v3017
        %v3027 = vcombine.low %v3023, %v3024
        %v3029 = vsub.f32 %v3020, %v3027
        %s3030 = sld [smem:[#allocation7 + $0x4]]
        %s3031 = scalar_lea.vmem %s486, 32 [#allocation9]
        %v3032 = vld [vmem:[%s3031] sm:$0x77]
        %v3033 = vstv %s3030
        %v3034 = vmul.f32 %v3033, %v3032
        %v3035 = vadd.f32 %v3029, %v3034
        %s3036 = scalar_lea.vmem %s6, 96
        %v3037 = vld [vmem:[%s3036] sm:$0xff]
        %v3038 = vld [vmem:[%s3036 + $0x8] sm:$0xff]
        %v3039 = vld [vmem:[%s3036 + $0x10] sm:$0xff]
        %v3040 = vld [vmem:[%s3036 + $0x18] sm:$0xff]
        %3042 = vset.pattern.permute.xlu0 0
        %3043 = vperm.xlu0 %3042, %v3037
        %v3044 = vpop.permute.xlu0 %3043
        %3047 = vset.pattern.permute.xlu0 0
        %3048 = vperm.xlu0 %3047, %v3038
        %v3049 = vpop.permute.xlu0 %3048
        %3052 = vset.pattern.permute.xlu0 0
        %3053 = vperm.xlu0 %3052, %v3039
        %v3054 = vpop.permute.xlu0 %3053
        %3057 = vset.pattern.permute.xlu0 0
        %3058 = vperm.xlu0 %3057, %v3040
        %v3059 = vpop.permute.xlu0 %3058
        %v3061 = vadd.f32 %v541, %v3044
        %v3062 = vadd.f32 %v542, %v3044
        %v3063 = vadd.f32 %v543, %v3049
        %v3064 = vadd.f32 %v544, %v3049
        %v3065 = vadd.f32 %v545, %v3054
        %v3066 = vadd.f32 %v546, %v3054
        %v3067 = vadd.f32 %v547, %v3059
        %v3068 = vadd.f32 %v548, %v3059
        %v3070 = vlaneseq
        %v3071 = vshrl.u32 %v3070, 7
        %v3072 = vsub.s32 0, %v3071
        %v3073 = vrot.slane %v3035, %v3072
        %v3074 = vlaneseq
        %v3075 = vshrl.u32 %v3074, 7
        %v3076 = vsub.s32 4, %v3075
        %v3077 = vrot.slane %v3035, %v3076
        %v3080 = vlaneseq
        %v3081 = vshrl.u32 %v3080, 7
        %v3082 = vsub.s32 0, %v3081
        %v3083 = vrot.slane %v3073, %v3082
        %v3084 = vlaneseq
        %v3085 = vshrl.u32 %v3084, 7
        %v3086 = vsub.s32 0, %v3085
        %v3087 = vrot.slane %v3077, %v3086
        %v3088 = vmul.f32 %v663, %v3083
        %v3089 = vmul.f32 %v663, %v3087
        %v3090 = vmul.f32 %v668, %v3083
        %v3091 = vmul.f32 %v668, %v3087
        %v3092 = vmul.f32 %v673, %v3083
        %v3093 = vmul.f32 %v673, %v3087
        %v3094 = vmul.f32 %v678, %v3083
        %v3095 = vmul.f32 %v678, %v3087
        %v3096 = vadd.f32 %v3061, %v3088
        %v3097 = vadd.f32 %v3062, %v3089
        %v3098 = vadd.f32 %v3063, %v3090
        %v3099 = vadd.f32 %v3064, %v3091
        %v3100 = vadd.f32 %v3065, %v3092
        %v3101 = vadd.f32 %v3066, %v3093
        %v3102 = vadd.f32 %v3067, %v3094
        %v3103 = vadd.f32 %v3068, %v3095
        %v3104 = vlaneseq
        %v3105 = vshrl.u32 %v3104, 7
        %v3106 = vsub.s32 1, %v3105
        %v3107 = vrot.slane %v3035, %v3106
        %v3108 = vlaneseq
        %v3109 = vshrl.u32 %v3108, 7
        %v3110 = vsub.s32 5, %v3109
        %v3111 = vrot.slane %v3035, %v3110
        %v3114 = vlaneseq
        %v3115 = vshrl.u32 %v3114, 7
        %v3116 = vsub.s32 1, %v3115
        %v3117 = vrot.slane %v3107, %v3116
        %v3118 = vlaneseq
        %v3119 = vshrl.u32 %v3118, 7
        %v3120 = vsub.s32 1, %v3119
        %v3121 = vrot.slane %v3111, %v3120
        %v3122 = vmul.f32 %v718, %v3117
        %v3123 = vmul.f32 %v718, %v3121
        %v3124 = vmul.f32 %v723, %v3117
        %v3125 = vmul.f32 %v723, %v3121
        %v3126 = vmul.f32 %v728, %v3117
        %v3127 = vmul.f32 %v728, %v3121
        %v3128 = vmul.f32 %v733, %v3117
        %v3129 = vmul.f32 %v733, %v3121
        %v3130 = vadd.f32 %v3096, %v3122
        %v3131 = vadd.f32 %v3097, %v3123
        %v3132 = vadd.f32 %v3098, %v3124
        %v3133 = vadd.f32 %v3099, %v3125
        %v3134 = vadd.f32 %v3100, %v3126
        %v3135 = vadd.f32 %v3101, %v3127
        %v3136 = vadd.f32 %v3102, %v3128
        %v3137 = vadd.f32 %v3103, %v3129
        %v3138 = vlaneseq
        %v3139 = vshrl.u32 %v3138, 7
        %v3140 = vsub.s32 2, %v3139
        %v3141 = vrot.slane %v3035, %v3140
        %v3142 = vlaneseq
        %v3143 = vshrl.u32 %v3142, 7
        %v3144 = vsub.s32 6, %v3143
        %v3145 = vrot.slane %v3035, %v3144
        %v3148 = vlaneseq
        %v3149 = vshrl.u32 %v3148, 7
        %v3150 = vsub.s32 2, %v3149
        %v3151 = vrot.slane %v3141, %v3150
        %v3152 = vlaneseq
        %v3153 = vshrl.u32 %v3152, 7
        %v3154 = vsub.s32 2, %v3153
        %v3155 = vrot.slane %v3145, %v3154
        %v3156 = vmul.f32 %v772, %v3151
        %v3157 = vmul.f32 %v772, %v3155
        %v3158 = vmul.f32 %v777, %v3151
        %v3159 = vmul.f32 %v777, %v3155
        %v3160 = vmul.f32 %v782, %v3151
        %v3161 = vmul.f32 %v782, %v3155
        %v3162 = vmul.f32 %v787, %v3151
        %v3163 = vmul.f32 %v787, %v3155
        %v3164 = vadd.f32 %v3130, %v3156
        %v3165 = vadd.f32 %v3131, %v3157
        %v3166 = vadd.f32 %v3132, %v3158
        %v3167 = vadd.f32 %v3133, %v3159
        %v3168 = vadd.f32 %v3134, %v3160
        %v3169 = vadd.f32 %v3135, %v3161
        %v3170 = vadd.f32 %v3136, %v3162
        %v3171 = vadd.f32 %v3137, %v3163
        %v3172 = vmax.f32 %v3164, 0.0
        %v3173 = vmax.f32 %v3165, 0.0
        %v3174 = vmax.f32 %v3166, 0.0
        %v3175 = vmax.f32 %v3167, 0.0
        %v3176 = vmax.f32 %v3168, 0.0
        %v3177 = vmax.f32 %v3169, 0.0
        %v3178 = vmax.f32 %v3170, 0.0
        %v3179 = vmax.f32 %v3171, 0.0
        %v3180 = vlaneseq
        %v3181 = vshrl.u32 %v3180, 7
        %v3182 = vsub.s32 0, %v3181
        %v3183 = vrot.slane %v3172, %v3182
        %v3184 = vlaneseq
        %v3185 = vshrl.u32 %v3184, 7
        %v3186 = vsub.s32 0, %v3185
        %v3187 = vrot.slane %v3173, %v3186
        %v3188 = vmul.f32 %v834, %v3183
        %v3189 = vmul.f32 %v834, %v3187
        %v3190 = vadd.f32 %v849, %v3188
        %v3191 = vadd.f32 %v849, %v3189
        %v3192 = vlaneseq
        %v3193 = vshrl.u32 %v3192, 7
        %v3194 = vsub.s32 1, %v3193
        %v3195 = vrot.slane %v3172, %v3194
        %v3196 = vlaneseq
        %v3197 = vshrl.u32 %v3196, 7
        %v3198 = vsub.s32 1, %v3197
        %v3199 = vrot.slane %v3173, %v3198
        %v3200 = vmul.f32 %v856, %v3195
        %v3201 = vmul.f32 %v856, %v3199
        %v3202 = vadd.f32 %v3190, %v3200
        %v3203 = vadd.f32 %v3191, %v3201
        %v3204 = vlaneseq
        %v3205 = vshrl.u32 %v3204, 7
        %v3206 = vsub.s32 2, %v3205
        %v3207 = vrot.slane %v3172, %v3206
        %v3208 = vlaneseq
        %v3209 = vshrl.u32 %v3208, 7
        %v3210 = vsub.s32 2, %v3209
        %v3211 = vrot.slane %v3173, %v3210
        %v3212 = vmul.f32 %v873, %v3207
        %v3213 = vmul.f32 %v873, %v3211
        %v3214 = vadd.f32 %v3202, %v3212
        %v3215 = vadd.f32 %v3203, %v3213
        %v3216 = vlaneseq
        %v3217 = vshrl.u32 %v3216, 7
        %v3218 = vsub.s32 3, %v3217
        %v3219 = vrot.slane %v3172, %v3218
        %v3220 = vlaneseq
        %v3221 = vshrl.u32 %v3220, 7
        %v3222 = vsub.s32 3, %v3221
        %v3223 = vrot.slane %v3173, %v3222
        %v3224 = vmul.f32 %v890, %v3219
        %v3225 = vmul.f32 %v890, %v3223
        %v3226 = vadd.f32 %v3214, %v3224
        %v3227 = vadd.f32 %v3215, %v3225
        %v3228 = vlaneseq
        %v3229 = vshrl.u32 %v3228, 7
        %v3230 = vsub.s32 4, %v3229
        %v3231 = vrot.slane %v3172, %v3230
        %v3232 = vlaneseq
        %v3233 = vshrl.u32 %v3232, 7
        %v3234 = vsub.s32 4, %v3233
        %v3235 = vrot.slane %v3173, %v3234
        %v3236 = vmul.f32 %v907, %v3231
        %v3237 = vmul.f32 %v907, %v3235
        %v3238 = vadd.f32 %v3226, %v3236
        %v3239 = vadd.f32 %v3227, %v3237
        %v3240 = vlaneseq
        %v3241 = vshrl.u32 %v3240, 7
        %v3242 = vsub.s32 5, %v3241
        %v3243 = vrot.slane %v3172, %v3242
        %v3244 = vlaneseq
        %v3245 = vshrl.u32 %v3244, 7
        %v3246 = vsub.s32 5, %v3245
        %v3247 = vrot.slane %v3173, %v3246
        %v3248 = vmul.f32 %v924, %v3243
        %v3249 = vmul.f32 %v924, %v3247
        %v3250 = vadd.f32 %v3238, %v3248
        %v3251 = vadd.f32 %v3239, %v3249
        %v3252 = vlaneseq
        %v3253 = vshrl.u32 %v3252, 7
        %v3254 = vsub.s32 6, %v3253
        %v3255 = vrot.slane %v3172, %v3254
        %v3256 = vlaneseq
        %v3257 = vshrl.u32 %v3256, 7
        %v3258 = vsub.s32 6, %v3257
        %v3259 = vrot.slane %v3173, %v3258
        %v3260 = vmul.f32 %v941, %v3255
        %v3261 = vmul.f32 %v941, %v3259
        %v3262 = vadd.f32 %v3250, %v3260
        %v3263 = vadd.f32 %v3251, %v3261
        %v3264 = vlaneseq
        %v3265 = vshrl.u32 %v3264, 7
        %v3266 = vsub.s32 7, %v3265
        %v3267 = vrot.slane %v3172, %v3266
        %v3268 = vlaneseq
        %v3269 = vshrl.u32 %v3268, 7
        %v3270 = vsub.s32 7, %v3269
        %v3271 = vrot.slane %v3173, %v3270
        %v3272 = vmul.f32 %v958, %v3267
        %v3273 = vmul.f32 %v958, %v3271
        %v3274 = vadd.f32 %v3262, %v3272
        %v3275 = vadd.f32 %v3263, %v3273
        %v3276 = vlaneseq
        %v3277 = vshrl.u32 %v3276, 7
        %v3278 = vsub.s32 0, %v3277
        %v3279 = vrot.slane %v3174, %v3278
        %v3280 = vlaneseq
        %v3281 = vshrl.u32 %v3280, 7
        %v3282 = vsub.s32 0, %v3281
        %v3283 = vrot.slane %v3175, %v3282
        %v3284 = vmul.f32 %v975, %v3279
        %v3285 = vmul.f32 %v975, %v3283
        %v3286 = vadd.f32 %v3274, %v3284
        %v3287 = vadd.f32 %v3275, %v3285
        %v3288 = vlaneseq
        %v3289 = vshrl.u32 %v3288, 7
        %v3290 = vsub.s32 1, %v3289
        %v3291 = vrot.slane %v3174, %v3290
        %v3292 = vlaneseq
        %v3293 = vshrl.u32 %v3292, 7
        %v3294 = vsub.s32 1, %v3293
        %v3295 = vrot.slane %v3175, %v3294
        %v3296 = vmul.f32 %v992, %v3291
        %v3297 = vmul.f32 %v992, %v3295
        %v3298 = vadd.f32 %v3286, %v3296
        %v3299 = vadd.f32 %v3287, %v3297
        %v3300 = vlaneseq
        %v3301 = vshrl.u32 %v3300, 7
        %v3302 = vsub.s32 2, %v3301
        %v3303 = vrot.slane %v3174, %v3302
        %v3304 = vlaneseq
        %v3305 = vshrl.u32 %v3304, 7
        %v3306 = vsub.s32 2, %v3305
        %v3307 = vrot.slane %v3175, %v3306
        %v3308 = vmul.f32 %v1009, %v3303
        %v3309 = vmul.f32 %v1009, %v3307
        %v3310 = vadd.f32 %v3298, %v3308
        %v3311 = vadd.f32 %v3299, %v3309
        %v3312 = vlaneseq
        %v3313 = vshrl.u32 %v3312, 7
        %v3314 = vsub.s32 3, %v3313
        %v3315 = vrot.slane %v3174, %v3314
        %v3316 = vlaneseq
        %v3317 = vshrl.u32 %v3316, 7
        %v3318 = vsub.s32 3, %v3317
        %v3319 = vrot.slane %v3175, %v3318
        %v3320 = vmul.f32 %v1026, %v3315
        %v3321 = vmul.f32 %v1026, %v3319
        %v3322 = vadd.f32 %v3310, %v3320
        %v3323 = vadd.f32 %v3311, %v3321
        %v3324 = vlaneseq
        %v3325 = vshrl.u32 %v3324, 7
        %v3326 = vsub.s32 4, %v3325
        %v3327 = vrot.slane %v3174, %v3326
        %v3328 = vlaneseq
        %v3329 = vshrl.u32 %v3328, 7
        %v3330 = vsub.s32 4, %v3329
        %v3331 = vrot.slane %v3175, %v3330
        %v3332 = vmul.f32 %v1043, %v3327
        %v3333 = vmul.f32 %v1043, %v3331
        %v3334 = vadd.f32 %v3322, %v3332
        %v3335 = vadd.f32 %v3323, %v3333
        %v3336 = vlaneseq
        %v3337 = vshrl.u32 %v3336, 7
        %v3338 = vsub.s32 5, %v3337
        %v3339 = vrot.slane %v3174, %v3338
        %v3340 = vlaneseq
        %v3341 = vshrl.u32 %v3340, 7
        %v3342 = vsub.s32 5, %v3341
        %v3343 = vrot.slane %v3175, %v3342
        %v3344 = vmul.f32 %v1060, %v3339
        %v3345 = vmul.f32 %v1060, %v3343
        %v3346 = vadd.f32 %v3334, %v3344
        %v3347 = vadd.f32 %v3335, %v3345
        %v3348 = vlaneseq
        %v3349 = vshrl.u32 %v3348, 7
        %v3350 = vsub.s32 6, %v3349
        %v3351 = vrot.slane %v3174, %v3350
        %v3352 = vlaneseq
        %v3353 = vshrl.u32 %v3352, 7
        %v3354 = vsub.s32 6, %v3353
        %v3355 = vrot.slane %v3175, %v3354
        %v3356 = vmul.f32 %v1077, %v3351
        %v3357 = vmul.f32 %v1077, %v3355
        %v3358 = vadd.f32 %v3346, %v3356
        %v3359 = vadd.f32 %v3347, %v3357
        %v3360 = vlaneseq
        %v3361 = vshrl.u32 %v3360, 7
        %v3362 = vsub.s32 7, %v3361
        %v3363 = vrot.slane %v3174, %v3362
        %v3364 = vlaneseq
        %v3365 = vshrl.u32 %v3364, 7
        %v3366 = vsub.s32 7, %v3365
        %v3367 = vrot.slane %v3175, %v3366
        %v3368 = vmul.f32 %v1094, %v3363
        %v3369 = vmul.f32 %v1094, %v3367
        %v3370 = vadd.f32 %v3358, %v3368
        %v3371 = vadd.f32 %v3359, %v3369
        %v3372 = vlaneseq
        %v3373 = vshrl.u32 %v3372, 7
        %v3374 = vsub.s32 0, %v3373
        %v3375 = vrot.slane %v3176, %v3374
        %v3376 = vlaneseq
        %v3377 = vshrl.u32 %v3376, 7
        %v3378 = vsub.s32 0, %v3377
        %v3379 = vrot.slane %v3177, %v3378
        %v3380 = vmul.f32 %v1111, %v3375
        %v3381 = vmul.f32 %v1111, %v3379
        %v3382 = vadd.f32 %v3370, %v3380
        %v3383 = vadd.f32 %v3371, %v3381
        %v3384 = vlaneseq
        %v3385 = vshrl.u32 %v3384, 7
        %v3386 = vsub.s32 1, %v3385
        %v3387 = vrot.slane %v3176, %v3386
        %v3388 = vlaneseq
        %v3389 = vshrl.u32 %v3388, 7
        %v3390 = vsub.s32 1, %v3389
        %v3391 = vrot.slane %v3177, %v3390
        %v3392 = vmul.f32 %v1128, %v3387
        %v3393 = vmul.f32 %v1128, %v3391
        %v3394 = vadd.f32 %v3382, %v3392
        %v3395 = vadd.f32 %v3383, %v3393
        %v3396 = vlaneseq
        %v3397 = vshrl.u32 %v3396, 7
        %v3398 = vsub.s32 2, %v3397
        %v3399 = vrot.slane %v3176, %v3398
        %v3400 = vlaneseq
        %v3401 = vshrl.u32 %v3400, 7
        %v3402 = vsub.s32 2, %v3401
        %v3403 = vrot.slane %v3177, %v3402
        %v3404 = vmul.f32 %v1145, %v3399
        %v3405 = vmul.f32 %v1145, %v3403
        %v3406 = vadd.f32 %v3394, %v3404
        %v3407 = vadd.f32 %v3395, %v3405
        %v3408 = vlaneseq
        %v3409 = vshrl.u32 %v3408, 7
        %v3410 = vsub.s32 3, %v3409
        %v3411 = vrot.slane %v3176, %v3410
        %v3412 = vlaneseq
        %v3413 = vshrl.u32 %v3412, 7
        %v3414 = vsub.s32 3, %v3413
        %v3415 = vrot.slane %v3177, %v3414
        %v3416 = vmul.f32 %v1162, %v3411
        %v3417 = vmul.f32 %v1162, %v3415
        %v3418 = vadd.f32 %v3406, %v3416
        %v3419 = vadd.f32 %v3407, %v3417
        %v3420 = vlaneseq
        %v3421 = vshrl.u32 %v3420, 7
        %v3422 = vsub.s32 4, %v3421
        %v3423 = vrot.slane %v3176, %v3422
        %v3424 = vlaneseq
        %v3425 = vshrl.u32 %v3424, 7
        %v3426 = vsub.s32 4, %v3425
        %v3427 = vrot.slane %v3177, %v3426
        %v3428 = vmul.f32 %v1179, %v3423
        %v3429 = vmul.f32 %v1179, %v3427
        %v3430 = vadd.f32 %v3418, %v3428
        %v3431 = vadd.f32 %v3419, %v3429
        %v3432 = vlaneseq
        %v3433 = vshrl.u32 %v3432, 7
        %v3434 = vsub.s32 5, %v3433
        %v3435 = vrot.slane %v3176, %v3434
        %v3436 = vlaneseq
        %v3437 = vshrl.u32 %v3436, 7
        %v3438 = vsub.s32 5, %v3437
        %v3439 = vrot.slane %v3177, %v3438
        %v3440 = vmul.f32 %v1196, %v3435
        %v3441 = vmul.f32 %v1196, %v3439
        %v3442 = vadd.f32 %v3430, %v3440
        %v3443 = vadd.f32 %v3431, %v3441
        %v3444 = vlaneseq
        %v3445 = vshrl.u32 %v3444, 7
        %v3446 = vsub.s32 6, %v3445
        %v3447 = vrot.slane %v3176, %v3446
        %v3448 = vlaneseq
        %v3449 = vshrl.u32 %v3448, 7
        %v3450 = vsub.s32 6, %v3449
        %v3451 = vrot.slane %v3177, %v3450
        %v3452 = vmul.f32 %v1213, %v3447
        %v3453 = vmul.f32 %v1213, %v3451
        %v3454 = vadd.f32 %v3442, %v3452
        %v3455 = vadd.f32 %v3443, %v3453
        %v3456 = vlaneseq
        %v3457 = vshrl.u32 %v3456, 7
        %v3458 = vsub.s32 7, %v3457
        %v3459 = vrot.slane %v3176, %v3458
        %v3460 = vlaneseq
        %v3461 = vshrl.u32 %v3460, 7
        %v3462 = vsub.s32 7, %v3461
        %v3463 = vrot.slane %v3177, %v3462
        %v3464 = vmul.f32 %v1230, %v3459
        %v3465 = vmul.f32 %v1230, %v3463
        %v3466 = vadd.f32 %v3454, %v3464
        %v3467 = vadd.f32 %v3455, %v3465
        %v3468 = vlaneseq
        %v3469 = vshrl.u32 %v3468, 7
        %v3470 = vsub.s32 0, %v3469
        %v3471 = vrot.slane %v3178, %v3470
        %v3472 = vlaneseq
        %v3473 = vshrl.u32 %v3472, 7
        %v3474 = vsub.s32 0, %v3473
        %v3475 = vrot.slane %v3179, %v3474
        %v3476 = vmul.f32 %v1247, %v3471
        %v3477 = vmul.f32 %v1247, %v3475
        %v3478 = vadd.f32 %v3466, %v3476
        %v3479 = vadd.f32 %v3467, %v3477
        %v3480 = vlaneseq
        %v3481 = vshrl.u32 %v3480, 7
        %v3482 = vsub.s32 1, %v3481
        %v3483 = vrot.slane %v3178, %v3482
        %v3484 = vlaneseq
        %v3485 = vshrl.u32 %v3484, 7
        %v3486 = vsub.s32 1, %v3485
        %v3487 = vrot.slane %v3179, %v3486
        %v3488 = vmul.f32 %v1264, %v3483
        %v3489 = vmul.f32 %v1264, %v3487
        %v3490 = vadd.f32 %v3478, %v3488
        %v3491 = vadd.f32 %v3479, %v3489
        %v3492 = vlaneseq
        %v3493 = vshrl.u32 %v3492, 7
        %v3494 = vsub.s32 2, %v3493
        %v3495 = vrot.slane %v3178, %v3494
        %v3496 = vlaneseq
        %v3497 = vshrl.u32 %v3496, 7
        %v3498 = vsub.s32 2, %v3497
        %v3499 = vrot.slane %v3179, %v3498
        %v3500 = vmul.f32 %v1281, %v3495
        %v3501 = vmul.f32 %v1281, %v3499
        %v3502 = vadd.f32 %v3490, %v3500
        %v3503 = vadd.f32 %v3491, %v3501
        %v3504 = vlaneseq
        %v3505 = vshrl.u32 %v3504, 7
        %v3506 = vsub.s32 3, %v3505
        %v3507 = vrot.slane %v3178, %v3506
        %v3508 = vlaneseq
        %v3509 = vshrl.u32 %v3508, 7
        %v3510 = vsub.s32 3, %v3509
        %v3511 = vrot.slane %v3179, %v3510
        %v3512 = vmul.f32 %v1298, %v3507
        %v3513 = vmul.f32 %v1298, %v3511
        %v3514 = vadd.f32 %v3502, %v3512
        %v3515 = vadd.f32 %v3503, %v3513
        %v3516 = vlaneseq
        %v3517 = vshrl.u32 %v3516, 7
        %v3518 = vsub.s32 4, %v3517
        %v3519 = vrot.slane %v3178, %v3518
        %v3520 = vlaneseq
        %v3521 = vshrl.u32 %v3520, 7
        %v3522 = vsub.s32 4, %v3521
        %v3523 = vrot.slane %v3179, %v3522
        %v3524 = vmul.f32 %v1315, %v3519
        %v3525 = vmul.f32 %v1315, %v3523
        %v3526 = vadd.f32 %v3514, %v3524
        %v3527 = vadd.f32 %v3515, %v3525
        %v3528 = vlaneseq
        %v3529 = vshrl.u32 %v3528, 7
        %v3530 = vsub.s32 5, %v3529
        %v3531 = vrot.slane %v3178, %v3530
        %v3532 = vlaneseq
        %v3533 = vshrl.u32 %v3532, 7
        %v3534 = vsub.s32 5, %v3533
        %v3535 = vrot.slane %v3179, %v3534
        %v3536 = vmul.f32 %v1332, %v3531
        %v3537 = vmul.f32 %v1332, %v3535
        %v3538 = vadd.f32 %v3526, %v3536
        %v3539 = vadd.f32 %v3527, %v3537
        %v3540 = vlaneseq
        %v3541 = vshrl.u32 %v3540, 7
        %v3542 = vsub.s32 6, %v3541
        %v3543 = vrot.slane %v3178, %v3542
        %v3544 = vlaneseq
        %v3545 = vshrl.u32 %v3544, 7
        %v3546 = vsub.s32 6, %v3545
        %v3547 = vrot.slane %v3179, %v3546
        %v3548 = vmul.f32 %v1349, %v3543
        %v3549 = vmul.f32 %v1349, %v3547
        %v3550 = vadd.f32 %v3538, %v3548
        %v3551 = vadd.f32 %v3539, %v3549
        %v3552 = vlaneseq
        %v3553 = vshrl.u32 %v3552, 7
        %v3554 = vsub.s32 7, %v3553
        %v3555 = vrot.slane %v3178, %v3554
        %v3556 = vlaneseq
        %v3557 = vshrl.u32 %v3556, 7
        %v3558 = vsub.s32 7, %v3557
        %v3559 = vrot.slane %v3179, %v3558
        %v3560 = vmul.f32 %v1366, %v3555
        %v3561 = vmul.f32 %v1366, %v3559
        %v3562 = vadd.f32 %v3550, %v3560
        %v3563 = vadd.f32 %v3551, %v3561
        %s3564 = sld [smem:[#allocation2 + $0x3]]
        %v3565 = vstv %s3564
        %v3566 = vmul.f32 %v3035, %v3565
        %s3567 = sld [smem:[#allocation5 + $0x3]]
        %v3568 = vstv %s3567
        %v3569 = vmul.f32 %v3568, %v3562
        %v3570 = vmul.f32 %v3568, %v3563
        %v3573 = vcombine.low %v3569, %v3570
        %v3575 = vsub.f32 %v3566, %v3573
        %s3576 = sld [smem:[#allocation7 + $0x3]]
        %s3577 = scalar_lea.vmem %s486, 24 [#allocation9]
        %v3578 = vld [vmem:[%s3577] sm:$0x77]
        %v3579 = vstv %s3576
        %v3580 = vmul.f32 %v3579, %v3578
        %v3581 = vadd.f32 %v3575, %v3580
        %s3582 = scalar_lea.vmem %s6, 64
        %v3583 = vld [vmem:[%s3582] sm:$0xff]
        %v3584 = vld [vmem:[%s3582 + $0x8] sm:$0xff]
        %v3585 = vld [vmem:[%s3582 + $0x10] sm:$0xff]
        %v3586 = vld [vmem:[%s3582 + $0x18] sm:$0xff]
        %3588 = vset.pattern.permute.xlu0 0
        %3589 = vperm.xlu0 %3588, %v3583
        %v3590 = vpop.permute.xlu0 %3589
        %3593 = vset.pattern.permute.xlu0 0
        %3594 = vperm.xlu0 %3593, %v3584
        %v3595 = vpop.permute.xlu0 %3594
        %3598 = vset.pattern.permute.xlu0 0
        %3599 = vperm.xlu0 %3598, %v3585
        %v3600 = vpop.permute.xlu0 %3599
        %3603 = vset.pattern.permute.xlu0 0
        %3604 = vperm.xlu0 %3603, %v3586
        %v3605 = vpop.permute.xlu0 %3604
        %v3607 = vadd.f32 %v541, %v3590
        %v3608 = vadd.f32 %v542, %v3590
        %v3609 = vadd.f32 %v543, %v3595
        %v3610 = vadd.f32 %v544, %v3595
        %v3611 = vadd.f32 %v545, %v3600
        %v3612 = vadd.f32 %v546, %v3600
        %v3613 = vadd.f32 %v547, %v3605
        %v3614 = vadd.f32 %v548, %v3605
        %v3616 = vlaneseq
        %v3617 = vshrl.u32 %v3616, 7
        %v3618 = vsub.s32 0, %v3617
        %v3619 = vrot.slane %v3581, %v3618
        %v3620 = vlaneseq
        %v3621 = vshrl.u32 %v3620, 7
        %v3622 = vsub.s32 4, %v3621
        %v3623 = vrot.slane %v3581, %v3622
        %v3626 = vlaneseq
        %v3627 = vshrl.u32 %v3626, 7
        %v3628 = vsub.s32 0, %v3627
        %v3629 = vrot.slane %v3619, %v3628
        %v3630 = vlaneseq
        %v3631 = vshrl.u32 %v3630, 7
        %v3632 = vsub.s32 0, %v3631
        %v3633 = vrot.slane %v3623, %v3632
        %v3634 = vmul.f32 %v663, %v3629
        %v3635 = vmul.f32 %v663, %v3633
        %v3636 = vmul.f32 %v668, %v3629
        %v3637 = vmul.f32 %v668, %v3633
        %v3638 = vmul.f32 %v673, %v3629
        %v3639 = vmul.f32 %v673, %v3633
        %v3640 = vmul.f32 %v678, %v3629
        %v3641 = vmul.f32 %v678, %v3633
        %v3642 = vadd.f32 %v3607, %v3634
        %v3643 = vadd.f32 %v3608, %v3635
        %v3644 = vadd.f32 %v3609, %v3636
        %v3645 = vadd.f32 %v3610, %v3637
        %v3646 = vadd.f32 %v3611, %v3638
        %v3647 = vadd.f32 %v3612, %v3639
        %v3648 = vadd.f32 %v3613, %v3640
        %v3649 = vadd.f32 %v3614, %v3641
        %v3650 = vlaneseq
        %v3651 = vshrl.u32 %v3650, 7
        %v3652 = vsub.s32 1, %v3651
        %v3653 = vrot.slane %v3581, %v3652
        %v3654 = vlaneseq
        %v3655 = vshrl.u32 %v3654, 7
        %v3656 = vsub.s32 5, %v3655
        %v3657 = vrot.slane %v3581, %v3656
        %v3660 = vlaneseq
        %v3661 = vshrl.u32 %v3660, 7
        %v3662 = vsub.s32 1, %v3661
        %v3663 = vrot.slane %v3653, %v3662
        %v3664 = vlaneseq
        %v3665 = vshrl.u32 %v3664, 7
        %v3666 = vsub.s32 1, %v3665
        %v3667 = vrot.slane %v3657, %v3666
        %v3668 = vmul.f32 %v718, %v3663
        %v3669 = vmul.f32 %v718, %v3667
        %v3670 = vmul.f32 %v723, %v3663
        %v3671 = vmul.f32 %v723, %v3667
        %v3672 = vmul.f32 %v728, %v3663
        %v3673 = vmul.f32 %v728, %v3667
        %v3674 = vmul.f32 %v733, %v3663
        %v3675 = vmul.f32 %v733, %v3667
        %v3676 = vadd.f32 %v3642, %v3668
        %v3677 = vadd.f32 %v3643, %v3669
        %v3678 = vadd.f32 %v3644, %v3670
        %v3679 = vadd.f32 %v3645, %v3671
        %v3680 = vadd.f32 %v3646, %v3672
        %v3681 = vadd.f32 %v3647, %v3673
        %v3682 = vadd.f32 %v3648, %v3674
        %v3683 = vadd.f32 %v3649, %v3675
        %v3684 = vlaneseq
        %v3685 = vshrl.u32 %v3684, 7
        %v3686 = vsub.s32 2, %v3685
        %v3687 = vrot.slane %v3581, %v3686
        %v3688 = vlaneseq
        %v3689 = vshrl.u32 %v3688, 7
        %v3690 = vsub.s32 6, %v3689
        %v3691 = vrot.slane %v3581, %v3690
        %v3694 = vlaneseq
        %v3695 = vshrl.u32 %v3694, 7
        %v3696 = vsub.s32 2, %v3695
        %v3697 = vrot.slane %v3687, %v3696
        %v3698 = vlaneseq
        %v3699 = vshrl.u32 %v3698, 7
        %v3700 = vsub.s32 2, %v3699
        %v3701 = vrot.slane %v3691, %v3700
        %v3702 = vmul.f32 %v772, %v3697
        %v3703 = vmul.f32 %v772, %v3701
        %v3704 = vmul.f32 %v777, %v3697
        %v3705 = vmul.f32 %v777, %v3701
        %v3706 = vmul.f32 %v782, %v3697
        %v3707 = vmul.f32 %v782, %v3701
        %v3708 = vmul.f32 %v787, %v3697
        %v3709 = vmul.f32 %v787, %v3701
        %v3710 = vadd.f32 %v3676, %v3702
        %v3711 = vadd.f32 %v3677, %v3703
        %v3712 = vadd.f32 %v3678, %v3704
        %v3713 = vadd.f32 %v3679, %v3705
        %v3714 = vadd.f32 %v3680, %v3706
        %v3715 = vadd.f32 %v3681, %v3707
        %v3716 = vadd.f32 %v3682, %v3708
        %v3717 = vadd.f32 %v3683, %v3709
        %v3718 = vmax.f32 %v3710, 0.0
        %v3719 = vmax.f32 %v3711, 0.0
        %v3720 = vmax.f32 %v3712, 0.0
        %v3721 = vmax.f32 %v3713, 0.0
        %v3722 = vmax.f32 %v3714, 0.0
        %v3723 = vmax.f32 %v3715, 0.0
        %v3724 = vmax.f32 %v3716, 0.0
        %v3725 = vmax.f32 %v3717, 0.0
        %v3726 = vlaneseq
        %v3727 = vshrl.u32 %v3726, 7
        %v3728 = vsub.s32 0, %v3727
        %v3729 = vrot.slane %v3718, %v3728
        %v3730 = vlaneseq
        %v3731 = vshrl.u32 %v3730, 7
        %v3732 = vsub.s32 0, %v3731
        %v3733 = vrot.slane %v3719, %v3732
        %v3734 = vmul.f32 %v834, %v3729
        %v3735 = vmul.f32 %v834, %v3733
        %v3736 = vadd.f32 %v849, %v3734
        %v3737 = vadd.f32 %v849, %v3735
        %v3738 = vlaneseq
        %v3739 = vshrl.u32 %v3738, 7
        %v3740 = vsub.s32 1, %v3739
        %v3741 = vrot.slane %v3718, %v3740
        %v3742 = vlaneseq
        %v3743 = vshrl.u32 %v3742, 7
        %v3744 = vsub.s32 1, %v3743
        %v3745 = vrot.slane %v3719, %v3744
        %v3746 = vmul.f32 %v856, %v3741
        %v3747 = vmul.f32 %v856, %v3745
        %v3748 = vadd.f32 %v3736, %v3746
        %v3749 = vadd.f32 %v3737, %v3747
        %v3750 = vlaneseq
        %v3751 = vshrl.u32 %v3750, 7
        %v3752 = vsub.s32 2, %v3751
        %v3753 = vrot.slane %v3718, %v3752
        %v3754 = vlaneseq
        %v3755 = vshrl.u32 %v3754, 7
        %v3756 = vsub.s32 2, %v3755
        %v3757 = vrot.slane %v3719, %v3756
        %v3758 = vmul.f32 %v873, %v3753
        %v3759 = vmul.f32 %v873, %v3757
        %v3760 = vadd.f32 %v3748, %v3758
        %v3761 = vadd.f32 %v3749, %v3759
        %v3762 = vlaneseq
        %v3763 = vshrl.u32 %v3762, 7
        %v3764 = vsub.s32 3, %v3763
        %v3765 = vrot.slane %v3718, %v3764
        %v3766 = vlaneseq
        %v3767 = vshrl.u32 %v3766, 7
        %v3768 = vsub.s32 3, %v3767
        %v3769 = vrot.slane %v3719, %v3768
        %v3770 = vmul.f32 %v890, %v3765
        %v3771 = vmul.f32 %v890, %v3769
        %v3772 = vadd.f32 %v3760, %v3770
        %v3773 = vadd.f32 %v3761, %v3771
        %v3774 = vlaneseq
        %v3775 = vshrl.u32 %v3774, 7
        %v3776 = vsub.s32 4, %v3775
        %v3777 = vrot.slane %v3718, %v3776
        %v3778 = vlaneseq
        %v3779 = vshrl.u32 %v3778, 7
        %v3780 = vsub.s32 4, %v3779
        %v3781 = vrot.slane %v3719, %v3780
        %v3782 = vmul.f32 %v907, %v3777
        %v3783 = vmul.f32 %v907, %v3781
        %v3784 = vadd.f32 %v3772, %v3782
        %v3785 = vadd.f32 %v3773, %v3783
        %v3786 = vlaneseq
        %v3787 = vshrl.u32 %v3786, 7
        %v3788 = vsub.s32 5, %v3787
        %v3789 = vrot.slane %v3718, %v3788
        %v3790 = vlaneseq
        %v3791 = vshrl.u32 %v3790, 7
        %v3792 = vsub.s32 5, %v3791
        %v3793 = vrot.slane %v3719, %v3792
        %v3794 = vmul.f32 %v924, %v3789
        %v3795 = vmul.f32 %v924, %v3793
        %v3796 = vadd.f32 %v3784, %v3794
        %v3797 = vadd.f32 %v3785, %v3795
        %v3798 = vlaneseq
        %v3799 = vshrl.u32 %v3798, 7
        %v3800 = vsub.s32 6, %v3799
        %v3801 = vrot.slane %v3718, %v3800
        %v3802 = vlaneseq
        %v3803 = vshrl.u32 %v3802, 7
        %v3804 = vsub.s32 6, %v3803
        %v3805 = vrot.slane %v3719, %v3804
        %v3806 = vmul.f32 %v941, %v3801
        %v3807 = vmul.f32 %v941, %v3805
        %v3808 = vadd.f32 %v3796, %v3806
        %v3809 = vadd.f32 %v3797, %v3807
        %v3810 = vlaneseq
        %v3811 = vshrl.u32 %v3810, 7
        %v3812 = vsub.s32 7, %v3811
        %v3813 = vrot.slane %v3718, %v3812
        %v3814 = vlaneseq
        %v3815 = vshrl.u32 %v3814, 7
        %v3816 = vsub.s32 7, %v3815
        %v3817 = vrot.slane %v3719, %v3816
        %v3818 = vmul.f32 %v958, %v3813
        %v3819 = vmul.f32 %v958, %v3817
        %v3820 = vadd.f32 %v3808, %v3818
        %v3821 = vadd.f32 %v3809, %v3819
        %v3822 = vlaneseq
        %v3823 = vshrl.u32 %v3822, 7
        %v3824 = vsub.s32 0, %v3823
        %v3825 = vrot.slane %v3720, %v3824
        %v3826 = vlaneseq
        %v3827 = vshrl.u32 %v3826, 7
        %v3828 = vsub.s32 0, %v3827
        %v3829 = vrot.slane %v3721, %v3828
        %v3830 = vmul.f32 %v975, %v3825
        %v3831 = vmul.f32 %v975, %v3829
        %v3832 = vadd.f32 %v3820, %v3830
        %v3833 = vadd.f32 %v3821, %v3831
        %v3834 = vlaneseq
        %v3835 = vshrl.u32 %v3834, 7
        %v3836 = vsub.s32 1, %v3835
        %v3837 = vrot.slane %v3720, %v3836
        %v3838 = vlaneseq
        %v3839 = vshrl.u32 %v3838, 7
        %v3840 = vsub.s32 1, %v3839
        %v3841 = vrot.slane %v3721, %v3840
        %v3842 = vmul.f32 %v992, %v3837
        %v3843 = vmul.f32 %v992, %v3841
        %v3844 = vadd.f32 %v3832, %v3842
        %v3845 = vadd.f32 %v3833, %v3843
        %v3846 = vlaneseq
        %v3847 = vshrl.u32 %v3846, 7
        %v3848 = vsub.s32 2, %v3847
        %v3849 = vrot.slane %v3720, %v3848
        %v3850 = vlaneseq
        %v3851 = vshrl.u32 %v3850, 7
        %v3852 = vsub.s32 2, %v3851
        %v3853 = vrot.slane %v3721, %v3852
        %v3854 = vmul.f32 %v1009, %v3849
        %v3855 = vmul.f32 %v1009, %v3853
        %v3856 = vadd.f32 %v3844, %v3854
        %v3857 = vadd.f32 %v3845, %v3855
        %v3858 = vlaneseq
        %v3859 = vshrl.u32 %v3858, 7
        %v3860 = vsub.s32 3, %v3859
        %v3861 = vrot.slane %v3720, %v3860
        %v3862 = vlaneseq
        %v3863 = vshrl.u32 %v3862, 7
        %v3864 = vsub.s32 3, %v3863
        %v3865 = vrot.slane %v3721, %v3864
        %v3866 = vmul.f32 %v1026, %v3861
        %v3867 = vmul.f32 %v1026, %v3865
        %v3868 = vadd.f32 %v3856, %v3866
        %v3869 = vadd.f32 %v3857, %v3867
        %v3870 = vlaneseq
        %v3871 = vshrl.u32 %v3870, 7
        %v3872 = vsub.s32 4, %v3871
        %v3873 = vrot.slane %v3720, %v3872
        %v3874 = vlaneseq
        %v3875 = vshrl.u32 %v3874, 7
        %v3876 = vsub.s32 4, %v3875
        %v3877 = vrot.slane %v3721, %v3876
        %v3878 = vmul.f32 %v1043, %v3873
        %v3879 = vmul.f32 %v1043, %v3877
        %v3880 = vadd.f32 %v3868, %v3878
        %v3881 = vadd.f32 %v3869, %v3879
        %v3882 = vlaneseq
        %v3883 = vshrl.u32 %v3882, 7
        %v3884 = vsub.s32 5, %v3883
        %v3885 = vrot.slane %v3720, %v3884
        %v3886 = vlaneseq
        %v3887 = vshrl.u32 %v3886, 7
        %v3888 = vsub.s32 5, %v3887
        %v3889 = vrot.slane %v3721, %v3888
        %v3890 = vmul.f32 %v1060, %v3885
        %v3891 = vmul.f32 %v1060, %v3889
        %v3892 = vadd.f32 %v3880, %v3890
        %v3893 = vadd.f32 %v3881, %v3891
        %v3894 = vlaneseq
        %v3895 = vshrl.u32 %v3894, 7
        %v3896 = vsub.s32 6, %v3895
        %v3897 = vrot.slane %v3720, %v3896
        %v3898 = vlaneseq
        %v3899 = vshrl.u32 %v3898, 7
        %v3900 = vsub.s32 6, %v3899
        %v3901 = vrot.slane %v3721, %v3900
        %v3902 = vmul.f32 %v1077, %v3897
        %v3903 = vmul.f32 %v1077, %v3901
        %v3904 = vadd.f32 %v3892, %v3902
        %v3905 = vadd.f32 %v3893, %v3903
        %v3906 = vlaneseq
        %v3907 = vshrl.u32 %v3906, 7
        %v3908 = vsub.s32 7, %v3907
        %v3909 = vrot.slane %v3720, %v3908
        %v3910 = vlaneseq
        %v3911 = vshrl.u32 %v3910, 7
        %v3912 = vsub.s32 7, %v3911
        %v3913 = vrot.slane %v3721, %v3912
        %v3914 = vmul.f32 %v1094, %v3909
        %v3915 = vmul.f32 %v1094, %v3913
        %v3916 = vadd.f32 %v3904, %v3914
        %v3917 = vadd.f32 %v3905, %v3915
        %v3918 = vlaneseq
        %v3919 = vshrl.u32 %v3918, 7
        %v3920 = vsub.s32 0, %v3919
        %v3921 = vrot.slane %v3722, %v3920
        %v3922 = vlaneseq
        %v3923 = vshrl.u32 %v3922, 7
        %v3924 = vsub.s32 0, %v3923
        %v3925 = vrot.slane %v3723, %v3924
        %v3926 = vmul.f32 %v1111, %v3921
        %v3927 = vmul.f32 %v1111, %v3925
        %v3928 = vadd.f32 %v3916, %v3926
        %v3929 = vadd.f32 %v3917, %v3927
        %v3930 = vlaneseq
        %v3931 = vshrl.u32 %v3930, 7
        %v3932 = vsub.s32 1, %v3931
        %v3933 = vrot.slane %v3722, %v3932
        %v3934 = vlaneseq
        %v3935 = vshrl.u32 %v3934, 7
        %v3936 = vsub.s32 1, %v3935
        %v3937 = vrot.slane %v3723, %v3936
        %v3938 = vmul.f32 %v1128, %v3933
        %v3939 = vmul.f32 %v1128, %v3937
        %v3940 = vadd.f32 %v3928, %v3938
        %v3941 = vadd.f32 %v3929, %v3939
        %v3942 = vlaneseq
        %v3943 = vshrl.u32 %v3942, 7
        %v3944 = vsub.s32 2, %v3943
        %v3945 = vrot.slane %v3722, %v3944
        %v3946 = vlaneseq
        %v3947 = vshrl.u32 %v3946, 7
        %v3948 = vsub.s32 2, %v3947
        %v3949 = vrot.slane %v3723, %v3948
        %v3950 = vmul.f32 %v1145, %v3945
        %v3951 = vmul.f32 %v1145, %v3949
        %v3952 = vadd.f32 %v3940, %v3950
        %v3953 = vadd.f32 %v3941, %v3951
        %v3954 = vlaneseq
        %v3955 = vshrl.u32 %v3954, 7
        %v3956 = vsub.s32 3, %v3955
        %v3957 = vrot.slane %v3722, %v3956
        %v3958 = vlaneseq
        %v3959 = vshrl.u32 %v3958, 7
        %v3960 = vsub.s32 3, %v3959
        %v3961 = vrot.slane %v3723, %v3960
        %v3962 = vmul.f32 %v1162, %v3957
        %v3963 = vmul.f32 %v1162, %v3961
        %v3964 = vadd.f32 %v3952, %v3962
        %v3965 = vadd.f32 %v3953, %v3963
        %v3966 = vlaneseq
        %v3967 = vshrl.u32 %v3966, 7
        %v3968 = vsub.s32 4, %v3967
        %v3969 = vrot.slane %v3722, %v3968
        %v3970 = vlaneseq
        %v3971 = vshrl.u32 %v3970, 7
        %v3972 = vsub.s32 4, %v3971
        %v3973 = vrot.slane %v3723, %v3972
        %v3974 = vmul.f32 %v1179, %v3969
        %v3975 = vmul.f32 %v1179, %v3973
        %v3976 = vadd.f32 %v3964, %v3974
        %v3977 = vadd.f32 %v3965, %v3975
        %v3978 = vlaneseq
        %v3979 = vshrl.u32 %v3978, 7
        %v3980 = vsub.s32 5, %v3979
        %v3981 = vrot.slane %v3722, %v3980
        %v3982 = vlaneseq
        %v3983 = vshrl.u32 %v3982, 7
        %v3984 = vsub.s32 5, %v3983
        %v3985 = vrot.slane %v3723, %v3984
        %v3986 = vmul.f32 %v1196, %v3981
        %v3987 = vmul.f32 %v1196, %v3985
        %v3988 = vadd.f32 %v3976, %v3986
        %v3989 = vadd.f32 %v3977, %v3987
        %v3990 = vlaneseq
        %v3991 = vshrl.u32 %v3990, 7
        %v3992 = vsub.s32 6, %v3991
        %v3993 = vrot.slane %v3722, %v3992
        %v3994 = vlaneseq
        %v3995 = vshrl.u32 %v3994, 7
        %v3996 = vsub.s32 6, %v3995
        %v3997 = vrot.slane %v3723, %v3996
        %v3998 = vmul.f32 %v1213, %v3993
        %v3999 = vmul.f32 %v1213, %v3997
        %v4000 = vadd.f32 %v3988, %v3998
        %v4001 = vadd.f32 %v3989, %v3999
        %v4002 = vlaneseq
        %v4003 = vshrl.u32 %v4002, 7
        %v4004 = vsub.s32 7, %v4003
        %v4005 = vrot.slane %v3722, %v4004
        %v4006 = vlaneseq
        %v4007 = vshrl.u32 %v4006, 7
        %v4008 = vsub.s32 7, %v4007
        %v4009 = vrot.slane %v3723, %v4008
        %v4010 = vmul.f32 %v1230, %v4005
        %v4011 = vmul.f32 %v1230, %v4009
        %v4012 = vadd.f32 %v4000, %v4010
        %v4013 = vadd.f32 %v4001, %v4011
        %v4014 = vlaneseq
        %v4015 = vshrl.u32 %v4014, 7
        %v4016 = vsub.s32 0, %v4015
        %v4017 = vrot.slane %v3724, %v4016
        %v4018 = vlaneseq
        %v4019 = vshrl.u32 %v4018, 7
        %v4020 = vsub.s32 0, %v4019
        %v4021 = vrot.slane %v3725, %v4020
        %v4022 = vmul.f32 %v1247, %v4017
        %v4023 = vmul.f32 %v1247, %v4021
        %v4024 = vadd.f32 %v4012, %v4022
        %v4025 = vadd.f32 %v4013, %v4023
        %v4026 = vlaneseq
        %v4027 = vshrl.u32 %v4026, 7
        %v4028 = vsub.s32 1, %v4027
        %v4029 = vrot.slane %v3724, %v4028
        %v4030 = vlaneseq
        %v4031 = vshrl.u32 %v4030, 7
        %v4032 = vsub.s32 1, %v4031
        %v4033 = vrot.slane %v3725, %v4032
        %v4034 = vmul.f32 %v1264, %v4029
        %v4035 = vmul.f32 %v1264, %v4033
        %v4036 = vadd.f32 %v4024, %v4034
        %v4037 = vadd.f32 %v4025, %v4035
        %v4038 = vlaneseq
        %v4039 = vshrl.u32 %v4038, 7
        %v4040 = vsub.s32 2, %v4039
        %v4041 = vrot.slane %v3724, %v4040
        %v4042 = vlaneseq
        %v4043 = vshrl.u32 %v4042, 7
        %v4044 = vsub.s32 2, %v4043
        %v4045 = vrot.slane %v3725, %v4044
        %v4046 = vmul.f32 %v1281, %v4041
        %v4047 = vmul.f32 %v1281, %v4045
        %v4048 = vadd.f32 %v4036, %v4046
        %v4049 = vadd.f32 %v4037, %v4047
        %v4050 = vlaneseq
        %v4051 = vshrl.u32 %v4050, 7
        %v4052 = vsub.s32 3, %v4051
        %v4053 = vrot.slane %v3724, %v4052
        %v4054 = vlaneseq
        %v4055 = vshrl.u32 %v4054, 7
        %v4056 = vsub.s32 3, %v4055
        %v4057 = vrot.slane %v3725, %v4056
        %v4058 = vmul.f32 %v1298, %v4053
        %v4059 = vmul.f32 %v1298, %v4057
        %v4060 = vadd.f32 %v4048, %v4058
        %v4061 = vadd.f32 %v4049, %v4059
        %v4062 = vlaneseq
        %v4063 = vshrl.u32 %v4062, 7
        %v4064 = vsub.s32 4, %v4063
        %v4065 = vrot.slane %v3724, %v4064
        %v4066 = vlaneseq
        %v4067 = vshrl.u32 %v4066, 7
        %v4068 = vsub.s32 4, %v4067
        %v4069 = vrot.slane %v3725, %v4068
        %v4070 = vmul.f32 %v1315, %v4065
        %v4071 = vmul.f32 %v1315, %v4069
        %v4072 = vadd.f32 %v4060, %v4070
        %v4073 = vadd.f32 %v4061, %v4071
        %v4074 = vlaneseq
        %v4075 = vshrl.u32 %v4074, 7
        %v4076 = vsub.s32 5, %v4075
        %v4077 = vrot.slane %v3724, %v4076
        %v4078 = vlaneseq
        %v4079 = vshrl.u32 %v4078, 7
        %v4080 = vsub.s32 5, %v4079
        %v4081 = vrot.slane %v3725, %v4080
        %v4082 = vmul.f32 %v1332, %v4077
        %v4083 = vmul.f32 %v1332, %v4081
        %v4084 = vadd.f32 %v4072, %v4082
        %v4085 = vadd.f32 %v4073, %v4083
        %v4086 = vlaneseq
        %v4087 = vshrl.u32 %v4086, 7
        %v4088 = vsub.s32 6, %v4087
        %v4089 = vrot.slane %v3724, %v4088
        %v4090 = vlaneseq
        %v4091 = vshrl.u32 %v4090, 7
        %v4092 = vsub.s32 6, %v4091
        %v4093 = vrot.slane %v3725, %v4092
        %v4094 = vmul.f32 %v1349, %v4089
        %v4095 = vmul.f32 %v1349, %v4093
        %v4096 = vadd.f32 %v4084, %v4094
        %v4097 = vadd.f32 %v4085, %v4095
        %v4098 = vlaneseq
        %v4099 = vshrl.u32 %v4098, 7
        %v4100 = vsub.s32 7, %v4099
        %v4101 = vrot.slane %v3724, %v4100
        %v4102 = vlaneseq
        %v4103 = vshrl.u32 %v4102, 7
        %v4104 = vsub.s32 7, %v4103
        %v4105 = vrot.slane %v3725, %v4104
        %v4106 = vmul.f32 %v1366, %v4101
        %v4107 = vmul.f32 %v1366, %v4105
        %v4108 = vadd.f32 %v4096, %v4106
        %v4109 = vadd.f32 %v4097, %v4107
        %s4110 = sld [smem:[#allocation2 + $0x2]]
        %v4111 = vstv %s4110
        %v4112 = vmul.f32 %v3581, %v4111
        %s4113 = sld [smem:[#allocation5 + $0x2]]
        %v4114 = vstv %s4113
        %v4115 = vmul.f32 %v4114, %v4108
        %v4116 = vmul.f32 %v4114, %v4109
        %v4119 = vcombine.low %v4115, %v4116
        %v4121 = vsub.f32 %v4112, %v4119
        %s4122 = sld [smem:[#allocation7 + $0x2]]
        %s4123 = scalar_lea.vmem %s486, 16 [#allocation9]
        %v4124 = vld [vmem:[%s4123] sm:$0x77]
        %v4125 = vstv %s4122
        %v4126 = vmul.f32 %v4125, %v4124
        %v4127 = vadd.f32 %v4121, %v4126
        %s4128 = scalar_lea.vmem %s6, 32
        %v4129 = vld [vmem:[%s4128] sm:$0xff]
        %v4130 = vld [vmem:[%s4128 + $0x8] sm:$0xff]
        %v4131 = vld [vmem:[%s4128 + $0x10] sm:$0xff]
        %v4132 = vld [vmem:[%s4128 + $0x18] sm:$0xff]
        %4134 = vset.pattern.permute.xlu0 0
        %4135 = vperm.xlu0 %4134, %v4129
        %v4136 = vpop.permute.xlu0 %4135
        %4139 = vset.pattern.permute.xlu0 0
        %4140 = vperm.xlu0 %4139, %v4130
        %v4141 = vpop.permute.xlu0 %4140
        %4144 = vset.pattern.permute.xlu0 0
        %4145 = vperm.xlu0 %4144, %v4131
        %v4146 = vpop.permute.xlu0 %4145
        %4149 = vset.pattern.permute.xlu0 0
        %4150 = vperm.xlu0 %4149, %v4132
        %v4151 = vpop.permute.xlu0 %4150
        %v4153 = vadd.f32 %v541, %v4136
        %v4154 = vadd.f32 %v542, %v4136
        %v4155 = vadd.f32 %v543, %v4141
        %v4156 = vadd.f32 %v544, %v4141
        %v4157 = vadd.f32 %v545, %v4146
        %v4158 = vadd.f32 %v546, %v4146
        %v4159 = vadd.f32 %v547, %v4151
        %v4160 = vadd.f32 %v548, %v4151
        %v4162 = vlaneseq
        %v4163 = vshrl.u32 %v4162, 7
        %v4164 = vsub.s32 0, %v4163
        %v4165 = vrot.slane %v4127, %v4164
        %v4166 = vlaneseq
        %v4167 = vshrl.u32 %v4166, 7
        %v4168 = vsub.s32 4, %v4167
        %v4169 = vrot.slane %v4127, %v4168
        %v4172 = vlaneseq
        %v4173 = vshrl.u32 %v4172, 7
        %v4174 = vsub.s32 0, %v4173
        %v4175 = vrot.slane %v4165, %v4174
        %v4176 = vlaneseq
        %v4177 = vshrl.u32 %v4176, 7
        %v4178 = vsub.s32 0, %v4177
        %v4179 = vrot.slane %v4169, %v4178
        %v4180 = vmul.f32 %v663, %v4175
        %v4181 = vmul.f32 %v663, %v4179
        %v4182 = vmul.f32 %v668, %v4175
        %v4183 = vmul.f32 %v668, %v4179
        %v4184 = vmul.f32 %v673, %v4175
        %v4185 = vmul.f32 %v673, %v4179
        %v4186 = vmul.f32 %v678, %v4175
        %v4187 = vmul.f32 %v678, %v4179
        %v4188 = vadd.f32 %v4153, %v4180
        %v4189 = vadd.f32 %v4154, %v4181
        %v4190 = vadd.f32 %v4155, %v4182
        %v4191 = vadd.f32 %v4156, %v4183
        %v4192 = vadd.f32 %v4157, %v4184
        %v4193 = vadd.f32 %v4158, %v4185
        %v4194 = vadd.f32 %v4159, %v4186
        %v4195 = vadd.f32 %v4160, %v4187
        %v4196 = vlaneseq
        %v4197 = vshrl.u32 %v4196, 7
        %v4198 = vsub.s32 1, %v4197
        %v4199 = vrot.slane %v4127, %v4198
        %v4200 = vlaneseq
        %v4201 = vshrl.u32 %v4200, 7
        %v4202 = vsub.s32 5, %v4201
        %v4203 = vrot.slane %v4127, %v4202
        %v4206 = vlaneseq
        %v4207 = vshrl.u32 %v4206, 7
        %v4208 = vsub.s32 1, %v4207
        %v4209 = vrot.slane %v4199, %v4208
        %v4210 = vlaneseq
        %v4211 = vshrl.u32 %v4210, 7
        %v4212 = vsub.s32 1, %v4211
        %v4213 = vrot.slane %v4203, %v4212
        %v4214 = vmul.f32 %v718, %v4209
        %v4215 = vmul.f32 %v718, %v4213
        %v4216 = vmul.f32 %v723, %v4209
        %v4217 = vmul.f32 %v723, %v4213
        %v4218 = vmul.f32 %v728, %v4209
        %v4219 = vmul.f32 %v728, %v4213
        %v4220 = vmul.f32 %v733, %v4209
        %v4221 = vmul.f32 %v733, %v4213
        %v4222 = vadd.f32 %v4188, %v4214
        %v4223 = vadd.f32 %v4189, %v4215
        %v4224 = vadd.f32 %v4190, %v4216
        %v4225 = vadd.f32 %v4191, %v4217
        %v4226 = vadd.f32 %v4192, %v4218
        %v4227 = vadd.f32 %v4193, %v4219
        %v4228 = vadd.f32 %v4194, %v4220
        %v4229 = vadd.f32 %v4195, %v4221
        %v4230 = vlaneseq
        %v4231 = vshrl.u32 %v4230, 7
        %v4232 = vsub.s32 2, %v4231
        %v4233 = vrot.slane %v4127, %v4232
        %v4234 = vlaneseq
        %v4235 = vshrl.u32 %v4234, 7
        %v4236 = vsub.s32 6, %v4235
        %v4237 = vrot.slane %v4127, %v4236
        %v4240 = vlaneseq
        %v4241 = vshrl.u32 %v4240, 7
        %v4242 = vsub.s32 2, %v4241
        %v4243 = vrot.slane %v4233, %v4242
        %v4244 = vlaneseq
        %v4245 = vshrl.u32 %v4244, 7
        %v4246 = vsub.s32 2, %v4245
        %v4247 = vrot.slane %v4237, %v4246
        %v4248 = vmul.f32 %v772, %v4243
        %v4249 = vmul.f32 %v772, %v4247
        %v4250 = vmul.f32 %v777, %v4243
        %v4251 = vmul.f32 %v777, %v4247
        %v4252 = vmul.f32 %v782, %v4243
        %v4253 = vmul.f32 %v782, %v4247
        %v4254 = vmul.f32 %v787, %v4243
        %v4255 = vmul.f32 %v787, %v4247
        %v4256 = vadd.f32 %v4222, %v4248
        %v4257 = vadd.f32 %v4223, %v4249
        %v4258 = vadd.f32 %v4224, %v4250
        %v4259 = vadd.f32 %v4225, %v4251
        %v4260 = vadd.f32 %v4226, %v4252
        %v4261 = vadd.f32 %v4227, %v4253
        %v4262 = vadd.f32 %v4228, %v4254
        %v4263 = vadd.f32 %v4229, %v4255
        %v4264 = vmax.f32 %v4256, 0.0
        %v4265 = vmax.f32 %v4257, 0.0
        %v4266 = vmax.f32 %v4258, 0.0
        %v4267 = vmax.f32 %v4259, 0.0
        %v4268 = vmax.f32 %v4260, 0.0
        %v4269 = vmax.f32 %v4261, 0.0
        %v4270 = vmax.f32 %v4262, 0.0
        %v4271 = vmax.f32 %v4263, 0.0
        %v4272 = vlaneseq
        %v4273 = vshrl.u32 %v4272, 7
        %v4274 = vsub.s32 0, %v4273
        %v4275 = vrot.slane %v4264, %v4274
        %v4276 = vlaneseq
        %v4277 = vshrl.u32 %v4276, 7
        %v4278 = vsub.s32 0, %v4277
        %v4279 = vrot.slane %v4265, %v4278
        %v4280 = vmul.f32 %v834, %v4275
        %v4281 = vmul.f32 %v834, %v4279
        %v4282 = vadd.f32 %v849, %v4280
        %v4283 = vadd.f32 %v849, %v4281
        %v4284 = vlaneseq
        %v4285 = vshrl.u32 %v4284, 7
        %v4286 = vsub.s32 1, %v4285
        %v4287 = vrot.slane %v4264, %v4286
        %v4288 = vlaneseq
        %v4289 = vshrl.u32 %v4288, 7
        %v4290 = vsub.s32 1, %v4289
        %v4291 = vrot.slane %v4265, %v4290
        %v4292 = vmul.f32 %v856, %v4287
        %v4293 = vmul.f32 %v856, %v4291
        %v4294 = vadd.f32 %v4282, %v4292
        %v4295 = vadd.f32 %v4283, %v4293
        %v4296 = vlaneseq
        %v4297 = vshrl.u32 %v4296, 7
        %v4298 = vsub.s32 2, %v4297
        %v4299 = vrot.slane %v4264, %v4298
        %v4300 = vlaneseq
        %v4301 = vshrl.u32 %v4300, 7
        %v4302 = vsub.s32 2, %v4301
        %v4303 = vrot.slane %v4265, %v4302
        %v4304 = vmul.f32 %v873, %v4299
        %v4305 = vmul.f32 %v873, %v4303
        %v4306 = vadd.f32 %v4294, %v4304
        %v4307 = vadd.f32 %v4295, %v4305
        %v4308 = vlaneseq
        %v4309 = vshrl.u32 %v4308, 7
        %v4310 = vsub.s32 3, %v4309
        %v4311 = vrot.slane %v4264, %v4310
        %v4312 = vlaneseq
        %v4313 = vshrl.u32 %v4312, 7
        %v4314 = vsub.s32 3, %v4313
        %v4315 = vrot.slane %v4265, %v4314
        %v4316 = vmul.f32 %v890, %v4311
        %v4317 = vmul.f32 %v890, %v4315
        %v4318 = vadd.f32 %v4306, %v4316
        %v4319 = vadd.f32 %v4307, %v4317
        %v4320 = vlaneseq
        %v4321 = vshrl.u32 %v4320, 7
        %v4322 = vsub.s32 4, %v4321
        %v4323 = vrot.slane %v4264, %v4322
        %v4324 = vlaneseq
        %v4325 = vshrl.u32 %v4324, 7
        %v4326 = vsub.s32 4, %v4325
        %v4327 = vrot.slane %v4265, %v4326
        %v4328 = vmul.f32 %v907, %v4323
        %v4329 = vmul.f32 %v907, %v4327
        %v4330 = vadd.f32 %v4318, %v4328
        %v4331 = vadd.f32 %v4319, %v4329
        %v4332 = vlaneseq
        %v4333 = vshrl.u32 %v4332, 7
        %v4334 = vsub.s32 5, %v4333
        %v4335 = vrot.slane %v4264, %v4334
        %v4336 = vlaneseq
        %v4337 = vshrl.u32 %v4336, 7
        %v4338 = vsub.s32 5, %v4337
        %v4339 = vrot.slane %v4265, %v4338
        %v4340 = vmul.f32 %v924, %v4335
        %v4341 = vmul.f32 %v924, %v4339
        %v4342 = vadd.f32 %v4330, %v4340
        %v4343 = vadd.f32 %v4331, %v4341
        %v4344 = vlaneseq
        %v4345 = vshrl.u32 %v4344, 7
        %v4346 = vsub.s32 6, %v4345
        %v4347 = vrot.slane %v4264, %v4346
        %v4348 = vlaneseq
        %v4349 = vshrl.u32 %v4348, 7
        %v4350 = vsub.s32 6, %v4349
        %v4351 = vrot.slane %v4265, %v4350
        %v4352 = vmul.f32 %v941, %v4347
        %v4353 = vmul.f32 %v941, %v4351
        %v4354 = vadd.f32 %v4342, %v4352
        %v4355 = vadd.f32 %v4343, %v4353
        %v4356 = vlaneseq
        %v4357 = vshrl.u32 %v4356, 7
        %v4358 = vsub.s32 7, %v4357
        %v4359 = vrot.slane %v4264, %v4358
        %v4360 = vlaneseq
        %v4361 = vshrl.u32 %v4360, 7
        %v4362 = vsub.s32 7, %v4361
        %v4363 = vrot.slane %v4265, %v4362
        %v4364 = vmul.f32 %v958, %v4359
        %v4365 = vmul.f32 %v958, %v4363
        %v4366 = vadd.f32 %v4354, %v4364
        %v4367 = vadd.f32 %v4355, %v4365
        %v4368 = vlaneseq
        %v4369 = vshrl.u32 %v4368, 7
        %v4370 = vsub.s32 0, %v4369
        %v4371 = vrot.slane %v4266, %v4370
        %v4372 = vlaneseq
        %v4373 = vshrl.u32 %v4372, 7
        %v4374 = vsub.s32 0, %v4373
        %v4375 = vrot.slane %v4267, %v4374
        %v4376 = vmul.f32 %v975, %v4371
        %v4377 = vmul.f32 %v975, %v4375
        %v4378 = vadd.f32 %v4366, %v4376
        %v4379 = vadd.f32 %v4367, %v4377
        %v4380 = vlaneseq
        %v4381 = vshrl.u32 %v4380, 7
        %v4382 = vsub.s32 1, %v4381
        %v4383 = vrot.slane %v4266, %v4382
        %v4384 = vlaneseq
        %v4385 = vshrl.u32 %v4384, 7
        %v4386 = vsub.s32 1, %v4385
        %v4387 = vrot.slane %v4267, %v4386
        %v4388 = vmul.f32 %v992, %v4383
        %v4389 = vmul.f32 %v992, %v4387
        %v4390 = vadd.f32 %v4378, %v4388
        %v4391 = vadd.f32 %v4379, %v4389
        %v4392 = vlaneseq
        %v4393 = vshrl.u32 %v4392, 7
        %v4394 = vsub.s32 2, %v4393
        %v4395 = vrot.slane %v4266, %v4394
        %v4396 = vlaneseq
        %v4397 = vshrl.u32 %v4396, 7
        %v4398 = vsub.s32 2, %v4397
        %v4399 = vrot.slane %v4267, %v4398
        %v4400 = vmul.f32 %v1009, %v4395
        %v4401 = vmul.f32 %v1009, %v4399
        %v4402 = vadd.f32 %v4390, %v4400
        %v4403 = vadd.f32 %v4391, %v4401
        %v4404 = vlaneseq
        %v4405 = vshrl.u32 %v4404, 7
        %v4406 = vsub.s32 3, %v4405
        %v4407 = vrot.slane %v4266, %v4406
        %v4408 = vlaneseq
        %v4409 = vshrl.u32 %v4408, 7
        %v4410 = vsub.s32 3, %v4409
        %v4411 = vrot.slane %v4267, %v4410
        %v4412 = vmul.f32 %v1026, %v4407
        %v4413 = vmul.f32 %v1026, %v4411
        %v4414 = vadd.f32 %v4402, %v4412
        %v4415 = vadd.f32 %v4403, %v4413
        %v4416 = vlaneseq
        %v4417 = vshrl.u32 %v4416, 7
        %v4418 = vsub.s32 4, %v4417
        %v4419 = vrot.slane %v4266, %v4418
        %v4420 = vlaneseq
        %v4421 = vshrl.u32 %v4420, 7
        %v4422 = vsub.s32 4, %v4421
        %v4423 = vrot.slane %v4267, %v4422
        %v4424 = vmul.f32 %v1043, %v4419
        %v4425 = vmul.f32 %v1043, %v4423
        %v4426 = vadd.f32 %v4414, %v4424
        %v4427 = vadd.f32 %v4415, %v4425
        %v4428 = vlaneseq
        %v4429 = vshrl.u32 %v4428, 7
        %v4430 = vsub.s32 5, %v4429
        %v4431 = vrot.slane %v4266, %v4430
        %v4432 = vlaneseq
        %v4433 = vshrl.u32 %v4432, 7
        %v4434 = vsub.s32 5, %v4433
        %v4435 = vrot.slane %v4267, %v4434
        %v4436 = vmul.f32 %v1060, %v4431
        %v4437 = vmul.f32 %v1060, %v4435
        %v4438 = vadd.f32 %v4426, %v4436
        %v4439 = vadd.f32 %v4427, %v4437
        %v4440 = vlaneseq
        %v4441 = vshrl.u32 %v4440, 7
        %v4442 = vsub.s32 6, %v4441
        %v4443 = vrot.slane %v4266, %v4442
        %v4444 = vlaneseq
        %v4445 = vshrl.u32 %v4444, 7
        %v4446 = vsub.s32 6, %v4445
        %v4447 = vrot.slane %v4267, %v4446
        %v4448 = vmul.f32 %v1077, %v4443
        %v4449 = vmul.f32 %v1077, %v4447
        %v4450 = vadd.f32 %v4438, %v4448
        %v4451 = vadd.f32 %v4439, %v4449
        %v4452 = vlaneseq
        %v4453 = vshrl.u32 %v4452, 7
        %v4454 = vsub.s32 7, %v4453
        %v4455 = vrot.slane %v4266, %v4454
        %v4456 = vlaneseq
        %v4457 = vshrl.u32 %v4456, 7
        %v4458 = vsub.s32 7, %v4457
        %v4459 = vrot.slane %v4267, %v4458
        %v4460 = vmul.f32 %v1094, %v4455
        %v4461 = vmul.f32 %v1094, %v4459
        %v4462 = vadd.f32 %v4450, %v4460
        %v4463 = vadd.f32 %v4451, %v4461
        %v4464 = vlaneseq
        %v4465 = vshrl.u32 %v4464, 7
        %v4466 = vsub.s32 0, %v4465
        %v4467 = vrot.slane %v4268, %v4466
        %v4468 = vlaneseq
        %v4469 = vshrl.u32 %v4468, 7
        %v4470 = vsub.s32 0, %v4469
        %v4471 = vrot.slane %v4269, %v4470
        %v4472 = vmul.f32 %v1111, %v4467
        %v4473 = vmul.f32 %v1111, %v4471
        %v4474 = vadd.f32 %v4462, %v4472
        %v4475 = vadd.f32 %v4463, %v4473
        %v4476 = vlaneseq
        %v4477 = vshrl.u32 %v4476, 7
        %v4478 = vsub.s32 1, %v4477
        %v4479 = vrot.slane %v4268, %v4478
        %v4480 = vlaneseq
        %v4481 = vshrl.u32 %v4480, 7
        %v4482 = vsub.s32 1, %v4481
        %v4483 = vrot.slane %v4269, %v4482
        %v4484 = vmul.f32 %v1128, %v4479
        %v4485 = vmul.f32 %v1128, %v4483
        %v4486 = vadd.f32 %v4474, %v4484
        %v4487 = vadd.f32 %v4475, %v4485
        %v4488 = vlaneseq
        %v4489 = vshrl.u32 %v4488, 7
        %v4490 = vsub.s32 2, %v4489
        %v4491 = vrot.slane %v4268, %v4490
        %v4492 = vlaneseq
        %v4493 = vshrl.u32 %v4492, 7
        %v4494 = vsub.s32 2, %v4493
        %v4495 = vrot.slane %v4269, %v4494
        %v4496 = vmul.f32 %v1145, %v4491
        %v4497 = vmul.f32 %v1145, %v4495
        %v4498 = vadd.f32 %v4486, %v4496
        %v4499 = vadd.f32 %v4487, %v4497
        %v4500 = vlaneseq
        %v4501 = vshrl.u32 %v4500, 7
        %v4502 = vsub.s32 3, %v4501
        %v4503 = vrot.slane %v4268, %v4502
        %v4504 = vlaneseq
        %v4505 = vshrl.u32 %v4504, 7
        %v4506 = vsub.s32 3, %v4505
        %v4507 = vrot.slane %v4269, %v4506
        %v4508 = vmul.f32 %v1162, %v4503
        %v4509 = vmul.f32 %v1162, %v4507
        %v4510 = vadd.f32 %v4498, %v4508
        %v4511 = vadd.f32 %v4499, %v4509
        %v4512 = vlaneseq
        %v4513 = vshrl.u32 %v4512, 7
        %v4514 = vsub.s32 4, %v4513
        %v4515 = vrot.slane %v4268, %v4514
        %v4516 = vlaneseq
        %v4517 = vshrl.u32 %v4516, 7
        %v4518 = vsub.s32 4, %v4517
        %v4519 = vrot.slane %v4269, %v4518
        %v4520 = vmul.f32 %v1179, %v4515
        %v4521 = vmul.f32 %v1179, %v4519
        %v4522 = vadd.f32 %v4510, %v4520
        %v4523 = vadd.f32 %v4511, %v4521
        %v4524 = vlaneseq
        %v4525 = vshrl.u32 %v4524, 7
        %v4526 = vsub.s32 5, %v4525
        %v4527 = vrot.slane %v4268, %v4526
        %v4528 = vlaneseq
        %v4529 = vshrl.u32 %v4528, 7
        %v4530 = vsub.s32 5, %v4529
        %v4531 = vrot.slane %v4269, %v4530
        %v4532 = vmul.f32 %v1196, %v4527
        %v4533 = vmul.f32 %v1196, %v4531
        %v4534 = vadd.f32 %v4522, %v4532
        %v4535 = vadd.f32 %v4523, %v4533
        %v4536 = vlaneseq
        %v4537 = vshrl.u32 %v4536, 7
        %v4538 = vsub.s32 6, %v4537
        %v4539 = vrot.slane %v4268, %v4538
        %v4540 = vlaneseq
        %v4541 = vshrl.u32 %v4540, 7
        %v4542 = vsub.s32 6, %v4541
        %v4543 = vrot.slane %v4269, %v4542
        %v4544 = vmul.f32 %v1213, %v4539
        %v4545 = vmul.f32 %v1213, %v4543
        %v4546 = vadd.f32 %v4534, %v4544
        %v4547 = vadd.f32 %v4535, %v4545
        %v4548 = vlaneseq
        %v4549 = vshrl.u32 %v4548, 7
        %v4550 = vsub.s32 7, %v4549
        %v4551 = vrot.slane %v4268, %v4550
        %v4552 = vlaneseq
        %v4553 = vshrl.u32 %v4552, 7
        %v4554 = vsub.s32 7, %v4553
        %v4555 = vrot.slane %v4269, %v4554
        %v4556 = vmul.f32 %v1230, %v4551
        %v4557 = vmul.f32 %v1230, %v4555
        %v4558 = vadd.f32 %v4546, %v4556
        %v4559 = vadd.f32 %v4547, %v4557
        %v4560 = vlaneseq
        %v4561 = vshrl.u32 %v4560, 7
        %v4562 = vsub.s32 0, %v4561
        %v4563 = vrot.slane %v4270, %v4562
        %v4564 = vlaneseq
        %v4565 = vshrl.u32 %v4564, 7
        %v4566 = vsub.s32 0, %v4565
        %v4567 = vrot.slane %v4271, %v4566
        %v4568 = vmul.f32 %v1247, %v4563
        %v4569 = vmul.f32 %v1247, %v4567
        %v4570 = vadd.f32 %v4558, %v4568
        %v4571 = vadd.f32 %v4559, %v4569
        %v4572 = vlaneseq
        %v4573 = vshrl.u32 %v4572, 7
        %v4574 = vsub.s32 1, %v4573
        %v4575 = vrot.slane %v4270, %v4574
        %v4576 = vlaneseq
        %v4577 = vshrl.u32 %v4576, 7
        %v4578 = vsub.s32 1, %v4577
        %v4579 = vrot.slane %v4271, %v4578
        %v4580 = vmul.f32 %v1264, %v4575
        %v4581 = vmul.f32 %v1264, %v4579
        %v4582 = vadd.f32 %v4570, %v4580
        %v4583 = vadd.f32 %v4571, %v4581
        %v4584 = vlaneseq
        %v4585 = vshrl.u32 %v4584, 7
        %v4586 = vsub.s32 2, %v4585
        %v4587 = vrot.slane %v4270, %v4586
        %v4588 = vlaneseq
        %v4589 = vshrl.u32 %v4588, 7
        %v4590 = vsub.s32 2, %v4589
        %v4591 = vrot.slane %v4271, %v4590
        %v4592 = vmul.f32 %v1281, %v4587
        %v4593 = vmul.f32 %v1281, %v4591
        %v4594 = vadd.f32 %v4582, %v4592
        %v4595 = vadd.f32 %v4583, %v4593
        %v4596 = vlaneseq
        %v4597 = vshrl.u32 %v4596, 7
        %v4598 = vsub.s32 3, %v4597
        %v4599 = vrot.slane %v4270, %v4598
        %v4600 = vlaneseq
        %v4601 = vshrl.u32 %v4600, 7
        %v4602 = vsub.s32 3, %v4601
        %v4603 = vrot.slane %v4271, %v4602
        %v4604 = vmul.f32 %v1298, %v4599
        %v4605 = vmul.f32 %v1298, %v4603
        %v4606 = vadd.f32 %v4594, %v4604
        %v4607 = vadd.f32 %v4595, %v4605
        %v4608 = vlaneseq
        %v4609 = vshrl.u32 %v4608, 7
        %v4610 = vsub.s32 4, %v4609
        %v4611 = vrot.slane %v4270, %v4610
        %v4612 = vlaneseq
        %v4613 = vshrl.u32 %v4612, 7
        %v4614 = vsub.s32 4, %v4613
        %v4615 = vrot.slane %v4271, %v4614
        %v4616 = vmul.f32 %v1315, %v4611
        %v4617 = vmul.f32 %v1315, %v4615
        %v4618 = vadd.f32 %v4606, %v4616
        %v4619 = vadd.f32 %v4607, %v4617
        %v4620 = vlaneseq
        %v4621 = vshrl.u32 %v4620, 7
        %v4622 = vsub.s32 5, %v4621
        %v4623 = vrot.slane %v4270, %v4622
        %v4624 = vlaneseq
        %v4625 = vshrl.u32 %v4624, 7
        %v4626 = vsub.s32 5, %v4625
        %v4627 = vrot.slane %v4271, %v4626
        %v4628 = vmul.f32 %v1332, %v4623
        %v4629 = vmul.f32 %v1332, %v4627
        %v4630 = vadd.f32 %v4618, %v4628
        %v4631 = vadd.f32 %v4619, %v4629
        %v4632 = vlaneseq
        %v4633 = vshrl.u32 %v4632, 7
        %v4634 = vsub.s32 6, %v4633
        %v4635 = vrot.slane %v4270, %v4634
        %v4636 = vlaneseq
        %v4637 = vshrl.u32 %v4636, 7
        %v4638 = vsub.s32 6, %v4637
        %v4639 = vrot.slane %v4271, %v4638
        %v4640 = vmul.f32 %v1349, %v4635
        %v4641 = vmul.f32 %v1349, %v4639
        %v4642 = vadd.f32 %v4630, %v4640
        %v4643 = vadd.f32 %v4631, %v4641
        %v4644 = vlaneseq
        %v4645 = vshrl.u32 %v4644, 7
        %v4646 = vsub.s32 7, %v4645
        %v4647 = vrot.slane %v4270, %v4646
        %v4648 = vlaneseq
        %v4649 = vshrl.u32 %v4648, 7
        %v4650 = vsub.s32 7, %v4649
        %v4651 = vrot.slane %v4271, %v4650
        %v4652 = vmul.f32 %v1366, %v4647
        %v4653 = vmul.f32 %v1366, %v4651
        %v4654 = vadd.f32 %v4642, %v4652
        %v4655 = vadd.f32 %v4643, %v4653
        %s4656 = sld [smem:[#allocation2 + $0x1]]
        %v4657 = vstv %s4656
        %v4658 = vmul.f32 %v4127, %v4657
        %s4659 = sld [smem:[#allocation5 + $0x1]]
        %v4660 = vstv %s4659
        %v4661 = vmul.f32 %v4660, %v4654
        %v4662 = vmul.f32 %v4660, %v4655
        %v4665 = vcombine.low %v4661, %v4662
        %v4667 = vsub.f32 %v4658, %v4665
        %s4668 = sld [smem:[#allocation7 + $0x1]]
        %s4669 = scalar_lea.vmem %s486, 8 [#allocation9]
        %v4670 = vld [vmem:[%s4669] sm:$0x77]
        %v4671 = vstv %s4668
        %v4672 = vmul.f32 %v4671, %v4670
        %v4673 = vadd.f32 %v4667, %v4672
        %v4674 = vld [vmem:[%s6] sm:$0xff]
        %v4675 = vld [vmem:[%s6 + $0x8] sm:$0xff]
        %v4676 = vld [vmem:[%s6 + $0x10] sm:$0xff]
        %v4677 = vld [vmem:[%s6 + $0x18] sm:$0xff]
        %4679 = vset.pattern.permute.xlu0 0
        %4680 = vperm.xlu0 %4679, %v4674
        %v4681 = vpop.permute.xlu0 %4680
        %4684 = vset.pattern.permute.xlu0 0
        %4685 = vperm.xlu0 %4684, %v4675
        %v4686 = vpop.permute.xlu0 %4685
        %4689 = vset.pattern.permute.xlu0 0
        %4690 = vperm.xlu0 %4689, %v4676
        %v4691 = vpop.permute.xlu0 %4690
        %4694 = vset.pattern.permute.xlu0 0
        %4695 = vperm.xlu0 %4694, %v4677
        %v4696 = vpop.permute.xlu0 %4695
        %v4698 = vadd.f32 %v541, %v4681
        %v4699 = vadd.f32 %v542, %v4681
        %v4700 = vadd.f32 %v543, %v4686
        %v4701 = vadd.f32 %v544, %v4686
        %v4702 = vadd.f32 %v545, %v4691
        %v4703 = vadd.f32 %v546, %v4691
        %v4704 = vadd.f32 %v547, %v4696
        %v4705 = vadd.f32 %v548, %v4696
        %v4707 = vlaneseq
        %v4708 = vshrl.u32 %v4707, 7
        %v4709 = vsub.s32 0, %v4708
        %v4710 = vrot.slane %v4673, %v4709
        %v4711 = vlaneseq
        %v4712 = vshrl.u32 %v4711, 7
        %v4713 = vsub.s32 4, %v4712
        %v4714 = vrot.slane %v4673, %v4713
        %v4717 = vlaneseq
        %v4718 = vshrl.u32 %v4717, 7
        %v4719 = vsub.s32 0, %v4718
        %v4720 = vrot.slane %v4710, %v4719
        %v4721 = vlaneseq
        %v4722 = vshrl.u32 %v4721, 7
        %v4723 = vsub.s32 0, %v4722
        %v4724 = vrot.slane %v4714, %v4723
        %v4725 = vmul.f32 %v663, %v4720
        %v4726 = vmul.f32 %v663, %v4724
        %v4727 = vmul.f32 %v668, %v4720
        %v4728 = vmul.f32 %v668, %v4724
        %v4729 = vmul.f32 %v673, %v4720
        %v4730 = vmul.f32 %v673, %v4724
        %v4731 = vmul.f32 %v678, %v4720
        %v4732 = vmul.f32 %v678, %v4724
        %v4733 = vadd.f32 %v4698, %v4725
        %v4734 = vadd.f32 %v4699, %v4726
        %v4735 = vadd.f32 %v4700, %v4727
        %v4736 = vadd.f32 %v4701, %v4728
        %v4737 = vadd.f32 %v4702, %v4729
        %v4738 = vadd.f32 %v4703, %v4730
        %v4739 = vadd.f32 %v4704, %v4731
        %v4740 = vadd.f32 %v4705, %v4732
        %v4741 = vlaneseq
        %v4742 = vshrl.u32 %v4741, 7
        %v4743 = vsub.s32 1, %v4742
        %v4744 = vrot.slane %v4673, %v4743
        %v4745 = vlaneseq
        %v4746 = vshrl.u32 %v4745, 7
        %v4747 = vsub.s32 5, %v4746
        %v4748 = vrot.slane %v4673, %v4747
        %v4751 = vlaneseq
        %v4752 = vshrl.u32 %v4751, 7
        %v4753 = vsub.s32 1, %v4752
        %v4754 = vrot.slane %v4744, %v4753
        %v4755 = vlaneseq
        %v4756 = vshrl.u32 %v4755, 7
        %v4757 = vsub.s32 1, %v4756
        %v4758 = vrot.slane %v4748, %v4757
        %v4759 = vmul.f32 %v718, %v4754
        %v4760 = vmul.f32 %v718, %v4758
        %v4761 = vmul.f32 %v723, %v4754
        %v4762 = vmul.f32 %v723, %v4758
        %v4763 = vmul.f32 %v728, %v4754
        %v4764 = vmul.f32 %v728, %v4758
        %v4765 = vmul.f32 %v733, %v4754
        %v4766 = vmul.f32 %v733, %v4758
        %v4767 = vadd.f32 %v4733, %v4759
        %v4768 = vadd.f32 %v4734, %v4760
        %v4769 = vadd.f32 %v4735, %v4761
        %v4770 = vadd.f32 %v4736, %v4762
        %v4771 = vadd.f32 %v4737, %v4763
        %v4772 = vadd.f32 %v4738, %v4764
        %v4773 = vadd.f32 %v4739, %v4765
        %v4774 = vadd.f32 %v4740, %v4766
        %v4775 = vlaneseq
        %v4776 = vshrl.u32 %v4775, 7
        %v4777 = vsub.s32 2, %v4776
        %v4778 = vrot.slane %v4673, %v4777
        %v4779 = vlaneseq
        %v4780 = vshrl.u32 %v4779, 7
        %v4781 = vsub.s32 6, %v4780
        %v4782 = vrot.slane %v4673, %v4781
        %v4785 = vlaneseq
        %v4786 = vshrl.u32 %v4785, 7
        %v4787 = vsub.s32 2, %v4786
        %v4788 = vrot.slane %v4778, %v4787
        %v4789 = vlaneseq
        %v4790 = vshrl.u32 %v4789, 7
        %v4791 = vsub.s32 2, %v4790
        %v4792 = vrot.slane %v4782, %v4791
        %v4793 = vmul.f32 %v772, %v4788
        %v4794 = vmul.f32 %v772, %v4792
        %v4795 = vmul.f32 %v777, %v4788
        %v4796 = vmul.f32 %v777, %v4792
        %v4797 = vmul.f32 %v782, %v4788
        %v4798 = vmul.f32 %v782, %v4792
        %v4799 = vmul.f32 %v787, %v4788
        %v4800 = vmul.f32 %v787, %v4792
        %v4801 = vadd.f32 %v4767, %v4793
        %v4802 = vadd.f32 %v4768, %v4794
        %v4803 = vadd.f32 %v4769, %v4795
        %v4804 = vadd.f32 %v4770, %v4796
        %v4805 = vadd.f32 %v4771, %v4797
        %v4806 = vadd.f32 %v4772, %v4798
        %v4807 = vadd.f32 %v4773, %v4799
        %v4808 = vadd.f32 %v4774, %v4800
        %v4809 = vmax.f32 %v4801, 0.0
        %v4810 = vmax.f32 %v4802, 0.0
        %v4811 = vmax.f32 %v4803, 0.0
        %v4812 = vmax.f32 %v4804, 0.0
        %v4813 = vmax.f32 %v4805, 0.0
        %v4814 = vmax.f32 %v4806, 0.0
        %v4815 = vmax.f32 %v4807, 0.0
        %v4816 = vmax.f32 %v4808, 0.0
        %v4817 = vlaneseq
        %v4818 = vshrl.u32 %v4817, 7
        %v4819 = vsub.s32 0, %v4818
        %v4820 = vrot.slane %v4809, %v4819
        %v4821 = vlaneseq
        %v4822 = vshrl.u32 %v4821, 7
        %v4823 = vsub.s32 0, %v4822
        %v4824 = vrot.slane %v4810, %v4823
        %v4825 = vmul.f32 %v834, %v4820
        %v4826 = vmul.f32 %v834, %v4824
        %v4827 = vadd.f32 %v849, %v4825
        %v4828 = vadd.f32 %v849, %v4826
        %v4829 = vlaneseq
        %v4830 = vshrl.u32 %v4829, 7
        %v4831 = vsub.s32 1, %v4830
        %v4832 = vrot.slane %v4809, %v4831
        %v4833 = vlaneseq
        %v4834 = vshrl.u32 %v4833, 7
        %v4835 = vsub.s32 1, %v4834
        %v4836 = vrot.slane %v4810, %v4835
        %v4837 = vmul.f32 %v856, %v4832
        %v4838 = vmul.f32 %v856, %v4836
        %v4839 = vadd.f32 %v4827, %v4837
        %v4840 = vadd.f32 %v4828, %v4838
        %v4841 = vlaneseq
        %v4842 = vshrl.u32 %v4841, 7
        %v4843 = vsub.s32 2, %v4842
        %v4844 = vrot.slane %v4809, %v4843
        %v4845 = vlaneseq
        %v4846 = vshrl.u32 %v4845, 7
        %v4847 = vsub.s32 2, %v4846
        %v4848 = vrot.slane %v4810, %v4847
        %v4849 = vmul.f32 %v873, %v4844
        %v4850 = vmul.f32 %v873, %v4848
        %v4851 = vadd.f32 %v4839, %v4849
        %v4852 = vadd.f32 %v4840, %v4850
        %v4853 = vlaneseq
        %v4854 = vshrl.u32 %v4853, 7
        %v4855 = vsub.s32 3, %v4854
        %v4856 = vrot.slane %v4809, %v4855
        %v4857 = vlaneseq
        %v4858 = vshrl.u32 %v4857, 7
        %v4859 = vsub.s32 3, %v4858
        %v4860 = vrot.slane %v4810, %v4859
        %v4861 = vmul.f32 %v890, %v4856
        %v4862 = vmul.f32 %v890, %v4860
        %v4863 = vadd.f32 %v4851, %v4861
        %v4864 = vadd.f32 %v4852, %v4862
        %v4865 = vlaneseq
        %v4866 = vshrl.u32 %v4865, 7
        %v4867 = vsub.s32 4, %v4866
        %v4868 = vrot.slane %v4809, %v4867
        %v4869 = vlaneseq
        %v4870 = vshrl.u32 %v4869, 7
        %v4871 = vsub.s32 4, %v4870
        %v4872 = vrot.slane %v4810, %v4871
        %v4873 = vmul.f32 %v907, %v4868
        %v4874 = vmul.f32 %v907, %v4872
        %v4875 = vadd.f32 %v4863, %v4873
        %v4876 = vadd.f32 %v4864, %v4874
        %v4877 = vlaneseq
        %v4878 = vshrl.u32 %v4877, 7
        %v4879 = vsub.s32 5, %v4878
        %v4880 = vrot.slane %v4809, %v4879
        %v4881 = vlaneseq
        %v4882 = vshrl.u32 %v4881, 7
        %v4883 = vsub.s32 5, %v4882
        %v4884 = vrot.slane %v4810, %v4883
        %v4885 = vmul.f32 %v924, %v4880
        %v4886 = vmul.f32 %v924, %v4884
        %v4887 = vadd.f32 %v4875, %v4885
        %v4888 = vadd.f32 %v4876, %v4886
        %v4889 = vlaneseq
        %v4890 = vshrl.u32 %v4889, 7
        %v4891 = vsub.s32 6, %v4890
        %v4892 = vrot.slane %v4809, %v4891
        %v4893 = vlaneseq
        %v4894 = vshrl.u32 %v4893, 7
        %v4895 = vsub.s32 6, %v4894
        %v4896 = vrot.slane %v4810, %v4895
        %v4897 = vmul.f32 %v941, %v4892
        %v4898 = vmul.f32 %v941, %v4896
        %v4899 = vadd.f32 %v4887, %v4897
        %v4900 = vadd.f32 %v4888, %v4898
        %v4901 = vlaneseq
        %v4902 = vshrl.u32 %v4901, 7
        %v4903 = vsub.s32 7, %v4902
        %v4904 = vrot.slane %v4809, %v4903
        %v4905 = vlaneseq
        %v4906 = vshrl.u32 %v4905, 7
        %v4907 = vsub.s32 7, %v4906
        %v4908 = vrot.slane %v4810, %v4907
        %v4909 = vmul.f32 %v958, %v4904
        %v4910 = vmul.f32 %v958, %v4908
        %v4911 = vadd.f32 %v4899, %v4909
        %v4912 = vadd.f32 %v4900, %v4910
        %v4913 = vlaneseq
        %v4914 = vshrl.u32 %v4913, 7
        %v4915 = vsub.s32 0, %v4914
        %v4916 = vrot.slane %v4811, %v4915
        %v4917 = vlaneseq
        %v4918 = vshrl.u32 %v4917, 7
        %v4919 = vsub.s32 0, %v4918
        %v4920 = vrot.slane %v4812, %v4919
        %v4921 = vmul.f32 %v975, %v4916
        %v4922 = vmul.f32 %v975, %v4920
        %v4923 = vadd.f32 %v4911, %v4921
        %v4924 = vadd.f32 %v4912, %v4922
        %v4925 = vlaneseq
        %v4926 = vshrl.u32 %v4925, 7
        %v4927 = vsub.s32 1, %v4926
        %v4928 = vrot.slane %v4811, %v4927
        %v4929 = vlaneseq
        %v4930 = vshrl.u32 %v4929, 7
        %v4931 = vsub.s32 1, %v4930
        %v4932 = vrot.slane %v4812, %v4931
        %v4933 = vmul.f32 %v992, %v4928
        %v4934 = vmul.f32 %v992, %v4932
        %v4935 = vadd.f32 %v4923, %v4933
        %v4936 = vadd.f32 %v4924, %v4934
        %v4937 = vlaneseq
        %v4938 = vshrl.u32 %v4937, 7
        %v4939 = vsub.s32 2, %v4938
        %v4940 = vrot.slane %v4811, %v4939
        %v4941 = vlaneseq
        %v4942 = vshrl.u32 %v4941, 7
        %v4943 = vsub.s32 2, %v4942
        %v4944 = vrot.slane %v4812, %v4943
        %v4945 = vmul.f32 %v1009, %v4940
        %v4946 = vmul.f32 %v1009, %v4944
        %v4947 = vadd.f32 %v4935, %v4945
        %v4948 = vadd.f32 %v4936, %v4946
        %v4949 = vlaneseq
        %v4950 = vshrl.u32 %v4949, 7
        %v4951 = vsub.s32 3, %v4950
        %v4952 = vrot.slane %v4811, %v4951
        %v4953 = vlaneseq
        %v4954 = vshrl.u32 %v4953, 7
        %v4955 = vsub.s32 3, %v4954
        %v4956 = vrot.slane %v4812, %v4955
        %v4957 = vmul.f32 %v1026, %v4952
        %v4958 = vmul.f32 %v1026, %v4956
        %v4959 = vadd.f32 %v4947, %v4957
        %v4960 = vadd.f32 %v4948, %v4958
        %v4961 = vlaneseq
        %v4962 = vshrl.u32 %v4961, 7
        %v4963 = vsub.s32 4, %v4962
        %v4964 = vrot.slane %v4811, %v4963
        %v4965 = vlaneseq
        %v4966 = vshrl.u32 %v4965, 7
        %v4967 = vsub.s32 4, %v4966
        %v4968 = vrot.slane %v4812, %v4967
        %v4969 = vmul.f32 %v1043, %v4964
        %v4970 = vmul.f32 %v1043, %v4968
        %v4971 = vadd.f32 %v4959, %v4969
        %v4972 = vadd.f32 %v4960, %v4970
        %v4973 = vlaneseq
        %v4974 = vshrl.u32 %v4973, 7
        %v4975 = vsub.s32 5, %v4974
        %v4976 = vrot.slane %v4811, %v4975
        %v4977 = vlaneseq
        %v4978 = vshrl.u32 %v4977, 7
        %v4979 = vsub.s32 5, %v4978
        %v4980 = vrot.slane %v4812, %v4979
        %v4981 = vmul.f32 %v1060, %v4976
        %v4982 = vmul.f32 %v1060, %v4980
        %v4983 = vadd.f32 %v4971, %v4981
        %v4984 = vadd.f32 %v4972, %v4982
        %v4985 = vlaneseq
        %v4986 = vshrl.u32 %v4985, 7
        %v4987 = vsub.s32 6, %v4986
        %v4988 = vrot.slane %v4811, %v4987
        %v4989 = vlaneseq
        %v4990 = vshrl.u32 %v4989, 7
        %v4991 = vsub.s32 6, %v4990
        %v4992 = vrot.slane %v4812, %v4991
        %v4993 = vmul.f32 %v1077, %v4988
        %v4994 = vmul.f32 %v1077, %v4992
        %v4995 = vadd.f32 %v4983, %v4993
        %v4996 = vadd.f32 %v4984, %v4994
        %v4997 = vlaneseq
        %v4998 = vshrl.u32 %v4997, 7
        %v4999 = vsub.s32 7, %v4998
        %v5000 = vrot.slane %v4811, %v4999
        %v5001 = vlaneseq
        %v5002 = vshrl.u32 %v5001, 7
        %v5003 = vsub.s32 7, %v5002
        %v5004 = vrot.slane %v4812, %v5003
        %v5005 = vmul.f32 %v1094, %v5000
        %v5006 = vmul.f32 %v1094, %v5004
        %v5007 = vadd.f32 %v4995, %v5005
        %v5008 = vadd.f32 %v4996, %v5006
        %v5009 = vlaneseq
        %v5010 = vshrl.u32 %v5009, 7
        %v5011 = vsub.s32 0, %v5010
        %v5012 = vrot.slane %v4813, %v5011
        %v5013 = vlaneseq
        %v5014 = vshrl.u32 %v5013, 7
        %v5015 = vsub.s32 0, %v5014
        %v5016 = vrot.slane %v4814, %v5015
        %v5017 = vmul.f32 %v1111, %v5012
        %v5018 = vmul.f32 %v1111, %v5016
        %v5019 = vadd.f32 %v5007, %v5017
        %v5020 = vadd.f32 %v5008, %v5018
        %v5021 = vlaneseq
        %v5022 = vshrl.u32 %v5021, 7
        %v5023 = vsub.s32 1, %v5022
        %v5024 = vrot.slane %v4813, %v5023
        %v5025 = vlaneseq
        %v5026 = vshrl.u32 %v5025, 7
        %v5027 = vsub.s32 1, %v5026
        %v5028 = vrot.slane %v4814, %v5027
        %v5029 = vmul.f32 %v1128, %v5024
        %v5030 = vmul.f32 %v1128, %v5028
        %v5031 = vadd.f32 %v5019, %v5029
        %v5032 = vadd.f32 %v5020, %v5030
        %v5033 = vlaneseq
        %v5034 = vshrl.u32 %v5033, 7
        %v5035 = vsub.s32 2, %v5034
        %v5036 = vrot.slane %v4813, %v5035
        %v5037 = vlaneseq
        %v5038 = vshrl.u32 %v5037, 7
        %v5039 = vsub.s32 2, %v5038
        %v5040 = vrot.slane %v4814, %v5039
        %v5041 = vmul.f32 %v1145, %v5036
        %v5042 = vmul.f32 %v1145, %v5040
        %v5043 = vadd.f32 %v5031, %v5041
        %v5044 = vadd.f32 %v5032, %v5042
        %v5045 = vlaneseq
        %v5046 = vshrl.u32 %v5045, 7
        %v5047 = vsub.s32 3, %v5046
        %v5048 = vrot.slane %v4813, %v5047
        %v5049 = vlaneseq
        %v5050 = vshrl.u32 %v5049, 7
        %v5051 = vsub.s32 3, %v5050
        %v5052 = vrot.slane %v4814, %v5051
        %v5053 = vmul.f32 %v1162, %v5048
        %v5054 = vmul.f32 %v1162, %v5052
        %v5055 = vadd.f32 %v5043, %v5053
        %v5056 = vadd.f32 %v5044, %v5054
        %v5057 = vlaneseq
        %v5058 = vshrl.u32 %v5057, 7
        %v5059 = vsub.s32 4, %v5058
        %v5060 = vrot.slane %v4813, %v5059
        %v5061 = vlaneseq
        %v5062 = vshrl.u32 %v5061, 7
        %v5063 = vsub.s32 4, %v5062
        %v5064 = vrot.slane %v4814, %v5063
        %v5065 = vmul.f32 %v1179, %v5060
        %v5066 = vmul.f32 %v1179, %v5064
        %v5067 = vadd.f32 %v5055, %v5065
        %v5068 = vadd.f32 %v5056, %v5066
        %v5069 = vlaneseq
        %v5070 = vshrl.u32 %v5069, 7
        %v5071 = vsub.s32 5, %v5070
        %v5072 = vrot.slane %v4813, %v5071
        %v5073 = vlaneseq
        %v5074 = vshrl.u32 %v5073, 7
        %v5075 = vsub.s32 5, %v5074
        %v5076 = vrot.slane %v4814, %v5075
        %v5077 = vmul.f32 %v1196, %v5072
        %v5078 = vmul.f32 %v1196, %v5076
        %v5079 = vadd.f32 %v5067, %v5077
        %v5080 = vadd.f32 %v5068, %v5078
        %v5081 = vlaneseq
        %v5082 = vshrl.u32 %v5081, 7
        %v5083 = vsub.s32 6, %v5082
        %v5084 = vrot.slane %v4813, %v5083
        %v5085 = vlaneseq
        %v5086 = vshrl.u32 %v5085, 7
        %v5087 = vsub.s32 6, %v5086
        %v5088 = vrot.slane %v4814, %v5087
        %v5089 = vmul.f32 %v1213, %v5084
        %v5090 = vmul.f32 %v1213, %v5088
        %v5091 = vadd.f32 %v5079, %v5089
        %v5092 = vadd.f32 %v5080, %v5090
        %v5093 = vlaneseq
        %v5094 = vshrl.u32 %v5093, 7
        %v5095 = vsub.s32 7, %v5094
        %v5096 = vrot.slane %v4813, %v5095
        %v5097 = vlaneseq
        %v5098 = vshrl.u32 %v5097, 7
        %v5099 = vsub.s32 7, %v5098
        %v5100 = vrot.slane %v4814, %v5099
        %v5101 = vmul.f32 %v1230, %v5096
        %v5102 = vmul.f32 %v1230, %v5100
        %v5103 = vadd.f32 %v5091, %v5101
        %v5104 = vadd.f32 %v5092, %v5102
        %v5105 = vlaneseq
        %v5106 = vshrl.u32 %v5105, 7
        %v5107 = vsub.s32 0, %v5106
        %v5108 = vrot.slane %v4815, %v5107
        %v5109 = vlaneseq
        %v5110 = vshrl.u32 %v5109, 7
        %v5111 = vsub.s32 0, %v5110
        %v5112 = vrot.slane %v4816, %v5111
        %v5113 = vmul.f32 %v1247, %v5108
        %v5114 = vmul.f32 %v1247, %v5112
        %v5115 = vadd.f32 %v5103, %v5113
        %v5116 = vadd.f32 %v5104, %v5114
        %v5117 = vlaneseq
        %v5118 = vshrl.u32 %v5117, 7
        %v5119 = vsub.s32 1, %v5118
        %v5120 = vrot.slane %v4815, %v5119
        %v5121 = vlaneseq
        %v5122 = vshrl.u32 %v5121, 7
        %v5123 = vsub.s32 1, %v5122
        %v5124 = vrot.slane %v4816, %v5123
        %v5125 = vmul.f32 %v1264, %v5120
        %v5126 = vmul.f32 %v1264, %v5124
        %v5127 = vadd.f32 %v5115, %v5125
        %v5128 = vadd.f32 %v5116, %v5126
        %v5129 = vlaneseq
        %v5130 = vshrl.u32 %v5129, 7
        %v5131 = vsub.s32 2, %v5130
        %v5132 = vrot.slane %v4815, %v5131
        %v5133 = vlaneseq
        %v5134 = vshrl.u32 %v5133, 7
        %v5135 = vsub.s32 2, %v5134
        %v5136 = vrot.slane %v4816, %v5135
        %v5137 = vmul.f32 %v1281, %v5132
        %v5138 = vmul.f32 %v1281, %v5136
        %v5139 = vadd.f32 %v5127, %v5137
        %v5140 = vadd.f32 %v5128, %v5138
        %v5141 = vlaneseq
        %v5142 = vshrl.u32 %v5141, 7
        %v5143 = vsub.s32 3, %v5142
        %v5144 = vrot.slane %v4815, %v5143
        %v5145 = vlaneseq
        %v5146 = vshrl.u32 %v5145, 7
        %v5147 = vsub.s32 3, %v5146
        %v5148 = vrot.slane %v4816, %v5147
        %v5149 = vmul.f32 %v1298, %v5144
        %v5150 = vmul.f32 %v1298, %v5148
        %v5151 = vadd.f32 %v5139, %v5149
        %v5152 = vadd.f32 %v5140, %v5150
        %v5153 = vlaneseq
        %v5154 = vshrl.u32 %v5153, 7
        %v5155 = vsub.s32 4, %v5154
        %v5156 = vrot.slane %v4815, %v5155
        %v5157 = vlaneseq
        %v5158 = vshrl.u32 %v5157, 7
        %v5159 = vsub.s32 4, %v5158
        %v5160 = vrot.slane %v4816, %v5159
        %v5161 = vmul.f32 %v1315, %v5156
        %v5162 = vmul.f32 %v1315, %v5160
        %v5163 = vadd.f32 %v5151, %v5161
        %v5164 = vadd.f32 %v5152, %v5162
        %v5165 = vlaneseq
        %v5166 = vshrl.u32 %v5165, 7
        %v5167 = vsub.s32 5, %v5166
        %v5168 = vrot.slane %v4815, %v5167
        %v5169 = vlaneseq
        %v5170 = vshrl.u32 %v5169, 7
        %v5171 = vsub.s32 5, %v5170
        %v5172 = vrot.slane %v4816, %v5171
        %v5173 = vmul.f32 %v1332, %v5168
        %v5174 = vmul.f32 %v1332, %v5172
        %v5175 = vadd.f32 %v5163, %v5173
        %v5176 = vadd.f32 %v5164, %v5174
        %v5177 = vlaneseq
        %v5178 = vshrl.u32 %v5177, 7
        %v5179 = vsub.s32 6, %v5178
        %v5180 = vrot.slane %v4815, %v5179
        %v5181 = vlaneseq
        %v5182 = vshrl.u32 %v5181, 7
        %v5183 = vsub.s32 6, %v5182
        %v5184 = vrot.slane %v4816, %v5183
        %v5185 = vmul.f32 %v1349, %v5180
        %v5186 = vmul.f32 %v1349, %v5184
        %v5187 = vadd.f32 %v5175, %v5185
        %v5188 = vadd.f32 %v5176, %v5186
        %v5189 = vlaneseq
        %v5190 = vshrl.u32 %v5189, 7
        %v5191 = vsub.s32 7, %v5190
        %v5192 = vrot.slane %v4815, %v5191
        %v5193 = vlaneseq
        %v5194 = vshrl.u32 %v5193, 7
        %v5195 = vsub.s32 7, %v5194
        %v5196 = vrot.slane %v4816, %v5195
        %v5197 = vmul.f32 %v1366, %v5192
        %v5198 = vmul.f32 %v1366, %v5196
        %v5199 = vadd.f32 %v5187, %v5197
        %v5200 = vadd.f32 %v5188, %v5198
        %s5201 = sld [smem:[#allocation2]]
        %v5202 = vstv %s5201
        %v5203 = vmul.f32 %v4673, %v5202
        %s5204 = sld [smem:[#allocation5]]
        %v5205 = vstv %s5204
        %v5206 = vmul.f32 %v5205, %v5199
        %v5207 = vmul.f32 %v5205, %v5200
        %v5210 = vcombine.low %v5206, %v5207
        %v5212 = vsub.f32 %v5203, %v5210
        %s5213 = sld [smem:[#allocation7]]
        %v5214 = vld [vmem:[%s486] sm:$0x77]
        %v5215 = vstv %s5213
        %v5216 = vmul.f32 %v5215, %v5214
        %v5217 = vadd.f32 %v5212, %v5216
        %5218 = vst [vmem:[%s530] sm:$0x77] %v5217
        %s5219 = sand.u32 %s259, 1
        %s5220 = scalar_lea.sflag [#allocation3], %s5219
        %s5221 = sand.u32 %s259, 1
        %s5222 = smul.addr %s5221, 8
        %s5223 = scalar_lea.vmem [#allocation10], %s5222
        // Predicated region
        $region134: #{tpu_custom_call.1} parent=112 // pred_check
          %p5224 = pneg %p269
        $region135: #{tpu_custom_call.1} parent=112 // pred_check_branch
          %5226 = sbr.rel (%p5224) target = $region137
        $region136: #{tpu_custom_call.1} parent=112 // pred_region
          %s5227 = smul.u32 2, %s26
          %s5229 = ssub.s32 128, 128
          %5230 = vsyncadd %s5220, %s5229
          %s5231 = smul.addr %s5227, 64
          %s5232 = scalar_lea.hbm %s10, %s5231
          %s5234 = sshll.u32 %s5223, 4
          %s5235 = int_to_ptr.vmem [resolvable:$true] %s5234
          %5237 = dma.vmem_to_hbm [thread:$0]  %s5235, 128, %s5232, %s5220
        $region137: #{tpu_custom_call.1} parent=112 // pred_fallthru
          _
      $region113: #{tpu_custom_call.1} parent=5 // pred_fallthru
        _
      %p5238 = scmp.le.s32.totalorder 2, %s21
      // Predicated region
      $region138: #{tpu_custom_call.1} parent=5 // pred_check
        %p5239 = pneg %p5238
      $region139: #{tpu_custom_call.1} parent=5 // pred_check_branch
        %5241 = sbr.rel (%p5239) target = $region141
      $region140: #{tpu_custom_call.1} parent=5 // pred_region
        %s5242 = ssub.s32 %s21, 2
        // Predicated region
        $region142: #{tpu_custom_call.1} parent=140 // pred_check
          %p5243 = pneg %p275
        $region143: #{tpu_custom_call.1} parent=140 // pred_check_branch
          %5245 = sbr.rel (%p5243) target = $region145
        $region144: #{tpu_custom_call.1} parent=140 // pred_region
          %s5246 = sand.u32 %s260, 1
          %s5247 = scalar_lea.sflag [#allocation3], %s5246
          %s5248 = sand.u32 %s260, 1
          %s5249 = smul.addr %s5248, 8
          %s5250 = scalar_lea.vmem [#allocation10], %s5249
          %5251 = dma.done %s5247, 128
        $region145: #{tpu_custom_call.1} parent=140 // pred_fallthru
          _
      $region141: #{tpu_custom_call.1} parent=5 // pred_fallthru
        _
    $region6: #{tpu_custom_call.1} parent=1 // loop_footer
      %s25 = sadd.s32 1, %s21
    $region7: #{tpu_custom_call.1} parent=1 // loop_footer_branch
      %20 = sbr.rel target = $region3
    $region8: #{tpu_custom_call.1} parent=1 // loop_exit
      _
    %5252 = vsyncpa [#allocation3], 1
    %s5253 = scalar_lea.sflag [#allocation3], 1
    %5254 = vsyncpa %s5253, 1
    %5255 = vsyncpa [#allocation4], 1
    %s5256 = scalar_lea.sflag [#allocation4], 1
    %5257 = vsyncpa %s5256, 1
    %5258 = vsyncpa [#allocation6], 1

</llo_original>
